<compile_context>
chip_gen: v7x
topology: tpu7x:2x2x1
jax: 0.10.0
libtpu: 0.0.40
codegen_flags: <defaults>
</compile_context>

<pallas_src>
import functools
import math

import numpy as np

import jax
import jax.numpy as jnp
from jax.experimental import pallas as pl
from jax.experimental.pallas import tpu as pltpu

_LANE = 128
_SUB = 8
_BN_EPS = 1e-5

SETTING = [[1, 16, 1, 1], [6, 24, 2, 2], [6, 32, 2, 2], [6, 64, 2, 2],
           [6, 96, 2, 2], [6, 160, 2, 1], [6, 320, 2, 1]]
SHORT_CUT_IN = "2"
SHORT_CUT_OUT = "2"
NUM_CLASSES = 2
SEG_IN_C = 24


def _ceil_to(x, m):
    return ((x + m - 1) // m) * m


# ---------------------------------------------------------------------------
# Pallas kernel:  out = act(x @ w + b)   (single K step, N-tiled grid)
# ---------------------------------------------------------------------------
def _fused_matmul_kernel(x_ref, w_ref, b_ref, o_ref, *, act):
    y = jnp.dot(x_ref[...], w_ref[...], preferred_element_type=jnp.float32)
    y = y + b_ref[...]
    if act == "relu6":
        y = jnp.clip(y, 0.0, 6.0)
    o_ref[...] = y.astype(o_ref.dtype)


def fused_matmul(x, w_pad, b_pad, n_out, act=None, out_dtype=jnp.float32):
    """x:(M,K) @ w_pad:(Kp,Np) + b_pad:(1,Np); returns (M, n_out) in out_dtype.

    w_pad / b_pad are pre-padded (lane-aligned) static operands; x is padded
    here only if its shape is not already (Mp, Kp)-aligned.
    """
    M, K = x.shape
    Kp, Np = w_pad.shape
    Mp = _ceil_to(max(M, _SUB), _SUB)

    x = x.astype(w_pad.dtype)
    if (Mp, Kp) != (M, K):
        x = jnp.pad(x, ((0, Mp - M), (0, Kp - K)))

    tn = 256 if (Np % 256 == 0) else _LANE

    out = pl.pallas_call(
        functools.partial(_fused_matmul_kernel, act=act),
        out_shape=jax.ShapeDtypeStruct((Mp, Np), out_dtype),
        grid_spec=pltpu.PrefetchScalarGridSpec(
            num_scalar_prefetch=0,
            grid=(Np // tn,),
            in_specs=[
                pl.BlockSpec((Mp, Kp), lambda j: (0, 0)),   # x resident in VMEM
                pl.BlockSpec((Kp, tn), lambda j: (0, j)),
                pl.BlockSpec((1, tn), lambda j: (0, j)),
            ],
            out_specs=pl.BlockSpec((Mp, tn), lambda j: (0, j)),
        ),
        compiler_params=pltpu.CompilerParams(
            dimension_semantics=("parallel",)),
    )(x, w_pad, b_pad)
    return out[:M, :n_out]


# ---------------------------------------------------------------------------
# Conv / resize glue (layout plumbing); all matmuls go through the kernel
# ---------------------------------------------------------------------------
def _im2col_3x3(x, stride):
    """stride must be a static Python int."""
    n, h, w, c = x.shape
    xp = jnp.pad(x, ((0, 0), (1, 1), (1, 1), (0, 0)))
    ho = (h - 1) // stride + 1
    wo = (w - 1) // stride + 1
    cols = []
    for dh in range(3):
        for dw in range(3):
            cols.append(xp[:, dh:dh + stride * (ho - 1) + 1:stride,
                           dw:dw + stride * (wo - 1) + 1:stride, :])
    cols = jnp.concatenate(cols, axis=-1)          # K ordered (kh, kw, c)
    return cols.reshape(n * ho * wo, 9 * c), (n, ho, wo)


def conv3x3(x, wb, stride, n_out, act, out_dtype=jnp.bfloat16):
    cols, (n, ho, wo) = _im2col_3x3(x, stride)
    y = fused_matmul(cols, wb["w"], wb["b"], n_out, act=act, out_dtype=out_dtype)
    return y.reshape(n, ho, wo, n_out)


def conv1x1(x, wb, n_out, act, out_dtype=jnp.bfloat16):
    n, h, w, c = x.shape
    y = fused_matmul(x.reshape(n * h * w, c), wb["w"], wb["b"], n_out,
                     act=act, out_dtype=out_dtype)
    return y.reshape(n, h, w, n_out)


def _interp_matrix_np(out_size, in_size):
    A = np.zeros((out_size, in_size), np.float32)
    if in_size == 1:
        A[:, 0] = 1.0
        return A
    if out_size == 1:
        A[0, 0] = 1.0
        return A
    pos = np.arange(out_size, dtype=np.float64) * ((in_size - 1) / (out_size - 1))
    lo = np.clip(np.floor(pos).astype(np.int64), 0, in_size - 2)
    frac = (pos - lo).astype(np.float32)
    rows = np.arange(out_size)
    A[rows, lo] += 1.0 - frac
    A[rows, lo + 1] += frac
    return A


def bilinear_resize_nhwc(x, out_h, out_w):
    """F.interpolate(mode='bilinear', align_corners=True) as one fused matmul."""
    n, h, w, c = x.shape
    if (out_h, out_w) == (h, w):
        return x                                    # identity resize
    A = np.kron(_interp_matrix_np(out_h, h), _interp_matrix_np(out_w, w))
    w_mat = A.T.astype(np.float32)                  # (h*w, out_h*out_w)
    K, N = w_mat.shape
    Kp, Np = _ceil_to(K, _LANE), _ceil_to(N, _LANE)
    wp = np.zeros((Kp, Np), np.float32)
    wp[:K, :N] = w_mat
    bp = np.zeros((1, Np), np.float32)
    xf = jnp.transpose(x, (0, 3, 1, 2)).reshape(n * c, h * w).astype(jnp.float32)
    y = fused_matmul(xf, jnp.asarray(wp), jnp.asarray(bp), N,
                     act=None, out_dtype=jnp.float32)
    y = y.reshape(n, c, out_h, out_w)
    return jnp.transpose(y, (0, 2, 3, 1))


# ---------------------------------------------------------------------------
# Parameter prep (BN folded into weights, padded once, bf16 for MXU)
# ---------------------------------------------------------------------------
def _pad_wb(w_mat, bias, w_dtype=jnp.bfloat16):
    K, N = w_mat.shape
    Kp, Np = _ceil_to(K, _LANE), _ceil_to(N, _LANE)
    wp = jnp.zeros((Kp, Np), w_dtype).at[:K, :N].set(w_mat.astype(w_dtype))
    bp = jnp.zeros((1, Np), jnp.float32).at[0, :N].set(bias.astype(jnp.float32))
    return {"w": wp, "b": bp}


def _conv_bn_weights(key, in_c, out_c, k=3):
    std = math.sqrt(2.0 / (k * k * out_c))
    wt = jax.random.normal(key, (out_c, in_c, k, k), jnp.float32) * std
    # BN eval mode with default running stats: gamma=1, beta=0, mean=0, var=1.
    scale = jnp.full((out_c,), 1.0 / math.sqrt(1.0 + _BN_EPS), jnp.float32)
    bias = jnp.zeros((out_c,), jnp.float32)
    return wt, scale, bias


def _prep_full3x3(wt, scale, bias):
    o, c = wt.shape[0], wt.shape[1]
    w_mat = jnp.transpose(wt, (2, 3, 1, 0)).reshape(9 * c, o) * scale[None, :]
    return _pad_wb(w_mat, bias)


def _prep_center3x3(wt, scale, bias):
    w_mat = wt[:, :, 1, 1].T * scale[None, :]       # only center tap matters
    return _pad_wb(w_mat, bias)


def _prep_1x1(wt, scale, bias):
    o, c = wt.shape[0], wt.shape[1]
    w_mat = wt.reshape(o, c).T * scale[None, :]
    return _pad_wb(w_mat, bias)


def build_model(key, in_hw=(32, 32)):
    """Returns (static cfg with Python ints/bools, params pytree of arrays)."""
    keys = iter(jax.random.split(key, 64))
    cfg = {"short_cut_in": SHORT_CUT_IN, "short_cut_out": SHORT_CUT_OUT,
           "stem_out": 32, "seg_mid": SEG_IN_C, "num_classes": NUM_CLASSES,
           "stages": {}}
    params = {"features": {}}

    def out_hw(h, w, s):
        return (h - 1) // s + 1, (w - 1) // s + 1

    h, w = in_hw
    # stem: conv_bn(3, 32, stride=2)
    wt, sc, bs = _conv_bn_weights(next(keys), 3, 32)
    params["stem"] = _prep_full3x3(wt, sc, bs)
    h, w = out_hw(h, w, 2)

    in_c = 32
    for idx, (t, c, n, s) in enumerate(SETTING):   # t unused (conv_type='normal')
        num = idx + 1
        blk_cfgs, blk_params = [], []
        for i in range(n):
            stride = s if i == 0 else 1
            ic = in_c + 2 if (i == 0 and num == int(SHORT_CUT_OUT) + 1) else in_c
            center = (h == 1 and w == 1)            # pad=1 -> only center tap
            wt, sc, bs = _conv_bn_weights(next(keys), ic, c)
            blk_params.append(_prep_center3x3(wt, sc, bs) if center
                              else _prep_full3x3(wt, sc, bs))
            blk_cfgs.append({"stride": stride, "center": center, "n_out": c})
            h, w = out_hw(h, w, stride)
            in_c = c
        cfg["stages"][str(num)] = blk_cfgs
        params["features"][str(num)] = blk_params

    # TODO(synk): BaHeadBase_ is not defined in the reference source; modelled
    # as conv3x3-BN-ReLU6(24->24) followed by a bias-only 1x1 conv to 2 chans.
    wt, sc, bs = _conv_bn_weights(next(keys), SEG_IN_C, SEG_IN_C)
    params["seg_c1"] = _prep_full3x3(wt, sc, bs)
    w2 = jax.random.normal(next(keys), (NUM_CLASSES, SEG_IN_C, 1, 1),
                           jnp.float32) * math.sqrt(2.0 / NUM_CLASSES)
    params["seg_c2"] = _prep_1x1(w2, jnp.ones((NUM_CLASSES,), jnp.float32),
                                 jnp.zeros((NUM_CLASSES,), jnp.float32))

    # last_channel: conv_1x1_bn(320, 1280)
    wl = jax.random.normal(next(keys), (1280, 320, 1, 1), jnp.float32) \
        * math.sqrt(2.0 / 1280.0)
    params["last_channel"] = _prep_1x1(
        wl, jnp.full((1280,), 1.0 / math.sqrt(1.0 + _BN_EPS), jnp.float32),
        jnp.zeros((1280,), jnp.float32))

    # head: Linear(1280, num_classes)
    wh = jax.random.normal(next(keys), (NUM_CLASSES, 1280), jnp.float32) * 0.01
    params["head"] = _pad_wb(wh.T, jnp.zeros((NUM_CLASSES,), jnp.float32))
    return cfg, params


# ---------------------------------------------------------------------------
# Forward (semantics of MbSegDec.forward with the module defaults)
# ---------------------------------------------------------------------------
def make_forward(cfg):
    def forward(params, x_nchw):
        row_, col_ = x_nchw.shape[2], x_nchw.shape[3]
        x = jnp.transpose(x_nchw, (0, 2, 3, 1)).astype(jnp.bfloat16)   # NHWC

        data = conv3x3(x, params["stem"], stride=2,
                       n_out=cfg["stem_out"], act="relu6")
        seg_output = None
        for key in [str(i) for i in range(1, 8)]:
            for bcfg, bpar in zip(cfg["stages"][key], params["features"][key]):
                if bcfg["center"]:
                    data = conv1x1(data, bpar, n_out=bcfg["n_out"], act="relu6")
                else:
                    data = conv3x3(data, bpar, stride=bcfg["stride"],
                                   n_out=bcfg["n_out"], act="relu6")
            if key == cfg["short_cut_in"]:
                s = conv3x3(data, params["seg_c1"], stride=1,
                            n_out=cfg["seg_mid"], act="relu6")
                seg_output = conv1x1(s, params["seg_c2"],
                                     n_out=cfg["num_classes"], act=None,
                                     out_dtype=jnp.float32)
            if key == cfg["short_cut_out"]:
                row, col = data.shape[1], data.shape[2]
                seg_output = bilinear_resize_nhwc(seg_output, row, col)
                data = jnp.concatenate(
                    [data, seg_output.astype(data.dtype)], axis=-1)

        data = conv1x1(data, params["last_channel"], n_out=1280, act="relu6")
        pooled = jnp.mean(data.astype(jnp.float32), axis=(1, 2))   # avg_pool(1)
        cls_out = fused_matmul(pooled, params["head"]["w"], params["head"]["b"],
                               n_out=cfg["num_classes"], act=None,
                               out_dtype=jnp.float32)

        seg_final = bilinear_resize_nhwc(seg_output, row_, col_)
        seg_final = jnp.transpose(seg_final, (0, 3, 1, 2)).astype(jnp.float32)
        return seg_final, cls_out
    return forward


if __name__ == "__main__":
    key = jax.random.PRNGKey(0)
    pkey, xkey = jax.random.split(key)
    cfg, params = build_model(pkey, in_hw=(32, 32))
    x = jax.random.normal(xkey, (2, 3, 32, 32), jnp.float32)   # NCHW like torch

    fwd = jax.jit(make_forward(cfg))
    seg, cls = fwd(params, x)
    jax.block_until_ready((seg, cls))

    assert seg.shape == (2, 2, 32, 32), seg.shape
    assert cls.shape == (2, 2), cls.shape
    print("KERNEL_OK")
</pallas_src>

<mosaic_0001>
module attributes {stable_mosaic.version = 11 : i64} {
  func.func @_fused_matmul_kernel(%arg0: i32, %arg1: memref<512x128xbf16, #tpu.memory_space<vmem>>, %arg2: memref<128x128xbf16, #tpu.memory_space<vmem>>, %arg3: memref<1x128xf32, #tpu.memory_space<vmem>>, %arg4: memref<512x128xbf16, #tpu.memory_space<vmem>>) attributes {dimension_semantics = [#tpu.dimension_semantics<parallel>], iteration_bounds = array<i64: 1>, scalar_prefetch = 0 : i64, scratch_operands = 0 : i64, tpu.core_type = #tpu.core_type<tc>, window_params = [{pipeline_mode = #tpu.pipeline_mode<synchronous>, transform_indices = @transform_0, window_bounds = array<i64: 512, 128>}, {transform_indices = @transform_1, window_bounds = array<i64: 128, 128>}, {transform_indices = @transform_2, window_bounds = array<i64: 1, 128>}, {transform_indices = @transform_3, window_bounds = array<i64: 512, 128>}]} {
    %c0 = arith.constant 0 : index
    %c0_0 = arith.constant 0 : index
    %0 = vector.load %arg1[%c0, %c0_0] : memref<512x128xbf16, #tpu.memory_space<vmem>>, vector<512x128xbf16>
    %c0_1 = arith.constant 0 : index
    %c0_2 = arith.constant 0 : index
    %1 = vector.load %arg2[%c0_1, %c0_2] : memref<128x128xbf16, #tpu.memory_space<vmem>>, vector<128x128xbf16>
    %cst = arith.constant dense<0.000000e+00> : vector<512x128xf32>
    %2 = tpu.matmul %0, %1, %cst {dimension_numbers = #tpu.dot_dimension_numbers<[1], [0], [0], [1], [0, 0, 1, 1], [], []>} : vector<512x128xbf16>, vector<128x128xbf16>, vector<512x128xf32> -> vector<512x128xf32>
    %c0_3 = arith.constant 0 : index
    %c0_4 = arith.constant 0 : index
    %3 = vector.load %arg3[%c0_3, %c0_4] : memref<1x128xf32, #tpu.memory_space<vmem>>, vector<1x128xf32>
    %4 = vector.broadcast %3 : vector<1x128xf32> to vector<512x128xf32>
    %5 = arith.addf %2, %4 : vector<512x128xf32>
    %cst_5 = arith.constant 0.000000e+00 : f32
    %cst_6 = arith.constant 6.000000e+00 : f32
    %6 = vector.broadcast %cst_5 : f32 to vector<512x128xf32>
    %7 = arith.maximumf %6, %5 : vector<512x128xf32>
    %8 = vector.broadcast %cst_6 : f32 to vector<512x128xf32>
    %9 = arith.minimumf %8, %7 : vector<512x128xf32>
    %10 = arith.truncf %9 : vector<512x128xf32> to vector<512x128xbf16>
    %c0_7 = arith.constant 0 : index
    %c0_8 = arith.constant 0 : index
    %11 = vector.load %arg4[%c0_7, %c0_8] : memref<512x128xbf16, #tpu.memory_space<vmem>>, vector<512x128xbf16>
    tpu.vector_store %arg4[%c0_7, %c0_8], %10 {strides = array<i32>} : memref<512x128xbf16, #tpu.memory_space<vmem>>, vector<512x128xbf16>,
    return
  }
  func.func @transform_0(%arg0: i32) -> (i32, i32) {
    %c0_i32 = arith.constant 0 : i32
    %c0_i32_0 = arith.constant 0 : i32
    %c0_i32_1 = arith.constant 0 : i32
    return %c0_i32, %c0_i32_0 : i32, i32
  }
  func.func @transform_1(%arg0: i32) -> (i32, i32) {
    %c0_i32 = arith.constant 0 : i32
    %c0_i32_0 = arith.constant 0 : i32
    return %c0_i32, %arg0 : i32, i32
  }
  func.func @transform_2(%arg0: i32) -> (i32, i32) {
    %c0_i32 = arith.constant 0 : i32
    %c0_i32_0 = arith.constant 0 : i32
    return %c0_i32, %arg0 : i32, i32
  }
  func.func @transform_3(%arg0: i32) -> (i32, i32) {
    %c0_i32 = arith.constant 0 : i32
    %c0_i32_0 = arith.constant 0 : i32
    return %c0_i32, %arg0 : i32, i32
  }
}

module attributes {stable_mosaic.version = 11 : i64} {
  func.func @_fused_matmul_kernel(%arg0: i32, %arg1: memref<512x384xbf16, #tpu.memory_space<vmem>>, %arg2: memref<384x128xbf16, #tpu.memory_space<vmem>>, %arg3: memref<1x128xf32, #tpu.memory_space<vmem>>, %arg4: memref<512x128xbf16, #tpu.memory_space<vmem>>) attributes {dimension_semantics = [#tpu.dimension_semantics<parallel>], iteration_bounds = array<i64: 1>, scalar_prefetch = 0 : i64, scratch_operands = 0 : i64, tpu.core_type = #tpu.core_type<tc>, window_params = [{pipeline_mode = #tpu.pipeline_mode<synchronous>, transform_indices = @transform_0, window_bounds = array<i64: 512, 384>}, {transform_indices = @transform_1, window_bounds = array<i64: 384, 128>}, {transform_indices = @transform_2, window_bounds = array<i64: 1, 128>}, {transform_indices = @transform_3, window_bounds = array<i64: 512, 128>}]} {
    %c0 = arith.constant 0 : index
    %c0_0 = arith.constant 0 : index
    %0 = vector.load %arg1[%c0, %c0_0] : memref<512x384xbf16, #tpu.memory_space<vmem>>, vector<512x384xbf16>
    %c0_1 = arith.constant 0 : index
    %c0_2 = arith.constant 0 : index
    %1 = vector.load %arg2[%c0_1, %c0_2] : memref<384x128xbf16, #tpu.memory_space<vmem>>, vector<384x128xbf16>
    %cst = arith.constant dense<0.000000e+00> : vector<512x128xf32>
    %2 = tpu.matmul %0, %1, %cst {dimension_numbers = #tpu.dot_dimension_numbers<[1], [0], [0], [1], [0, 0, 1, 1], [], []>} : vector<512x384xbf16>, vector<384x128xbf16>, vector<512x128xf32> -> vector<512x128xf32>
    %c0_3 = arith.constant 0 : index
    %c0_4 = arith.constant 0 : index
    %3 = vector.load %arg3[%c0_3, %c0_4] : memref<1x128xf32, #tpu.memory_space<vmem>>, vector<1x128xf32>
    %4 = vector.broadcast %3 : vector<1x128xf32> to vector<512x128xf32>
    %5 = arith.addf %2, %4 : vector<512x128xf32>
    %cst_5 = arith.constant 0.000000e+00 : f32
    %cst_6 = arith.constant 6.000000e+00 : f32
    %6 = vector.broadcast %cst_5 : f32 to vector<512x128xf32>
    %7 = arith.maximumf %6, %5 : vector<512x128xf32>
    %8 = vector.broadcast %cst_6 : f32 to vector<512x128xf32>
    %9 = arith.minimumf %8, %7 : vector<512x128xf32>
    %10 = arith.truncf %9 : vector<512x128xf32> to vector<512x128xbf16>
    %c0_7 = arith.constant 0 : index
    %c0_8 = arith.constant 0 : index
    %11 = vector.load %arg4[%c0_7, %c0_8] : memref<512x128xbf16, #tpu.memory_space<vmem>>, vector<512x128xbf16>
    tpu.vector_store %arg4[%c0_7, %c0_8], %10 {strides = array<i32>} : memref<512x128xbf16, #tpu.memory_space<vmem>>, vector<512x128xbf16>,
    return
  }
  func.func @transform_0(%arg0: i32) -> (i32, i32) {
    %c0_i32 = arith.constant 0 : i32
    %c0_i32_0 = arith.constant 0 : i32
    %c0_i32_1 = arith.constant 0 : i32
    return %c0_i32, %c0_i32_0 : i32, i32
  }
  func.func @transform_1(%arg0: i32) -> (i32, i32) {
    %c0_i32 = arith.constant 0 : i32
    %c0_i32_0 = arith.constant 0 : i32
    return %c0_i32, %arg0 : i32, i32
  }
  func.func @transform_2(%arg0: i32) -> (i32, i32) {
    %c0_i32 = arith.constant 0 : i32
    %c0_i32_0 = arith.constant 0 : i32
    return %c0_i32, %arg0 : i32, i32
  }
  func.func @transform_3(%arg0: i32) -> (i32, i32) {
    %c0_i32 = arith.constant 0 : i32
    %c0_i32_0 = arith.constant 0 : i32
    return %c0_i32, %arg0 : i32, i32
  }
}

module attributes {stable_mosaic.version = 11 : i64} {
  func.func @_fused_matmul_kernel(%arg0: i32, %arg1: memref<128x256xbf16, #tpu.memory_space<vmem>>, %arg2: memref<256x128xbf16, #tpu.memory_space<vmem>>, %arg3: memref<1x128xf32, #tpu.memory_space<vmem>>, %arg4: memref<128x128xbf16, #tpu.memory_space<vmem>>) attributes {dimension_semantics = [#tpu.dimension_semantics<parallel>], iteration_bounds = array<i64: 1>, scalar_prefetch = 0 : i64, scratch_operands = 0 : i64, tpu.core_type = #tpu.core_type<tc>, window_params = [{pipeline_mode = #tpu.pipeline_mode<synchronous>, transform_indices = @transform_0, window_bounds = array<i64: 128, 256>}, {transform_indices = @transform_1, window_bounds = array<i64: 256, 128>}, {transform_indices = @transform_2, window_bounds = array<i64: 1, 128>}, {transform_indices = @transform_3, window_bounds = array<i64: 128, 128>}]} {
    %c0 = arith.constant 0 : index
    %c0_0 = arith.constant 0 : index
    %0 = vector.load %arg1[%c0, %c0_0] : memref<128x256xbf16, #tpu.memory_space<vmem>>, vector<128x256xbf16>
    %c0_1 = arith.constant 0 : index
    %c0_2 = arith.constant 0 : index
    %1 = vector.load %arg2[%c0_1, %c0_2] : memref<256x128xbf16, #tpu.memory_space<vmem>>, vector<256x128xbf16>
    %cst = arith.constant dense<0.000000e+00> : vector<128x128xf32>
    %2 = tpu.matmul %0, %1, %cst {dimension_numbers = #tpu.dot_dimension_numbers<[1], [0], [0], [1], [0, 0, 1, 1], [], []>} : vector<128x256xbf16>, vector<256x128xbf16>, vector<128x128xf32> -> vector<128x128xf32>
    %c0_3 = arith.constant 0 : index
    %c0_4 = arith.constant 0 : index
    %3 = vector.load %arg3[%c0_3, %c0_4] : memref<1x128xf32, #tpu.memory_space<vmem>>, vector<1x128xf32>
    %4 = vector.broadcast %3 : vector<1x128xf32> to vector<128x128xf32>
    %5 = arith.addf %2, %4 : vector<128x128xf32>
    %cst_5 = arith.constant 0.000000e+00 : f32
    %cst_6 = arith.constant 6.000000e+00 : f32
    %6 = vector.broadcast %cst_5 : f32 to vector<128x128xf32>
    %7 = arith.maximumf %6, %5 : vector<128x128xf32>
    %8 = vector.broadcast %cst_6 : f32 to vector<128x128xf32>
    %9 = arith.minimumf %8, %7 : vector<128x128xf32>
    %10 = arith.truncf %9 : vector<128x128xf32> to vector<128x128xbf16>
    %c0_7 = arith.constant 0 : index
    %c0_8 = arith.constant 0 : index
    %11 = vector.load %arg4[%c0_7, %c0_8] : memref<128x128xbf16, #tpu.memory_space<vmem>>, vector<128x128xbf16>
    tpu.vector_store %arg4[%c0_7, %c0_8], %10 {strides = array<i32>} : memref<128x128xbf16, #tpu.memory_space<vmem>>, vector<128x128xbf16>,
    return
  }
  func.func @transform_0(%arg0: i32) -> (i32, i32) {
    %c0_i32 = arith.constant 0 : i32
    %c0_i32_0 = arith.constant 0 : i32
    %c0_i32_1 = arith.constant 0 : i32
    return %c0_i32, %c0_i32_0 : i32, i32
  }
  func.func @transform_1(%arg0: i32) -> (i32, i32) {
    %c0_i32 = arith.constant 0 : i32
    %c0_i32_0 = arith.constant 0 : i32
    return %c0_i32, %arg0 : i32, i32
  }
  func.func @transform_2(%arg0: i32) -> (i32, i32) {
    %c0_i32 = arith.constant 0 : i32
    %c0_i32_0 = arith.constant 0 : i32
    return %c0_i32, %arg0 : i32, i32
  }
  func.func @transform_3(%arg0: i32) -> (i32, i32) {
    %c0_i32 = arith.constant 0 : i32
    %c0_i32_0 = arith.constant 0 : i32
    return %c0_i32, %arg0 : i32, i32
  }
}

module attributes {stable_mosaic.version = 11 : i64} {
  func.func @_fused_matmul_kernel(%arg0: i32, %arg1: memref<128x128xbf16, #tpu.memory_space<vmem>>, %arg2: memref<128x128xbf16, #tpu.memory_space<vmem>>, %arg3: memref<1x128xf32, #tpu.memory_space<vmem>>, %arg4: memref<128x128xf32, #tpu.memory_space<vmem>>) attributes {dimension_semantics = [#tpu.dimension_semantics<parallel>], iteration_bounds = array<i64: 1>, scalar_prefetch = 0 : i64, scratch_operands = 0 : i64, tpu.core_type = #tpu.core_type<tc>, window_params = [{pipeline_mode = #tpu.pipeline_mode<synchronous>, transform_indices = @transform_0, window_bounds = array<i64: 128, 128>}, {transform_indices = @transform_1, window_bounds = array<i64: 128, 128>}, {transform_indices = @transform_2, window_bounds = array<i64: 1, 128>}, {transform_indices = @transform_3, window_bounds = array<i64: 128, 128>}]} {
    %c0 = arith.constant 0 : index
    %c0_0 = arith.constant 0 : index
    %0 = vector.load %arg1[%c0, %c0_0] : memref<128x128xbf16, #tpu.memory_space<vmem>>, vector<128x128xbf16>
    %c0_1 = arith.constant 0 : index
    %c0_2 = arith.constant 0 : index
    %1 = vector.load %arg2[%c0_1, %c0_2] : memref<128x128xbf16, #tpu.memory_space<vmem>>, vector<128x128xbf16>
    %cst = arith.constant dense<0.000000e+00> : vector<128x128xf32>
    %2 = tpu.matmul %0, %1, %cst {dimension_numbers = #tpu.dot_dimension_numbers<[1], [0], [0], [1], [0, 0, 1, 1], [], []>} : vector<128x128xbf16>, vector<128x128xbf16>, vector<128x128xf32> -> vector<128x128xf32>
    %c0_3 = arith.constant 0 : index
    %c0_4 = arith.constant 0 : index
    %3 = vector.load %arg3[%c0_3, %c0_4] : memref<1x128xf32, #tpu.memory_space<vmem>>, vector<1x128xf32>
    %4 = vector.broadcast %3 : vector<1x128xf32> to vector<128x128xf32>
    %5 = arith.addf %2, %4 : vector<128x128xf32>
    %c0_5 = arith.constant 0 : index
    %c0_6 = arith.constant 0 : index
    %6 = vector.load %arg4[%c0_5, %c0_6] : memref<128x128xf32, #tpu.memory_space<vmem>>, vector<128x128xf32>
    tpu.vector_store %arg4[%c0_5, %c0_6], %5 {strides = array<i32>} : memref<128x128xf32, #tpu.memory_space<vmem>>, vector<128x128xf32>,
    return
  }
  func.func @transform_0(%arg0: i32) -> (i32, i32) {
    %c0_i32 = arith.constant 0 : i32
    %c0_i32_0 = arith.constant 0 : i32
    %c0_i32_1 = arith.constant 0 : i32
    return %c0_i32, %c0_i32_0 : i32, i32
  }
  func.func @transform_1(%arg0: i32) -> (i32, i32) {
    %c0_i32 = arith.constant 0 : i32
    %c0_i32_0 = arith.constant 0 : i32
    return %c0_i32, %arg0 : i32, i32
  }
  func.func @transform_2(%arg0: i32) -> (i32, i32) {
    %c0_i32 = arith.constant 0 : i32
    %c0_i32_0 = arith.constant 0 : i32
    return %c0_i32, %arg0 : i32, i32
  }
  func.func @transform_3(%arg0: i32) -> (i32, i32) {
    %c0_i32 = arith.constant 0 : i32
    %c0_i32_0 = arith.constant 0 : i32
    return %c0_i32, %arg0 : i32, i32
  }
}

module attributes {stable_mosaic.version = 11 : i64} {
  func.func @_fused_matmul_kernel(%arg0: i32, %arg1: memref<32x256xbf16, #tpu.memory_space<vmem>>, %arg2: memref<256x128xbf16, #tpu.memory_space<vmem>>, %arg3: memref<1x128xf32, #tpu.memory_space<vmem>>, %arg4: memref<32x128xbf16, #tpu.memory_space<vmem>>) attributes {dimension_semantics = [#tpu.dimension_semantics<parallel>], iteration_bounds = array<i64: 1>, scalar_prefetch = 0 : i64, scratch_operands = 0 : i64, tpu.core_type = #tpu.core_type<tc>, window_params = [{pipeline_mode = #tpu.pipeline_mode<synchronous>, transform_indices = @transform_0, window_bounds = array<i64: 32, 256>}, {transform_indices = @transform_1, window_bounds = array<i64: 256, 128>}, {transform_indices = @transform_2, window_bounds = array<i64: 1, 128>}, {transform_indices = @transform_3, window_bounds = array<i64: 32, 128>}]} {
    %c0 = arith.constant 0 : index
    %c0_0 = arith.constant 0 : index
    %0 = vector.load %arg1[%c0, %c0_0] : memref<32x256xbf16, #tpu.memory_space<vmem>>, vector<32x256xbf16>
    %c0_1 = arith.constant 0 : index
    %c0_2 = arith.constant 0 : index
    %1 = vector.load %arg2[%c0_1, %c0_2] : memref<256x128xbf16, #tpu.memory_space<vmem>>, vector<256x128xbf16>
    %cst = arith.constant dense<0.000000e+00> : vector<32x128xf32>
    %2 = tpu.matmul %0, %1, %cst {dimension_numbers = #tpu.dot_dimension_numbers<[1], [0], [0], [1], [0, 0, 1, 1], [], []>} : vector<32x256xbf16>, vector<256x128xbf16>, vector<32x128xf32> -> vector<32x128xf32>
    %c0_3 = arith.constant 0 : index
    %c0_4 = arith.constant 0 : index
    %3 = vector.load %arg3[%c0_3, %c0_4] : memref<1x128xf32, #tpu.memory_space<vmem>>, vector<1x128xf32>
    %4 = vector.broadcast %3 : vector<1x128xf32> to vector<32x128xf32>
    %5 = arith.addf %2, %4 : vector<32x128xf32>
    %cst_5 = arith.constant 0.000000e+00 : f32
    %cst_6 = arith.constant 6.000000e+00 : f32
    %6 = vector.broadcast %cst_5 : f32 to vector<32x128xf32>
    %7 = arith.maximumf %6, %5 : vector<32x128xf32>
    %8 = vector.broadcast %cst_6 : f32 to vector<32x128xf32>
    %9 = arith.minimumf %8, %7 : vector<32x128xf32>
    %10 = arith.truncf %9 : vector<32x128xf32> to vector<32x128xbf16>
    %c0_7 = arith.constant 0 : index
    %c0_8 = arith.constant 0 : index
    %11 = vector.load %arg4[%c0_7, %c0_8] : memref<32x128xbf16, #tpu.memory_space<vmem>>, vector<32x128xbf16>
    tpu.vector_store %arg4[%c0_7, %c0_8], %10 {strides = array<i32>} : memref<32x128xbf16, #tpu.memory_space<vmem>>, vector<32x128xbf16>,
    return
  }
  func.func @transform_0(%arg0: i32) -> (i32, i32) {
    %c0_i32 = arith.constant 0 : i32
    %c0_i32_0 = arith.constant 0 : i32
    %c0_i32_1 = arith.constant 0 : i32
    return %c0_i32, %c0_i32_0 : i32, i32
  }
  func.func @transform_1(%arg0: i32) -> (i32, i32) {
    %c0_i32 = arith.constant 0 : i32
    %c0_i32_0 = arith.constant 0 : i32
    return %c0_i32, %arg0 : i32, i32
  }
  func.func @transform_2(%arg0: i32) -> (i32, i32) {
    %c0_i32 = arith.constant 0 : i32
    %c0_i32_0 = arith.constant 0 : i32
    return %c0_i32, %arg0 : i32, i32
  }
  func.func @transform_3(%arg0: i32) -> (i32, i32) {
    %c0_i32 = arith.constant 0 : i32
    %c0_i32_0 = arith.constant 0 : i32
    return %c0_i32, %arg0 : i32, i32
  }
}

module attributes {stable_mosaic.version = 11 : i64} {
  func.func @_fused_matmul_kernel(%arg0: i32, %arg1: memref<32x384xbf16, #tpu.memory_space<vmem>>, %arg2: memref<384x128xbf16, #tpu.memory_space<vmem>>, %arg3: memref<1x128xf32, #tpu.memory_space<vmem>>, %arg4: memref<32x128xbf16, #tpu.memory_space<vmem>>) attributes {dimension_semantics = [#tpu.dimension_semantics<parallel>], iteration_bounds = array<i64: 1>, scalar_prefetch = 0 : i64, scratch_operands = 0 : i64, tpu.core_type = #tpu.core_type<tc>, window_params = [{pipeline_mode = #tpu.pipeline_mode<synchronous>, transform_indices = @transform_0, window_bounds = array<i64: 32, 384>}, {transform_indices = @transform_1, window_bounds = array<i64: 384, 128>}, {transform_indices = @transform_2, window_bounds = array<i64: 1, 128>}, {transform_indices = @transform_3, window_bounds = array<i64: 32, 128>}]} {
    %c0 = arith.constant 0 : index
    %c0_0 = arith.constant 0 : index
    %0 = vector.load %arg1[%c0, %c0_0] : memref<32x384xbf16, #tpu.memory_space<vmem>>, vector<32x384xbf16>
    %c0_1 = arith.constant 0 : index
    %c0_2 = arith.constant 0 : index
    %1 = vector.load %arg2[%c0_1, %c0_2] : memref<384x128xbf16, #tpu.memory_space<vmem>>, vector<384x128xbf16>
    %cst = arith.constant dense<0.000000e+00> : vector<32x128xf32>
    %2 = tpu.matmul %0, %1, %cst {dimension_numbers = #tpu.dot_dimension_numbers<[1], [0], [0], [1], [0, 0, 1, 1], [], []>} : vector<32x384xbf16>, vector<384x128xbf16>, vector<32x128xf32> -> vector<32x128xf32>
    %c0_3 = arith.constant 0 : index
    %c0_4 = arith.constant 0 : index
    %3 = vector.load %arg3[%c0_3, %c0_4] : memref<1x128xf32, #tpu.memory_space<vmem>>, vector<1x128xf32>
    %4 = vector.broadcast %3 : vector<1x128xf32> to vector<32x128xf32>
    %5 = arith.addf %2, %4 : vector<32x128xf32>
    %cst_5 = arith.constant 0.000000e+00 : f32
    %cst_6 = arith.constant 6.000000e+00 : f32
    %6 = vector.broadcast %cst_5 : f32 to vector<32x128xf32>
    %7 = arith.maximumf %6, %5 : vector<32x128xf32>
    %8 = vector.broadcast %cst_6 : f32 to vector<32x128xf32>
    %9 = arith.minimumf %8, %7 : vector<32x128xf32>
    %10 = arith.truncf %9 : vector<32x128xf32> to vector<32x128xbf16>
    %c0_7 = arith.constant 0 : index
    %c0_8 = arith.constant 0 : index
    %11 = vector.load %arg4[%c0_7, %c0_8] : memref<32x128xbf16, #tpu.memory_space<vmem>>, vector<32x128xbf16>
    tpu.vector_store %arg4[%c0_7, %c0_8], %10 {strides = array<i32>} : memref<32x128xbf16, #tpu.memory_space<vmem>>, vector<32x128xbf16>,
    return
  }
  func.func @transform_0(%arg0: i32) -> (i32, i32) {
    %c0_i32 = arith.constant 0 : i32
    %c0_i32_0 = arith.constant 0 : i32
    %c0_i32_1 = arith.constant 0 : i32
    return %c0_i32, %c0_i32_0 : i32, i32
  }
  func.func @transform_1(%arg0: i32) -> (i32, i32) {
    %c0_i32 = arith.constant 0 : i32
    %c0_i32_0 = arith.constant 0 : i32
    return %c0_i32, %arg0 : i32, i32
  }
  func.func @transform_2(%arg0: i32) -> (i32, i32) {
    %c0_i32 = arith.constant 0 : i32
    %c0_i32_0 = arith.constant 0 : i32
    return %c0_i32, %arg0 : i32, i32
  }
  func.func @transform_3(%arg0: i32) -> (i32, i32) {
    %c0_i32 = arith.constant 0 : i32
    %c0_i32_0 = arith.constant 0 : i32
    return %c0_i32, %arg0 : i32, i32
  }
}

module attributes {stable_mosaic.version = 11 : i64} {
  func.func @_fused_matmul_kernel(%arg0: i32, %arg1: memref<8x384xbf16, #tpu.memory_space<vmem>>, %arg2: memref<384x128xbf16, #tpu.memory_space<vmem>>, %arg3: memref<1x128xf32, #tpu.memory_space<vmem>>, %arg4: memref<8x128xbf16, #tpu.memory_space<vmem>>) attributes {dimension_semantics = [#tpu.dimension_semantics<parallel>], iteration_bounds = array<i64: 1>, scalar_prefetch = 0 : i64, scratch_operands = 0 : i64, tpu.core_type = #tpu.core_type<tc>, window_params = [{pipeline_mode = #tpu.pipeline_mode<synchronous>, transform_indices = @transform_0, window_bounds = array<i64: 8, 384>}, {transform_indices = @transform_1, window_bounds = array<i64: 384, 128>}, {transform_indices = @transform_2, window_bounds = array<i64: 1, 128>}, {transform_indices = @transform_3, window_bounds = array<i64: 8, 128>}]} {
    %c0 = arith.constant 0 : index
    %c0_0 = arith.constant 0 : index
    %0 = vector.load %arg1[%c0, %c0_0] : memref<8x384xbf16, #tpu.memory_space<vmem>>, vector<8x384xbf16>
    %c0_1 = arith.constant 0 : index
    %c0_2 = arith.constant 0 : index
    %1 = vector.load %arg2[%c0_1, %c0_2] : memref<384x128xbf16, #tpu.memory_space<vmem>>, vector<384x128xbf16>
    %cst = arith.constant dense<0.000000e+00> : vector<8x128xf32>
    %2 = tpu.matmul %0, %1, %cst {dimension_numbers = #tpu.dot_dimension_numbers<[1], [0], [0], [1], [0, 0, 1, 1], [], []>} : vector<8x384xbf16>, vector<384x128xbf16>, vector<8x128xf32> -> vector<8x128xf32>
    %c0_3 = arith.constant 0 : index
    %c0_4 = arith.constant 0 : index
    %3 = vector.load %arg3[%c0_3, %c0_4] : memref<1x128xf32, #tpu.memory_space<vmem>>, vector<1x128xf32>
    %4 = vector.broadcast %3 : vector<1x128xf32> to vector<8x128xf32>
    %5 = arith.addf %2, %4 : vector<8x128xf32>
    %cst_5 = arith.constant 0.000000e+00 : f32
    %cst_6 = arith.constant 6.000000e+00 : f32
    %6 = vector.broadcast %cst_5 : f32 to vector<8x128xf32>
    %7 = arith.maximumf %6, %5 : vector<8x128xf32>
    %8 = vector.broadcast %cst_6 : f32 to vector<8x128xf32>
    %9 = arith.minimumf %8, %7 : vector<8x128xf32>
    %10 = arith.truncf %9 : vector<8x128xf32> to vector<8x128xbf16>
    %c0_7 = arith.constant 0 : index
    %c0_8 = arith.constant 0 : index
    %11 = vector.load %arg4[%c0_7, %c0_8] : memref<8x128xbf16, #tpu.memory_space<vmem>>, vector<8x128xbf16>
    tpu.vector_store %arg4[%c0_7, %c0_8], %10 {strides = array<i32>} : memref<8x128xbf16, #tpu.memory_space<vmem>>, vector<8x128xbf16>,
    return
  }
  func.func @transform_0(%arg0: i32) -> (i32, i32) {
    %c0_i32 = arith.constant 0 : i32
    %c0_i32_0 = arith.constant 0 : i32
    %c0_i32_1 = arith.constant 0 : i32
    return %c0_i32, %c0_i32_0 : i32, i32
  }
  func.func @transform_1(%arg0: i32) -> (i32, i32) {
    %c0_i32 = arith.constant 0 : i32
    %c0_i32_0 = arith.constant 0 : i32
    return %c0_i32, %arg0 : i32, i32
  }
  func.func @transform_2(%arg0: i32) -> (i32, i32) {
    %c0_i32 = arith.constant 0 : i32
    %c0_i32_0 = arith.constant 0 : i32
    return %c0_i32, %arg0 : i32, i32
  }
  func.func @transform_3(%arg0: i32) -> (i32, i32) {
    %c0_i32 = arith.constant 0 : i32
    %c0_i32_0 = arith.constant 0 : i32
    return %c0_i32, %arg0 : i32, i32
  }
}

module attributes {stable_mosaic.version = 11 : i64} {
  func.func @_fused_matmul_kernel(%arg0: i32, %arg1: memref<8x128xbf16, #tpu.memory_space<vmem>>, %arg2: memref<128x256xbf16, #tpu.memory_space<vmem>>, %arg3: memref<1x256xf32, #tpu.memory_space<vmem>>, %arg4: memref<8x256xbf16, #tpu.memory_space<vmem>>) attributes {dimension_semantics = [#tpu.dimension_semantics<parallel>], iteration_bounds = array<i64: 1>, scalar_prefetch = 0 : i64, scratch_operands = 0 : i64, tpu.core_type = #tpu.core_type<tc>, window_params = [{pipeline_mode = #tpu.pipeline_mode<synchronous>, transform_indices = @transform_0, window_bounds = array<i64: 8, 128>}, {transform_indices = @transform_1, window_bounds = array<i64: 128, 256>}, {transform_indices = @transform_2, window_bounds = array<i64: 1, 256>}, {transform_indices = @transform_3, window_bounds = array<i64: 8, 256>}]} {
    %c0 = arith.constant 0 : index
    %c0_0 = arith.constant 0 : index
    %0 = vector.load %arg1[%c0, %c0_0] : memref<8x128xbf16, #tpu.memory_space<vmem>>, vector<8x128xbf16>
    %c0_1 = arith.constant 0 : index
    %c0_2 = arith.constant 0 : index
    %1 = vector.load %arg2[%c0_1, %c0_2] : memref<128x256xbf16, #tpu.memory_space<vmem>>, vector<128x256xbf16>
    %cst = arith.constant dense<0.000000e+00> : vector<8x256xf32>
    %2 = tpu.matmul %0, %1, %cst {dimension_numbers = #tpu.dot_dimension_numbers<[1], [0], [0], [1], [0, 0, 1, 1], [], []>} : vector<8x128xbf16>, vector<128x256xbf16>, vector<8x256xf32> -> vector<8x256xf32>
    %c0_3 = arith.constant 0 : index
    %c0_4 = arith.constant 0 : index
    %3 = vector.load %arg3[%c0_3, %c0_4] : memref<1x256xf32, #tpu.memory_space<vmem>>, vector<1x256xf32>
    %4 = vector.broadcast %3 : vector<1x256xf32> to vector<8x256xf32>
    %5 = arith.addf %2, %4 : vector<8x256xf32>
    %cst_5 = arith.constant 0.000000e+00 : f32
    %cst_6 = arith.constant 6.000000e+00 : f32
    %6 = vector.broadcast %cst_5 : f32 to vector<8x256xf32>
    %7 = arith.maximumf %6, %5 : vector<8x256xf32>
    %8 = vector.broadcast %cst_6 : f32 to vector<8x256xf32>
    %9 = arith.minimumf %8, %7 : vector<8x256xf32>
    %10 = arith.truncf %9 : vector<8x256xf32> to vector<8x256xbf16>
    %c0_7 = arith.constant 0 : index
    %c0_8 = arith.constant 0 : index
    %11 = vector.load %arg4[%c0_7, %c0_8] : memref<8x256xbf16, #tpu.memory_space<vmem>>, vector<8x256xbf16>
    tpu.vector_store %arg4[%c0_7, %c0_8], %10 {strides = array<i32>} : memref<8x256xbf16, #tpu.memory_space<vmem>>, vector<8x256xbf16>,
    return
  }
  func.func @transform_0(%arg0: i32) -> (i32, i32) {
    %c0_i32 = arith.constant 0 : i32
    %c0_i32_0 = arith.constant 0 : i32
    %c0_i32_1 = arith.constant 0 : i32
    return %c0_i32, %c0_i32_0 : i32, i32
  }
  func.func @transform_1(%arg0: i32) -> (i32, i32) {
    %c0_i32 = arith.constant 0 : i32
    %c0_i32_0 = arith.constant 0 : i32
    return %c0_i32, %arg0 : i32, i32
  }
  func.func @transform_2(%arg0: i32) -> (i32, i32) {
    %c0_i32 = arith.constant 0 : i32
    %c0_i32_0 = arith.constant 0 : i32
    return %c0_i32, %arg0 : i32, i32
  }
  func.func @transform_3(%arg0: i32) -> (i32, i32) {
    %c0_i32 = arith.constant 0 : i32
    %c0_i32_0 = arith.constant 0 : i32
    return %c0_i32, %arg0 : i32, i32
  }
}

module attributes {stable_mosaic.version = 11 : i64} {
  func.func @_fused_matmul_kernel(%arg0: i32, %arg1: memref<8x640xbf16, #tpu.memory_space<vmem>>, %arg2: memref<640x128xbf16, #tpu.memory_space<vmem>>, %arg3: memref<1x128xf32, #tpu.memory_space<vmem>>, %arg4: memref<8x128xbf16, #tpu.memory_space<vmem>>) attributes {dimension_semantics = [#tpu.dimension_semantics<parallel>], iteration_bounds = array<i64: 1>, scalar_prefetch = 0 : i64, scratch_operands = 0 : i64, tpu.core_type = #tpu.core_type<tc>, window_params = [{pipeline_mode = #tpu.pipeline_mode<synchronous>, transform_indices = @transform_0, window_bounds = array<i64: 8, 640>}, {transform_indices = @transform_1, window_bounds = array<i64: 640, 128>}, {transform_indices = @transform_2, window_bounds = array<i64: 1, 128>}, {transform_indices = @transform_3, window_bounds = array<i64: 8, 128>}]} {
    %c0 = arith.constant 0 : index
    %c0_0 = arith.constant 0 : index
    %0 = vector.load %arg1[%c0, %c0_0] : memref<8x640xbf16, #tpu.memory_space<vmem>>, vector<8x640xbf16>
    %c0_1 = arith.constant 0 : index
    %c0_2 = arith.constant 0 : index
    %1 = vector.load %arg2[%c0_1, %c0_2] : memref<640x128xbf16, #tpu.memory_space<vmem>>, vector<640x128xbf16>
    %cst = arith.constant dense<0.000000e+00> : vector<8x128xf32>
    %2 = tpu.matmul %0, %1, %cst {dimension_numbers = #tpu.dot_dimension_numbers<[1], [0], [0], [1], [0, 0, 1, 1], [], []>} : vector<8x640xbf16>, vector<640x128xbf16>, vector<8x128xf32> -> vector<8x128xf32>
    %c0_3 = arith.constant 0 : index
    %c0_4 = arith.constant 0 : index
    %3 = vector.load %arg3[%c0_3, %c0_4] : memref<1x128xf32, #tpu.memory_space<vmem>>, vector<1x128xf32>
    %4 = vector.broadcast %3 : vector<1x128xf32> to vector<8x128xf32>
    %5 = arith.addf %2, %4 : vector<8x128xf32>
    %cst_5 = arith.constant 0.000000e+00 : f32
    %cst_6 = arith.constant 6.000000e+00 : f32
    %6 = vector.broadcast %cst_5 : f32 to vector<8x128xf32>
    %7 = arith.maximumf %6, %5 : vector<8x128xf32>
    %8 = vector.broadcast %cst_6 : f32 to vector<8x128xf32>
    %9 = arith.minimumf %8, %7 : vector<8x128xf32>
    %10 = arith.truncf %9 : vector<8x128xf32> to vector<8x128xbf16>
    %c0_7 = arith.constant 0 : index
    %c0_8 = arith.constant 0 : index
    %11 = vector.load %arg4[%c0_7, %c0_8] : memref<8x128xbf16, #tpu.memory_space<vmem>>, vector<8x128xbf16>
    tpu.vector_store %arg4[%c0_7, %c0_8], %10 {strides = array<i32>} : memref<8x128xbf16, #tpu.memory_space<vmem>>, vector<8x128xbf16>,
    return
  }
  func.func @transform_0(%arg0: i32) -> (i32, i32) {
    %c0_i32 = arith.constant 0 : i32
    %c0_i32_0 = arith.constant 0 : i32
    %c0_i32_1 = arith.constant 0 : i32
    return %c0_i32, %c0_i32_0 : i32, i32
  }
  func.func @transform_1(%arg0: i32) -> (i32, i32) {
    %c0_i32 = arith.constant 0 : i32
    %c0_i32_0 = arith.constant 0 : i32
    return %c0_i32, %arg0 : i32, i32
  }
  func.func @transform_2(%arg0: i32) -> (i32, i32) {
    %c0_i32 = arith.constant 0 : i32
    %c0_i32_0 = arith.constant 0 : i32
    return %c0_i32, %arg0 : i32, i32
  }
  func.func @transform_3(%arg0: i32) -> (i32, i32) {
    %c0_i32 = arith.constant 0 : i32
    %c0_i32_0 = arith.constant 0 : i32
    return %c0_i32, %arg0 : i32, i32
  }
}

module attributes {stable_mosaic.version = 11 : i64} {
  func.func @_fused_matmul_kernel(%arg0: i32, %arg1: memref<8x128xbf16, #tpu.memory_space<vmem>>, %arg2: memref<128x128xbf16, #tpu.memory_space<vmem>>, %arg3: memref<1x128xf32, #tpu.memory_space<vmem>>, %arg4: memref<8x128xbf16, #tpu.memory_space<vmem>>) attributes {dimension_semantics = [#tpu.dimension_semantics<parallel>], iteration_bounds = array<i64: 1>, scalar_prefetch = 0 : i64, scratch_operands = 0 : i64, tpu.core_type = #tpu.core_type<tc>, window_params = [{pipeline_mode = #tpu.pipeline_mode<synchronous>, transform_indices = @transform_0, window_bounds = array<i64: 8, 128>}, {transform_indices = @transform_1, window_bounds = array<i64: 128, 128>}, {transform_indices = @transform_2, window_bounds = array<i64: 1, 128>}, {transform_indices = @transform_3, window_bounds = array<i64: 8, 128>}]} {
    %c0 = arith.constant 0 : index
    %c0_0 = arith.constant 0 : index
    %0 = vector.load %arg1[%c0, %c0_0] : memref<8x128xbf16, #tpu.memory_space<vmem>>, vector<8x128xbf16>
    %c0_1 = arith.constant 0 : index
    %c0_2 = arith.constant 0 : index
    %1 = vector.load %arg2[%c0_1, %c0_2] : memref<128x128xbf16, #tpu.memory_space<vmem>>, vector<128x128xbf16>
    %cst = arith.constant dense<0.000000e+00> : vector<8x128xf32>
    %2 = tpu.matmul %0, %1, %cst {dimension_numbers = #tpu.dot_dimension_numbers<[1], [0], [0], [1], [0, 0, 1, 1], [], []>} : vector<8x128xbf16>, vector<128x128xbf16>, vector<8x128xf32> -> vector<8x128xf32>
    %c0_3 = arith.constant 0 : index
    %c0_4 = arith.constant 0 : index
    %3 = vector.load %arg3[%c0_3, %c0_4] : memref<1x128xf32, #tpu.memory_space<vmem>>, vector<1x128xf32>
    %4 = vector.broadcast %3 : vector<1x128xf32> to vector<8x128xf32>
    %5 = arith.addf %2, %4 : vector<8x128xf32>
    %cst_5 = arith.constant 0.000000e+00 : f32
    %cst_6 = arith.constant 6.000000e+00 : f32
    %6 = vector.broadcast %cst_5 : f32 to vector<8x128xf32>
    %7 = arith.maximumf %6, %5 : vector<8x128xf32>
    %8 = vector.broadcast %cst_6 : f32 to vector<8x128xf32>
    %9 = arith.minimumf %8, %7 : vector<8x128xf32>
    %10 = arith.truncf %9 : vector<8x128xf32> to vector<8x128xbf16>
    %c0_7 = arith.constant 0 : index
    %c0_8 = arith.constant 0 : index
    %11 = vector.load %arg4[%c0_7, %c0_8] : memref<8x128xbf16, #tpu.memory_space<vmem>>, vector<8x128xbf16>
    tpu.vector_store %arg4[%c0_7, %c0_8], %10 {strides = array<i32>} : memref<8x128xbf16, #tpu.memory_space<vmem>>, vector<8x128xbf16>,
    return
  }
  func.func @transform_0(%arg0: i32) -> (i32, i32) {
    %c0_i32 = arith.constant 0 : i32
    %c0_i32_0 = arith.constant 0 : i32
    %c0_i32_1 = arith.constant 0 : i32
    return %c0_i32, %c0_i32_0 : i32, i32
  }
  func.func @transform_1(%arg0: i32) -> (i32, i32) {
    %c0_i32 = arith.constant 0 : i32
    %c0_i32_0 = arith.constant 0 : i32
    return %c0_i32, %arg0 : i32, i32
  }
  func.func @transform_2(%arg0: i32) -> (i32, i32) {
    %c0_i32 = arith.constant 0 : i32
    %c0_i32_0 = arith.constant 0 : i32
    return %c0_i32, %arg0 : i32, i32
  }
  func.func @transform_3(%arg0: i32) -> (i32, i32) {
    %c0_i32 = arith.constant 0 : i32
    %c0_i32_0 = arith.constant 0 : i32
    return %c0_i32, %arg0 : i32, i32
  }
}

module attributes {stable_mosaic.version = 11 : i64} {
  func.func @_fused_matmul_kernel(%arg0: i32, %arg1: memref<8x256xbf16, #tpu.memory_space<vmem>>, %arg2: memref<256x256xbf16, #tpu.memory_space<vmem>>, %arg3: memref<1x256xf32, #tpu.memory_space<vmem>>, %arg4: memref<8x256xbf16, #tpu.memory_space<vmem>>) attributes {dimension_semantics = [#tpu.dimension_semantics<parallel>], iteration_bounds = array<i64: 1>, scalar_prefetch = 0 : i64, scratch_operands = 0 : i64, tpu.core_type = #tpu.core_type<tc>, window_params = [{pipeline_mode = #tpu.pipeline_mode<synchronous>, transform_indices = @transform_0, window_bounds = array<i64: 8, 256>}, {transform_indices = @transform_1, window_bounds = array<i64: 256, 256>}, {transform_indices = @transform_2, window_bounds = array<i64: 1, 256>}, {transform_indices = @transform_3, window_bounds = array<i64: 8, 256>}]} {
    %c0 = arith.constant 0 : index
    %c0_0 = arith.constant 0 : index
    %0 = vector.load %arg1[%c0, %c0_0] : memref<8x256xbf16, #tpu.memory_space<vmem>>, vector<8x256xbf16>
    %c0_1 = arith.constant 0 : index
    %c0_2 = arith.constant 0 : index
    %1 = vector.load %arg2[%c0_1, %c0_2] : memref<256x256xbf16, #tpu.memory_space<vmem>>, vector<256x256xbf16>
    %cst = arith.constant dense<0.000000e+00> : vector<8x256xf32>
    %2 = tpu.matmul %0, %1, %cst {dimension_numbers = #tpu.dot_dimension_numbers<[1], [0], [0], [1], [0, 0, 1, 1], [], []>} : vector<8x256xbf16>, vector<256x256xbf16>, vector<8x256xf32> -> vector<8x256xf32>
    %c0_3 = arith.constant 0 : index
    %c0_4 = arith.constant 0 : index
    %3 = vector.load %arg3[%c0_3, %c0_4] : memref<1x256xf32, #tpu.memory_space<vmem>>, vector<1x256xf32>
    %4 = vector.broadcast %3 : vector<1x256xf32> to vector<8x256xf32>
    %5 = arith.addf %2, %4 : vector<8x256xf32>
    %cst_5 = arith.constant 0.000000e+00 : f32
    %cst_6 = arith.constant 6.000000e+00 : f32
    %6 = vector.broadcast %cst_5 : f32 to vector<8x256xf32>
    %7 = arith.maximumf %6, %5 : vector<8x256xf32>
    %8 = vector.broadcast %cst_6 : f32 to vector<8x256xf32>
    %9 = arith.minimumf %8, %7 : vector<8x256xf32>
    %10 = arith.truncf %9 : vector<8x256xf32> to vector<8x256xbf16>
    %c0_7 = arith.constant 0 : index
    %c0_8 = arith.constant 0 : index
    %11 = vector.load %arg4[%c0_7, %c0_8] : memref<8x256xbf16, #tpu.memory_space<vmem>>, vector<8x256xbf16>
    tpu.vector_store %arg4[%c0_7, %c0_8], %10 {strides = array<i32>} : memref<8x256xbf16, #tpu.memory_space<vmem>>, vector<8x256xbf16>,
    return
  }
  func.func @transform_0(%arg0: i32) -> (i32, i32) {
    %c0_i32 = arith.constant 0 : i32
    %c0_i32_0 = arith.constant 0 : i32
    %c0_i32_1 = arith.constant 0 : i32
    return %c0_i32, %c0_i32_0 : i32, i32
  }
  func.func @transform_1(%arg0: i32) -> (i32, i32) {
    %c0_i32 = arith.constant 0 : i32
    %c0_i32_0 = arith.constant 0 : i32
    return %c0_i32, %arg0 : i32, i32
  }
  func.func @transform_2(%arg0: i32) -> (i32, i32) {
    %c0_i32 = arith.constant 0 : i32
    %c0_i32_0 = arith.constant 0 : i32
    return %c0_i32, %arg0 : i32, i32
  }
  func.func @transform_3(%arg0: i32) -> (i32, i32) {
    %c0_i32 = arith.constant 0 : i32
    %c0_i32_0 = arith.constant 0 : i32
    return %c0_i32, %arg0 : i32, i32
  }
}

module attributes {stable_mosaic.version = 11 : i64} {
  func.func @_fused_matmul_kernel(%arg0: i32, %arg1: memref<8x256xbf16, #tpu.memory_space<vmem>>, %arg2: memref<256x128xbf16, #tpu.memory_space<vmem>>, %arg3: memref<1x128xf32, #tpu.memory_space<vmem>>, %arg4: memref<8x128xbf16, #tpu.memory_space<vmem>>) attributes {dimension_semantics = [#tpu.dimension_semantics<parallel>], iteration_bounds = array<i64: 3>, scalar_prefetch = 0 : i64, scratch_operands = 0 : i64, tpu.core_type = #tpu.core_type<tc>, window_params = [{pipeline_mode = #tpu.pipeline_mode<synchronous>, transform_indices = @transform_0, window_bounds = array<i64: 8, 256>}, {transform_indices = @transform_1, window_bounds = array<i64: 256, 128>}, {transform_indices = @transform_2, window_bounds = array<i64: 1, 128>}, {transform_indices = @transform_3, window_bounds = array<i64: 8, 128>}]} {
    %c0 = arith.constant 0 : index
    %c0_0 = arith.constant 0 : index
    %0 = vector.load %arg1[%c0, %c0_0] : memref<8x256xbf16, #tpu.memory_space<vmem>>, vector<8x256xbf16>
    %c0_1 = arith.constant 0 : index
    %c0_2 = arith.constant 0 : index
    %1 = vector.load %arg2[%c0_1, %c0_2] : memref<256x128xbf16, #tpu.memory_space<vmem>>, vector<256x128xbf16>
    %cst = arith.constant dense<0.000000e+00> : vector<8x128xf32>
    %2 = tpu.matmul %0, %1, %cst {dimension_numbers = #tpu.dot_dimension_numbers<[1], [0], [0], [1], [0, 0, 1, 1], [], []>} : vector<8x256xbf16>, vector<256x128xbf16>, vector<8x128xf32> -> vector<8x128xf32>
    %c0_3 = arith.constant 0 : index
    %c0_4 = arith.constant 0 : index
    %3 = vector.load %arg3[%c0_3, %c0_4] : memref<1x128xf32, #tpu.memory_space<vmem>>, vector<1x128xf32>
    %4 = vector.broadcast %3 : vector<1x128xf32> to vector<8x128xf32>
    %5 = arith.addf %2, %4 : vector<8x128xf32>
    %cst_5 = arith.constant 0.000000e+00 : f32
    %cst_6 = arith.constant 6.000000e+00 : f32
    %6 = vector.broadcast %cst_5 : f32 to vector<8x128xf32>
    %7 = arith.maximumf %6, %5 : vector<8x128xf32>
    %8 = vector.broadcast %cst_6 : f32 to vector<8x128xf32>
    %9 = arith.minimumf %8, %7 : vector<8x128xf32>
    %10 = arith.truncf %9 : vector<8x128xf32> to vector<8x128xbf16>
    %c0_7 = arith.constant 0 : index
    %c0_8 = arith.constant 0 : index
    %11 = vector.load %arg4[%c0_7, %c0_8] : memref<8x128xbf16, #tpu.memory_space<vmem>>, vector<8x128xbf16>
    tpu.vector_store %arg4[%c0_7, %c0_8], %10 {strides = array<i32>} : memref<8x128xbf16, #tpu.memory_space<vmem>>, vector<8x128xbf16>,
    return
  }
  func.func @transform_0(%arg0: i32) -> (i32, i32) {
    %c0_i32 = arith.constant 0 : i32
    %c0_i32_0 = arith.constant 0 : i32
    %c0_i32_1 = arith.constant 0 : i32
    return %c0_i32, %c0_i32_0 : i32, i32
  }
  func.func @transform_1(%arg0: i32) -> (i32, i32) {
    %c0_i32 = arith.constant 0 : i32
    %c0_i32_0 = arith.constant 0 : i32
    return %c0_i32, %arg0 : i32, i32
  }
  func.func @transform_2(%arg0: i32) -> (i32, i32) {
    %c0_i32 = arith.constant 0 : i32
    %c0_i32_0 = arith.constant 0 : i32
    return %c0_i32, %arg0 : i32, i32
  }
  func.func @transform_3(%arg0: i32) -> (i32, i32) {
    %c0_i32 = arith.constant 0 : i32
    %c0_i32_0 = arith.constant 0 : i32
    return %c0_i32, %arg0 : i32, i32
  }
}

module attributes {stable_mosaic.version = 11 : i64} {
  func.func @_fused_matmul_kernel(%arg0: i32, %arg1: memref<8x384xbf16, #tpu.memory_space<vmem>>, %arg2: memref<384x128xbf16, #tpu.memory_space<vmem>>, %arg3: memref<1x128xf32, #tpu.memory_space<vmem>>, %arg4: memref<8x128xbf16, #tpu.memory_space<vmem>>) attributes {dimension_semantics = [#tpu.dimension_semantics<parallel>], iteration_bounds = array<i64: 3>, scalar_prefetch = 0 : i64, scratch_operands = 0 : i64, tpu.core_type = #tpu.core_type<tc>, window_params = [{pipeline_mode = #tpu.pipeline_mode<synchronous>, transform_indices = @transform_0, window_bounds = array<i64: 8, 384>}, {transform_indices = @transform_1, window_bounds = array<i64: 384, 128>}, {transform_indices = @transform_2, window_bounds = array<i64: 1, 128>}, {transform_indices = @transform_3, window_bounds = array<i64: 8, 128>}]} {
    %c0 = arith.constant 0 : index
    %c0_0 = arith.constant 0 : index
    %0 = vector.load %arg1[%c0, %c0_0] : memref<8x384xbf16, #tpu.memory_space<vmem>>, vector<8x384xbf16>
    %c0_1 = arith.constant 0 : index
    %c0_2 = arith.constant 0 : index
    %1 = vector.load %arg2[%c0_1, %c0_2] : memref<384x128xbf16, #tpu.memory_space<vmem>>, vector<384x128xbf16>
    %cst = arith.constant dense<0.000000e+00> : vector<8x128xf32>
    %2 = tpu.matmul %0, %1, %cst {dimension_numbers = #tpu.dot_dimension_numbers<[1], [0], [0], [1], [0, 0, 1, 1], [], []>} : vector<8x384xbf16>, vector<384x128xbf16>, vector<8x128xf32> -> vector<8x128xf32>
    %c0_3 = arith.constant 0 : index
    %c0_4 = arith.constant 0 : index
    %3 = vector.load %arg3[%c0_3, %c0_4] : memref<1x128xf32, #tpu.memory_space<vmem>>, vector<1x128xf32>
    %4 = vector.broadcast %3 : vector<1x128xf32> to vector<8x128xf32>
    %5 = arith.addf %2, %4 : vector<8x128xf32>
    %cst_5 = arith.constant 0.000000e+00 : f32
    %cst_6 = arith.constant 6.000000e+00 : f32
    %6 = vector.broadcast %cst_5 : f32 to vector<8x128xf32>
    %7 = arith.maximumf %6, %5 : vector<8x128xf32>
    %8 = vector.broadcast %cst_6 : f32 to vector<8x128xf32>
    %9 = arith.minimumf %8, %7 : vector<8x128xf32>
    %10 = arith.truncf %9 : vector<8x128xf32> to vector<8x128xbf16>
    %c0_7 = arith.constant 0 : index
    %c0_8 = arith.constant 0 : index
    %11 = vector.load %arg4[%c0_7, %c0_8] : memref<8x128xbf16, #tpu.memory_space<vmem>>, vector<8x128xbf16>
    tpu.vector_store %arg4[%c0_7, %c0_8], %10 {strides = array<i32>} : memref<8x128xbf16, #tpu.memory_space<vmem>>, vector<8x128xbf16>,
    return
  }
  func.func @transform_0(%arg0: i32) -> (i32, i32) {
    %c0_i32 = arith.constant 0 : i32
    %c0_i32_0 = arith.constant 0 : i32
    %c0_i32_1 = arith.constant 0 : i32
    return %c0_i32, %c0_i32_0 : i32, i32
  }
  func.func @transform_1(%arg0: i32) -> (i32, i32) {
    %c0_i32 = arith.constant 0 : i32
    %c0_i32_0 = arith.constant 0 : i32
    return %c0_i32, %arg0 : i32, i32
  }
  func.func @transform_2(%arg0: i32) -> (i32, i32) {
    %c0_i32 = arith.constant 0 : i32
    %c0_i32_0 = arith.constant 0 : i32
    return %c0_i32, %arg0 : i32, i32
  }
  func.func @transform_3(%arg0: i32) -> (i32, i32) {
    %c0_i32 = arith.constant 0 : i32
    %c0_i32_0 = arith.constant 0 : i32
    return %c0_i32, %arg0 : i32, i32
  }
}

module attributes {stable_mosaic.version = 11 : i64} {
  func.func @_fused_matmul_kernel(%arg0: i32, %arg1: memref<8x384xbf16, #tpu.memory_space<vmem>>, %arg2: memref<384x256xbf16, #tpu.memory_space<vmem>>, %arg3: memref<1x256xf32, #tpu.memory_space<vmem>>, %arg4: memref<8x256xbf16, #tpu.memory_space<vmem>>) attributes {dimension_semantics = [#tpu.dimension_semantics<parallel>], iteration_bounds = array<i64: 5>, scalar_prefetch = 0 : i64, scratch_operands = 0 : i64, tpu.core_type = #tpu.core_type<tc>, window_params = [{pipeline_mode = #tpu.pipeline_mode<synchronous>, transform_indices = @transform_0, window_bounds = array<i64: 8, 384>}, {transform_indices = @transform_1, window_bounds = array<i64: 384, 256>}, {transform_indices = @transform_2, window_bounds = array<i64: 1, 256>}, {transform_indices = @transform_3, window_bounds = array<i64: 8, 256>}]} {
    %c0 = arith.constant 0 : index
    %c0_0 = arith.constant 0 : index
    %0 = vector.load %arg1[%c0, %c0_0] : memref<8x384xbf16, #tpu.memory_space<vmem>>, vector<8x384xbf16>
    %c0_1 = arith.constant 0 : index
    %c0_2 = arith.constant 0 : index
    %1 = vector.load %arg2[%c0_1, %c0_2] : memref<384x256xbf16, #tpu.memory_space<vmem>>, vector<384x256xbf16>
    %cst = arith.constant dense<0.000000e+00> : vector<8x256xf32>
    %2 = tpu.matmul %0, %1, %cst {dimension_numbers = #tpu.dot_dimension_numbers<[1], [0], [0], [1], [0, 0, 1, 1], [], []>} : vector<8x384xbf16>, vector<384x256xbf16>, vector<8x256xf32> -> vector<8x256xf32>
    %c0_3 = arith.constant 0 : index
    %c0_4 = arith.constant 0 : index
    %3 = vector.load %arg3[%c0_3, %c0_4] : memref<1x256xf32, #tpu.memory_space<vmem>>, vector<1x256xf32>
    %4 = vector.broadcast %3 : vector<1x256xf32> to vector<8x256xf32>
    %5 = arith.addf %2, %4 : vector<8x256xf32>
    %cst_5 = arith.constant 0.000000e+00 : f32
    %cst_6 = arith.constant 6.000000e+00 : f32
    %6 = vector.broadcast %cst_5 : f32 to vector<8x256xf32>
    %7 = arith.maximumf %6, %5 : vector<8x256xf32>
    %8 = vector.broadcast %cst_6 : f32 to vector<8x256xf32>
    %9 = arith.minimumf %8, %7 : vector<8x256xf32>
    %10 = arith.truncf %9 : vector<8x256xf32> to vector<8x256xbf16>
    %c0_7 = arith.constant 0 : index
    %c0_8 = arith.constant 0 : index
    %11 = vector.load %arg4[%c0_7, %c0_8] : memref<8x256xbf16, #tpu.memory_space<vmem>>, vector<8x256xbf16>
    tpu.vector_store %arg4[%c0_7, %c0_8], %10 {strides = array<i32>} : memref<8x256xbf16, #tpu.memory_space<vmem>>, vector<8x256xbf16>,
    return
  }
  func.func @transform_0(%arg0: i32) -> (i32, i32) {
    %c0_i32 = arith.constant 0 : i32
    %c0_i32_0 = arith.constant 0 : i32
    %c0_i32_1 = arith.constant 0 : i32
    return %c0_i32, %c0_i32_0 : i32, i32
  }
  func.func @transform_1(%arg0: i32) -> (i32, i32) {
    %c0_i32 = arith.constant 0 : i32
    %c0_i32_0 = arith.constant 0 : i32
    return %c0_i32, %arg0 : i32, i32
  }
  func.func @transform_2(%arg0: i32) -> (i32, i32) {
    %c0_i32 = arith.constant 0 : i32
    %c0_i32_0 = arith.constant 0 : i32
    return %c0_i32, %arg0 : i32, i32
  }
  func.func @transform_3(%arg0: i32) -> (i32, i32) {
    %c0_i32 = arith.constant 0 : i32
    %c0_i32_0 = arith.constant 0 : i32
    return %c0_i32, %arg0 : i32, i32
  }
}

module attributes {stable_mosaic.version = 11 : i64} {
  func.func @_fused_matmul_kernel(%arg0: i32, %arg1: memref<8x1280xbf16, #tpu.memory_space<vmem>>, %arg2: memref<1280x128xbf16, #tpu.memory_space<vmem>>, %arg3: memref<1x128xf32, #tpu.memory_space<vmem>>, %arg4: memref<8x128xf32, #tpu.memory_space<vmem>>) attributes {dimension_semantics = [#tpu.dimension_semantics<parallel>], iteration_bounds = array<i64: 1>, scalar_prefetch = 0 : i64, scratch_operands = 0 : i64, tpu.core_type = #tpu.core_type<tc>, window_params = [{pipeline_mode = #tpu.pipeline_mode<synchronous>, transform_indices = @transform_0, window_bounds = array<i64: 8, 1280>}, {transform_indices = @transform_1, window_bounds = array<i64: 1280, 128>}, {transform_indices = @transform_2, window_bounds = array<i64: 1, 128>}, {transform_indices = @transform_3, window_bounds = array<i64: 8, 128>}]} {
    %c0 = arith.constant 0 : index
    %c0_0 = arith.constant 0 : index
    %0 = vector.load %arg1[%c0, %c0_0] : memref<8x1280xbf16, #tpu.memory_space<vmem>>, vector<8x1280xbf16>
    %c0_1 = arith.constant 0 : index
    %c0_2 = arith.constant 0 : index
    %1 = vector.load %arg2[%c0_1, %c0_2] : memref<1280x128xbf16, #tpu.memory_space<vmem>>, vector<1280x128xbf16>
    %cst = arith.constant dense<0.000000e+00> : vector<8x128xf32>
    %2 = tpu.matmul %0, %1, %cst {dimension_numbers = #tpu.dot_dimension_numbers<[1], [0], [0], [1], [0, 0, 1, 1], [], []>} : vector<8x1280xbf16>, vector<1280x128xbf16>, vector<8x128xf32> -> vector<8x128xf32>
    %c0_3 = arith.constant 0 : index
    %c0_4 = arith.constant 0 : index
    %3 = vector.load %arg3[%c0_3, %c0_4] : memref<1x128xf32, #tpu.memory_space<vmem>>, vector<1x128xf32>
    %4 = vector.broadcast %3 : vector<1x128xf32> to vector<8x128xf32>
    %5 = arith.addf %2, %4 : vector<8x128xf32>
    %c0_5 = arith.constant 0 : index
    %c0_6 = arith.constant 0 : index
    %6 = vector.load %arg4[%c0_5, %c0_6] : memref<8x128xf32, #tpu.memory_space<vmem>>, vector<8x128xf32>
    tpu.vector_store %arg4[%c0_5, %c0_6], %5 {strides = array<i32>} : memref<8x128xf32, #tpu.memory_space<vmem>>, vector<8x128xf32>,
    return
  }
  func.func @transform_0(%arg0: i32) -> (i32, i32) {
    %c0_i32 = arith.constant 0 : i32
    %c0_i32_0 = arith.constant 0 : i32
    %c0_i32_1 = arith.constant 0 : i32
    return %c0_i32, %c0_i32_0 : i32, i32
  }
  func.func @transform_1(%arg0: i32) -> (i32, i32) {
    %c0_i32 = arith.constant 0 : i32
    %c0_i32_0 = arith.constant 0 : i32
    return %c0_i32, %arg0 : i32, i32
  }
  func.func @transform_2(%arg0: i32) -> (i32, i32) {
    %c0_i32 = arith.constant 0 : i32
    %c0_i32_0 = arith.constant 0 : i32
    return %c0_i32, %arg0 : i32, i32
  }
  func.func @transform_3(%arg0: i32) -> (i32, i32) {
    %c0_i32 = arith.constant 0 : i32
    %c0_i32_0 = arith.constant 0 : i32
    return %c0_i32, %arg0 : i32, i32
  }
}

module attributes {stable_mosaic.version = 11 : i64} {
  func.func @_fused_matmul_kernel(%arg0: i32, %arg1: memref<8x128xf32, #tpu.memory_space<vmem>>, %arg2: memref<128x256xf32, #tpu.memory_space<vmem>>, %arg3: memref<1x256xf32, #tpu.memory_space<vmem>>, %arg4: memref<8x256xf32, #tpu.memory_space<vmem>>) attributes {dimension_semantics = [#tpu.dimension_semantics<parallel>], iteration_bounds = array<i64: 4>, scalar_prefetch = 0 : i64, scratch_operands = 0 : i64, tpu.core_type = #tpu.core_type<tc>, window_params = [{pipeline_mode = #tpu.pipeline_mode<synchronous>, transform_indices = @transform_0, window_bounds = array<i64: 8, 128>}, {transform_indices = @transform_1, window_bounds = array<i64: 128, 256>}, {transform_indices = @transform_2, window_bounds = array<i64: 1, 256>}, {transform_indices = @transform_3, window_bounds = array<i64: 8, 256>}]} {
    %c0 = arith.constant 0 : index
    %c0_0 = arith.constant 0 : index
    %0 = vector.load %arg1[%c0, %c0_0] : memref<8x128xf32, #tpu.memory_space<vmem>>, vector<8x128xf32>
    %c0_1 = arith.constant 0 : index
    %c0_2 = arith.constant 0 : index
    %1 = vector.load %arg2[%c0_1, %c0_2] : memref<128x256xf32, #tpu.memory_space<vmem>>, vector<128x256xf32>
    %cst = arith.constant dense<0.000000e+00> : vector<8x256xf32>
    %2 = tpu.matmul %0, %1, %cst {dimension_numbers = #tpu.dot_dimension_numbers<[1], [0], [0], [1], [0, 0, 1, 1], [], []>} : vector<8x128xf32>, vector<128x256xf32>, vector<8x256xf32> -> vector<8x256xf32>
    %c0_3 = arith.constant 0 : index
    %c0_4 = arith.constant 0 : index
    %3 = vector.load %arg3[%c0_3, %c0_4] : memref<1x256xf32, #tpu.memory_space<vmem>>, vector<1x256xf32>
    %4 = vector.broadcast %3 : vector<1x256xf32> to vector<8x256xf32>
    %5 = arith.addf %2, %4 : vector<8x256xf32>
    %c0_5 = arith.constant 0 : index
    %c0_6 = arith.constant 0 : index
    %6 = vector.load %arg4[%c0_5, %c0_6] : memref<8x256xf32, #tpu.memory_space<vmem>>, vector<8x256xf32>
    tpu.vector_store %arg4[%c0_5, %c0_6], %5 {strides = array<i32>} : memref<8x256xf32, #tpu.memory_space<vmem>>, vector<8x256xf32>,
    return
  }
  func.func @transform_0(%arg0: i32) -> (i32, i32) {
    %c0_i32 = arith.constant 0 : i32
    %c0_i32_0 = arith.constant 0 : i32
    %c0_i32_1 = arith.constant 0 : i32
    return %c0_i32, %c0_i32_0 : i32, i32
  }
  func.func @transform_1(%arg0: i32) -> (i32, i32) {
    %c0_i32 = arith.constant 0 : i32
    %c0_i32_0 = arith.constant 0 : i32
    return %c0_i32, %arg0 : i32, i32
  }
  func.func @transform_2(%arg0: i32) -> (i32, i32) {
    %c0_i32 = arith.constant 0 : i32
    %c0_i32_0 = arith.constant 0 : i32
    return %c0_i32, %arg0 : i32, i32
  }
  func.func @transform_3(%arg0: i32) -> (i32, i32) {
    %c0_i32 = arith.constant 0 : i32
    %c0_i32_0 = arith.constant 0 : i32
    return %c0_i32, %arg0 : i32, i32
  }
}

</mosaic_0001>

<llo_original>
// kernel: forward.19
$region0: #{forward.19}
  #allocation0 [shape = 'u32[]', space=smem, size = 0x4, offset = 0x4, fixed_abs, tag = 'smem constant byte address 0x4 - core index']
  #allocation1 [shape = 'u32[144,128]{1,0:T(1,128)}', space=vmem, size = 0x12000, scoped, tag = 'internal scratch']
  %s0 = inlined_call_operand.vmem [shape: bf16[512,128], index: 0, kind: input, shape index: {}]
  %s1 = inlined_call_operand.vmem [shape: bf16[128,128], index: 1, kind: input, shape index: {}]
  %s2 = inlined_call_operand.vmem [shape: f32[1,128], index: 2, kind: input, shape index: {}]
  %s3 = inlined_call_operand.vmem [shape: bf16[512,128], index: 3, kind: output, shape index: {}]
  %s4 = sld [smem:[#allocation0]]
  $region22: #{forward.19} parent=0
    _
  %s6 = ssub.s32 1, %s4
  %s7 = scalar_select 0, %s6, %s4
  // Predicated region
  $region2: #{forward.19} parent=0 // pred_check
    _
  $region3: #{forward.19} parent=0 // pred_check_branch
    %9 = sbr.rel (0) target = $region5
  $region4: #{forward.19} parent=0 // pred_region
    _
  $region5: #{forward.19} parent=0 // pred_fallthru
    _
  // Predicated region
  $region6: #{forward.19} parent=0 // pred_check
    _
  $region7: #{forward.19} parent=0 // pred_check_branch
    %11 = sbr.rel (0) target = $region9
  $region8: #{forward.19} parent=0 // pred_region
    _
  $region9: #{forward.19} parent=0 // pred_fallthru
    _
  // Predicated region
  $region10: #{forward.19} parent=0 // pred_check
    _
  $region11: #{forward.19} parent=0 // pred_check_branch
    %13 = sbr.rel (0) target = $region13
  $region12: #{forward.19} parent=0 // pred_region
    _
  $region13: #{forward.19} parent=0 // pred_fallthru
    _
  %v15 = vld [vmem:[%s0] sm:$0xf]
  %v16 = vld [vmem:[%s0 + $0x4] sm:$0xf]
  %v17 = vld [vmem:[%s0 + $0x8] sm:$0xf]
  %v18 = vld [vmem:[%s0 + $0xc] sm:$0xf]
  %v19 = vld [vmem:[%s0 + $0x10] sm:$0xf]
  %v20 = vld [vmem:[%s0 + $0x14] sm:$0xf]
  %v21 = vld [vmem:[%s0 + $0x18] sm:$0xf]
  %v22 = vld [vmem:[%s0 + $0x1c] sm:$0xf]
  %v23 = vld [vmem:[%s0 + $0x20] sm:$0xf]
  %v24 = vld [vmem:[%s0 + $0x24] sm:$0xf]
  %v25 = vld [vmem:[%s0 + $0x28] sm:$0xf]
  %v26 = vld [vmem:[%s0 + $0x2c] sm:$0xf]
  %v27 = vld [vmem:[%s0 + $0x30] sm:$0xf]
  %v28 = vld [vmem:[%s0 + $0x34] sm:$0xf]
  %v29 = vld [vmem:[%s0 + $0x38] sm:$0xf]
  %v30 = vld [vmem:[%s0 + $0x3c] sm:$0xf]
  %v31 = vld [vmem:[%s0 + $0x40] sm:$0xf]
  %v32 = vld [vmem:[%s0 + $0x44] sm:$0xf]
  %v33 = vld [vmem:[%s0 + $0x48] sm:$0xf]
  %v34 = vld [vmem:[%s0 + $0x4c] sm:$0xf]
  %v35 = vld [vmem:[%s0 + $0x50] sm:$0xf]
  %v36 = vld [vmem:[%s0 + $0x54] sm:$0xf]
  %v37 = vld [vmem:[%s0 + $0x58] sm:$0xf]
  %v38 = vld [vmem:[%s0 + $0x5c] sm:$0xf]
  %v39 = vld [vmem:[%s0 + $0x60] sm:$0xf]
  %v40 = vld [vmem:[%s0 + $0x64] sm:$0xf]
  %v41 = vld [vmem:[%s0 + $0x68] sm:$0xf]
  %v42 = vld [vmem:[%s0 + $0x6c] sm:$0xf]
  %v43 = vld [vmem:[%s0 + $0x70] sm:$0xf]
  %v44 = vld [vmem:[%s0 + $0x74] sm:$0xf]
  %v45 = vld [vmem:[%s0 + $0x78] sm:$0xf]
  %v46 = vld [vmem:[%s0 + $0x7c] sm:$0xf]
  %v47 = vld [vmem:[%s0 + $0x80] sm:$0xf]
  %v48 = vld [vmem:[%s0 + $0x84] sm:$0xf]
  %v49 = vld [vmem:[%s0 + $0x88] sm:$0xf]
  %v50 = vld [vmem:[%s0 + $0x8c] sm:$0xf]
  %v51 = vld [vmem:[%s0 + $0x90] sm:$0xf]
  %v52 = vld [vmem:[%s0 + $0x94] sm:$0xf]
  %v53 = vld [vmem:[%s0 + $0x98] sm:$0xf]
  %v54 = vld [vmem:[%s0 + $0x9c] sm:$0xf]
  %v55 = vld [vmem:[%s0 + $0xa0] sm:$0xf]
  %v56 = vld [vmem:[%s0 + $0xa4] sm:$0xf]
  %v57 = vld [vmem:[%s0 + $0xa8] sm:$0xf]
  %v58 = vld [vmem:[%s0 + $0xac] sm:$0xf]
  %v59 = vld [vmem:[%s0 + $0xb0] sm:$0xf]
  %v60 = vld [vmem:[%s0 + $0xb4] sm:$0xf]
  %v61 = vld [vmem:[%s0 + $0xb8] sm:$0xf]
  %v62 = vld [vmem:[%s0 + $0xbc] sm:$0xf]
  %v63 = vld [vmem:[%s0 + $0xc0] sm:$0xf]
  %v64 = vld [vmem:[%s0 + $0xc4] sm:$0xf]
  %v65 = vld [vmem:[%s0 + $0xc8] sm:$0xf]
  %v66 = vld [vmem:[%s0 + $0xcc] sm:$0xf]
  %v67 = vld [vmem:[%s0 + $0xd0] sm:$0xf]
  %v68 = vld [vmem:[%s0 + $0xd4] sm:$0xf]
  %v69 = vld [vmem:[%s0 + $0xd8] sm:$0xf]
  %v70 = vld [vmem:[%s0 + $0xdc] sm:$0xf]
  %v71 = vld [vmem:[%s0 + $0xe0] sm:$0xf]
  %v72 = vld [vmem:[%s0 + $0xe4] sm:$0xf]
  %v73 = vld [vmem:[%s0 + $0xe8] sm:$0xf]
  %v74 = vld [vmem:[%s0 + $0xec] sm:$0xf]
  %v75 = vld [vmem:[%s0 + $0xf0] sm:$0xf]
  %v76 = vld [vmem:[%s0 + $0xf4] sm:$0xf]
  %v77 = vld [vmem:[%s0 + $0xf8] sm:$0xf]
  %v78 = vld [vmem:[%s0 + $0xfc] sm:$0xf]
  %v79 = vld [vmem:[%s1] sm:$0xf]
  %v80 = vld [vmem:[%s1 + $0x4] sm:$0xf]
  %v81 = vld [vmem:[%s1 + $0x8] sm:$0xf]
  %v82 = vld [vmem:[%s1 + $0xc] sm:$0xf]
  %v83 = vld [vmem:[%s1 + $0x10] sm:$0xf]
  %v84 = vld [vmem:[%s1 + $0x14] sm:$0xf]
  %v85 = vld [vmem:[%s1 + $0x18] sm:$0xf]
  %v86 = vld [vmem:[%s1 + $0x1c] sm:$0xf]
  %v87 = vld [vmem:[%s1 + $0x20] sm:$0xf]
  %v88 = vld [vmem:[%s1 + $0x24] sm:$0xf]
  %v89 = vld [vmem:[%s1 + $0x28] sm:$0xf]
  %v90 = vld [vmem:[%s1 + $0x2c] sm:$0xf]
  %v91 = vld [vmem:[%s1 + $0x30] sm:$0xf]
  %v92 = vld [vmem:[%s1 + $0x34] sm:$0xf]
  %v93 = vld [vmem:[%s1 + $0x38] sm:$0xf]
  %v94 = vld [vmem:[%s1 + $0x3c] sm:$0xf]
  %v95 = vld [vmem:[%s2] sm:$0x1]
  %v97 = vlaneseq
  %v98 = vshrl.u32 %v97, 7
  %v99 = vsub.s32 0, %v98
  %v100 = vrot.slane %v95, %v99
  %v166 = vunpack.c.l.b16 %v15
  %v167 = vunpack.c.l.b16 %v16
  %v168 = vunpack.c.l.b16 %v17
  %v169 = vunpack.c.l.b16 %v18
  %v170 = vunpack.c.l.b16 %v19
  %v171 = vunpack.c.l.b16 %v20
  %v172 = vunpack.c.l.b16 %v21
  %v173 = vunpack.c.l.b16 %v22
  %v174 = vunpack.c.l.b16 %v23
  %v175 = vunpack.c.l.b16 %v24
  %v176 = vunpack.c.l.b16 %v25
  %v177 = vunpack.c.l.b16 %v26
  %v178 = vunpack.c.l.b16 %v27
  %v179 = vunpack.c.l.b16 %v28
  %v180 = vunpack.c.l.b16 %v29
  %v181 = vunpack.c.l.b16 %v30
  %v182 = vunpack.c.l.b16 %v31
  %v183 = vunpack.c.l.b16 %v32
  %v184 = vunpack.c.l.b16 %v33
  %v185 = vunpack.c.l.b16 %v34
  %v186 = vunpack.c.l.b16 %v35
  %v187 = vunpack.c.l.b16 %v36
  %v188 = vunpack.c.l.b16 %v37
  %v189 = vunpack.c.l.b16 %v38
  %v190 = vunpack.c.l.b16 %v39
  %v191 = vunpack.c.l.b16 %v40
  %v192 = vunpack.c.l.b16 %v41
  %v193 = vunpack.c.l.b16 %v42
  %v194 = vunpack.c.l.b16 %v43
  %v195 = vunpack.c.l.b16 %v44
  %v196 = vunpack.c.l.b16 %v45
  %v197 = vunpack.c.l.b16 %v46
  %v198 = vunpack.c.l.b16 %v47
  %v199 = vunpack.c.l.b16 %v48
  %v200 = vunpack.c.l.b16 %v49
  %v201 = vunpack.c.l.b16 %v50
  %v202 = vunpack.c.l.b16 %v51
  %v203 = vunpack.c.l.b16 %v52
  %v204 = vunpack.c.l.b16 %v53
  %v205 = vunpack.c.l.b16 %v54
  %v206 = vunpack.c.l.b16 %v55
  %v207 = vunpack.c.l.b16 %v56
  %v208 = vunpack.c.l.b16 %v57
  %v209 = vunpack.c.l.b16 %v58
  %v210 = vunpack.c.l.b16 %v59
  %v211 = vunpack.c.l.b16 %v60
  %v212 = vunpack.c.l.b16 %v61
  %v213 = vunpack.c.l.b16 %v62
  %v214 = vunpack.c.l.b16 %v63
  %v215 = vunpack.c.l.b16 %v64
  %v216 = vunpack.c.l.b16 %v65
  %v217 = vunpack.c.l.b16 %v66
  %v218 = vunpack.c.l.b16 %v67
  %v219 = vunpack.c.l.b16 %v68
  %v220 = vunpack.c.l.b16 %v69
  %v221 = vunpack.c.l.b16 %v70
  %v222 = vunpack.c.l.b16 %v71
  %v223 = vunpack.c.l.b16 %v72
  %v224 = vunpack.c.l.b16 %v73
  %v225 = vunpack.c.l.b16 %v74
  %v226 = vunpack.c.l.b16 %v75
  %v227 = vunpack.c.l.b16 %v76
  %v228 = vunpack.c.l.b16 %v77
  %v229 = vunpack.c.l.b16 %v78
  %v230 = vpack.c.b16 %v167, %v166
  %v231 = vpack.c.b16 %v169, %v168
  %v232 = vpack.c.b16 %v171, %v170
  %v233 = vpack.c.b16 %v173, %v172
  %v234 = vpack.c.b16 %v175, %v174
  %v235 = vpack.c.b16 %v177, %v176
  %v236 = vpack.c.b16 %v179, %v178
  %v237 = vpack.c.b16 %v181, %v180
  %v238 = vpack.c.b16 %v183, %v182
  %v239 = vpack.c.b16 %v185, %v184
  %v240 = vpack.c.b16 %v187, %v186
  %v241 = vpack.c.b16 %v189, %v188
  %v242 = vpack.c.b16 %v191, %v190
  %v243 = vpack.c.b16 %v193, %v192
  %v244 = vpack.c.b16 %v195, %v194
  %v245 = vpack.c.b16 %v197, %v196
  %v246 = vpack.c.b16 %v199, %v198
  %v247 = vpack.c.b16 %v201, %v200
  %v248 = vpack.c.b16 %v203, %v202
  %v249 = vpack.c.b16 %v205, %v204
  %v250 = vpack.c.b16 %v207, %v206
  %v251 = vpack.c.b16 %v209, %v208
  %v252 = vpack.c.b16 %v211, %v210
  %v253 = vpack.c.b16 %v213, %v212
  %v254 = vpack.c.b16 %v215, %v214
  %v255 = vpack.c.b16 %v217, %v216
  %v256 = vpack.c.b16 %v219, %v218
  %v257 = vpack.c.b16 %v221, %v220
  %v258 = vpack.c.b16 %v223, %v222
  %v259 = vpack.c.b16 %v225, %v224
  %v260 = vpack.c.b16 %v227, %v226
  %v261 = vpack.c.b16 %v229, %v228
  %v310 = vunpack.c.l.b16 %v79
  %v311 = vunpack.c.l.b16 %v80
  %v312 = vunpack.c.l.b16 %v81
  %v313 = vunpack.c.l.b16 %v82
  %v314 = vunpack.c.l.b16 %v83
  %v315 = vunpack.c.l.b16 %v84
  %v316 = vunpack.c.l.b16 %v85
  %v317 = vunpack.c.l.b16 %v86
  %v318 = vunpack.c.l.b16 %v87
  %v319 = vunpack.c.l.b16 %v88
  %v320 = vunpack.c.l.b16 %v89
  %v321 = vunpack.c.l.b16 %v90
  %v322 = vunpack.c.l.b16 %v91
  %v323 = vunpack.c.l.b16 %v92
  %v324 = vunpack.c.l.b16 %v93
  %v325 = vunpack.c.l.b16 %v94
  %v326 = vpack.c.b16 %v311, %v310
  %v327 = vpack.c.b16 %v313, %v312
  %v328 = vpack.c.b16 %v315, %v314
  %v329 = vpack.c.b16 %v317, %v316
  %v330 = vpack.c.b16 %v319, %v318
  %v331 = vpack.c.b16 %v321, %v320
  %v332 = vpack.c.b16 %v323, %v322
  %v333 = vpack.c.b16 %v325, %v324
  %342 = vmatprep.subr.bf16.mxu0 0
  %343 = vmatpush1.bf16.msra.mxu0 %v326
  %344 = vmatprep.subr.bf16.mxu0 0
  %345 = vmatpush1.bf16.msra.mxu0 %v327
  %346 = vmatprep.subr.bf16.mxu0 0
  %347 = vmatpush1.bf16.msra.mxu0 %v328
  %348 = vmatprep.subr.bf16.mxu0 0
  %349 = vmatpush1.bf16.msra.mxu0 %v329
  %350 = vmatprep.subr.bf16.mxu0 0
  %351 = vmatpush1.bf16.msra.mxu0 %v330
  %352 = vmatprep.subr.bf16.mxu0 0
  %353 = vmatpush1.bf16.msra.mxu0 %v331
  %354 = vmatprep.subr.bf16.mxu0 0
  %355 = vmatpush1.bf16.msra.mxu0 %v332
  %356 = vmatprep.subr.bf16.mxu0 0
  %357 = vmatpush1.bf16.msra.mxu0 %v333
  %358 = vmatprep.subr.bf16.mxu0 0
  %359 = vmatpush1.bf16.msra.mxu0 0
  %360 = vmatprep.subr.bf16.mxu0 0
  %361 = vmatpush1.bf16.msra.mxu0 0
  %362 = vmatprep.subr.bf16.mxu0 0
  %363 = vmatpush1.bf16.msra.mxu0 0
  %364 = vmatprep.subr.bf16.mxu0 0
  %365 = vmatpush1.bf16.msra.mxu0 0
  %366 = vmatprep.subr.bf16.mxu0 0
  %367 = vmatpush1.bf16.msra.mxu0 0
  %368 = vmatprep.subr.bf16.mxu0 0
  %369 = vmatpush1.bf16.msra.mxu0 0
  %370 = vmatprep.subr.bf16.mxu0 0
  %371 = vmatpush1.bf16.msra.mxu0 0
  %372 = vmatprep.subr.bf16.mxu0 0
  %373 = vmatpush1.bf16.msra.mxu0 0
  %374 = vmatprep.mubr.bf16.mxu0 0
  %375 = vmatmul.mubr.bf16.gmra.mrb[0].mxu0 %v230
  %v376 = vpop.f32.mrb[0].mxu0
  %v377 = vadd.f32 %v100, %v376
  %v378 = vpop.f32.mrb[0].mxu0
  %v379 = vpop.f32.mrb[0].mxu0
  %v380 = vadd.f32 %v100, %v379
  %v381 = vpop.f32.mrb[0].mxu0
  %382 = vmatprep.mubr.bf16.mxu0 0
  %383 = vmatmul.mubr.bf16.gmra.mrb[0].mxu0 %v231
  %v384 = vpop.f32.mrb[0].mxu0
  %v385 = vadd.f32 %v100, %v384
  %v386 = vpop.f32.mrb[0].mxu0
  %v387 = vpop.f32.mrb[0].mxu0
  %v388 = vadd.f32 %v100, %v387
  %v389 = vpop.f32.mrb[0].mxu0
  %390 = vmatprep.mubr.bf16.mxu0 0
  %391 = vmatmul.mubr.bf16.gmra.mrb[0].mxu0 %v232
  %v392 = vpop.f32.mrb[0].mxu0
  %v393 = vadd.f32 %v100, %v392
  %v394 = vpop.f32.mrb[0].mxu0
  %v395 = vpop.f32.mrb[0].mxu0
  %v396 = vadd.f32 %v100, %v395
  %v397 = vpop.f32.mrb[0].mxu0
  %398 = vmatprep.mubr.bf16.mxu0 0
  %399 = vmatmul.mubr.bf16.gmra.mrb[0].mxu0 %v233
  %v400 = vpop.f32.mrb[0].mxu0
  %v401 = vadd.f32 %v100, %v400
  %v402 = vpop.f32.mrb[0].mxu0
  %v403 = vpop.f32.mrb[0].mxu0
  %v404 = vadd.f32 %v100, %v403
  %v405 = vpop.f32.mrb[0].mxu0
  %406 = vmatprep.mubr.bf16.mxu0 0
  %407 = vmatmul.mubr.bf16.gmra.mrb[0].mxu0 %v234
  %v408 = vpop.f32.mrb[0].mxu0
  %v409 = vadd.f32 %v100, %v408
  %v410 = vpop.f32.mrb[0].mxu0
  %v411 = vpop.f32.mrb[0].mxu0
  %v412 = vadd.f32 %v100, %v411
  %v413 = vpop.f32.mrb[0].mxu0
  %414 = vmatprep.mubr.bf16.mxu0 0
  %415 = vmatmul.mubr.bf16.gmra.mrb[0].mxu0 %v235
  %v416 = vpop.f32.mrb[0].mxu0
  %v417 = vadd.f32 %v100, %v416
  %v418 = vpop.f32.mrb[0].mxu0
  %v419 = vpop.f32.mrb[0].mxu0
  %v420 = vadd.f32 %v100, %v419
  %v421 = vpop.f32.mrb[0].mxu0
  %422 = vmatprep.mubr.bf16.mxu0 0
  %423 = vmatmul.mubr.bf16.gmra.mrb[0].mxu0 %v236
  %v424 = vpop.f32.mrb[0].mxu0
  %v425 = vadd.f32 %v100, %v424
  %v426 = vpop.f32.mrb[0].mxu0
  %v427 = vpop.f32.mrb[0].mxu0
  %v428 = vadd.f32 %v100, %v427
  %v429 = vpop.f32.mrb[0].mxu0
  %430 = vmatprep.mubr.bf16.mxu0 0
  %431 = vmatmul.mubr.bf16.gmra.mrb[0].mxu0 %v237
  %v432 = vpop.f32.mrb[0].mxu0
  %v433 = vadd.f32 %v100, %v432
  %v434 = vpop.f32.mrb[0].mxu0
  %v435 = vpop.f32.mrb[0].mxu0
  %v436 = vadd.f32 %v100, %v435
  %v437 = vpop.f32.mrb[0].mxu0
  %438 = vmatprep.mubr.bf16.mxu0 0
  %439 = vmatmul.mubr.bf16.gmra.mrb[0].mxu0 %v238
  %v440 = vpop.f32.mrb[0].mxu0
  %v441 = vadd.f32 %v100, %v440
  %v442 = vpop.f32.mrb[0].mxu0
  %v443 = vpop.f32.mrb[0].mxu0
  %v444 = vadd.f32 %v100, %v443
  %v445 = vpop.f32.mrb[0].mxu0
  %446 = vmatprep.mubr.bf16.mxu0 0
  %447 = vmatmul.mubr.bf16.gmra.mrb[0].mxu0 %v239
  %v448 = vpop.f32.mrb[0].mxu0
  %v449 = vadd.f32 %v100, %v448
  %v450 = vpop.f32.mrb[0].mxu0
  %v451 = vpop.f32.mrb[0].mxu0
  %v452 = vadd.f32 %v100, %v451
  %v453 = vpop.f32.mrb[0].mxu0
  %454 = vmatprep.mubr.bf16.mxu0 0
  %455 = vmatmul.mubr.bf16.gmra.mrb[0].mxu0 %v240
  %v456 = vpop.f32.mrb[0].mxu0
  %v457 = vadd.f32 %v100, %v456
  %v458 = vpop.f32.mrb[0].mxu0
  %v459 = vpop.f32.mrb[0].mxu0
  %v460 = vadd.f32 %v100, %v459
  %v461 = vpop.f32.mrb[0].mxu0
  %462 = vmatprep.mubr.bf16.mxu0 0
  %463 = vmatmul.mubr.bf16.gmra.mrb[0].mxu0 %v241
  %v464 = vpop.f32.mrb[0].mxu0
  %v465 = vadd.f32 %v100, %v464
  %v466 = vpop.f32.mrb[0].mxu0
  %v467 = vpop.f32.mrb[0].mxu0
  %v468 = vadd.f32 %v100, %v467
  %v469 = vpop.f32.mrb[0].mxu0
  %470 = vmatprep.mubr.bf16.mxu0 0
  %471 = vmatmul.mubr.bf16.gmra.mrb[0].mxu0 %v242
  %v472 = vpop.f32.mrb[0].mxu0
  %v473 = vadd.f32 %v100, %v472
  %v474 = vpop.f32.mrb[0].mxu0
  %v475 = vpop.f32.mrb[0].mxu0
  %v476 = vadd.f32 %v100, %v475
  %v477 = vpop.f32.mrb[0].mxu0
  %478 = vmatprep.mubr.bf16.mxu0 0
  %479 = vmatmul.mubr.bf16.gmra.mrb[0].mxu0 %v243
  %v480 = vpop.f32.mrb[0].mxu0
  %v481 = vadd.f32 %v100, %v480
  %v482 = vpop.f32.mrb[0].mxu0
  %v483 = vpop.f32.mrb[0].mxu0
  %v484 = vadd.f32 %v100, %v483
  %v485 = vpop.f32.mrb[0].mxu0
  %486 = vmatprep.mubr.bf16.mxu0 0
  %487 = vmatmul.mubr.bf16.gmra.mrb[0].mxu0 %v244
  %v488 = vpop.f32.mrb[0].mxu0
  %v489 = vadd.f32 %v100, %v488
  %v490 = vpop.f32.mrb[0].mxu0
  %v491 = vpop.f32.mrb[0].mxu0
  %v492 = vadd.f32 %v100, %v491
  %v493 = vpop.f32.mrb[0].mxu0
  %494 = vmatprep.mubr.bf16.mxu0 0
  %495 = vmatmul.mubr.bf16.gmra.mrb[0].mxu0 %v245
  %v496 = vpop.f32.mrb[0].mxu0
  %v497 = vadd.f32 %v100, %v496
  %v498 = vpop.f32.mrb[0].mxu0
  %v499 = vpop.f32.mrb[0].mxu0
  %v500 = vadd.f32 %v100, %v499
  %v501 = vpop.f32.mrb[0].mxu0
  %502 = vmatprep.mubr.bf16.mxu0 0
  %503 = vmatmul.mubr.bf16.gmra.mrb[0].mxu0 %v246
  %v504 = vpop.f32.mrb[0].mxu0
  %v505 = vadd.f32 %v100, %v504
  %v506 = vpop.f32.mrb[0].mxu0
  %v507 = vpop.f32.mrb[0].mxu0
  %v508 = vadd.f32 %v100, %v507
  %v509 = vpop.f32.mrb[0].mxu0
  %510 = vmatprep.mubr.bf16.mxu0 0
  %511 = vmatmul.mubr.bf16.gmra.mrb[0].mxu0 %v247
  %v512 = vpop.f32.mrb[0].mxu0
  %v513 = vadd.f32 %v100, %v512
  %v514 = vpop.f32.mrb[0].mxu0
  %v515 = vpop.f32.mrb[0].mxu0
  %v516 = vadd.f32 %v100, %v515
  %v517 = vpop.f32.mrb[0].mxu0
  %518 = vmatprep.mubr.bf16.mxu0 0
  %519 = vmatmul.mubr.bf16.gmra.mrb[0].mxu0 %v248
  %v520 = vpop.f32.mrb[0].mxu0
  %v521 = vadd.f32 %v100, %v520
  %v522 = vpop.f32.mrb[0].mxu0
  %v523 = vpop.f32.mrb[0].mxu0
  %v524 = vadd.f32 %v100, %v523
  %v525 = vpop.f32.mrb[0].mxu0
  %526 = vmatprep.mubr.bf16.mxu0 0
  %527 = vmatmul.mubr.bf16.gmra.mrb[0].mxu0 %v249
  %v528 = vpop.f32.mrb[0].mxu0
  %v529 = vadd.f32 %v100, %v528
  %v530 = vpop.f32.mrb[0].mxu0
  %v531 = vpop.f32.mrb[0].mxu0
  %v532 = vadd.f32 %v100, %v531
  %v533 = vpop.f32.mrb[0].mxu0
  %534 = vmatprep.mubr.bf16.mxu0 0
  %535 = vmatmul.mubr.bf16.gmra.mrb[0].mxu0 %v250
  %v536 = vpop.f32.mrb[0].mxu0
  %v537 = vadd.f32 %v100, %v536
  %v538 = vpop.f32.mrb[0].mxu0
  %v539 = vpop.f32.mrb[0].mxu0
  %v540 = vadd.f32 %v100, %v539
  %v541 = vpop.f32.mrb[0].mxu0
  %542 = vmatprep.mubr.bf16.mxu0 0
  %543 = vmatmul.mubr.bf16.gmra.mrb[0].mxu0 %v251
  %v544 = vpop.f32.mrb[0].mxu0
  %v545 = vadd.f32 %v100, %v544
  %v546 = vpop.f32.mrb[0].mxu0
  %v547 = vpop.f32.mrb[0].mxu0
  %v548 = vadd.f32 %v100, %v547
  %v549 = vpop.f32.mrb[0].mxu0
  %550 = vmatprep.mubr.bf16.mxu0 0
  %551 = vmatmul.mubr.bf16.gmra.mrb[0].mxu0 %v252
  %v552 = vpop.f32.mrb[0].mxu0
  %v553 = vadd.f32 %v100, %v552
  %v554 = vpop.f32.mrb[0].mxu0
  %v555 = vpop.f32.mrb[0].mxu0
  %v556 = vadd.f32 %v100, %v555
  %v557 = vpop.f32.mrb[0].mxu0
  %558 = vmatprep.mubr.bf16.mxu0 0
  %559 = vmatmul.mubr.bf16.gmra.mrb[0].mxu0 %v253
  %v560 = vpop.f32.mrb[0].mxu0
  %v561 = vadd.f32 %v100, %v560
  %v562 = vpop.f32.mrb[0].mxu0
  %v563 = vpop.f32.mrb[0].mxu0
  %v564 = vadd.f32 %v100, %v563
  %v565 = vpop.f32.mrb[0].mxu0
  %566 = vmatprep.mubr.bf16.mxu0 0
  %567 = vmatmul.mubr.bf16.gmra.mrb[0].mxu0 %v254
  %v568 = vpop.f32.mrb[0].mxu0
  %v569 = vadd.f32 %v100, %v568
  %v570 = vpop.f32.mrb[0].mxu0
  %v571 = vpop.f32.mrb[0].mxu0
  %v572 = vadd.f32 %v100, %v571
  %v573 = vpop.f32.mrb[0].mxu0
  %574 = vmatprep.mubr.bf16.mxu0 0
  %575 = vmatmul.mubr.bf16.gmra.mrb[0].mxu0 %v255
  %v576 = vpop.f32.mrb[0].mxu0
  %v577 = vadd.f32 %v100, %v576
  %v578 = vpop.f32.mrb[0].mxu0
  %v579 = vpop.f32.mrb[0].mxu0
  %v580 = vadd.f32 %v100, %v579
  %v581 = vpop.f32.mrb[0].mxu0
  %582 = vmatprep.mubr.bf16.mxu0 0
  %583 = vmatmul.mubr.bf16.gmra.mrb[0].mxu0 %v256
  %v584 = vpop.f32.mrb[0].mxu0
  %v585 = vadd.f32 %v100, %v584
  %v586 = vpop.f32.mrb[0].mxu0
  %v587 = vpop.f32.mrb[0].mxu0
  %v588 = vadd.f32 %v100, %v587
  %v589 = vpop.f32.mrb[0].mxu0
  %590 = vmatprep.mubr.bf16.mxu0 0
  %591 = vmatmul.mubr.bf16.gmra.mrb[0].mxu0 %v257
  %v592 = vpop.f32.mrb[0].mxu0
  %v593 = vadd.f32 %v100, %v592
  %v594 = vpop.f32.mrb[0].mxu0
  %v595 = vpop.f32.mrb[0].mxu0
  %v596 = vadd.f32 %v100, %v595
  %v597 = vpop.f32.mrb[0].mxu0
  %598 = vmatprep.mubr.bf16.mxu0 0
  %599 = vmatmul.mubr.bf16.gmra.mrb[0].mxu0 %v258
  %v600 = vpop.f32.mrb[0].mxu0
  %v601 = vadd.f32 %v100, %v600
  %v602 = vpop.f32.mrb[0].mxu0
  %v603 = vpop.f32.mrb[0].mxu0
  %v604 = vadd.f32 %v100, %v603
  %v605 = vpop.f32.mrb[0].mxu0
  %606 = vmatprep.mubr.bf16.mxu0 0
  %607 = vmatmul.mubr.bf16.gmra.mrb[0].mxu0 %v259
  %v608 = vpop.f32.mrb[0].mxu0
  %v609 = vadd.f32 %v100, %v608
  %v610 = vpop.f32.mrb[0].mxu0
  %v611 = vpop.f32.mrb[0].mxu0
  %v612 = vadd.f32 %v100, %v611
  %v613 = vpop.f32.mrb[0].mxu0
  %614 = vmatprep.mubr.bf16.mxu0 0
  %615 = vmatmul.mubr.bf16.gmra.mrb[0].mxu0 %v260
  %v616 = vpop.f32.mrb[0].mxu0
  %v617 = vadd.f32 %v100, %v616
  %v618 = vpop.f32.mrb[0].mxu0
  %v619 = vpop.f32.mrb[0].mxu0
  %v620 = vadd.f32 %v100, %v619
  %v621 = vpop.f32.mrb[0].mxu0
  %622 = vmatprep.mubr.bf16.mxu0 0
  %623 = vmatmul.mubr.bf16.gmra.mrb[0].mxu0 %v261
  %v624 = vpop.f32.mrb[0].mxu0
  %v625 = vadd.f32 %v100, %v624
  %v626 = vpop.f32.mrb[0].mxu0
  %v627 = vpop.f32.mrb[0].mxu0
  %v628 = vadd.f32 %v100, %v627
  %v629 = vpop.f32.mrb[0].mxu0
  %630 = vdwg.mxu0
  %v631 = vmax.f32 %v377, 0.0
  %v632 = vmax.f32 %v380, 0.0
  %v633 = vmax.f32 %v385, 0.0
  %v634 = vmax.f32 %v388, 0.0
  %v635 = vmax.f32 %v393, 0.0
  %v636 = vmax.f32 %v396, 0.0
  %v637 = vmax.f32 %v401, 0.0
  %v638 = vmax.f32 %v404, 0.0
  %v639 = vmax.f32 %v409, 0.0
  %v640 = vmax.f32 %v412, 0.0
  %v641 = vmax.f32 %v417, 0.0
  %v642 = vmax.f32 %v420, 0.0
  %v643 = vmax.f32 %v425, 0.0
  %v644 = vmax.f32 %v428, 0.0
  %v645 = vmax.f32 %v433, 0.0
  %v646 = vmax.f32 %v436, 0.0
  %v647 = vmax.f32 %v441, 0.0
  %v648 = vmax.f32 %v444, 0.0
  %v649 = vmax.f32 %v449, 0.0
  %v650 = vmax.f32 %v452, 0.0
  %v651 = vmax.f32 %v457, 0.0
  %v652 = vmax.f32 %v460, 0.0
  %v653 = vmax.f32 %v465, 0.0
  %v654 = vmax.f32 %v468, 0.0
  %v655 = vmax.f32 %v473, 0.0
  %v656 = vmax.f32 %v476, 0.0
  %v657 = vmax.f32 %v481, 0.0
  %v658 = vmax.f32 %v484, 0.0
  %v659 = vmax.f32 %v489, 0.0
  %v660 = vmax.f32 %v492, 0.0
  %v661 = vmax.f32 %v497, 0.0
  %v662 = vmax.f32 %v500, 0.0
  %v663 = vmax.f32 %v505, 0.0
  %v664 = vmax.f32 %v508, 0.0
  %v665 = vmax.f32 %v513, 0.0
  %v666 = vmax.f32 %v516, 0.0
  %v667 = vmax.f32 %v521, 0.0
  %v668 = vmax.f32 %v524, 0.0
  %v669 = vmax.f32 %v529, 0.0
  %v670 = vmax.f32 %v532, 0.0
  %v671 = vmax.f32 %v537, 0.0
  %v672 = vmax.f32 %v540, 0.0
  %v673 = vmax.f32 %v545, 0.0
  %v674 = vmax.f32 %v548, 0.0
  %v675 = vmax.f32 %v553, 0.0
  %v676 = vmax.f32 %v556, 0.0
  %v677 = vmax.f32 %v561, 0.0
  %v678 = vmax.f32 %v564, 0.0
  %v679 = vmax.f32 %v569, 0.0
  %v680 = vmax.f32 %v572, 0.0
  %v681 = vmax.f32 %v577, 0.0
  %v682 = vmax.f32 %v580, 0.0
  %v683 = vmax.f32 %v585, 0.0
  %v684 = vmax.f32 %v588, 0.0
  %v685 = vmax.f32 %v593, 0.0
  %v686 = vmax.f32 %v596, 0.0
  %v687 = vmax.f32 %v601, 0.0
  %v688 = vmax.f32 %v604, 0.0
  %v689 = vmax.f32 %v609, 0.0
  %v690 = vmax.f32 %v612, 0.0
  %v691 = vmax.f32 %v617, 0.0
  %v692 = vmax.f32 %v620, 0.0
  %v693 = vmax.f32 %v625, 0.0
  %v694 = vmax.f32 %v628, 0.0
  %v695 = vmin.f32 %v631, 6.0
  %v696 = vmin.f32 %v632, 6.0
  %v697 = vmin.f32 %v633, 6.0
  %v698 = vmin.f32 %v634, 6.0
  %v699 = vmin.f32 %v635, 6.0
  %v700 = vmin.f32 %v636, 6.0
  %v701 = vmin.f32 %v637, 6.0
  %v702 = vmin.f32 %v638, 6.0
  %v703 = vmin.f32 %v639, 6.0
  %v704 = vmin.f32 %v640, 6.0
  %v705 = vmin.f32 %v641, 6.0
  %v706 = vmin.f32 %v642, 6.0
  %v707 = vmin.f32 %v643, 6.0
  %v708 = vmin.f32 %v644, 6.0
  %v709 = vmin.f32 %v645, 6.0
  %v710 = vmin.f32 %v646, 6.0
  %v711 = vmin.f32 %v647, 6.0
  %v712 = vmin.f32 %v648, 6.0
  %v713 = vmin.f32 %v649, 6.0
  %v714 = vmin.f32 %v650, 6.0
  %v715 = vmin.f32 %v651, 6.0
  %v716 = vmin.f32 %v652, 6.0
  %v717 = vmin.f32 %v653, 6.0
  %v718 = vmin.f32 %v654, 6.0
  %v719 = vmin.f32 %v655, 6.0
  %v720 = vmin.f32 %v656, 6.0
  %v721 = vmin.f32 %v657, 6.0
  %v722 = vmin.f32 %v658, 6.0
  %v723 = vmin.f32 %v659, 6.0
  %v724 = vmin.f32 %v660, 6.0
  %v725 = vmin.f32 %v661, 6.0
  %v726 = vmin.f32 %v662, 6.0
  %v727 = vmin.f32 %v663, 6.0
  %v728 = vmin.f32 %v664, 6.0
  %v729 = vmin.f32 %v665, 6.0
  %v730 = vmin.f32 %v666, 6.0
  %v731 = vmin.f32 %v667, 6.0
  %v732 = vmin.f32 %v668, 6.0
  %v733 = vmin.f32 %v669, 6.0
  %v734 = vmin.f32 %v670, 6.0
  %v735 = vmin.f32 %v671, 6.0
  %v736 = vmin.f32 %v672, 6.0
  %v737 = vmin.f32 %v673, 6.0
  %v738 = vmin.f32 %v674, 6.0
  %v739 = vmin.f32 %v675, 6.0
  %v740 = vmin.f32 %v676, 6.0
  %v741 = vmin.f32 %v677, 6.0
  %v742 = vmin.f32 %v678, 6.0
  %v743 = vmin.f32 %v679, 6.0
  %v744 = vmin.f32 %v680, 6.0
  %v745 = vmin.f32 %v681, 6.0
  %v746 = vmin.f32 %v682, 6.0
  %v747 = vmin.f32 %v683, 6.0
  %v748 = vmin.f32 %v684, 6.0
  %v749 = vmin.f32 %v685, 6.0
  %v750 = vmin.f32 %v686, 6.0
  %v751 = vmin.f32 %v687, 6.0
  %v752 = vmin.f32 %v688, 6.0
  %v753 = vmin.f32 %v689, 6.0
  %v754 = vmin.f32 %v690, 6.0
  %v755 = vmin.f32 %v691, 6.0
  %v756 = vmin.f32 %v692, 6.0
  %v757 = vmin.f32 %v693, 6.0
  %v758 = vmin.f32 %v694, 6.0
  %v759 = vpack.c.bf16 %v696, %v695
  %v760 = vpack.c.bf16 %v698, %v697
  %v761 = vpack.c.bf16 %v700, %v699
  %v762 = vpack.c.bf16 %v702, %v701
  %v763 = vpack.c.bf16 %v704, %v703
  %v764 = vpack.c.bf16 %v706, %v705
  %v765 = vpack.c.bf16 %v708, %v707
  %v766 = vpack.c.bf16 %v710, %v709
  %v767 = vpack.c.bf16 %v712, %v711
  %v768 = vpack.c.bf16 %v714, %v713
  %v769 = vpack.c.bf16 %v716, %v715
  %v770 = vpack.c.bf16 %v718, %v717
  %v771 = vpack.c.bf16 %v720, %v719
  %v772 = vpack.c.bf16 %v722, %v721
  %v773 = vpack.c.bf16 %v724, %v723
  %v774 = vpack.c.bf16 %v726, %v725
  %v775 = vpack.c.bf16 %v728, %v727
  %v776 = vpack.c.bf16 %v730, %v729
  %v777 = vpack.c.bf16 %v732, %v731
  %v778 = vpack.c.bf16 %v734, %v733
  %v779 = vpack.c.bf16 %v736, %v735
  %v780 = vpack.c.bf16 %v738, %v737
  %v781 = vpack.c.bf16 %v740, %v739
  %v782 = vpack.c.bf16 %v742, %v741
  %v783 = vpack.c.bf16 %v744, %v743
  %v784 = vpack.c.bf16 %v746, %v745
  %v785 = vpack.c.bf16 %v748, %v747
  %v786 = vpack.c.bf16 %v750, %v749
  %v787 = vpack.c.bf16 %v752, %v751
  %v788 = vpack.c.bf16 %v754, %v753
  %v789 = vpack.c.bf16 %v756, %v755
  %v790 = vpack.c.bf16 %v758, %v757
  %v823 = vunpack.c.l.b16 %v759
  %v824 = vunpack.c.h.b16 %v759
  %v825 = vunpack.c.l.b16 %v760
  %v826 = vunpack.c.h.b16 %v760
  %v827 = vunpack.c.l.b16 %v761
  %v828 = vunpack.c.h.b16 %v761
  %v829 = vunpack.c.l.b16 %v762
  %v830 = vunpack.c.h.b16 %v762
  %v831 = vunpack.c.l.b16 %v763
  %v832 = vunpack.c.h.b16 %v763
  %v833 = vunpack.c.l.b16 %v764
  %v834 = vunpack.c.h.b16 %v764
  %v835 = vunpack.c.l.b16 %v765
  %v836 = vunpack.c.h.b16 %v765
  %v837 = vunpack.c.l.b16 %v766
  %v838 = vunpack.c.h.b16 %v766
  %v839 = vunpack.c.l.b16 %v767
  %v840 = vunpack.c.h.b16 %v767
  %v841 = vunpack.c.l.b16 %v768
  %v842 = vunpack.c.h.b16 %v768
  %v843 = vunpack.c.l.b16 %v769
  %v844 = vunpack.c.h.b16 %v769
  %v845 = vunpack.c.l.b16 %v770
  %v846 = vunpack.c.h.b16 %v770
  %v847 = vunpack.c.l.b16 %v771
  %v848 = vunpack.c.h.b16 %v771
  %v849 = vunpack.c.l.b16 %v772
  %v850 = vunpack.c.h.b16 %v772
  %v851 = vunpack.c.l.b16 %v773
  %v852 = vunpack.c.h.b16 %v773
  %v853 = vunpack.c.l.b16 %v774
  %v854 = vunpack.c.h.b16 %v774
  %v855 = vunpack.c.l.b16 %v775
  %v856 = vunpack.c.h.b16 %v775
  %v857 = vunpack.c.l.b16 %v776
  %v858 = vunpack.c.h.b16 %v776
  %v859 = vunpack.c.l.b16 %v777
  %v860 = vunpack.c.h.b16 %v777
  %v861 = vunpack.c.l.b16 %v778
  %v862 = vunpack.c.h.b16 %v778
  %v863 = vunpack.c.l.b16 %v779
  %v864 = vunpack.c.h.b16 %v779
  %v865 = vunpack.c.l.b16 %v780
  %v866 = vunpack.c.h.b16 %v780
  %v867 = vunpack.c.l.b16 %v781
  %v868 = vunpack.c.h.b16 %v781
  %v869 = vunpack.c.l.b16 %v782
  %v870 = vunpack.c.h.b16 %v782
  %v871 = vunpack.c.l.b16 %v783
  %v872 = vunpack.c.h.b16 %v783
  %v873 = vunpack.c.l.b16 %v784
  %v874 = vunpack.c.h.b16 %v784
  %v875 = vunpack.c.l.b16 %v785
  %v876 = vunpack.c.h.b16 %v785
  %v877 = vunpack.c.l.b16 %v786
  %v878 = vunpack.c.h.b16 %v786
  %v879 = vunpack.c.l.b16 %v787
  %v880 = vunpack.c.h.b16 %v787
  %v881 = vunpack.c.l.b16 %v788
  %v882 = vunpack.c.h.b16 %v788
  %v883 = vunpack.c.l.b16 %v789
  %v884 = vunpack.c.h.b16 %v789
  %v885 = vunpack.c.l.b16 %v790
  %v886 = vunpack.c.h.b16 %v790
  %v887 = vpack.c.b16 %v823, %v823
  %v888 = vpack.c.b16 %v824, %v824
  %v889 = vpack.c.b16 %v825, %v825
  %v890 = vpack.c.b16 %v826, %v826
  %v891 = vpack.c.b16 %v827, %v827
  %v892 = vpack.c.b16 %v828, %v828
  %v893 = vpack.c.b16 %v829, %v829
  %v894 = vpack.c.b16 %v830, %v830
  %v895 = vpack.c.b16 %v831, %v831
  %v896 = vpack.c.b16 %v832, %v832
  %v897 = vpack.c.b16 %v833, %v833
  %v898 = vpack.c.b16 %v834, %v834
  %v899 = vpack.c.b16 %v835, %v835
  %v900 = vpack.c.b16 %v836, %v836
  %v901 = vpack.c.b16 %v837, %v837
  %v902 = vpack.c.b16 %v838, %v838
  %v903 = vpack.c.b16 %v839, %v839
  %v904 = vpack.c.b16 %v840, %v840
  %v905 = vpack.c.b16 %v841, %v841
  %v906 = vpack.c.b16 %v842, %v842
  %v907 = vpack.c.b16 %v843, %v843
  %v908 = vpack.c.b16 %v844, %v844
  %v909 = vpack.c.b16 %v845, %v845
  %v910 = vpack.c.b16 %v846, %v846
  %v911 = vpack.c.b16 %v847, %v847
  %v912 = vpack.c.b16 %v848, %v848
  %v913 = vpack.c.b16 %v849, %v849
  %v914 = vpack.c.b16 %v850, %v850
  %v915 = vpack.c.b16 %v851, %v851
  %v916 = vpack.c.b16 %v852, %v852
  %v917 = vpack.c.b16 %v853, %v853
  %v918 = vpack.c.b16 %v854, %v854
  %v919 = vpack.c.b16 %v855, %v855
  %v920 = vpack.c.b16 %v856, %v856
  %v921 = vpack.c.b16 %v857, %v857
  %v922 = vpack.c.b16 %v858, %v858
  %v923 = vpack.c.b16 %v859, %v859
  %v924 = vpack.c.b16 %v860, %v860
  %v925 = vpack.c.b16 %v861, %v861
  %v926 = vpack.c.b16 %v862, %v862
  %v927 = vpack.c.b16 %v863, %v863
  %v928 = vpack.c.b16 %v864, %v864
  %v929 = vpack.c.b16 %v865, %v865
  %v930 = vpack.c.b16 %v866, %v866
  %v931 = vpack.c.b16 %v867, %v867
  %v932 = vpack.c.b16 %v868, %v868
  %v933 = vpack.c.b16 %v869, %v869
  %v934 = vpack.c.b16 %v870, %v870
  %v935 = vpack.c.b16 %v871, %v871
  %v936 = vpack.c.b16 %v872, %v872
  %v937 = vpack.c.b16 %v873, %v873
  %v938 = vpack.c.b16 %v874, %v874
  %v939 = vpack.c.b16 %v875, %v875
  %v940 = vpack.c.b16 %v876, %v876
  %v941 = vpack.c.b16 %v877, %v877
  %v942 = vpack.c.b16 %v878, %v878
  %v943 = vpack.c.b16 %v879, %v879
  %v944 = vpack.c.b16 %v880, %v880
  %v945 = vpack.c.b16 %v881, %v881
  %v946 = vpack.c.b16 %v882, %v882
  %v947 = vpack.c.b16 %v883, %v883
  %v948 = vpack.c.b16 %v884, %v884
  %v949 = vpack.c.b16 %v885, %v885
  %v950 = vpack.c.b16 %v886, %v886
  %1015 = vst [vmem:[%s3] sm:$0xf] %v887
  %1016 = vst [vmem:[%s3 + $0x4] sm:$0xf] %v888
  %1017 = vst [vmem:[%s3 + $0x8] sm:$0xf] %v889
  %1018 = vst [vmem:[%s3 + $0xc] sm:$0xf] %v890
  %1019 = vst [vmem:[%s3 + $0x10] sm:$0xf] %v891
  %1020 = vst [vmem:[%s3 + $0x14] sm:$0xf] %v892
  %1021 = vst [vmem:[%s3 + $0x18] sm:$0xf] %v893
  %1022 = vst [vmem:[%s3 + $0x1c] sm:$0xf] %v894
  %1023 = vst [vmem:[%s3 + $0x20] sm:$0xf] %v895
  %1024 = vst [vmem:[%s3 + $0x24] sm:$0xf] %v896
  %1025 = vst [vmem:[%s3 + $0x28] sm:$0xf] %v897
  %1026 = vst [vmem:[%s3 + $0x2c] sm:$0xf] %v898
  %1027 = vst [vmem:[%s3 + $0x30] sm:$0xf] %v899
  %1028 = vst [vmem:[%s3 + $0x34] sm:$0xf] %v900
  %1029 = vst [vmem:[%s3 + $0x38] sm:$0xf] %v901
  %1030 = vst [vmem:[%s3 + $0x3c] sm:$0xf] %v902
  %1031 = vst [vmem:[%s3 + $0x40] sm:$0xf] %v903
  %1032 = vst [vmem:[%s3 + $0x44] sm:$0xf] %v904
  %1033 = vst [vmem:[%s3 + $0x48] sm:$0xf] %v905
  %1034 = vst [vmem:[%s3 + $0x4c] sm:$0xf] %v906
  %1035 = vst [vmem:[%s3 + $0x50] sm:$0xf] %v907
  %1036 = vst [vmem:[%s3 + $0x54] sm:$0xf] %v908
  %1037 = vst [vmem:[%s3 + $0x58] sm:$0xf] %v909
  %1038 = vst [vmem:[%s3 + $0x5c] sm:$0xf] %v910
  %1039 = vst [vmem:[%s3 + $0x60] sm:$0xf] %v911
  %1040 = vst [vmem:[%s3 + $0x64] sm:$0xf] %v912
  %1041 = vst [vmem:[%s3 + $0x68] sm:$0xf] %v913
  %1042 = vst [vmem:[%s3 + $0x6c] sm:$0xf] %v914
  %1043 = vst [vmem:[%s3 + $0x70] sm:$0xf] %v915
  %1044 = vst [vmem:[%s3 + $0x74] sm:$0xf] %v916
  %1045 = vst [vmem:[%s3 + $0x78] sm:$0xf] %v917
  %1046 = vst [vmem:[%s3 + $0x7c] sm:$0xf] %v918
  %1047 = vst [vmem:[%s3 + $0x80] sm:$0xf] %v919
  %1048 = vst [vmem:[%s3 + $0x84] sm:$0xf] %v920
  %1049 = vst [vmem:[%s3 + $0x88] sm:$0xf] %v921
  %1050 = vst [vmem:[%s3 + $0x8c] sm:$0xf] %v922
  %1051 = vst [vmem:[%s3 + $0x90] sm:$0xf] %v923
  %1052 = vst [vmem:[%s3 + $0x94] sm:$0xf] %v924
  %1053 = vst [vmem:[%s3 + $0x98] sm:$0xf] %v925
  %1054 = vst [vmem:[%s3 + $0x9c] sm:$0xf] %v926
  %1055 = vst [vmem:[%s3 + $0xa0] sm:$0xf] %v927
  %1056 = vst [vmem:[%s3 + $0xa4] sm:$0xf] %v928
  %1057 = vst [vmem:[%s3 + $0xa8] sm:$0xf] %v929
  %1058 = vst [vmem:[%s3 + $0xac] sm:$0xf] %v930
  %1059 = vst [vmem:[%s3 + $0xb0] sm:$0xf] %v931
  %1060 = vst [vmem:[%s3 + $0xb4] sm:$0xf] %v932
  %1061 = vst [vmem:[%s3 + $0xb8] sm:$0xf] %v933
  %1062 = vst [vmem:[%s3 + $0xbc] sm:$0xf] %v934
  %1063 = vst [vmem:[%s3 + $0xc0] sm:$0xf] %v935
  %1064 = vst [vmem:[%s3 + $0xc4] sm:$0xf] %v936
  %1065 = vst [vmem:[%s3 + $0xc8] sm:$0xf] %v937
  %1066 = vst [vmem:[%s3 + $0xcc] sm:$0xf] %v938
  %1067 = vst [vmem:[%s3 + $0xd0] sm:$0xf] %v939
  %1068 = vst [vmem:[%s3 + $0xd4] sm:$0xf] %v940
  %1069 = vst [vmem:[%s3 + $0xd8] sm:$0xf] %v941
  %1070 = vst [vmem:[%s3 + $0xdc] sm:$0xf] %v942
  %1071 = vst [vmem:[%s3 + $0xe0] sm:$0xf] %v943
  %1072 = vst [vmem:[%s3 + $0xe4] sm:$0xf] %v944
  %1073 = vst [vmem:[%s3 + $0xe8] sm:$0xf] %v945
  %1074 = vst [vmem:[%s3 + $0xec] sm:$0xf] %v946
  %1075 = vst [vmem:[%s3 + $0xf0] sm:$0xf] %v947
  %1076 = vst [vmem:[%s3 + $0xf4] sm:$0xf] %v948
  %1077 = vst [vmem:[%s3 + $0xf8] sm:$0xf] %v949
  %1078 = vst [vmem:[%s3 + $0xfc] sm:$0xf] %v950
  // Predicated region
  $region14: #{forward.19} parent=0 // pred_check
    _
  $region15: #{forward.19} parent=0 // pred_check_branch
    %1080 = sbr.rel (0) target = $region17
  $region16: #{forward.19} parent=0 // pred_region
    _
  $region17: #{forward.19} parent=0 // pred_fallthru
    _
  // Predicated region
  $region18: #{forward.19} parent=0 // pred_check
    _
  $region19: #{forward.19} parent=0 // pred_check_branch
    %1082 = sbr.rel (0) target = $region21
  $region20: #{forward.19} parent=0 // pred_region
    _
  $region21: #{forward.19} parent=0 // pred_fallthru
    _

// kernel: forward.20
$region0: #{forward.20}
  #allocation0 [shape = 'u32[]', space=smem, size = 0x4, offset = 0x4, fixed_abs, tag = 'smem constant byte address 0x4 - core index']
  #allocation1 [shape = 'u32[144,128]{1,0:T(1,128)}', space=vmem, size = 0x12000, scoped, tag = 'internal scratch']
  %s0 = inlined_call_operand.vmem [shape: bf16[512,384], index: 0, kind: input, shape index: {}]
  %s1 = inlined_call_operand.vmem [shape: bf16[384,128], index: 1, kind: input, shape index: {}]
  %s2 = inlined_call_operand.vmem [shape: f32[1,128], index: 2, kind: input, shape index: {}]
  %s3 = inlined_call_operand.vmem [shape: bf16[512,128], index: 3, kind: output, shape index: {}]
  %s4 = sld [smem:[#allocation0]]
  $region22: #{forward.20} parent=0
    _
  %s6 = ssub.s32 1, %s4
  %s7 = scalar_select 0, %s6, %s4
  // Predicated region
  $region2: #{forward.20} parent=0 // pred_check
    _
  $region3: #{forward.20} parent=0 // pred_check_branch
    %9 = sbr.rel (0) target = $region5
  $region4: #{forward.20} parent=0 // pred_region
    _
  $region5: #{forward.20} parent=0 // pred_fallthru
    _
  // Predicated region
  $region6: #{forward.20} parent=0 // pred_check
    _
  $region7: #{forward.20} parent=0 // pred_check_branch
    %11 = sbr.rel (0) target = $region9
  $region8: #{forward.20} parent=0 // pred_region
    _
  $region9: #{forward.20} parent=0 // pred_fallthru
    _
  // Predicated region
  $region10: #{forward.20} parent=0 // pred_check
    _
  $region11: #{forward.20} parent=0 // pred_check_branch
    %13 = sbr.rel (0) target = $region13
  $region12: #{forward.20} parent=0 // pred_region
    _
  $region13: #{forward.20} parent=0 // pred_fallthru
    _
  %v15 = vld [vmem:[%s0] sm:$0xff]
  %v16 = vld [vmem:[%s0 + $0x8] sm:$0xf]
  %v17 = vld [vmem:[%s0 + $0xc] sm:$0xff]
  %v18 = vld [vmem:[%s0 + $0x14] sm:$0xf]
  %v19 = vld [vmem:[%s0 + $0x18] sm:$0xff]
  %v20 = vld [vmem:[%s0 + $0x20] sm:$0xf]
  %v21 = vld [vmem:[%s0 + $0x24] sm:$0xff]
  %v22 = vld [vmem:[%s0 + $0x2c] sm:$0xf]
  %v23 = vld [vmem:[%s0 + $0x30] sm:$0xff]
  %v24 = vld [vmem:[%s0 + $0x38] sm:$0xf]
  %v25 = vld [vmem:[%s0 + $0x3c] sm:$0xff]
  %v26 = vld [vmem:[%s0 + $0x44] sm:$0xf]
  %v27 = vld [vmem:[%s0 + $0x48] sm:$0xff]
  %v28 = vld [vmem:[%s0 + $0x50] sm:$0xf]
  %v29 = vld [vmem:[%s0 + $0x54] sm:$0xff]
  %v30 = vld [vmem:[%s0 + $0x5c] sm:$0xf]
  %v31 = vld [vmem:[%s0 + $0x60] sm:$0xff]
  %v32 = vld [vmem:[%s0 + $0x68] sm:$0xf]
  %v33 = vld [vmem:[%s0 + $0x6c] sm:$0xff]
  %v34 = vld [vmem:[%s0 + $0x74] sm:$0xf]
  %v35 = vld [vmem:[%s0 + $0x78] sm:$0xff]
  %v36 = vld [vmem:[%s0 + $0x80] sm:$0xf]
  %v37 = vld [vmem:[%s0 + $0x84] sm:$0xff]
  %v38 = vld [vmem:[%s0 + $0x8c] sm:$0xf]
  %v39 = vld [vmem:[%s0 + $0x90] sm:$0xff]
  %v40 = vld [vmem:[%s0 + $0x98] sm:$0xf]
  %v41 = vld [vmem:[%s0 + $0x9c] sm:$0xff]
  %v42 = vld [vmem:[%s0 + $0xa4] sm:$0xf]
  %v43 = vld [vmem:[%s0 + $0xa8] sm:$0xff]
  %v44 = vld [vmem:[%s0 + $0xb0] sm:$0xf]
  %v45 = vld [vmem:[%s0 + $0xb4] sm:$0xff]
  %v46 = vld [vmem:[%s0 + $0xbc] sm:$0xf]
  %v47 = vld [vmem:[%s0 + $0xc0] sm:$0xff]
  %v48 = vld [vmem:[%s0 + $0xc8] sm:$0xf]
  %v49 = vld [vmem:[%s0 + $0xcc] sm:$0xff]
  %v50 = vld [vmem:[%s0 + $0xd4] sm:$0xf]
  %v51 = vld [vmem:[%s0 + $0xd8] sm:$0xff]
  %v52 = vld [vmem:[%s0 + $0xe0] sm:$0xf]
  %v53 = vld [vmem:[%s0 + $0xe4] sm:$0xff]
  %v54 = vld [vmem:[%s0 + $0xec] sm:$0xf]
  %v55 = vld [vmem:[%s0 + $0xf0] sm:$0xff]
  %v56 = vld [vmem:[%s0 + $0xf8] sm:$0xf]
  %v57 = vld [vmem:[%s0 + $0xfc] sm:$0xff]
  %v58 = vld [vmem:[%s0 + $0x104] sm:$0xf]
  %v59 = vld [vmem:[%s0 + $0x108] sm:$0xff]
  %v60 = vld [vmem:[%s0 + $0x110] sm:$0xf]
  %v61 = vld [vmem:[%s0 + $0x114] sm:$0xff]
  %v62 = vld [vmem:[%s0 + $0x11c] sm:$0xf]
  %v63 = vld [vmem:[%s0 + $0x120] sm:$0xff]
  %v64 = vld [vmem:[%s0 + $0x128] sm:$0xf]
  %v65 = vld [vmem:[%s0 + $0x12c] sm:$0xff]
  %v66 = vld [vmem:[%s0 + $0x134] sm:$0xf]
  %v67 = vld [vmem:[%s0 + $0x138] sm:$0xff]
  %v68 = vld [vmem:[%s0 + $0x140] sm:$0xf]
  %v69 = vld [vmem:[%s0 + $0x144] sm:$0xff]
  %v70 = vld [vmem:[%s0 + $0x14c] sm:$0xf]
  %v71 = vld [vmem:[%s0 + $0x150] sm:$0xff]
  %v72 = vld [vmem:[%s0 + $0x158] sm:$0xf]
  %v73 = vld [vmem:[%s0 + $0x15c] sm:$0xff]
  %v74 = vld [vmem:[%s0 + $0x164] sm:$0xf]
  %v75 = vld [vmem:[%s0 + $0x168] sm:$0xff]
  %v76 = vld [vmem:[%s0 + $0x170] sm:$0xf]
  %v77 = vld [vmem:[%s0 + $0x174] sm:$0xff]
  %v78 = vld [vmem:[%s0 + $0x17c] sm:$0xf]
  %v79 = vld [vmem:[%s0 + $0x180] sm:$0xff]
  %v80 = vld [vmem:[%s0 + $0x188] sm:$0xf]
  %v81 = vld [vmem:[%s0 + $0x18c] sm:$0xff]
  %v82 = vld [vmem:[%s0 + $0x194] sm:$0xf]
  %v83 = vld [vmem:[%s0 + $0x198] sm:$0xff]
  %v84 = vld [vmem:[%s0 + $0x1a0] sm:$0xf]
  %v85 = vld [vmem:[%s0 + $0x1a4] sm:$0xff]
  %v86 = vld [vmem:[%s0 + $0x1ac] sm:$0xf]
  %v87 = vld [vmem:[%s0 + $0x1b0] sm:$0xff]
  %v88 = vld [vmem:[%s0 + $0x1b8] sm:$0xf]
  %v89 = vld [vmem:[%s0 + $0x1bc] sm:$0xff]
  %v90 = vld [vmem:[%s0 + $0x1c4] sm:$0xf]
  %v91 = vld [vmem:[%s0 + $0x1c8] sm:$0xff]
  %v92 = vld [vmem:[%s0 + $0x1d0] sm:$0xf]
  %v93 = vld [vmem:[%s0 + $0x1d4] sm:$0xff]
  %v94 = vld [vmem:[%s0 + $0x1dc] sm:$0xf]
  %v95 = vld [vmem:[%s0 + $0x1e0] sm:$0xff]
  %v96 = vld [vmem:[%s0 + $0x1e8] sm:$0xf]
  %v97 = vld [vmem:[%s0 + $0x1ec] sm:$0xff]
  %v98 = vld [vmem:[%s0 + $0x1f4] sm:$0xf]
  %v99 = vld [vmem:[%s0 + $0x1f8] sm:$0xff]
  %v100 = vld [vmem:[%s0 + $0x200] sm:$0xf]
  %v101 = vld [vmem:[%s0 + $0x204] sm:$0xff]
  %v102 = vld [vmem:[%s0 + $0x20c] sm:$0xf]
  %v103 = vld [vmem:[%s0 + $0x210] sm:$0xff]
  %v104 = vld [vmem:[%s0 + $0x218] sm:$0xf]
  %v105 = vld [vmem:[%s0 + $0x21c] sm:$0xff]
  %v106 = vld [vmem:[%s0 + $0x224] sm:$0xf]
  %v107 = vld [vmem:[%s0 + $0x228] sm:$0xff]
  %v108 = vld [vmem:[%s0 + $0x230] sm:$0xf]
  %v109 = vld [vmem:[%s0 + $0x234] sm:$0xff]
  %v110 = vld [vmem:[%s0 + $0x23c] sm:$0xf]
  %v111 = vld [vmem:[%s0 + $0x240] sm:$0xff]
  %v112 = vld [vmem:[%s0 + $0x248] sm:$0xf]
  %v113 = vld [vmem:[%s0 + $0x24c] sm:$0xff]
  %v114 = vld [vmem:[%s0 + $0x254] sm:$0xf]
  %v115 = vld [vmem:[%s0 + $0x258] sm:$0xff]
  %v116 = vld [vmem:[%s0 + $0x260] sm:$0xf]
  %v117 = vld [vmem:[%s0 + $0x264] sm:$0xff]
  %v118 = vld [vmem:[%s0 + $0x26c] sm:$0xf]
  %v119 = vld [vmem:[%s0 + $0x270] sm:$0xff]
  %v120 = vld [vmem:[%s0 + $0x278] sm:$0xf]
  %v121 = vld [vmem:[%s0 + $0x27c] sm:$0xff]
  %v122 = vld [vmem:[%s0 + $0x284] sm:$0xf]
  %v123 = vld [vmem:[%s0 + $0x288] sm:$0xff]
  %v124 = vld [vmem:[%s0 + $0x290] sm:$0xf]
  %v125 = vld [vmem:[%s0 + $0x294] sm:$0xff]
  %v126 = vld [vmem:[%s0 + $0x29c] sm:$0xf]
  %v127 = vld [vmem:[%s0 + $0x2a0] sm:$0xff]
  %v128 = vld [vmem:[%s0 + $0x2a8] sm:$0xf]
  %v129 = vld [vmem:[%s0 + $0x2ac] sm:$0xff]
  %v130 = vld [vmem:[%s0 + $0x2b4] sm:$0xf]
  %v131 = vld [vmem:[%s0 + $0x2b8] sm:$0xff]
  %v132 = vld [vmem:[%s0 + $0x2c0] sm:$0xf]
  %v133 = vld [vmem:[%s0 + $0x2c4] sm:$0xff]
  %v134 = vld [vmem:[%s0 + $0x2cc] sm:$0xf]
  %v135 = vld [vmem:[%s0 + $0x2d0] sm:$0xff]
  %v136 = vld [vmem:[%s0 + $0x2d8] sm:$0xf]
  %v137 = vld [vmem:[%s0 + $0x2dc] sm:$0xff]
  %v138 = vld [vmem:[%s0 + $0x2e4] sm:$0xf]
  %v139 = vld [vmem:[%s0 + $0x2e8] sm:$0xff]
  %v140 = vld [vmem:[%s0 + $0x2f0] sm:$0xf]
  %v141 = vld [vmem:[%s0 + $0x2f4] sm:$0xff]
  %v142 = vld [vmem:[%s0 + $0x2fc] sm:$0xf]
  %v143 = vld [vmem:[%s1] sm:$0xf]
  %v144 = vld [vmem:[%s1 + $0x4] sm:$0xf]
  %v145 = vld [vmem:[%s1 + $0x8] sm:$0xf]
  %v146 = vld [vmem:[%s1 + $0xc] sm:$0xf]
  %v147 = vld [vmem:[%s1 + $0x10] sm:$0xf]
  %v148 = vld [vmem:[%s1 + $0x14] sm:$0xf]
  %v149 = vld [vmem:[%s1 + $0x18] sm:$0xf]
  %v150 = vld [vmem:[%s1 + $0x1c] sm:$0xf]
  %v151 = vld [vmem:[%s1 + $0x20] sm:$0xf]
  %v152 = vld [vmem:[%s1 + $0x24] sm:$0xf]
  %v153 = vld [vmem:[%s1 + $0x28] sm:$0xf]
  %v154 = vld [vmem:[%s1 + $0x2c] sm:$0xf]
  %v155 = vld [vmem:[%s1 + $0x30] sm:$0xf]
  %v156 = vld [vmem:[%s1 + $0x34] sm:$0xf]
  %v157 = vld [vmem:[%s1 + $0x38] sm:$0xf]
  %v158 = vld [vmem:[%s1 + $0x3c] sm:$0xf]
  %v159 = vld [vmem:[%s1 + $0x40] sm:$0xf]
  %v160 = vld [vmem:[%s1 + $0x44] sm:$0xf]
  %v161 = vld [vmem:[%s1 + $0x48] sm:$0xf]
  %v162 = vld [vmem:[%s1 + $0x4c] sm:$0xf]
  %v163 = vld [vmem:[%s1 + $0x50] sm:$0xf]
  %v164 = vld [vmem:[%s1 + $0x54] sm:$0xf]
  %v165 = vld [vmem:[%s1 + $0x58] sm:$0xf]
  %v166 = vld [vmem:[%s1 + $0x5c] sm:$0xf]
  %v167 = vld [vmem:[%s1 + $0x60] sm:$0xf]
  %v168 = vld [vmem:[%s1 + $0x64] sm:$0xf]
  %v169 = vld [vmem:[%s1 + $0x68] sm:$0xf]
  %v170 = vld [vmem:[%s1 + $0x6c] sm:$0xf]
  %v171 = vld [vmem:[%s1 + $0x70] sm:$0xf]
  %v172 = vld [vmem:[%s1 + $0x74] sm:$0xf]
  %v173 = vld [vmem:[%s1 + $0x78] sm:$0xf]
  %v174 = vld [vmem:[%s1 + $0x7c] sm:$0xf]
  %v175 = vld [vmem:[%s1 + $0x80] sm:$0xf]
  %v176 = vld [vmem:[%s1 + $0x84] sm:$0xf]
  %v177 = vld [vmem:[%s1 + $0x88] sm:$0xf]
  %v178 = vld [vmem:[%s1 + $0x8c] sm:$0xf]
  %v179 = vld [vmem:[%s1 + $0x90] sm:$0xf]
  %v180 = vld [vmem:[%s1 + $0x94] sm:$0xf]
  %v181 = vld [vmem:[%s1 + $0x98] sm:$0xf]
  %v182 = vld [vmem:[%s1 + $0x9c] sm:$0xf]
  %v183 = vld [vmem:[%s1 + $0xa0] sm:$0xf]
  %v184 = vld [vmem:[%s1 + $0xa4] sm:$0xf]
  %v185 = vld [vmem:[%s1 + $0xa8] sm:$0xf]
  %v186 = vld [vmem:[%s1 + $0xac] sm:$0xf]
  %v187 = vld [vmem:[%s1 + $0xb0] sm:$0xf]
  %v188 = vld [vmem:[%s1 + $0xb4] sm:$0xf]
  %v189 = vld [vmem:[%s1 + $0xb8] sm:$0xf]
  %v190 = vld [vmem:[%s1 + $0xbc] sm:$0xf]
  %v191 = vld [vmem:[%s2] sm:$0x1]
  %v193 = vlaneseq
  %v194 = vshrl.u32 %v193, 7
  %v195 = vsub.s32 0, %v194
  %v196 = vrot.slane %v191, %v195
  %v326 = vunpack.c.l.b16 %v15
  %v327 = vunpack.c.h.b16 %v15
  %v328 = vunpack.c.l.b16 %v16
  %v329 = vunpack.c.l.b16 %v17
  %v330 = vunpack.c.h.b16 %v17
  %v331 = vunpack.c.l.b16 %v18
  %v332 = vunpack.c.l.b16 %v19
  %v333 = vunpack.c.h.b16 %v19
  %v334 = vunpack.c.l.b16 %v20
  %v335 = vunpack.c.l.b16 %v21
  %v336 = vunpack.c.h.b16 %v21
  %v337 = vunpack.c.l.b16 %v22
  %v338 = vunpack.c.l.b16 %v23
  %v339 = vunpack.c.h.b16 %v23
  %v340 = vunpack.c.l.b16 %v24
  %v341 = vunpack.c.l.b16 %v25
  %v342 = vunpack.c.h.b16 %v25
  %v343 = vunpack.c.l.b16 %v26
  %v344 = vunpack.c.l.b16 %v27
  %v345 = vunpack.c.h.b16 %v27
  %v346 = vunpack.c.l.b16 %v28
  %v347 = vunpack.c.l.b16 %v29
  %v348 = vunpack.c.h.b16 %v29
  %v349 = vunpack.c.l.b16 %v30
  %v350 = vunpack.c.l.b16 %v31
  %v351 = vunpack.c.h.b16 %v31
  %v352 = vunpack.c.l.b16 %v32
  %v353 = vunpack.c.l.b16 %v33
  %v354 = vunpack.c.h.b16 %v33
  %v355 = vunpack.c.l.b16 %v34
  %v356 = vunpack.c.l.b16 %v35
  %v357 = vunpack.c.h.b16 %v35
  %v358 = vunpack.c.l.b16 %v36
  %v359 = vunpack.c.l.b16 %v37
  %v360 = vunpack.c.h.b16 %v37
  %v361 = vunpack.c.l.b16 %v38
  %v362 = vunpack.c.l.b16 %v39
  %v363 = vunpack.c.h.b16 %v39
  %v364 = vunpack.c.l.b16 %v40
  %v365 = vunpack.c.l.b16 %v41
  %v366 = vunpack.c.h.b16 %v41
  %v367 = vunpack.c.l.b16 %v42
  %v368 = vunpack.c.l.b16 %v43
  %v369 = vunpack.c.h.b16 %v43
  %v370 = vunpack.c.l.b16 %v44
  %v371 = vunpack.c.l.b16 %v45
  %v372 = vunpack.c.h.b16 %v45
  %v373 = vunpack.c.l.b16 %v46
  %v374 = vunpack.c.l.b16 %v47
  %v375 = vunpack.c.h.b16 %v47
  %v376 = vunpack.c.l.b16 %v48
  %v377 = vunpack.c.l.b16 %v49
  %v378 = vunpack.c.h.b16 %v49
  %v379 = vunpack.c.l.b16 %v50
  %v380 = vunpack.c.l.b16 %v51
  %v381 = vunpack.c.h.b16 %v51
  %v382 = vunpack.c.l.b16 %v52
  %v383 = vunpack.c.l.b16 %v53
  %v384 = vunpack.c.h.b16 %v53
  %v385 = vunpack.c.l.b16 %v54
  %v386 = vunpack.c.l.b16 %v55
  %v387 = vunpack.c.h.b16 %v55
  %v388 = vunpack.c.l.b16 %v56
  %v389 = vunpack.c.l.b16 %v57
  %v390 = vunpack.c.h.b16 %v57
  %v391 = vunpack.c.l.b16 %v58
  %v392 = vunpack.c.l.b16 %v59
  %v393 = vunpack.c.h.b16 %v59
  %v394 = vunpack.c.l.b16 %v60
  %v395 = vunpack.c.l.b16 %v61
  %v396 = vunpack.c.h.b16 %v61
  %v397 = vunpack.c.l.b16 %v62
  %v398 = vunpack.c.l.b16 %v63
  %v399 = vunpack.c.h.b16 %v63
  %v400 = vunpack.c.l.b16 %v64
  %v401 = vunpack.c.l.b16 %v65
  %v402 = vunpack.c.h.b16 %v65
  %v403 = vunpack.c.l.b16 %v66
  %v404 = vunpack.c.l.b16 %v67
  %v405 = vunpack.c.h.b16 %v67
  %v406 = vunpack.c.l.b16 %v68
  %v407 = vunpack.c.l.b16 %v69
  %v408 = vunpack.c.h.b16 %v69
  %v409 = vunpack.c.l.b16 %v70
  %v410 = vunpack.c.l.b16 %v71
  %v411 = vunpack.c.h.b16 %v71
  %v412 = vunpack.c.l.b16 %v72
  %v413 = vunpack.c.l.b16 %v73
  %v414 = vunpack.c.h.b16 %v73
  %v415 = vunpack.c.l.b16 %v74
  %v416 = vunpack.c.l.b16 %v75
  %v417 = vunpack.c.h.b16 %v75
  %v418 = vunpack.c.l.b16 %v76
  %v419 = vunpack.c.l.b16 %v77
  %v420 = vunpack.c.h.b16 %v77
  %v421 = vunpack.c.l.b16 %v78
  %v422 = vunpack.c.l.b16 %v79
  %v423 = vunpack.c.h.b16 %v79
  %v424 = vunpack.c.l.b16 %v80
  %v425 = vunpack.c.l.b16 %v81
  %v426 = vunpack.c.h.b16 %v81
  %v427 = vunpack.c.l.b16 %v82
  %v428 = vunpack.c.l.b16 %v83
  %v429 = vunpack.c.h.b16 %v83
  %v430 = vunpack.c.l.b16 %v84
  %v431 = vunpack.c.l.b16 %v85
  %v432 = vunpack.c.h.b16 %v85
  %v433 = vunpack.c.l.b16 %v86
  %v434 = vunpack.c.l.b16 %v87
  %v435 = vunpack.c.h.b16 %v87
  %v436 = vunpack.c.l.b16 %v88
  %v437 = vunpack.c.l.b16 %v89
  %v438 = vunpack.c.h.b16 %v89
  %v439 = vunpack.c.l.b16 %v90
  %v440 = vunpack.c.l.b16 %v91
  %v441 = vunpack.c.h.b16 %v91
  %v442 = vunpack.c.l.b16 %v92
  %v443 = vunpack.c.l.b16 %v93
  %v444 = vunpack.c.h.b16 %v93
  %v445 = vunpack.c.l.b16 %v94
  %v446 = vunpack.c.l.b16 %v95
  %v447 = vunpack.c.h.b16 %v95
  %v448 = vunpack.c.l.b16 %v96
  %v449 = vunpack.c.l.b16 %v97
  %v450 = vunpack.c.h.b16 %v97
  %v451 = vunpack.c.l.b16 %v98
  %v452 = vunpack.c.l.b16 %v99
  %v453 = vunpack.c.h.b16 %v99
  %v454 = vunpack.c.l.b16 %v100
  %v455 = vunpack.c.l.b16 %v101
  %v456 = vunpack.c.h.b16 %v101
  %v457 = vunpack.c.l.b16 %v102
  %v458 = vunpack.c.l.b16 %v103
  %v459 = vunpack.c.h.b16 %v103
  %v460 = vunpack.c.l.b16 %v104
  %v461 = vunpack.c.l.b16 %v105
  %v462 = vunpack.c.h.b16 %v105
  %v463 = vunpack.c.l.b16 %v106
  %v464 = vunpack.c.l.b16 %v107
  %v465 = vunpack.c.h.b16 %v107
  %v466 = vunpack.c.l.b16 %v108
  %v467 = vunpack.c.l.b16 %v109
  %v468 = vunpack.c.h.b16 %v109
  %v469 = vunpack.c.l.b16 %v110
  %v470 = vunpack.c.l.b16 %v111
  %v471 = vunpack.c.h.b16 %v111
  %v472 = vunpack.c.l.b16 %v112
  %v473 = vunpack.c.l.b16 %v113
  %v474 = vunpack.c.h.b16 %v113
  %v475 = vunpack.c.l.b16 %v114
  %v476 = vunpack.c.l.b16 %v115
  %v477 = vunpack.c.h.b16 %v115
  %v478 = vunpack.c.l.b16 %v116
  %v479 = vunpack.c.l.b16 %v117
  %v480 = vunpack.c.h.b16 %v117
  %v481 = vunpack.c.l.b16 %v118
  %v482 = vunpack.c.l.b16 %v119
  %v483 = vunpack.c.h.b16 %v119
  %v484 = vunpack.c.l.b16 %v120
  %v485 = vunpack.c.l.b16 %v121
  %v486 = vunpack.c.h.b16 %v121
  %v487 = vunpack.c.l.b16 %v122
  %v488 = vunpack.c.l.b16 %v123
  %v489 = vunpack.c.h.b16 %v123
  %v490 = vunpack.c.l.b16 %v124
  %v491 = vunpack.c.l.b16 %v125
  %v492 = vunpack.c.h.b16 %v125
  %v493 = vunpack.c.l.b16 %v126
  %v494 = vunpack.c.l.b16 %v127
  %v495 = vunpack.c.h.b16 %v127
  %v496 = vunpack.c.l.b16 %v128
  %v497 = vunpack.c.l.b16 %v129
  %v498 = vunpack.c.h.b16 %v129
  %v499 = vunpack.c.l.b16 %v130
  %v500 = vunpack.c.l.b16 %v131
  %v501 = vunpack.c.h.b16 %v131
  %v502 = vunpack.c.l.b16 %v132
  %v503 = vunpack.c.l.b16 %v133
  %v504 = vunpack.c.h.b16 %v133
  %v505 = vunpack.c.l.b16 %v134
  %v506 = vunpack.c.l.b16 %v135
  %v507 = vunpack.c.h.b16 %v135
  %v508 = vunpack.c.l.b16 %v136
  %v509 = vunpack.c.l.b16 %v137
  %v510 = vunpack.c.h.b16 %v137
  %v511 = vunpack.c.l.b16 %v138
  %v512 = vunpack.c.l.b16 %v139
  %v513 = vunpack.c.h.b16 %v139
  %v514 = vunpack.c.l.b16 %v140
  %v515 = vunpack.c.l.b16 %v141
  %v516 = vunpack.c.h.b16 %v141
  %v517 = vunpack.c.l.b16 %v142
  %v518 = vpack.c.b16 %v329, %v326
  %v519 = vpack.c.b16 %v330, %v327
  %v520 = vpack.c.b16 %v331, %v328
  %v521 = vpack.c.b16 %v335, %v332
  %v522 = vpack.c.b16 %v336, %v333
  %v523 = vpack.c.b16 %v337, %v334
  %v524 = vpack.c.b16 %v341, %v338
  %v525 = vpack.c.b16 %v342, %v339
  %v526 = vpack.c.b16 %v343, %v340
  %v527 = vpack.c.b16 %v347, %v344
  %v528 = vpack.c.b16 %v348, %v345
  %v529 = vpack.c.b16 %v349, %v346
  %v530 = vpack.c.b16 %v353, %v350
  %v531 = vpack.c.b16 %v354, %v351
  %v532 = vpack.c.b16 %v355, %v352
  %v533 = vpack.c.b16 %v359, %v356
  %v534 = vpack.c.b16 %v360, %v357
  %v535 = vpack.c.b16 %v361, %v358
  %v536 = vpack.c.b16 %v365, %v362
  %v537 = vpack.c.b16 %v366, %v363
  %v538 = vpack.c.b16 %v367, %v364
  %v539 = vpack.c.b16 %v371, %v368
  %v540 = vpack.c.b16 %v372, %v369
  %v541 = vpack.c.b16 %v373, %v370
  %v542 = vpack.c.b16 %v377, %v374
  %v543 = vpack.c.b16 %v378, %v375
  %v544 = vpack.c.b16 %v379, %v376
  %v545 = vpack.c.b16 %v383, %v380
  %v546 = vpack.c.b16 %v384, %v381
  %v547 = vpack.c.b16 %v385, %v382
  %v548 = vpack.c.b16 %v389, %v386
  %v549 = vpack.c.b16 %v390, %v387
  %v550 = vpack.c.b16 %v391, %v388
  %v551 = vpack.c.b16 %v395, %v392
  %v552 = vpack.c.b16 %v396, %v393
  %v553 = vpack.c.b16 %v397, %v394
  %v554 = vpack.c.b16 %v401, %v398
  %v555 = vpack.c.b16 %v402, %v399
  %v556 = vpack.c.b16 %v403, %v400
  %v557 = vpack.c.b16 %v407, %v404
  %v558 = vpack.c.b16 %v408, %v405
  %v559 = vpack.c.b16 %v409, %v406
  %v560 = vpack.c.b16 %v413, %v410
  %v561 = vpack.c.b16 %v414, %v411
  %v562 = vpack.c.b16 %v415, %v412
  %v563 = vpack.c.b16 %v419, %v416
  %v564 = vpack.c.b16 %v420, %v417
  %v565 = vpack.c.b16 %v421, %v418
  %v566 = vpack.c.b16 %v425, %v422
  %v567 = vpack.c.b16 %v426, %v423
  %v568 = vpack.c.b16 %v427, %v424
  %v569 = vpack.c.b16 %v431, %v428
  %v570 = vpack.c.b16 %v432, %v429
  %v571 = vpack.c.b16 %v433, %v430
  %v572 = vpack.c.b16 %v437, %v434
  %v573 = vpack.c.b16 %v438, %v435
  %v574 = vpack.c.b16 %v439, %v436
  %v575 = vpack.c.b16 %v443, %v440
  %v576 = vpack.c.b16 %v444, %v441
  %v577 = vpack.c.b16 %v445, %v442
  %v578 = vpack.c.b16 %v449, %v446
  %v579 = vpack.c.b16 %v450, %v447
  %v580 = vpack.c.b16 %v451, %v448
  %v581 = vpack.c.b16 %v455, %v452
  %v582 = vpack.c.b16 %v456, %v453
  %v583 = vpack.c.b16 %v457, %v454
  %v584 = vpack.c.b16 %v461, %v458
  %v585 = vpack.c.b16 %v462, %v459
  %v586 = vpack.c.b16 %v463, %v460
  %v587 = vpack.c.b16 %v467, %v464
  %v588 = vpack.c.b16 %v468, %v465
  %v589 = vpack.c.b16 %v469, %v466
  %v590 = vpack.c.b16 %v473, %v470
  %v591 = vpack.c.b16 %v474, %v471
  %v592 = vpack.c.b16 %v475, %v472
  %v593 = vpack.c.b16 %v479, %v476
  %v594 = vpack.c.b16 %v480, %v477
  %v595 = vpack.c.b16 %v481, %v478
  %v596 = vpack.c.b16 %v485, %v482
  %v597 = vpack.c.b16 %v486, %v483
  %v598 = vpack.c.b16 %v487, %v484
  %v599 = vpack.c.b16 %v491, %v488
  %v600 = vpack.c.b16 %v492, %v489
  %v601 = vpack.c.b16 %v493, %v490
  %v602 = vpack.c.b16 %v497, %v494
  %v603 = vpack.c.b16 %v498, %v495
  %v604 = vpack.c.b16 %v499, %v496
  %v605 = vpack.c.b16 %v503, %v500
  %v606 = vpack.c.b16 %v504, %v501
  %v607 = vpack.c.b16 %v505, %v502
  %v608 = vpack.c.b16 %v509, %v506
  %v609 = vpack.c.b16 %v510, %v507
  %v610 = vpack.c.b16 %v511, %v508
  %v611 = vpack.c.b16 %v515, %v512
  %v612 = vpack.c.b16 %v516, %v513
  %v613 = vpack.c.b16 %v517, %v514
  %v758 = vunpack.c.l.b16 %v143
  %v759 = vunpack.c.l.b16 %v144
  %v760 = vunpack.c.l.b16 %v145
  %v761 = vunpack.c.l.b16 %v146
  %v762 = vunpack.c.l.b16 %v147
  %v763 = vunpack.c.l.b16 %v148
  %v764 = vunpack.c.l.b16 %v149
  %v765 = vunpack.c.l.b16 %v150
  %v766 = vunpack.c.l.b16 %v151
  %v767 = vunpack.c.l.b16 %v152
  %v768 = vunpack.c.l.b16 %v153
  %v769 = vunpack.c.l.b16 %v154
  %v770 = vunpack.c.l.b16 %v155
  %v771 = vunpack.c.l.b16 %v156
  %v772 = vunpack.c.l.b16 %v157
  %v773 = vunpack.c.l.b16 %v158
  %v774 = vunpack.c.l.b16 %v159
  %v775 = vunpack.c.l.b16 %v160
  %v776 = vunpack.c.l.b16 %v161
  %v777 = vunpack.c.l.b16 %v162
  %v778 = vunpack.c.l.b16 %v163
  %v779 = vunpack.c.l.b16 %v164
  %v780 = vunpack.c.l.b16 %v165
  %v781 = vunpack.c.l.b16 %v166
  %v782 = vunpack.c.l.b16 %v167
  %v783 = vunpack.c.l.b16 %v168
  %v784 = vunpack.c.l.b16 %v169
  %v785 = vunpack.c.l.b16 %v170
  %v786 = vunpack.c.l.b16 %v171
  %v787 = vunpack.c.l.b16 %v172
  %v788 = vunpack.c.l.b16 %v173
  %v789 = vunpack.c.l.b16 %v174
  %v790 = vunpack.c.l.b16 %v175
  %v791 = vunpack.c.l.b16 %v176
  %v792 = vunpack.c.l.b16 %v177
  %v793 = vunpack.c.l.b16 %v178
  %v794 = vunpack.c.l.b16 %v179
  %v795 = vunpack.c.l.b16 %v180
  %v796 = vunpack.c.l.b16 %v181
  %v797 = vunpack.c.l.b16 %v182
  %v798 = vunpack.c.l.b16 %v183
  %v799 = vunpack.c.l.b16 %v184
  %v800 = vunpack.c.l.b16 %v185
  %v801 = vunpack.c.l.b16 %v186
  %v802 = vunpack.c.l.b16 %v187
  %v803 = vunpack.c.l.b16 %v188
  %v804 = vunpack.c.l.b16 %v189
  %v805 = vunpack.c.l.b16 %v190
  %v806 = vpack.c.b16 %v759, %v758
  %v807 = vpack.c.b16 %v761, %v760
  %v808 = vpack.c.b16 %v763, %v762
  %v809 = vpack.c.b16 %v765, %v764
  %v810 = vpack.c.b16 %v767, %v766
  %v811 = vpack.c.b16 %v769, %v768
  %v812 = vpack.c.b16 %v771, %v770
  %v813 = vpack.c.b16 %v773, %v772
  %v814 = vpack.c.b16 %v775, %v774
  %v815 = vpack.c.b16 %v777, %v776
  %v816 = vpack.c.b16 %v779, %v778
  %v817 = vpack.c.b16 %v781, %v780
  %v818 = vpack.c.b16 %v783, %v782
  %v819 = vpack.c.b16 %v785, %v784
  %v820 = vpack.c.b16 %v787, %v786
  %v821 = vpack.c.b16 %v789, %v788
  %v822 = vpack.c.b16 %v791, %v790
  %v823 = vpack.c.b16 %v793, %v792
  %v824 = vpack.c.b16 %v795, %v794
  %v825 = vpack.c.b16 %v797, %v796
  %v826 = vpack.c.b16 %v799, %v798
  %v827 = vpack.c.b16 %v801, %v800
  %v828 = vpack.c.b16 %v803, %v802
  %v829 = vpack.c.b16 %v805, %v804
  %854 = vmatprep.subr.bf16.mxu0 0
  %855 = vmatpush1.bf16.msra.mxu0 %v806
  %856 = vmatprep.subr.bf16.mxu0 0
  %857 = vmatpush1.bf16.msra.mxu0 %v807
  %858 = vmatprep.subr.bf16.mxu0 0
  %859 = vmatpush1.bf16.msra.mxu0 %v808
  %860 = vmatprep.subr.bf16.mxu0 0
  %861 = vmatpush1.bf16.msra.mxu0 %v809
  %862 = vmatprep.subr.bf16.mxu0 0
  %863 = vmatpush1.bf16.msra.mxu0 %v810
  %864 = vmatprep.subr.bf16.mxu0 0
  %865 = vmatpush1.bf16.msra.mxu0 %v811
  %866 = vmatprep.subr.bf16.mxu0 0
  %867 = vmatpush1.bf16.msra.mxu0 %v812
  %868 = vmatprep.subr.bf16.mxu0 0
  %869 = vmatpush1.bf16.msra.mxu0 %v813
  %870 = vmatprep.subr.bf16.mxu0 0
  %871 = vmatpush1.bf16.msra.mxu0 %v814
  %872 = vmatprep.subr.bf16.mxu0 0
  %873 = vmatpush1.bf16.msra.mxu0 %v815
  %874 = vmatprep.subr.bf16.mxu0 0
  %875 = vmatpush1.bf16.msra.mxu0 %v816
  %876 = vmatprep.subr.bf16.mxu0 0
  %877 = vmatpush1.bf16.msra.mxu0 %v817
  %878 = vmatprep.subr.bf16.mxu0 0
  %879 = vmatpush1.bf16.msra.mxu0 %v818
  %880 = vmatprep.subr.bf16.mxu0 0
  %881 = vmatpush1.bf16.msra.mxu0 %v819
  %882 = vmatprep.subr.bf16.mxu0 0
  %883 = vmatpush1.bf16.msra.mxu0 %v820
  %884 = vmatprep.subr.bf16.mxu0 0
  %885 = vmatpush1.bf16.msra.mxu0 %v821
  %886 = vmatprep.mubr.bf16.mxu0 %v519
  %887 = vmatmul.mubr.bf16.gmra.mrb[0].mxu0 %v518
  %v888 = vpop.f32.mrb[0].mxu0
  %v889 = vadd.f32 %v196, %v888
  %v890 = vpop.f32.mrb[0].mxu0
  %v891 = vpop.f32.mrb[0].mxu0
  %v892 = vadd.f32 %v196, %v891
  %v893 = vpop.f32.mrb[0].mxu0
  %894 = vmatprep.mubr.bf16.mxu0 %v522
  %895 = vmatmul.mubr.bf16.gmra.mrb[0].mxu0 %v521
  %v896 = vpop.f32.mrb[0].mxu0
  %v897 = vadd.f32 %v196, %v896
  %v898 = vpop.f32.mrb[0].mxu0
  %v899 = vpop.f32.mrb[0].mxu0
  %v900 = vadd.f32 %v196, %v899
  %v901 = vpop.f32.mrb[0].mxu0
  %902 = vmatprep.mubr.bf16.mxu0 %v525
  %903 = vmatmul.mubr.bf16.gmra.mrb[0].mxu0 %v524
  %v904 = vpop.f32.mrb[0].mxu0
  %v905 = vadd.f32 %v196, %v904
  %v906 = vpop.f32.mrb[0].mxu0
  %v907 = vpop.f32.mrb[0].mxu0
  %v908 = vadd.f32 %v196, %v907
  %v909 = vpop.f32.mrb[0].mxu0
  %910 = vmatprep.mubr.bf16.mxu0 %v528
  %911 = vmatmul.mubr.bf16.gmra.mrb[0].mxu0 %v527
  %v912 = vpop.f32.mrb[0].mxu0
  %v913 = vadd.f32 %v196, %v912
  %v914 = vpop.f32.mrb[0].mxu0
  %v915 = vpop.f32.mrb[0].mxu0
  %v916 = vadd.f32 %v196, %v915
  %v917 = vpop.f32.mrb[0].mxu0
  %918 = vmatprep.mubr.bf16.mxu0 %v531
  %919 = vmatmul.mubr.bf16.gmra.mrb[0].mxu0 %v530
  %v920 = vpop.f32.mrb[0].mxu0
  %v921 = vadd.f32 %v196, %v920
  %v922 = vpop.f32.mrb[0].mxu0
  %v923 = vpop.f32.mrb[0].mxu0
  %v924 = vadd.f32 %v196, %v923
  %v925 = vpop.f32.mrb[0].mxu0
  %926 = vmatprep.mubr.bf16.mxu0 %v534
  %927 = vmatmul.mubr.bf16.gmra.mrb[0].mxu0 %v533
  %v928 = vpop.f32.mrb[0].mxu0
  %v929 = vadd.f32 %v196, %v928
  %v930 = vpop.f32.mrb[0].mxu0
  %v931 = vpop.f32.mrb[0].mxu0
  %v932 = vadd.f32 %v196, %v931
  %v933 = vpop.f32.mrb[0].mxu0
  %934 = vmatprep.mubr.bf16.mxu0 %v537
  %935 = vmatmul.mubr.bf16.gmra.mrb[0].mxu0 %v536
  %v936 = vpop.f32.mrb[0].mxu0
  %v937 = vadd.f32 %v196, %v936
  %v938 = vpop.f32.mrb[0].mxu0
  %v939 = vpop.f32.mrb[0].mxu0
  %v940 = vadd.f32 %v196, %v939
  %v941 = vpop.f32.mrb[0].mxu0
  %942 = vmatprep.mubr.bf16.mxu0 %v540
  %943 = vmatmul.mubr.bf16.gmra.mrb[0].mxu0 %v539
  %v944 = vpop.f32.mrb[0].mxu0
  %v945 = vadd.f32 %v196, %v944
  %v946 = vpop.f32.mrb[0].mxu0
  %v947 = vpop.f32.mrb[0].mxu0
  %v948 = vadd.f32 %v196, %v947
  %v949 = vpop.f32.mrb[0].mxu0
  %950 = vmatprep.mubr.bf16.mxu0 %v543
  %951 = vmatmul.mubr.bf16.gmra.mrb[0].mxu0 %v542
  %v952 = vpop.f32.mrb[0].mxu0
  %v953 = vadd.f32 %v196, %v952
  %v954 = vpop.f32.mrb[0].mxu0
  %v955 = vpop.f32.mrb[0].mxu0
  %v956 = vadd.f32 %v196, %v955
  %v957 = vpop.f32.mrb[0].mxu0
  %958 = vmatprep.mubr.bf16.mxu0 %v546
  %959 = vmatmul.mubr.bf16.gmra.mrb[0].mxu0 %v545
  %v960 = vpop.f32.mrb[0].mxu0
  %v961 = vadd.f32 %v196, %v960
  %v962 = vpop.f32.mrb[0].mxu0
  %v963 = vpop.f32.mrb[0].mxu0
  %v964 = vadd.f32 %v196, %v963
  %v965 = vpop.f32.mrb[0].mxu0
  %966 = vmatprep.mubr.bf16.mxu0 %v549
  %967 = vmatmul.mubr.bf16.gmra.mrb[0].mxu0 %v548
  %v968 = vpop.f32.mrb[0].mxu0
  %v969 = vadd.f32 %v196, %v968
  %v970 = vpop.f32.mrb[0].mxu0
  %v971 = vpop.f32.mrb[0].mxu0
  %v972 = vadd.f32 %v196, %v971
  %v973 = vpop.f32.mrb[0].mxu0
  %974 = vmatprep.mubr.bf16.mxu0 %v552
  %975 = vmatmul.mubr.bf16.gmra.mrb[0].mxu0 %v551
  %v976 = vpop.f32.mrb[0].mxu0
  %v977 = vadd.f32 %v196, %v976
  %v978 = vpop.f32.mrb[0].mxu0
  %v979 = vpop.f32.mrb[0].mxu0
  %v980 = vadd.f32 %v196, %v979
  %v981 = vpop.f32.mrb[0].mxu0
  %982 = vmatprep.mubr.bf16.mxu0 %v555
  %983 = vmatmul.mubr.bf16.gmra.mrb[0].mxu0 %v554
  %v984 = vpop.f32.mrb[0].mxu0
  %v985 = vadd.f32 %v196, %v984
  %v986 = vpop.f32.mrb[0].mxu0
  %v987 = vpop.f32.mrb[0].mxu0
  %v988 = vadd.f32 %v196, %v987
  %v989 = vpop.f32.mrb[0].mxu0
  %990 = vmatprep.mubr.bf16.mxu0 %v558
  %991 = vmatmul.mubr.bf16.gmra.mrb[0].mxu0 %v557
  %v992 = vpop.f32.mrb[0].mxu0
  %v993 = vadd.f32 %v196, %v992
  %v994 = vpop.f32.mrb[0].mxu0
  %v995 = vpop.f32.mrb[0].mxu0
  %v996 = vadd.f32 %v196, %v995
  %v997 = vpop.f32.mrb[0].mxu0
  %998 = vmatprep.mubr.bf16.mxu0 %v561
  %999 = vmatmul.mubr.bf16.gmra.mrb[0].mxu0 %v560
  %v1000 = vpop.f32.mrb[0].mxu0
  %v1001 = vadd.f32 %v196, %v1000
  %v1002 = vpop.f32.mrb[0].mxu0
  %v1003 = vpop.f32.mrb[0].mxu0
  %v1004 = vadd.f32 %v196, %v1003
  %v1005 = vpop.f32.mrb[0].mxu0
  %1006 = vmatprep.mubr.bf16.mxu0 %v564
  %1007 = vmatmul.mubr.bf16.gmra.mrb[0].mxu0 %v563
  %v1008 = vpop.f32.mrb[0].mxu0
  %v1009 = vadd.f32 %v196, %v1008
  %v1010 = vpop.f32.mrb[0].mxu0
  %v1011 = vpop.f32.mrb[0].mxu0
  %v1012 = vadd.f32 %v196, %v1011
  %v1013 = vpop.f32.mrb[0].mxu0
  %1014 = vmatprep.mubr.bf16.mxu0 %v567
  %1015 = vmatmul.mubr.bf16.gmra.mrb[0].mxu0 %v566
  %v1016 = vpop.f32.mrb[0].mxu0
  %v1017 = vadd.f32 %v196, %v1016
  %v1018 = vpop.f32.mrb[0].mxu0
  %v1019 = vpop.f32.mrb[0].mxu0
  %v1020 = vadd.f32 %v196, %v1019
  %v1021 = vpop.f32.mrb[0].mxu0
  %1022 = vmatprep.mubr.bf16.mxu0 %v570
  %1023 = vmatmul.mubr.bf16.gmra.mrb[0].mxu0 %v569
  %v1024 = vpop.f32.mrb[0].mxu0
  %v1025 = vadd.f32 %v196, %v1024
  %v1026 = vpop.f32.mrb[0].mxu0
  %v1027 = vpop.f32.mrb[0].mxu0
  %v1028 = vadd.f32 %v196, %v1027
  %v1029 = vpop.f32.mrb[0].mxu0
  %1030 = vmatprep.mubr.bf16.mxu0 %v573
  %1031 = vmatmul.mubr.bf16.gmra.mrb[0].mxu0 %v572
  %v1032 = vpop.f32.mrb[0].mxu0
  %v1033 = vadd.f32 %v196, %v1032
  %v1034 = vpop.f32.mrb[0].mxu0
  %v1035 = vpop.f32.mrb[0].mxu0
  %v1036 = vadd.f32 %v196, %v1035
  %v1037 = vpop.f32.mrb[0].mxu0
  %1038 = vmatprep.mubr.bf16.mxu0 %v576
  %1039 = vmatmul.mubr.bf16.gmra.mrb[0].mxu0 %v575
  %v1040 = vpop.f32.mrb[0].mxu0
  %v1041 = vadd.f32 %v196, %v1040
  %v1042 = vpop.f32.mrb[0].mxu0
  %v1043 = vpop.f32.mrb[0].mxu0
  %v1044 = vadd.f32 %v196, %v1043
  %v1045 = vpop.f32.mrb[0].mxu0
  %1046 = vmatprep.mubr.bf16.mxu0 %v579
  %1047 = vmatmul.mubr.bf16.gmra.mrb[0].mxu0 %v578
  %v1048 = vpop.f32.mrb[0].mxu0
  %v1049 = vadd.f32 %v196, %v1048
  %v1050 = vpop.f32.mrb[0].mxu0
  %v1051 = vpop.f32.mrb[0].mxu0
  %v1052 = vadd.f32 %v196, %v1051
  %v1053 = vpop.f32.mrb[0].mxu0
  %1054 = vmatprep.mubr.bf16.mxu0 %v582
  %1055 = vmatmul.mubr.bf16.gmra.mrb[0].mxu0 %v581
  %v1056 = vpop.f32.mrb[0].mxu0
  %v1057 = vadd.f32 %v196, %v1056
  %v1058 = vpop.f32.mrb[0].mxu0
  %v1059 = vpop.f32.mrb[0].mxu0
  %v1060 = vadd.f32 %v196, %v1059
  %v1061 = vpop.f32.mrb[0].mxu0
  %1062 = vmatprep.mubr.bf16.mxu0 %v585
  %1063 = vmatmul.mubr.bf16.gmra.mrb[0].mxu0 %v584
  %v1064 = vpop.f32.mrb[0].mxu0
  %v1065 = vadd.f32 %v196, %v1064
  %v1066 = vpop.f32.mrb[0].mxu0
  %v1067 = vpop.f32.mrb[0].mxu0
  %v1068 = vadd.f32 %v196, %v1067
  %v1069 = vpop.f32.mrb[0].mxu0
  %1070 = vmatprep.mubr.bf16.mxu0 %v588
  %1071 = vmatmul.mubr.bf16.gmra.mrb[0].mxu0 %v587
  %v1072 = vpop.f32.mrb[0].mxu0
  %v1073 = vadd.f32 %v196, %v1072
  %v1074 = vpop.f32.mrb[0].mxu0
  %v1075 = vpop.f32.mrb[0].mxu0
  %v1076 = vadd.f32 %v196, %v1075
  %v1077 = vpop.f32.mrb[0].mxu0
  %1078 = vmatprep.mubr.bf16.mxu0 %v591
  %1079 = vmatmul.mubr.bf16.gmra.mrb[0].mxu0 %v590
  %v1080 = vpop.f32.mrb[0].mxu0
  %v1081 = vadd.f32 %v196, %v1080
  %v1082 = vpop.f32.mrb[0].mxu0
  %v1083 = vpop.f32.mrb[0].mxu0
  %v1084 = vadd.f32 %v196, %v1083
  %v1085 = vpop.f32.mrb[0].mxu0
  %1086 = vmatprep.mubr.bf16.mxu0 %v594
  %1087 = vmatmul.mubr.bf16.gmra.mrb[0].mxu0 %v593
  %v1088 = vpop.f32.mrb[0].mxu0
  %v1089 = vadd.f32 %v196, %v1088
  %v1090 = vpop.f32.mrb[0].mxu0
  %v1091 = vpop.f32.mrb[0].mxu0
  %v1092 = vadd.f32 %v196, %v1091
  %v1093 = vpop.f32.mrb[0].mxu0
  %1094 = vmatprep.mubr.bf16.mxu0 %v597
  %1095 = vmatmul.mubr.bf16.gmra.mrb[0].mxu0 %v596
  %v1096 = vpop.f32.mrb[0].mxu0
  %v1097 = vadd.f32 %v196, %v1096
  %v1098 = vpop.f32.mrb[0].mxu0
  %v1099 = vpop.f32.mrb[0].mxu0
  %v1100 = vadd.f32 %v196, %v1099
  %v1101 = vpop.f32.mrb[0].mxu0
  %1102 = vmatprep.mubr.bf16.mxu0 %v600
  %1103 = vmatmul.mubr.bf16.gmra.mrb[0].mxu0 %v599
  %v1104 = vpop.f32.mrb[0].mxu0
  %v1105 = vadd.f32 %v196, %v1104
  %v1106 = vpop.f32.mrb[0].mxu0
  %v1107 = vpop.f32.mrb[0].mxu0
  %v1108 = vadd.f32 %v196, %v1107
  %v1109 = vpop.f32.mrb[0].mxu0
  %1110 = vmatprep.mubr.bf16.mxu0 %v603
  %1111 = vmatmul.mubr.bf16.gmra.mrb[0].mxu0 %v602
  %v1112 = vpop.f32.mrb[0].mxu0
  %v1113 = vadd.f32 %v196, %v1112
  %v1114 = vpop.f32.mrb[0].mxu0
  %v1115 = vpop.f32.mrb[0].mxu0
  %v1116 = vadd.f32 %v196, %v1115
  %v1117 = vpop.f32.mrb[0].mxu0
  %1118 = vmatprep.mubr.bf16.mxu0 %v606
  %1119 = vmatmul.mubr.bf16.gmra.mrb[0].mxu0 %v605
  %v1120 = vpop.f32.mrb[0].mxu0
  %v1121 = vadd.f32 %v196, %v1120
  %v1122 = vpop.f32.mrb[0].mxu0
  %v1123 = vpop.f32.mrb[0].mxu0
  %v1124 = vadd.f32 %v196, %v1123
  %v1125 = vpop.f32.mrb[0].mxu0
  %1126 = vmatprep.mubr.bf16.mxu0 %v609
  %1127 = vmatmul.mubr.bf16.gmra.mrb[0].mxu0 %v608
  %v1128 = vpop.f32.mrb[0].mxu0
  %v1129 = vadd.f32 %v196, %v1128
  %v1130 = vpop.f32.mrb[0].mxu0
  %v1131 = vpop.f32.mrb[0].mxu0
  %v1132 = vadd.f32 %v196, %v1131
  %v1133 = vpop.f32.mrb[0].mxu0
  %1134 = vmatprep.mubr.bf16.mxu0 %v612
  %1135 = vmatmul.mubr.bf16.gmra.mrb[0].mxu0 %v611
  %v1136 = vpop.f32.mrb[0].mxu0
  %v1137 = vadd.f32 %v196, %v1136
  %v1138 = vpop.f32.mrb[0].mxu0
  %v1139 = vpop.f32.mrb[0].mxu0
  %v1140 = vadd.f32 %v196, %v1139
  %v1141 = vpop.f32.mrb[0].mxu0
  %1142 = vdwg.mxu0
  %1143 = vmatprep.subr.bf16.mxu0 0
  %1144 = vmatpush1.bf16.msra.mxu0 %v822
  %1145 = vmatprep.subr.bf16.mxu0 0
  %1146 = vmatpush1.bf16.msra.mxu0 %v823
  %1147 = vmatprep.subr.bf16.mxu0 0
  %1148 = vmatpush1.bf16.msra.mxu0 %v824
  %1149 = vmatprep.subr.bf16.mxu0 0
  %1150 = vmatpush1.bf16.msra.mxu0 %v825
  %1151 = vmatprep.subr.bf16.mxu0 0
  %1152 = vmatpush1.bf16.msra.mxu0 %v826
  %1153 = vmatprep.subr.bf16.mxu0 0
  %1154 = vmatpush1.bf16.msra.mxu0 %v827
  %1155 = vmatprep.subr.bf16.mxu0 0
  %1156 = vmatpush1.bf16.msra.mxu0 %v828
  %1157 = vmatprep.subr.bf16.mxu0 0
  %1158 = vmatpush1.bf16.msra.mxu0 %v829
  %1159 = vmatprep.subr.bf16.mxu0 0
  %1160 = vmatpush1.bf16.msra.mxu0 0
  %1161 = vmatprep.subr.bf16.mxu0 0
  %1162 = vmatpush1.bf16.msra.mxu0 0
  %1163 = vmatprep.subr.bf16.mxu0 0
  %1164 = vmatpush1.bf16.msra.mxu0 0
  %1165 = vmatprep.subr.bf16.mxu0 0
  %1166 = vmatpush1.bf16.msra.mxu0 0
  %1167 = vmatprep.subr.bf16.mxu0 0
  %1168 = vmatpush1.bf16.msra.mxu0 0
  %1169 = vmatprep.subr.bf16.mxu0 0
  %1170 = vmatpush1.bf16.msra.mxu0 0
  %1171 = vmatprep.subr.bf16.mxu0 0
  %1172 = vmatpush1.bf16.msra.mxu0 0
  %1173 = vmatprep.subr.bf16.mxu0 0
  %1174 = vmatpush1.bf16.msra.mxu0 0
  %1175 = vmatprep.mubr.bf16.mxu0 0
  %1176 = vmatmul.mubr.bf16.gmra.mrb[0].mxu0 %v520
  %v1177 = vpop.f32.mrb[0].mxu0
  %v1178 = vadd.f32 %v889, %v1177
  %v1179 = vpop.f32.mrb[0].mxu0
  %v1180 = vpop.f32.mrb[0].mxu0
  %v1181 = vadd.f32 %v892, %v1180
  %v1182 = vpop.f32.mrb[0].mxu0
  %1183 = vmatprep.mubr.bf16.mxu0 0
  %1184 = vmatmul.mubr.bf16.gmra.mrb[0].mxu0 %v523
  %v1185 = vpop.f32.mrb[0].mxu0
  %v1186 = vadd.f32 %v897, %v1185
  %v1187 = vpop.f32.mrb[0].mxu0
  %v1188 = vpop.f32.mrb[0].mxu0
  %v1189 = vadd.f32 %v900, %v1188
  %v1190 = vpop.f32.mrb[0].mxu0
  %1191 = vmatprep.mubr.bf16.mxu0 0
  %1192 = vmatmul.mubr.bf16.gmra.mrb[0].mxu0 %v526
  %v1193 = vpop.f32.mrb[0].mxu0
  %v1194 = vadd.f32 %v905, %v1193
  %v1195 = vpop.f32.mrb[0].mxu0
  %v1196 = vpop.f32.mrb[0].mxu0
  %v1197 = vadd.f32 %v908, %v1196
  %v1198 = vpop.f32.mrb[0].mxu0
  %1199 = vmatprep.mubr.bf16.mxu0 0
  %1200 = vmatmul.mubr.bf16.gmra.mrb[0].mxu0 %v529
  %v1201 = vpop.f32.mrb[0].mxu0
  %v1202 = vadd.f32 %v913, %v1201
  %v1203 = vpop.f32.mrb[0].mxu0
  %v1204 = vpop.f32.mrb[0].mxu0
  %v1205 = vadd.f32 %v916, %v1204
  %v1206 = vpop.f32.mrb[0].mxu0
  %1207 = vmatprep.mubr.bf16.mxu0 0
  %1208 = vmatmul.mubr.bf16.gmra.mrb[0].mxu0 %v532
  %v1209 = vpop.f32.mrb[0].mxu0
  %v1210 = vadd.f32 %v921, %v1209
  %v1211 = vpop.f32.mrb[0].mxu0
  %v1212 = vpop.f32.mrb[0].mxu0
  %v1213 = vadd.f32 %v924, %v1212
  %v1214 = vpop.f32.mrb[0].mxu0
  %1215 = vmatprep.mubr.bf16.mxu0 0
  %1216 = vmatmul.mubr.bf16.gmra.mrb[0].mxu0 %v535
  %v1217 = vpop.f32.mrb[0].mxu0
  %v1218 = vadd.f32 %v929, %v1217
  %v1219 = vpop.f32.mrb[0].mxu0
  %v1220 = vpop.f32.mrb[0].mxu0
  %v1221 = vadd.f32 %v932, %v1220
  %v1222 = vpop.f32.mrb[0].mxu0
  %1223 = vmatprep.mubr.bf16.mxu0 0
  %1224 = vmatmul.mubr.bf16.gmra.mrb[0].mxu0 %v538
  %v1225 = vpop.f32.mrb[0].mxu0
  %v1226 = vadd.f32 %v937, %v1225
  %v1227 = vpop.f32.mrb[0].mxu0
  %v1228 = vpop.f32.mrb[0].mxu0
  %v1229 = vadd.f32 %v940, %v1228
  %v1230 = vpop.f32.mrb[0].mxu0
  %1231 = vmatprep.mubr.bf16.mxu0 0
  %1232 = vmatmul.mubr.bf16.gmra.mrb[0].mxu0 %v541
  %v1233 = vpop.f32.mrb[0].mxu0
  %v1234 = vadd.f32 %v945, %v1233
  %v1235 = vpop.f32.mrb[0].mxu0
  %v1236 = vpop.f32.mrb[0].mxu0
  %v1237 = vadd.f32 %v948, %v1236
  %v1238 = vpop.f32.mrb[0].mxu0
  %1239 = vmatprep.mubr.bf16.mxu0 0
  %1240 = vmatmul.mubr.bf16.gmra.mrb[0].mxu0 %v544
  %v1241 = vpop.f32.mrb[0].mxu0
  %v1242 = vadd.f32 %v953, %v1241
  %v1243 = vpop.f32.mrb[0].mxu0
  %v1244 = vpop.f32.mrb[0].mxu0
  %v1245 = vadd.f32 %v956, %v1244
  %v1246 = vpop.f32.mrb[0].mxu0
  %1247 = vmatprep.mubr.bf16.mxu0 0
  %1248 = vmatmul.mubr.bf16.gmra.mrb[0].mxu0 %v547
  %v1249 = vpop.f32.mrb[0].mxu0
  %v1250 = vadd.f32 %v961, %v1249
  %v1251 = vpop.f32.mrb[0].mxu0
  %v1252 = vpop.f32.mrb[0].mxu0
  %v1253 = vadd.f32 %v964, %v1252
  %v1254 = vpop.f32.mrb[0].mxu0
  %1255 = vmatprep.mubr.bf16.mxu0 0
  %1256 = vmatmul.mubr.bf16.gmra.mrb[0].mxu0 %v550
  %v1257 = vpop.f32.mrb[0].mxu0
  %v1258 = vadd.f32 %v969, %v1257
  %v1259 = vpop.f32.mrb[0].mxu0
  %v1260 = vpop.f32.mrb[0].mxu0
  %v1261 = vadd.f32 %v972, %v1260
  %v1262 = vpop.f32.mrb[0].mxu0
  %1263 = vmatprep.mubr.bf16.mxu0 0
  %1264 = vmatmul.mubr.bf16.gmra.mrb[0].mxu0 %v553
  %v1265 = vpop.f32.mrb[0].mxu0
  %v1266 = vadd.f32 %v977, %v1265
  %v1267 = vpop.f32.mrb[0].mxu0
  %v1268 = vpop.f32.mrb[0].mxu0
  %v1269 = vadd.f32 %v980, %v1268
  %v1270 = vpop.f32.mrb[0].mxu0
  %1271 = vmatprep.mubr.bf16.mxu0 0
  %1272 = vmatmul.mubr.bf16.gmra.mrb[0].mxu0 %v556
  %v1273 = vpop.f32.mrb[0].mxu0
  %v1274 = vadd.f32 %v985, %v1273
  %v1275 = vpop.f32.mrb[0].mxu0
  %v1276 = vpop.f32.mrb[0].mxu0
  %v1277 = vadd.f32 %v988, %v1276
  %v1278 = vpop.f32.mrb[0].mxu0
  %1279 = vmatprep.mubr.bf16.mxu0 0
  %1280 = vmatmul.mubr.bf16.gmra.mrb[0].mxu0 %v559
  %v1281 = vpop.f32.mrb[0].mxu0
  %v1282 = vadd.f32 %v993, %v1281
  %v1283 = vpop.f32.mrb[0].mxu0
  %v1284 = vpop.f32.mrb[0].mxu0
  %v1285 = vadd.f32 %v996, %v1284
  %v1286 = vpop.f32.mrb[0].mxu0
  %1287 = vmatprep.mubr.bf16.mxu0 0
  %1288 = vmatmul.mubr.bf16.gmra.mrb[0].mxu0 %v562
  %v1289 = vpop.f32.mrb[0].mxu0
  %v1290 = vadd.f32 %v1001, %v1289
  %v1291 = vpop.f32.mrb[0].mxu0
  %v1292 = vpop.f32.mrb[0].mxu0
  %v1293 = vadd.f32 %v1004, %v1292
  %v1294 = vpop.f32.mrb[0].mxu0
  %1295 = vmatprep.mubr.bf16.mxu0 0
  %1296 = vmatmul.mubr.bf16.gmra.mrb[0].mxu0 %v565
  %v1297 = vpop.f32.mrb[0].mxu0
  %v1298 = vadd.f32 %v1009, %v1297
  %v1299 = vpop.f32.mrb[0].mxu0
  %v1300 = vpop.f32.mrb[0].mxu0
  %v1301 = vadd.f32 %v1012, %v1300
  %v1302 = vpop.f32.mrb[0].mxu0
  %1303 = vmatprep.mubr.bf16.mxu0 0
  %1304 = vmatmul.mubr.bf16.gmra.mrb[0].mxu0 %v568
  %v1305 = vpop.f32.mrb[0].mxu0
  %v1306 = vadd.f32 %v1017, %v1305
  %v1307 = vpop.f32.mrb[0].mxu0
  %v1308 = vpop.f32.mrb[0].mxu0
  %v1309 = vadd.f32 %v1020, %v1308
  %v1310 = vpop.f32.mrb[0].mxu0
  %1311 = vmatprep.mubr.bf16.mxu0 0
  %1312 = vmatmul.mubr.bf16.gmra.mrb[0].mxu0 %v571
  %v1313 = vpop.f32.mrb[0].mxu0
  %v1314 = vadd.f32 %v1025, %v1313
  %v1315 = vpop.f32.mrb[0].mxu0
  %v1316 = vpop.f32.mrb[0].mxu0
  %v1317 = vadd.f32 %v1028, %v1316
  %v1318 = vpop.f32.mrb[0].mxu0
  %1319 = vmatprep.mubr.bf16.mxu0 0
  %1320 = vmatmul.mubr.bf16.gmra.mrb[0].mxu0 %v574
  %v1321 = vpop.f32.mrb[0].mxu0
  %v1322 = vadd.f32 %v1033, %v1321
  %v1323 = vpop.f32.mrb[0].mxu0
  %v1324 = vpop.f32.mrb[0].mxu0
  %v1325 = vadd.f32 %v1036, %v1324
  %v1326 = vpop.f32.mrb[0].mxu0
  %1327 = vmatprep.mubr.bf16.mxu0 0
  %1328 = vmatmul.mubr.bf16.gmra.mrb[0].mxu0 %v577
  %v1329 = vpop.f32.mrb[0].mxu0
  %v1330 = vadd.f32 %v1041, %v1329
  %v1331 = vpop.f32.mrb[0].mxu0
  %v1332 = vpop.f32.mrb[0].mxu0
  %v1333 = vadd.f32 %v1044, %v1332
  %v1334 = vpop.f32.mrb[0].mxu0
  %1335 = vmatprep.mubr.bf16.mxu0 0
  %1336 = vmatmul.mubr.bf16.gmra.mrb[0].mxu0 %v580
  %v1337 = vpop.f32.mrb[0].mxu0
  %v1338 = vadd.f32 %v1049, %v1337
  %v1339 = vpop.f32.mrb[0].mxu0
  %v1340 = vpop.f32.mrb[0].mxu0
  %v1341 = vadd.f32 %v1052, %v1340
  %v1342 = vpop.f32.mrb[0].mxu0
  %1343 = vmatprep.mubr.bf16.mxu0 0
  %1344 = vmatmul.mubr.bf16.gmra.mrb[0].mxu0 %v583
  %v1345 = vpop.f32.mrb[0].mxu0
  %v1346 = vadd.f32 %v1057, %v1345
  %v1347 = vpop.f32.mrb[0].mxu0
  %v1348 = vpop.f32.mrb[0].mxu0
  %v1349 = vadd.f32 %v1060, %v1348
  %v1350 = vpop.f32.mrb[0].mxu0
  %1351 = vmatprep.mubr.bf16.mxu0 0
  %1352 = vmatmul.mubr.bf16.gmra.mrb[0].mxu0 %v586
  %v1353 = vpop.f32.mrb[0].mxu0
  %v1354 = vadd.f32 %v1065, %v1353
  %v1355 = vpop.f32.mrb[0].mxu0
  %v1356 = vpop.f32.mrb[0].mxu0
  %v1357 = vadd.f32 %v1068, %v1356
  %v1358 = vpop.f32.mrb[0].mxu0
  %1359 = vmatprep.mubr.bf16.mxu0 0
  %1360 = vmatmul.mubr.bf16.gmra.mrb[0].mxu0 %v589
  %v1361 = vpop.f32.mrb[0].mxu0
  %v1362 = vadd.f32 %v1073, %v1361
  %v1363 = vpop.f32.mrb[0].mxu0
  %v1364 = vpop.f32.mrb[0].mxu0
  %v1365 = vadd.f32 %v1076, %v1364
  %v1366 = vpop.f32.mrb[0].mxu0
  %1367 = vmatprep.mubr.bf16.mxu0 0
  %1368 = vmatmul.mubr.bf16.gmra.mrb[0].mxu0 %v592
  %v1369 = vpop.f32.mrb[0].mxu0
  %v1370 = vadd.f32 %v1081, %v1369
  %v1371 = vpop.f32.mrb[0].mxu0
  %v1372 = vpop.f32.mrb[0].mxu0
  %v1373 = vadd.f32 %v1084, %v1372
  %v1374 = vpop.f32.mrb[0].mxu0
  %1375 = vmatprep.mubr.bf16.mxu0 0
  %1376 = vmatmul.mubr.bf16.gmra.mrb[0].mxu0 %v595
  %v1377 = vpop.f32.mrb[0].mxu0
  %v1378 = vadd.f32 %v1089, %v1377
  %v1379 = vpop.f32.mrb[0].mxu0
  %v1380 = vpop.f32.mrb[0].mxu0
  %v1381 = vadd.f32 %v1092, %v1380
  %v1382 = vpop.f32.mrb[0].mxu0
  %1383 = vmatprep.mubr.bf16.mxu0 0
  %1384 = vmatmul.mubr.bf16.gmra.mrb[0].mxu0 %v598
  %v1385 = vpop.f32.mrb[0].mxu0
  %v1386 = vadd.f32 %v1097, %v1385
  %v1387 = vpop.f32.mrb[0].mxu0
  %v1388 = vpop.f32.mrb[0].mxu0
  %v1389 = vadd.f32 %v1100, %v1388
  %v1390 = vpop.f32.mrb[0].mxu0
  %1391 = vmatprep.mubr.bf16.mxu0 0
  %1392 = vmatmul.mubr.bf16.gmra.mrb[0].mxu0 %v601
  %v1393 = vpop.f32.mrb[0].mxu0
  %v1394 = vadd.f32 %v1105, %v1393
  %v1395 = vpop.f32.mrb[0].mxu0
  %v1396 = vpop.f32.mrb[0].mxu0
  %v1397 = vadd.f32 %v1108, %v1396
  %v1398 = vpop.f32.mrb[0].mxu0
  %1399 = vmatprep.mubr.bf16.mxu0 0
  %1400 = vmatmul.mubr.bf16.gmra.mrb[0].mxu0 %v604
  %v1401 = vpop.f32.mrb[0].mxu0
  %v1402 = vadd.f32 %v1113, %v1401
  %v1403 = vpop.f32.mrb[0].mxu0
  %v1404 = vpop.f32.mrb[0].mxu0
  %v1405 = vadd.f32 %v1116, %v1404
  %v1406 = vpop.f32.mrb[0].mxu0
  %1407 = vmatprep.mubr.bf16.mxu0 0
  %1408 = vmatmul.mubr.bf16.gmra.mrb[0].mxu0 %v607
  %v1409 = vpop.f32.mrb[0].mxu0
  %v1410 = vadd.f32 %v1121, %v1409
  %v1411 = vpop.f32.mrb[0].mxu0
  %v1412 = vpop.f32.mrb[0].mxu0
  %v1413 = vadd.f32 %v1124, %v1412
  %v1414 = vpop.f32.mrb[0].mxu0
  %1415 = vmatprep.mubr.bf16.mxu0 0
  %1416 = vmatmul.mubr.bf16.gmra.mrb[0].mxu0 %v610
  %v1417 = vpop.f32.mrb[0].mxu0
  %v1418 = vadd.f32 %v1129, %v1417
  %v1419 = vpop.f32.mrb[0].mxu0
  %v1420 = vpop.f32.mrb[0].mxu0
  %v1421 = vadd.f32 %v1132, %v1420
  %v1422 = vpop.f32.mrb[0].mxu0
  %1423 = vmatprep.mubr.bf16.mxu0 0
  %1424 = vmatmul.mubr.bf16.gmra.mrb[0].mxu0 %v613
  %v1425 = vpop.f32.mrb[0].mxu0
  %v1426 = vadd.f32 %v1137, %v1425
  %v1427 = vpop.f32.mrb[0].mxu0
  %v1428 = vpop.f32.mrb[0].mxu0
  %v1429 = vadd.f32 %v1140, %v1428
  %v1430 = vpop.f32.mrb[0].mxu0
  %1431 = vdwg.mxu0
  %v1432 = vmax.f32 %v1178, 0.0
  %v1433 = vmax.f32 %v1181, 0.0
  %v1434 = vmax.f32 %v1186, 0.0
  %v1435 = vmax.f32 %v1189, 0.0
  %v1436 = vmax.f32 %v1194, 0.0
  %v1437 = vmax.f32 %v1197, 0.0
  %v1438 = vmax.f32 %v1202, 0.0
  %v1439 = vmax.f32 %v1205, 0.0
  %v1440 = vmax.f32 %v1210, 0.0
  %v1441 = vmax.f32 %v1213, 0.0
  %v1442 = vmax.f32 %v1218, 0.0
  %v1443 = vmax.f32 %v1221, 0.0
  %v1444 = vmax.f32 %v1226, 0.0
  %v1445 = vmax.f32 %v1229, 0.0
  %v1446 = vmax.f32 %v1234, 0.0
  %v1447 = vmax.f32 %v1237, 0.0
  %v1448 = vmax.f32 %v1242, 0.0
  %v1449 = vmax.f32 %v1245, 0.0
  %v1450 = vmax.f32 %v1250, 0.0
  %v1451 = vmax.f32 %v1253, 0.0
  %v1452 = vmax.f32 %v1258, 0.0
  %v1453 = vmax.f32 %v1261, 0.0
  %v1454 = vmax.f32 %v1266, 0.0
  %v1455 = vmax.f32 %v1269, 0.0
  %v1456 = vmax.f32 %v1274, 0.0
  %v1457 = vmax.f32 %v1277, 0.0
  %v1458 = vmax.f32 %v1282, 0.0
  %v1459 = vmax.f32 %v1285, 0.0
  %v1460 = vmax.f32 %v1290, 0.0
  %v1461 = vmax.f32 %v1293, 0.0
  %v1462 = vmax.f32 %v1298, 0.0
  %v1463 = vmax.f32 %v1301, 0.0
  %v1464 = vmax.f32 %v1306, 0.0
  %v1465 = vmax.f32 %v1309, 0.0
  %v1466 = vmax.f32 %v1314, 0.0
  %v1467 = vmax.f32 %v1317, 0.0
  %v1468 = vmax.f32 %v1322, 0.0
  %v1469 = vmax.f32 %v1325, 0.0
  %v1470 = vmax.f32 %v1330, 0.0
  %v1471 = vmax.f32 %v1333, 0.0
  %v1472 = vmax.f32 %v1338, 0.0
  %v1473 = vmax.f32 %v1341, 0.0
  %v1474 = vmax.f32 %v1346, 0.0
  %v1475 = vmax.f32 %v1349, 0.0
  %v1476 = vmax.f32 %v1354, 0.0
  %v1477 = vmax.f32 %v1357, 0.0
  %v1478 = vmax.f32 %v1362, 0.0
  %v1479 = vmax.f32 %v1365, 0.0
  %v1480 = vmax.f32 %v1370, 0.0
  %v1481 = vmax.f32 %v1373, 0.0
  %v1482 = vmax.f32 %v1378, 0.0
  %v1483 = vmax.f32 %v1381, 0.0
  %v1484 = vmax.f32 %v1386, 0.0
  %v1485 = vmax.f32 %v1389, 0.0
  %v1486 = vmax.f32 %v1394, 0.0
  %v1487 = vmax.f32 %v1397, 0.0
  %v1488 = vmax.f32 %v1402, 0.0
  %v1489 = vmax.f32 %v1405, 0.0
  %v1490 = vmax.f32 %v1410, 0.0
  %v1491 = vmax.f32 %v1413, 0.0
  %v1492 = vmax.f32 %v1418, 0.0
  %v1493 = vmax.f32 %v1421, 0.0
  %v1494 = vmax.f32 %v1426, 0.0
  %v1495 = vmax.f32 %v1429, 0.0
  %v1496 = vmin.f32 %v1432, 6.0
  %v1497 = vmin.f32 %v1433, 6.0
  %v1498 = vmin.f32 %v1434, 6.0
  %v1499 = vmin.f32 %v1435, 6.0
  %v1500 = vmin.f32 %v1436, 6.0
  %v1501 = vmin.f32 %v1437, 6.0
  %v1502 = vmin.f32 %v1438, 6.0
  %v1503 = vmin.f32 %v1439, 6.0
  %v1504 = vmin.f32 %v1440, 6.0
  %v1505 = vmin.f32 %v1441, 6.0
  %v1506 = vmin.f32 %v1442, 6.0
  %v1507 = vmin.f32 %v1443, 6.0
  %v1508 = vmin.f32 %v1444, 6.0
  %v1509 = vmin.f32 %v1445, 6.0
  %v1510 = vmin.f32 %v1446, 6.0
  %v1511 = vmin.f32 %v1447, 6.0
  %v1512 = vmin.f32 %v1448, 6.0
  %v1513 = vmin.f32 %v1449, 6.0
  %v1514 = vmin.f32 %v1450, 6.0
  %v1515 = vmin.f32 %v1451, 6.0
  %v1516 = vmin.f32 %v1452, 6.0
  %v1517 = vmin.f32 %v1453, 6.0
  %v1518 = vmin.f32 %v1454, 6.0
  %v1519 = vmin.f32 %v1455, 6.0
  %v1520 = vmin.f32 %v1456, 6.0
  %v1521 = vmin.f32 %v1457, 6.0
  %v1522 = vmin.f32 %v1458, 6.0
  %v1523 = vmin.f32 %v1459, 6.0
  %v1524 = vmin.f32 %v1460, 6.0
  %v1525 = vmin.f32 %v1461, 6.0
  %v1526 = vmin.f32 %v1462, 6.0
  %v1527 = vmin.f32 %v1463, 6.0
  %v1528 = vmin.f32 %v1464, 6.0
  %v1529 = vmin.f32 %v1465, 6.0
  %v1530 = vmin.f32 %v1466, 6.0
  %v1531 = vmin.f32 %v1467, 6.0
  %v1532 = vmin.f32 %v1468, 6.0
  %v1533 = vmin.f32 %v1469, 6.0
  %v1534 = vmin.f32 %v1470, 6.0
  %v1535 = vmin.f32 %v1471, 6.0
  %v1536 = vmin.f32 %v1472, 6.0
  %v1537 = vmin.f32 %v1473, 6.0
  %v1538 = vmin.f32 %v1474, 6.0
  %v1539 = vmin.f32 %v1475, 6.0
  %v1540 = vmin.f32 %v1476, 6.0
  %v1541 = vmin.f32 %v1477, 6.0
  %v1542 = vmin.f32 %v1478, 6.0
  %v1543 = vmin.f32 %v1479, 6.0
  %v1544 = vmin.f32 %v1480, 6.0
  %v1545 = vmin.f32 %v1481, 6.0
  %v1546 = vmin.f32 %v1482, 6.0
  %v1547 = vmin.f32 %v1483, 6.0
  %v1548 = vmin.f32 %v1484, 6.0
  %v1549 = vmin.f32 %v1485, 6.0
  %v1550 = vmin.f32 %v1486, 6.0
  %v1551 = vmin.f32 %v1487, 6.0
  %v1552 = vmin.f32 %v1488, 6.0
  %v1553 = vmin.f32 %v1489, 6.0
  %v1554 = vmin.f32 %v1490, 6.0
  %v1555 = vmin.f32 %v1491, 6.0
  %v1556 = vmin.f32 %v1492, 6.0
  %v1557 = vmin.f32 %v1493, 6.0
  %v1558 = vmin.f32 %v1494, 6.0
  %v1559 = vmin.f32 %v1495, 6.0
  %v1560 = vpack.c.bf16 %v1497, %v1496
  %v1561 = vpack.c.bf16 %v1499, %v1498
  %v1562 = vpack.c.bf16 %v1501, %v1500
  %v1563 = vpack.c.bf16 %v1503, %v1502
  %v1564 = vpack.c.bf16 %v1505, %v1504
  %v1565 = vpack.c.bf16 %v1507, %v1506
  %v1566 = vpack.c.bf16 %v1509, %v1508
  %v1567 = vpack.c.bf16 %v1511, %v1510
  %v1568 = vpack.c.bf16 %v1513, %v1512
  %v1569 = vpack.c.bf16 %v1515, %v1514
  %v1570 = vpack.c.bf16 %v1517, %v1516
  %v1571 = vpack.c.bf16 %v1519, %v1518
  %v1572 = vpack.c.bf16 %v1521, %v1520
  %v1573 = vpack.c.bf16 %v1523, %v1522
  %v1574 = vpack.c.bf16 %v1525, %v1524
  %v1575 = vpack.c.bf16 %v1527, %v1526
  %v1576 = vpack.c.bf16 %v1529, %v1528
  %v1577 = vpack.c.bf16 %v1531, %v1530
  %v1578 = vpack.c.bf16 %v1533, %v1532
  %v1579 = vpack.c.bf16 %v1535, %v1534
  %v1580 = vpack.c.bf16 %v1537, %v1536
  %v1581 = vpack.c.bf16 %v1539, %v1538
  %v1582 = vpack.c.bf16 %v1541, %v1540
  %v1583 = vpack.c.bf16 %v1543, %v1542
  %v1584 = vpack.c.bf16 %v1545, %v1544
  %v1585 = vpack.c.bf16 %v1547, %v1546
  %v1586 = vpack.c.bf16 %v1549, %v1548
  %v1587 = vpack.c.bf16 %v1551, %v1550
  %v1588 = vpack.c.bf16 %v1553, %v1552
  %v1589 = vpack.c.bf16 %v1555, %v1554
  %v1590 = vpack.c.bf16 %v1557, %v1556
  %v1591 = vpack.c.bf16 %v1559, %v1558
  %v1624 = vunpack.c.l.b16 %v1560
  %v1625 = vunpack.c.h.b16 %v1560
  %v1626 = vunpack.c.l.b16 %v1561
  %v1627 = vunpack.c.h.b16 %v1561
  %v1628 = vunpack.c.l.b16 %v1562
  %v1629 = vunpack.c.h.b16 %v1562
  %v1630 = vunpack.c.l.b16 %v1563
  %v1631 = vunpack.c.h.b16 %v1563
  %v1632 = vunpack.c.l.b16 %v1564
  %v1633 = vunpack.c.h.b16 %v1564
  %v1634 = vunpack.c.l.b16 %v1565
  %v1635 = vunpack.c.h.b16 %v1565
  %v1636 = vunpack.c.l.b16 %v1566
  %v1637 = vunpack.c.h.b16 %v1566
  %v1638 = vunpack.c.l.b16 %v1567
  %v1639 = vunpack.c.h.b16 %v1567
  %v1640 = vunpack.c.l.b16 %v1568
  %v1641 = vunpack.c.h.b16 %v1568
  %v1642 = vunpack.c.l.b16 %v1569
  %v1643 = vunpack.c.h.b16 %v1569
  %v1644 = vunpack.c.l.b16 %v1570
  %v1645 = vunpack.c.h.b16 %v1570
  %v1646 = vunpack.c.l.b16 %v1571
  %v1647 = vunpack.c.h.b16 %v1571
  %v1648 = vunpack.c.l.b16 %v1572
  %v1649 = vunpack.c.h.b16 %v1572
  %v1650 = vunpack.c.l.b16 %v1573
  %v1651 = vunpack.c.h.b16 %v1573
  %v1652 = vunpack.c.l.b16 %v1574
  %v1653 = vunpack.c.h.b16 %v1574
  %v1654 = vunpack.c.l.b16 %v1575
  %v1655 = vunpack.c.h.b16 %v1575
  %v1656 = vunpack.c.l.b16 %v1576
  %v1657 = vunpack.c.h.b16 %v1576
  %v1658 = vunpack.c.l.b16 %v1577
  %v1659 = vunpack.c.h.b16 %v1577
  %v1660 = vunpack.c.l.b16 %v1578
  %v1661 = vunpack.c.h.b16 %v1578
  %v1662 = vunpack.c.l.b16 %v1579
  %v1663 = vunpack.c.h.b16 %v1579
  %v1664 = vunpack.c.l.b16 %v1580
  %v1665 = vunpack.c.h.b16 %v1580
  %v1666 = vunpack.c.l.b16 %v1581
  %v1667 = vunpack.c.h.b16 %v1581
  %v1668 = vunpack.c.l.b16 %v1582
  %v1669 = vunpack.c.h.b16 %v1582
  %v1670 = vunpack.c.l.b16 %v1583
  %v1671 = vunpack.c.h.b16 %v1583
  %v1672 = vunpack.c.l.b16 %v1584
  %v1673 = vunpack.c.h.b16 %v1584
  %v1674 = vunpack.c.l.b16 %v1585
  %v1675 = vunpack.c.h.b16 %v1585
  %v1676 = vunpack.c.l.b16 %v1586
  %v1677 = vunpack.c.h.b16 %v1586
  %v1678 = vunpack.c.l.b16 %v1587
  %v1679 = vunpack.c.h.b16 %v1587
  %v1680 = vunpack.c.l.b16 %v1588
  %v1681 = vunpack.c.h.b16 %v1588
  %v1682 = vunpack.c.l.b16 %v1589
  %v1683 = vunpack.c.h.b16 %v1589
  %v1684 = vunpack.c.l.b16 %v1590
  %v1685 = vunpack.c.h.b16 %v1590
  %v1686 = vunpack.c.l.b16 %v1591
  %v1687 = vunpack.c.h.b16 %v1591
  %v1688 = vpack.c.b16 %v1624, %v1624
  %v1689 = vpack.c.b16 %v1625, %v1625
  %v1690 = vpack.c.b16 %v1626, %v1626
  %v1691 = vpack.c.b16 %v1627, %v1627
  %v1692 = vpack.c.b16 %v1628, %v1628
  %v1693 = vpack.c.b16 %v1629, %v1629
  %v1694 = vpack.c.b16 %v1630, %v1630
  %v1695 = vpack.c.b16 %v1631, %v1631
  %v1696 = vpack.c.b16 %v1632, %v1632
  %v1697 = vpack.c.b16 %v1633, %v1633
  %v1698 = vpack.c.b16 %v1634, %v1634
  %v1699 = vpack.c.b16 %v1635, %v1635
  %v1700 = vpack.c.b16 %v1636, %v1636
  %v1701 = vpack.c.b16 %v1637, %v1637
  %v1702 = vpack.c.b16 %v1638, %v1638
  %v1703 = vpack.c.b16 %v1639, %v1639
  %v1704 = vpack.c.b16 %v1640, %v1640
  %v1705 = vpack.c.b16 %v1641, %v1641
  %v1706 = vpack.c.b16 %v1642, %v1642
  %v1707 = vpack.c.b16 %v1643, %v1643
  %v1708 = vpack.c.b16 %v1644, %v1644
  %v1709 = vpack.c.b16 %v1645, %v1645
  %v1710 = vpack.c.b16 %v1646, %v1646
  %v1711 = vpack.c.b16 %v1647, %v1647
  %v1712 = vpack.c.b16 %v1648, %v1648
  %v1713 = vpack.c.b16 %v1649, %v1649
  %v1714 = vpack.c.b16 %v1650, %v1650
  %v1715 = vpack.c.b16 %v1651, %v1651
  %v1716 = vpack.c.b16 %v1652, %v1652
  %v1717 = vpack.c.b16 %v1653, %v1653
  %v1718 = vpack.c.b16 %v1654, %v1654
  %v1719 = vpack.c.b16 %v1655, %v1655
  %v1720 = vpack.c.b16 %v1656, %v1656
  %v1721 = vpack.c.b16 %v1657, %v1657
  %v1722 = vpack.c.b16 %v1658, %v1658
  %v1723 = vpack.c.b16 %v1659, %v1659
  %v1724 = vpack.c.b16 %v1660, %v1660
  %v1725 = vpack.c.b16 %v1661, %v1661
  %v1726 = vpack.c.b16 %v1662, %v1662
  %v1727 = vpack.c.b16 %v1663, %v1663
  %v1728 = vpack.c.b16 %v1664, %v1664
  %v1729 = vpack.c.b16 %v1665, %v1665
  %v1730 = vpack.c.b16 %v1666, %v1666
  %v1731 = vpack.c.b16 %v1667, %v1667
  %v1732 = vpack.c.b16 %v1668, %v1668
  %v1733 = vpack.c.b16 %v1669, %v1669
  %v1734 = vpack.c.b16 %v1670, %v1670
  %v1735 = vpack.c.b16 %v1671, %v1671
  %v1736 = vpack.c.b16 %v1672, %v1672
  %v1737 = vpack.c.b16 %v1673, %v1673
  %v1738 = vpack.c.b16 %v1674, %v1674
  %v1739 = vpack.c.b16 %v1675, %v1675
  %v1740 = vpack.c.b16 %v1676, %v1676
  %v1741 = vpack.c.b16 %v1677, %v1677
  %v1742 = vpack.c.b16 %v1678, %v1678
  %v1743 = vpack.c.b16 %v1679, %v1679
  %v1744 = vpack.c.b16 %v1680, %v1680
  %v1745 = vpack.c.b16 %v1681, %v1681
  %v1746 = vpack.c.b16 %v1682, %v1682
  %v1747 = vpack.c.b16 %v1683, %v1683
  %v1748 = vpack.c.b16 %v1684, %v1684
  %v1749 = vpack.c.b16 %v1685, %v1685
  %v1750 = vpack.c.b16 %v1686, %v1686
  %v1751 = vpack.c.b16 %v1687, %v1687
  %1816 = vst [vmem:[%s3] sm:$0xf] %v1688
  %1817 = vst [vmem:[%s3 + $0x4] sm:$0xf] %v1689
  %1818 = vst [vmem:[%s3 + $0x8] sm:$0xf] %v1690
  %1819 = vst [vmem:[%s3 + $0xc] sm:$0xf] %v1691
  %1820 = vst [vmem:[%s3 + $0x10] sm:$0xf] %v1692
  %1821 = vst [vmem:[%s3 + $0x14] sm:$0xf] %v1693
  %1822 = vst [vmem:[%s3 + $0x18] sm:$0xf] %v1694
  %1823 = vst [vmem:[%s3 + $0x1c] sm:$0xf] %v1695
  %1824 = vst [vmem:[%s3 + $0x20] sm:$0xf] %v1696
  %1825 = vst [vmem:[%s3 + $0x24] sm:$0xf] %v1697
  %1826 = vst [vmem:[%s3 + $0x28] sm:$0xf] %v1698
  %1827 = vst [vmem:[%s3 + $0x2c] sm:$0xf] %v1699
  %1828 = vst [vmem:[%s3 + $0x30] sm:$0xf] %v1700
  %1829 = vst [vmem:[%s3 + $0x34] sm:$0xf] %v1701
  %1830 = vst [vmem:[%s3 + $0x38] sm:$0xf] %v1702
  %1831 = vst [vmem:[%s3 + $0x3c] sm:$0xf] %v1703
  %1832 = vst [vmem:[%s3 + $0x40] sm:$0xf] %v1704
  %1833 = vst [vmem:[%s3 + $0x44] sm:$0xf] %v1705
  %1834 = vst [vmem:[%s3 + $0x48] sm:$0xf] %v1706
  %1835 = vst [vmem:[%s3 + $0x4c] sm:$0xf] %v1707
  %1836 = vst [vmem:[%s3 + $0x50] sm:$0xf] %v1708
  %1837 = vst [vmem:[%s3 + $0x54] sm:$0xf] %v1709
  %1838 = vst [vmem:[%s3 + $0x58] sm:$0xf] %v1710
  %1839 = vst [vmem:[%s3 + $0x5c] sm:$0xf] %v1711
  %1840 = vst [vmem:[%s3 + $0x60] sm:$0xf] %v1712
  %1841 = vst [vmem:[%s3 + $0x64] sm:$0xf] %v1713
  %1842 = vst [vmem:[%s3 + $0x68] sm:$0xf] %v1714
  %1843 = vst [vmem:[%s3 + $0x6c] sm:$0xf] %v1715
  %1844 = vst [vmem:[%s3 + $0x70] sm:$0xf] %v1716
  %1845 = vst [vmem:[%s3 + $0x74] sm:$0xf] %v1717
  %1846 = vst [vmem:[%s3 + $0x78] sm:$0xf] %v1718
  %1847 = vst [vmem:[%s3 + $0x7c] sm:$0xf] %v1719
  %1848 = vst [vmem:[%s3 + $0x80] sm:$0xf] %v1720
  %1849 = vst [vmem:[%s3 + $0x84] sm:$0xf] %v1721
  %1850 = vst [vmem:[%s3 + $0x88] sm:$0xf] %v1722
  %1851 = vst [vmem:[%s3 + $0x8c] sm:$0xf] %v1723
  %1852 = vst [vmem:[%s3 + $0x90] sm:$0xf] %v1724
  %1853 = vst [vmem:[%s3 + $0x94] sm:$0xf] %v1725
  %1854 = vst [vmem:[%s3 + $0x98] sm:$0xf] %v1726
  %1855 = vst [vmem:[%s3 + $0x9c] sm:$0xf] %v1727
  %1856 = vst [vmem:[%s3 + $0xa0] sm:$0xf] %v1728
  %1857 = vst [vmem:[%s3 + $0xa4] sm:$0xf] %v1729
  %1858 = vst [vmem:[%s3 + $0xa8] sm:$0xf] %v1730
  %1859 = vst [vmem:[%s3 + $0xac] sm:$0xf] %v1731
  %1860 = vst [vmem:[%s3 + $0xb0] sm:$0xf] %v1732
  %1861 = vst [vmem:[%s3 + $0xb4] sm:$0xf] %v1733
  %1862 = vst [vmem:[%s3 + $0xb8] sm:$0xf] %v1734
  %1863 = vst [vmem:[%s3 + $0xbc] sm:$0xf] %v1735
  %1864 = vst [vmem:[%s3 + $0xc0] sm:$0xf] %v1736
  %1865 = vst [vmem:[%s3 + $0xc4] sm:$0xf] %v1737
  %1866 = vst [vmem:[%s3 + $0xc8] sm:$0xf] %v1738
  %1867 = vst [vmem:[%s3 + $0xcc] sm:$0xf] %v1739
  %1868 = vst [vmem:[%s3 + $0xd0] sm:$0xf] %v1740
  %1869 = vst [vmem:[%s3 + $0xd4] sm:$0xf] %v1741
  %1870 = vst [vmem:[%s3 + $0xd8] sm:$0xf] %v1742
  %1871 = vst [vmem:[%s3 + $0xdc] sm:$0xf] %v1743
  %1872 = vst [vmem:[%s3 + $0xe0] sm:$0xf] %v1744
  %1873 = vst [vmem:[%s3 + $0xe4] sm:$0xf] %v1745
  %1874 = vst [vmem:[%s3 + $0xe8] sm:$0xf] %v1746
  %1875 = vst [vmem:[%s3 + $0xec] sm:$0xf] %v1747
  %1876 = vst [vmem:[%s3 + $0xf0] sm:$0xf] %v1748
  %1877 = vst [vmem:[%s3 + $0xf4] sm:$0xf] %v1749
  %1878 = vst [vmem:[%s3 + $0xf8] sm:$0xf] %v1750
  %1879 = vst [vmem:[%s3 + $0xfc] sm:$0xf] %v1751
  // Predicated region
  $region14: #{forward.20} parent=0 // pred_check
    _
  $region15: #{forward.20} parent=0 // pred_check_branch
    %1881 = sbr.rel (0) target = $region17
  $region16: #{forward.20} parent=0 // pred_region
    _
  $region17: #{forward.20} parent=0 // pred_fallthru
    _
  // Predicated region
  $region18: #{forward.20} parent=0 // pred_check
    _
  $region19: #{forward.20} parent=0 // pred_check_branch
    %1883 = sbr.rel (0) target = $region21
  $region20: #{forward.20} parent=0 // pred_region
    _
  $region21: #{forward.20} parent=0 // pred_fallthru
    _

// kernel: forward.21
$region0: #{forward.21}
  #allocation0 [shape = 'u32[]', space=smem, size = 0x4, offset = 0x4, fixed_abs, tag = 'smem constant byte address 0x4 - core index']
  #allocation1 [shape = 'u32[144,128]{1,0:T(1,128)}', space=vmem, size = 0x12000, scoped, tag = 'internal scratch']
  %s0 = inlined_call_operand.vmem [shape: bf16[128,256], index: 0, kind: input, shape index: {}]
  %s1 = inlined_call_operand.vmem [shape: bf16[256,128], index: 1, kind: input, shape index: {}]
  %s2 = inlined_call_operand.vmem [shape: f32[1,128], index: 2, kind: input, shape index: {}]
  %s3 = inlined_call_operand.vmem [shape: bf16[128,128], index: 3, kind: output, shape index: {}]
  %s4 = sld [smem:[#allocation0]]
  $region22: #{forward.21} parent=0
    _
  %s6 = ssub.s32 1, %s4
  %s7 = scalar_select 0, %s6, %s4
  // Predicated region
  $region2: #{forward.21} parent=0 // pred_check
    _
  $region3: #{forward.21} parent=0 // pred_check_branch
    %9 = sbr.rel (0) target = $region5
  $region4: #{forward.21} parent=0 // pred_region
    _
  $region5: #{forward.21} parent=0 // pred_fallthru
    _
  // Predicated region
  $region6: #{forward.21} parent=0 // pred_check
    _
  $region7: #{forward.21} parent=0 // pred_check_branch
    %11 = sbr.rel (0) target = $region9
  $region8: #{forward.21} parent=0 // pred_region
    _
  $region9: #{forward.21} parent=0 // pred_fallthru
    _
  // Predicated region
  $region10: #{forward.21} parent=0 // pred_check
    _
  $region11: #{forward.21} parent=0 // pred_check_branch
    %13 = sbr.rel (0) target = $region13
  $region12: #{forward.21} parent=0 // pred_region
    _
  $region13: #{forward.21} parent=0 // pred_fallthru
    _
  %v15 = vld [vmem:[%s0] sm:$0xff]
  %v16 = vld [vmem:[%s0 + $0x8] sm:$0xff]
  %v17 = vld [vmem:[%s0 + $0x10] sm:$0xff]
  %v18 = vld [vmem:[%s0 + $0x18] sm:$0xff]
  %v19 = vld [vmem:[%s0 + $0x20] sm:$0xff]
  %v20 = vld [vmem:[%s0 + $0x28] sm:$0xff]
  %v21 = vld [vmem:[%s0 + $0x30] sm:$0xff]
  %v22 = vld [vmem:[%s0 + $0x38] sm:$0xff]
  %v23 = vld [vmem:[%s0 + $0x40] sm:$0xff]
  %v24 = vld [vmem:[%s0 + $0x48] sm:$0xff]
  %v25 = vld [vmem:[%s0 + $0x50] sm:$0xff]
  %v26 = vld [vmem:[%s0 + $0x58] sm:$0xff]
  %v27 = vld [vmem:[%s0 + $0x60] sm:$0xff]
  %v28 = vld [vmem:[%s0 + $0x68] sm:$0xff]
  %v29 = vld [vmem:[%s0 + $0x70] sm:$0xff]
  %v30 = vld [vmem:[%s0 + $0x78] sm:$0xff]
  %v31 = vld [vmem:[%s1] sm:$0xf]
  %v32 = vld [vmem:[%s1 + $0x4] sm:$0xf]
  %v33 = vld [vmem:[%s1 + $0x8] sm:$0xf]
  %v34 = vld [vmem:[%s1 + $0xc] sm:$0xf]
  %v35 = vld [vmem:[%s1 + $0x10] sm:$0xf]
  %v36 = vld [vmem:[%s1 + $0x14] sm:$0xf]
  %v37 = vld [vmem:[%s1 + $0x18] sm:$0xf]
  %v38 = vld [vmem:[%s1 + $0x1c] sm:$0xf]
  %v39 = vld [vmem:[%s1 + $0x20] sm:$0xf]
  %v40 = vld [vmem:[%s1 + $0x24] sm:$0xf]
  %v41 = vld [vmem:[%s1 + $0x28] sm:$0xf]
  %v42 = vld [vmem:[%s1 + $0x2c] sm:$0xf]
  %v43 = vld [vmem:[%s1 + $0x30] sm:$0xf]
  %v44 = vld [vmem:[%s1 + $0x34] sm:$0xf]
  %v45 = vld [vmem:[%s1 + $0x38] sm:$0xf]
  %v46 = vld [vmem:[%s1 + $0x3c] sm:$0xf]
  %v47 = vld [vmem:[%s1 + $0x40] sm:$0xf]
  %v48 = vld [vmem:[%s1 + $0x44] sm:$0xf]
  %v49 = vld [vmem:[%s1 + $0x48] sm:$0xf]
  %v50 = vld [vmem:[%s1 + $0x4c] sm:$0xf]
  %v51 = vld [vmem:[%s1 + $0x50] sm:$0xf]
  %v52 = vld [vmem:[%s1 + $0x54] sm:$0xf]
  %v53 = vld [vmem:[%s1 + $0x58] sm:$0xf]
  %v54 = vld [vmem:[%s1 + $0x5c] sm:$0xf]
  %v55 = vld [vmem:[%s1 + $0x60] sm:$0xf]
  %v56 = vld [vmem:[%s1 + $0x64] sm:$0xf]
  %v57 = vld [vmem:[%s1 + $0x68] sm:$0xf]
  %v58 = vld [vmem:[%s1 + $0x6c] sm:$0xf]
  %v59 = vld [vmem:[%s1 + $0x70] sm:$0xf]
  %v60 = vld [vmem:[%s1 + $0x74] sm:$0xf]
  %v61 = vld [vmem:[%s1 + $0x78] sm:$0xf]
  %v62 = vld [vmem:[%s1 + $0x7c] sm:$0xf]
  %v63 = vld [vmem:[%s2] sm:$0x1]
  %v65 = vlaneseq
  %v66 = vshrl.u32 %v65, 7
  %v67 = vsub.s32 0, %v66
  %v68 = vrot.slane %v63, %v67
  %v86 = vunpack.c.l.b16 %v15
  %v87 = vunpack.c.h.b16 %v15
  %v88 = vunpack.c.l.b16 %v16
  %v89 = vunpack.c.h.b16 %v16
  %v90 = vunpack.c.l.b16 %v17
  %v91 = vunpack.c.h.b16 %v17
  %v92 = vunpack.c.l.b16 %v18
  %v93 = vunpack.c.h.b16 %v18
  %v94 = vunpack.c.l.b16 %v19
  %v95 = vunpack.c.h.b16 %v19
  %v96 = vunpack.c.l.b16 %v20
  %v97 = vunpack.c.h.b16 %v20
  %v98 = vunpack.c.l.b16 %v21
  %v99 = vunpack.c.h.b16 %v21
  %v100 = vunpack.c.l.b16 %v22
  %v101 = vunpack.c.h.b16 %v22
  %v102 = vunpack.c.l.b16 %v23
  %v103 = vunpack.c.h.b16 %v23
  %v104 = vunpack.c.l.b16 %v24
  %v105 = vunpack.c.h.b16 %v24
  %v106 = vunpack.c.l.b16 %v25
  %v107 = vunpack.c.h.b16 %v25
  %v108 = vunpack.c.l.b16 %v26
  %v109 = vunpack.c.h.b16 %v26
  %v110 = vunpack.c.l.b16 %v27
  %v111 = vunpack.c.h.b16 %v27
  %v112 = vunpack.c.l.b16 %v28
  %v113 = vunpack.c.h.b16 %v28
  %v114 = vunpack.c.l.b16 %v29
  %v115 = vunpack.c.h.b16 %v29
  %v116 = vunpack.c.l.b16 %v30
  %v117 = vunpack.c.h.b16 %v30
  %v118 = vpack.c.b16 %v88, %v86
  %v119 = vpack.c.b16 %v89, %v87
  %v120 = vpack.c.b16 %v92, %v90
  %v121 = vpack.c.b16 %v93, %v91
  %v122 = vpack.c.b16 %v96, %v94
  %v123 = vpack.c.b16 %v97, %v95
  %v124 = vpack.c.b16 %v100, %v98
  %v125 = vpack.c.b16 %v101, %v99
  %v126 = vpack.c.b16 %v104, %v102
  %v127 = vpack.c.b16 %v105, %v103
  %v128 = vpack.c.b16 %v108, %v106
  %v129 = vpack.c.b16 %v109, %v107
  %v130 = vpack.c.b16 %v112, %v110
  %v131 = vpack.c.b16 %v113, %v111
  %v132 = vpack.c.b16 %v116, %v114
  %v133 = vpack.c.b16 %v117, %v115
  %v182 = vunpack.c.l.b16 %v31
  %v183 = vunpack.c.l.b16 %v32
  %v184 = vunpack.c.l.b16 %v33
  %v185 = vunpack.c.l.b16 %v34
  %v186 = vunpack.c.l.b16 %v35
  %v187 = vunpack.c.l.b16 %v36
  %v188 = vunpack.c.l.b16 %v37
  %v189 = vunpack.c.l.b16 %v38
  %v190 = vunpack.c.l.b16 %v39
  %v191 = vunpack.c.l.b16 %v40
  %v192 = vunpack.c.l.b16 %v41
  %v193 = vunpack.c.l.b16 %v42
  %v194 = vunpack.c.l.b16 %v43
  %v195 = vunpack.c.l.b16 %v44
  %v196 = vunpack.c.l.b16 %v45
  %v197 = vunpack.c.l.b16 %v46
  %v198 = vunpack.c.l.b16 %v47
  %v199 = vunpack.c.l.b16 %v48
  %v200 = vunpack.c.l.b16 %v49
  %v201 = vunpack.c.l.b16 %v50
  %v202 = vunpack.c.l.b16 %v51
  %v203 = vunpack.c.l.b16 %v52
  %v204 = vunpack.c.l.b16 %v53
  %v205 = vunpack.c.l.b16 %v54
  %v206 = vunpack.c.l.b16 %v55
  %v207 = vunpack.c.l.b16 %v56
  %v208 = vunpack.c.l.b16 %v57
  %v209 = vunpack.c.l.b16 %v58
  %v210 = vunpack.c.l.b16 %v59
  %v211 = vunpack.c.l.b16 %v60
  %v212 = vunpack.c.l.b16 %v61
  %v213 = vunpack.c.l.b16 %v62
  %v214 = vpack.c.b16 %v183, %v182
  %v215 = vpack.c.b16 %v185, %v184
  %v216 = vpack.c.b16 %v187, %v186
  %v217 = vpack.c.b16 %v189, %v188
  %v218 = vpack.c.b16 %v191, %v190
  %v219 = vpack.c.b16 %v193, %v192
  %v220 = vpack.c.b16 %v195, %v194
  %v221 = vpack.c.b16 %v197, %v196
  %v222 = vpack.c.b16 %v199, %v198
  %v223 = vpack.c.b16 %v201, %v200
  %v224 = vpack.c.b16 %v203, %v202
  %v225 = vpack.c.b16 %v205, %v204
  %v226 = vpack.c.b16 %v207, %v206
  %v227 = vpack.c.b16 %v209, %v208
  %v228 = vpack.c.b16 %v211, %v210
  %v229 = vpack.c.b16 %v213, %v212
  %246 = vmatprep.subr.bf16.mxu0 0
  %247 = vmatpush1.bf16.msra.mxu0 %v214
  %248 = vmatprep.subr.bf16.mxu0 0
  %249 = vmatpush1.bf16.msra.mxu0 %v215
  %250 = vmatprep.subr.bf16.mxu0 0
  %251 = vmatpush1.bf16.msra.mxu0 %v216
  %252 = vmatprep.subr.bf16.mxu0 0
  %253 = vmatpush1.bf16.msra.mxu0 %v217
  %254 = vmatprep.subr.bf16.mxu0 0
  %255 = vmatpush1.bf16.msra.mxu0 %v218
  %256 = vmatprep.subr.bf16.mxu0 0
  %257 = vmatpush1.bf16.msra.mxu0 %v219
  %258 = vmatprep.subr.bf16.mxu0 0
  %259 = vmatpush1.bf16.msra.mxu0 %v220
  %260 = vmatprep.subr.bf16.mxu0 0
  %261 = vmatpush1.bf16.msra.mxu0 %v221
  %262 = vmatprep.subr.bf16.mxu0 0
  %263 = vmatpush1.bf16.msra.mxu0 %v222
  %264 = vmatprep.subr.bf16.mxu0 0
  %265 = vmatpush1.bf16.msra.mxu0 %v223
  %266 = vmatprep.subr.bf16.mxu0 0
  %267 = vmatpush1.bf16.msra.mxu0 %v224
  %268 = vmatprep.subr.bf16.mxu0 0
  %269 = vmatpush1.bf16.msra.mxu0 %v225
  %270 = vmatprep.subr.bf16.mxu0 0
  %271 = vmatpush1.bf16.msra.mxu0 %v226
  %272 = vmatprep.subr.bf16.mxu0 0
  %273 = vmatpush1.bf16.msra.mxu0 %v227
  %274 = vmatprep.subr.bf16.mxu0 0
  %275 = vmatpush1.bf16.msra.mxu0 %v228
  %276 = vmatprep.subr.bf16.mxu0 0
  %277 = vmatpush1.bf16.msra.mxu0 %v229
  %278 = vmatprep.mubr.bf16.mxu0 %v119
  %279 = vmatmul.mubr.bf16.gmra.mrb[0].mxu0 %v118
  %v280 = vpop.f32.mrb[0].mxu0
  %v281 = vadd.f32 %v68, %v280
  %v282 = vpop.f32.mrb[0].mxu0
  %v283 = vpop.f32.mrb[0].mxu0
  %v284 = vadd.f32 %v68, %v283
  %v285 = vpop.f32.mrb[0].mxu0
  %286 = vmatprep.mubr.bf16.mxu0 %v121
  %287 = vmatmul.mubr.bf16.gmra.mrb[0].mxu0 %v120
  %v288 = vpop.f32.mrb[0].mxu0
  %v289 = vadd.f32 %v68, %v288
  %v290 = vpop.f32.mrb[0].mxu0
  %v291 = vpop.f32.mrb[0].mxu0
  %v292 = vadd.f32 %v68, %v291
  %v293 = vpop.f32.mrb[0].mxu0
  %294 = vmatprep.mubr.bf16.mxu0 %v123
  %295 = vmatmul.mubr.bf16.gmra.mrb[0].mxu0 %v122
  %v296 = vpop.f32.mrb[0].mxu0
  %v297 = vadd.f32 %v68, %v296
  %v298 = vpop.f32.mrb[0].mxu0
  %v299 = vpop.f32.mrb[0].mxu0
  %v300 = vadd.f32 %v68, %v299
  %v301 = vpop.f32.mrb[0].mxu0
  %302 = vmatprep.mubr.bf16.mxu0 %v125
  %303 = vmatmul.mubr.bf16.gmra.mrb[0].mxu0 %v124
  %v304 = vpop.f32.mrb[0].mxu0
  %v305 = vadd.f32 %v68, %v304
  %v306 = vpop.f32.mrb[0].mxu0
  %v307 = vpop.f32.mrb[0].mxu0
  %v308 = vadd.f32 %v68, %v307
  %v309 = vpop.f32.mrb[0].mxu0
  %310 = vmatprep.mubr.bf16.mxu0 %v127
  %311 = vmatmul.mubr.bf16.gmra.mrb[0].mxu0 %v126
  %v312 = vpop.f32.mrb[0].mxu0
  %v313 = vadd.f32 %v68, %v312
  %v314 = vpop.f32.mrb[0].mxu0
  %v315 = vpop.f32.mrb[0].mxu0
  %v316 = vadd.f32 %v68, %v315
  %v317 = vpop.f32.mrb[0].mxu0
  %318 = vmatprep.mubr.bf16.mxu0 %v129
  %319 = vmatmul.mubr.bf16.gmra.mrb[0].mxu0 %v128
  %v320 = vpop.f32.mrb[0].mxu0
  %v321 = vadd.f32 %v68, %v320
  %v322 = vpop.f32.mrb[0].mxu0
  %v323 = vpop.f32.mrb[0].mxu0
  %v324 = vadd.f32 %v68, %v323
  %v325 = vpop.f32.mrb[0].mxu0
  %326 = vmatprep.mubr.bf16.mxu0 %v131
  %327 = vmatmul.mubr.bf16.gmra.mrb[0].mxu0 %v130
  %v328 = vpop.f32.mrb[0].mxu0
  %v329 = vadd.f32 %v68, %v328
  %v330 = vpop.f32.mrb[0].mxu0
  %v331 = vpop.f32.mrb[0].mxu0
  %v332 = vadd.f32 %v68, %v331
  %v333 = vpop.f32.mrb[0].mxu0
  %334 = vmatprep.mubr.bf16.mxu0 %v133
  %335 = vmatmul.mubr.bf16.gmra.mrb[0].mxu0 %v132
  %v336 = vpop.f32.mrb[0].mxu0
  %v337 = vadd.f32 %v68, %v336
  %v338 = vpop.f32.mrb[0].mxu0
  %v339 = vpop.f32.mrb[0].mxu0
  %v340 = vadd.f32 %v68, %v339
  %v341 = vpop.f32.mrb[0].mxu0
  %342 = vdwg.mxu0
  %v343 = vmax.f32 %v281, 0.0
  %v344 = vmax.f32 %v284, 0.0
  %v345 = vmax.f32 %v289, 0.0
  %v346 = vmax.f32 %v292, 0.0
  %v347 = vmax.f32 %v297, 0.0
  %v348 = vmax.f32 %v300, 0.0
  %v349 = vmax.f32 %v305, 0.0
  %v350 = vmax.f32 %v308, 0.0
  %v351 = vmax.f32 %v313, 0.0
  %v352 = vmax.f32 %v316, 0.0
  %v353 = vmax.f32 %v321, 0.0
  %v354 = vmax.f32 %v324, 0.0
  %v355 = vmax.f32 %v329, 0.0
  %v356 = vmax.f32 %v332, 0.0
  %v357 = vmax.f32 %v337, 0.0
  %v358 = vmax.f32 %v340, 0.0
  %v359 = vmin.f32 %v343, 6.0
  %v360 = vmin.f32 %v344, 6.0
  %v361 = vmin.f32 %v345, 6.0
  %v362 = vmin.f32 %v346, 6.0
  %v363 = vmin.f32 %v347, 6.0
  %v364 = vmin.f32 %v348, 6.0
  %v365 = vmin.f32 %v349, 6.0
  %v366 = vmin.f32 %v350, 6.0
  %v367 = vmin.f32 %v351, 6.0
  %v368 = vmin.f32 %v352, 6.0
  %v369 = vmin.f32 %v353, 6.0
  %v370 = vmin.f32 %v354, 6.0
  %v371 = vmin.f32 %v355, 6.0
  %v372 = vmin.f32 %v356, 6.0
  %v373 = vmin.f32 %v357, 6.0
  %v374 = vmin.f32 %v358, 6.0
  %v375 = vpack.c.bf16 %v360, %v359
  %v376 = vpack.c.bf16 %v362, %v361
  %v377 = vpack.c.bf16 %v364, %v363
  %v378 = vpack.c.bf16 %v366, %v365
  %v379 = vpack.c.bf16 %v368, %v367
  %v380 = vpack.c.bf16 %v370, %v369
  %v381 = vpack.c.bf16 %v372, %v371
  %v382 = vpack.c.bf16 %v374, %v373
  %v391 = vunpack.c.l.b16 %v375
  %v392 = vunpack.c.h.b16 %v375
  %v393 = vunpack.c.l.b16 %v376
  %v394 = vunpack.c.h.b16 %v376
  %v395 = vunpack.c.l.b16 %v377
  %v396 = vunpack.c.h.b16 %v377
  %v397 = vunpack.c.l.b16 %v378
  %v398 = vunpack.c.h.b16 %v378
  %v399 = vunpack.c.l.b16 %v379
  %v400 = vunpack.c.h.b16 %v379
  %v401 = vunpack.c.l.b16 %v380
  %v402 = vunpack.c.h.b16 %v380
  %v403 = vunpack.c.l.b16 %v381
  %v404 = vunpack.c.h.b16 %v381
  %v405 = vunpack.c.l.b16 %v382
  %v406 = vunpack.c.h.b16 %v382
  %v407 = vpack.c.b16 %v391, %v391
  %v408 = vpack.c.b16 %v392, %v392
  %v409 = vpack.c.b16 %v393, %v393
  %v410 = vpack.c.b16 %v394, %v394
  %v411 = vpack.c.b16 %v395, %v395
  %v412 = vpack.c.b16 %v396, %v396
  %v413 = vpack.c.b16 %v397, %v397
  %v414 = vpack.c.b16 %v398, %v398
  %v415 = vpack.c.b16 %v399, %v399
  %v416 = vpack.c.b16 %v400, %v400
  %v417 = vpack.c.b16 %v401, %v401
  %v418 = vpack.c.b16 %v402, %v402
  %v419 = vpack.c.b16 %v403, %v403
  %v420 = vpack.c.b16 %v404, %v404
  %v421 = vpack.c.b16 %v405, %v405
  %v422 = vpack.c.b16 %v406, %v406
  %439 = vst [vmem:[%s3] sm:$0xf] %v407
  %440 = vst [vmem:[%s3 + $0x4] sm:$0xf] %v408
  %441 = vst [vmem:[%s3 + $0x8] sm:$0xf] %v409
  %442 = vst [vmem:[%s3 + $0xc] sm:$0xf] %v410
  %443 = vst [vmem:[%s3 + $0x10] sm:$0xf] %v411
  %444 = vst [vmem:[%s3 + $0x14] sm:$0xf] %v412
  %445 = vst [vmem:[%s3 + $0x18] sm:$0xf] %v413
  %446 = vst [vmem:[%s3 + $0x1c] sm:$0xf] %v414
  %447 = vst [vmem:[%s3 + $0x20] sm:$0xf] %v415
  %448 = vst [vmem:[%s3 + $0x24] sm:$0xf] %v416
  %449 = vst [vmem:[%s3 + $0x28] sm:$0xf] %v417
  %450 = vst [vmem:[%s3 + $0x2c] sm:$0xf] %v418
  %451 = vst [vmem:[%s3 + $0x30] sm:$0xf] %v419
  %452 = vst [vmem:[%s3 + $0x34] sm:$0xf] %v420
  %453 = vst [vmem:[%s3 + $0x38] sm:$0xf] %v421
  %454 = vst [vmem:[%s3 + $0x3c] sm:$0xf] %v422
  // Predicated region
  $region14: #{forward.21} parent=0 // pred_check
    _
  $region15: #{forward.21} parent=0 // pred_check_branch
    %456 = sbr.rel (0) target = $region17
  $region16: #{forward.21} parent=0 // pred_region
    _
  $region17: #{forward.21} parent=0 // pred_fallthru
    _
  // Predicated region
  $region18: #{forward.21} parent=0 // pred_check
    _
  $region19: #{forward.21} parent=0 // pred_check_branch
    %458 = sbr.rel (0) target = $region21
  $region20: #{forward.21} parent=0 // pred_region
    _
  $region21: #{forward.21} parent=0 // pred_fallthru
    _

// kernel: forward.24
$region0: #{forward.24}
  #allocation0 [shape = 'u32[]', space=smem, size = 0x4, offset = 0x4, fixed_abs, tag = 'smem constant byte address 0x4 - core index']
  #allocation1 [shape = 'u32[144,128]{1,0:T(1,128)}', space=vmem, size = 0x12000, scoped, tag = 'internal scratch']
  %s0 = inlined_call_operand.vmem [shape: bf16[128,128], index: 0, kind: input, shape index: {}]
  %s1 = inlined_call_operand.vmem [shape: bf16[128,128], index: 1, kind: input, shape index: {}]
  %s2 = inlined_call_operand.vmem [shape: f32[1,128], index: 2, kind: input, shape index: {}]
  %s3 = inlined_call_operand.vmem [shape: f32[128,128], index: 3, kind: output, shape index: {}]
  %s4 = sld [smem:[#allocation0]]
  $region22: #{forward.24} parent=0
    _
  %s6 = ssub.s32 1, %s4
  %s7 = scalar_select 0, %s6, %s4
  // Predicated region
  $region2: #{forward.24} parent=0 // pred_check
    _
  $region3: #{forward.24} parent=0 // pred_check_branch
    %9 = sbr.rel (0) target = $region5
  $region4: #{forward.24} parent=0 // pred_region
    _
  $region5: #{forward.24} parent=0 // pred_fallthru
    _
  // Predicated region
  $region6: #{forward.24} parent=0 // pred_check
    _
  $region7: #{forward.24} parent=0 // pred_check_branch
    %11 = sbr.rel (0) target = $region9
  $region8: #{forward.24} parent=0 // pred_region
    _
  $region9: #{forward.24} parent=0 // pred_fallthru
    _
  // Predicated region
  $region10: #{forward.24} parent=0 // pred_check
    _
  $region11: #{forward.24} parent=0 // pred_check_branch
    %13 = sbr.rel (0) target = $region13
  $region12: #{forward.24} parent=0 // pred_region
    _
  $region13: #{forward.24} parent=0 // pred_fallthru
    _
  %v15 = vld [vmem:[%s0] sm:$0xf]
  %v16 = vld [vmem:[%s0 + $0x4] sm:$0xf]
  %v17 = vld [vmem:[%s0 + $0x8] sm:$0xf]
  %v18 = vld [vmem:[%s0 + $0xc] sm:$0xf]
  %v19 = vld [vmem:[%s0 + $0x10] sm:$0xf]
  %v20 = vld [vmem:[%s0 + $0x14] sm:$0xf]
  %v21 = vld [vmem:[%s0 + $0x18] sm:$0xf]
  %v22 = vld [vmem:[%s0 + $0x1c] sm:$0xf]
  %v23 = vld [vmem:[%s0 + $0x20] sm:$0xf]
  %v24 = vld [vmem:[%s0 + $0x24] sm:$0xf]
  %v25 = vld [vmem:[%s0 + $0x28] sm:$0xf]
  %v26 = vld [vmem:[%s0 + $0x2c] sm:$0xf]
  %v27 = vld [vmem:[%s0 + $0x30] sm:$0xf]
  %v28 = vld [vmem:[%s0 + $0x34] sm:$0xf]
  %v29 = vld [vmem:[%s0 + $0x38] sm:$0xf]
  %v30 = vld [vmem:[%s0 + $0x3c] sm:$0xf]
  %v31 = vld [vmem:[%s1] sm:$0xf]
  %v32 = vld [vmem:[%s1 + $0x4] sm:$0xf]
  %v33 = vld [vmem:[%s1 + $0x8] sm:$0xf]
  %v34 = vld [vmem:[%s1 + $0xc] sm:$0xf]
  %v35 = vld [vmem:[%s1 + $0x10] sm:$0xf]
  %v36 = vld [vmem:[%s1 + $0x14] sm:$0xf]
  %v37 = vld [vmem:[%s1 + $0x18] sm:$0xf]
  %v38 = vld [vmem:[%s1 + $0x1c] sm:$0xf]
  %v39 = vld [vmem:[%s1 + $0x20] sm:$0xf]
  %v40 = vld [vmem:[%s1 + $0x24] sm:$0xf]
  %v41 = vld [vmem:[%s1 + $0x28] sm:$0xf]
  %v42 = vld [vmem:[%s1 + $0x2c] sm:$0xf]
  %v43 = vld [vmem:[%s1 + $0x30] sm:$0xf]
  %v44 = vld [vmem:[%s1 + $0x34] sm:$0xf]
  %v45 = vld [vmem:[%s1 + $0x38] sm:$0xf]
  %v46 = vld [vmem:[%s1 + $0x3c] sm:$0xf]
  %v47 = vld [vmem:[%s2] sm:$0x1]
  %v49 = vlaneseq
  %v50 = vshrl.u32 %v49, 7
  %v51 = vsub.s32 0, %v50
  %v52 = vrot.slane %v47, %v51
  %v70 = vunpack.c.l.b16 %v15
  %v71 = vunpack.c.l.b16 %v16
  %v72 = vunpack.c.l.b16 %v17
  %v73 = vunpack.c.l.b16 %v18
  %v74 = vunpack.c.l.b16 %v19
  %v75 = vunpack.c.l.b16 %v20
  %v76 = vunpack.c.l.b16 %v21
  %v77 = vunpack.c.l.b16 %v22
  %v78 = vunpack.c.l.b16 %v23
  %v79 = vunpack.c.l.b16 %v24
  %v80 = vunpack.c.l.b16 %v25
  %v81 = vunpack.c.l.b16 %v26
  %v82 = vunpack.c.l.b16 %v27
  %v83 = vunpack.c.l.b16 %v28
  %v84 = vunpack.c.l.b16 %v29
  %v85 = vunpack.c.l.b16 %v30
  %v86 = vpack.c.b16 %v71, %v70
  %v87 = vpack.c.b16 %v73, %v72
  %v88 = vpack.c.b16 %v75, %v74
  %v89 = vpack.c.b16 %v77, %v76
  %v90 = vpack.c.b16 %v79, %v78
  %v91 = vpack.c.b16 %v81, %v80
  %v92 = vpack.c.b16 %v83, %v82
  %v93 = vpack.c.b16 %v85, %v84
  %v118 = vunpack.c.l.b16 %v31
  %v119 = vunpack.c.l.b16 %v32
  %v120 = vunpack.c.l.b16 %v33
  %v121 = vunpack.c.l.b16 %v34
  %v122 = vunpack.c.l.b16 %v35
  %v123 = vunpack.c.l.b16 %v36
  %v124 = vunpack.c.l.b16 %v37
  %v125 = vunpack.c.l.b16 %v38
  %v126 = vunpack.c.l.b16 %v39
  %v127 = vunpack.c.l.b16 %v40
  %v128 = vunpack.c.l.b16 %v41
  %v129 = vunpack.c.l.b16 %v42
  %v130 = vunpack.c.l.b16 %v43
  %v131 = vunpack.c.l.b16 %v44
  %v132 = vunpack.c.l.b16 %v45
  %v133 = vunpack.c.l.b16 %v46
  %v134 = vpack.c.b16 %v119, %v118
  %v135 = vpack.c.b16 %v121, %v120
  %v136 = vpack.c.b16 %v123, %v122
  %v137 = vpack.c.b16 %v125, %v124
  %v138 = vpack.c.b16 %v127, %v126
  %v139 = vpack.c.b16 %v129, %v128
  %v140 = vpack.c.b16 %v131, %v130
  %v141 = vpack.c.b16 %v133, %v132
  %150 = vmatprep.subr.bf16.mxu0 0
  %151 = vmatpush1.bf16.msra.mxu0 %v134
  %152 = vmatprep.subr.bf16.mxu0 0
  %153 = vmatpush1.bf16.msra.mxu0 %v135
  %154 = vmatprep.subr.bf16.mxu0 0
  %155 = vmatpush1.bf16.msra.mxu0 %v136
  %156 = vmatprep.subr.bf16.mxu0 0
  %157 = vmatpush1.bf16.msra.mxu0 %v137
  %158 = vmatprep.subr.bf16.mxu0 0
  %159 = vmatpush1.bf16.msra.mxu0 %v138
  %160 = vmatprep.subr.bf16.mxu0 0
  %161 = vmatpush1.bf16.msra.mxu0 %v139
  %162 = vmatprep.subr.bf16.mxu0 0
  %163 = vmatpush1.bf16.msra.mxu0 %v140
  %164 = vmatprep.subr.bf16.mxu0 0
  %165 = vmatpush1.bf16.msra.mxu0 %v141
  %166 = vmatprep.subr.bf16.mxu0 0
  %167 = vmatpush1.bf16.msra.mxu0 0
  %168 = vmatprep.subr.bf16.mxu0 0
  %169 = vmatpush1.bf16.msra.mxu0 0
  %170 = vmatprep.subr.bf16.mxu0 0
  %171 = vmatpush1.bf16.msra.mxu0 0
  %172 = vmatprep.subr.bf16.mxu0 0
  %173 = vmatpush1.bf16.msra.mxu0 0
  %174 = vmatprep.subr.bf16.mxu0 0
  %175 = vmatpush1.bf16.msra.mxu0 0
  %176 = vmatprep.subr.bf16.mxu0 0
  %177 = vmatpush1.bf16.msra.mxu0 0
  %178 = vmatprep.subr.bf16.mxu0 0
  %179 = vmatpush1.bf16.msra.mxu0 0
  %180 = vmatprep.subr.bf16.mxu0 0
  %181 = vmatpush1.bf16.msra.mxu0 0
  %182 = vmatprep.mubr.bf16.mxu0 0
  %183 = vmatmul.mubr.bf16.gmra.mrb[0].mxu0 %v86
  %v184 = vpop.f32.mrb[0].mxu0
  %v185 = vadd.f32 %v52, %v184
  %v186 = vpop.f32.mrb[0].mxu0
  %v187 = vpop.f32.mrb[0].mxu0
  %v188 = vadd.f32 %v52, %v187
  %v189 = vpop.f32.mrb[0].mxu0
  %190 = vmatprep.mubr.bf16.mxu0 0
  %191 = vmatmul.mubr.bf16.gmra.mrb[0].mxu0 %v87
  %v192 = vpop.f32.mrb[0].mxu0
  %v193 = vadd.f32 %v52, %v192
  %v194 = vpop.f32.mrb[0].mxu0
  %v195 = vpop.f32.mrb[0].mxu0
  %v196 = vadd.f32 %v52, %v195
  %v197 = vpop.f32.mrb[0].mxu0
  %198 = vmatprep.mubr.bf16.mxu0 0
  %199 = vmatmul.mubr.bf16.gmra.mrb[0].mxu0 %v88
  %v200 = vpop.f32.mrb[0].mxu0
  %v201 = vadd.f32 %v52, %v200
  %v202 = vpop.f32.mrb[0].mxu0
  %v203 = vpop.f32.mrb[0].mxu0
  %v204 = vadd.f32 %v52, %v203
  %v205 = vpop.f32.mrb[0].mxu0
  %206 = vmatprep.mubr.bf16.mxu0 0
  %207 = vmatmul.mubr.bf16.gmra.mrb[0].mxu0 %v89
  %v208 = vpop.f32.mrb[0].mxu0
  %v209 = vadd.f32 %v52, %v208
  %v210 = vpop.f32.mrb[0].mxu0
  %v211 = vpop.f32.mrb[0].mxu0
  %v212 = vadd.f32 %v52, %v211
  %v213 = vpop.f32.mrb[0].mxu0
  %214 = vmatprep.mubr.bf16.mxu0 0
  %215 = vmatmul.mubr.bf16.gmra.mrb[0].mxu0 %v90
  %v216 = vpop.f32.mrb[0].mxu0
  %v217 = vadd.f32 %v52, %v216
  %v218 = vpop.f32.mrb[0].mxu0
  %v219 = vpop.f32.mrb[0].mxu0
  %v220 = vadd.f32 %v52, %v219
  %v221 = vpop.f32.mrb[0].mxu0
  %222 = vmatprep.mubr.bf16.mxu0 0
  %223 = vmatmul.mubr.bf16.gmra.mrb[0].mxu0 %v91
  %v224 = vpop.f32.mrb[0].mxu0
  %v225 = vadd.f32 %v52, %v224
  %v226 = vpop.f32.mrb[0].mxu0
  %v227 = vpop.f32.mrb[0].mxu0
  %v228 = vadd.f32 %v52, %v227
  %v229 = vpop.f32.mrb[0].mxu0
  %230 = vmatprep.mubr.bf16.mxu0 0
  %231 = vmatmul.mubr.bf16.gmra.mrb[0].mxu0 %v92
  %v232 = vpop.f32.mrb[0].mxu0
  %v233 = vadd.f32 %v52, %v232
  %v234 = vpop.f32.mrb[0].mxu0
  %v235 = vpop.f32.mrb[0].mxu0
  %v236 = vadd.f32 %v52, %v235
  %v237 = vpop.f32.mrb[0].mxu0
  %238 = vmatprep.mubr.bf16.mxu0 0
  %239 = vmatmul.mubr.bf16.gmra.mrb[0].mxu0 %v93
  %v240 = vpop.f32.mrb[0].mxu0
  %v241 = vadd.f32 %v52, %v240
  %v242 = vpop.f32.mrb[0].mxu0
  %v243 = vpop.f32.mrb[0].mxu0
  %v244 = vadd.f32 %v52, %v243
  %v245 = vpop.f32.mrb[0].mxu0
  %246 = vdwg.mxu0
  %247 = vst [vmem:[%s3] sm:$0xff] %v185
  %248 = vst [vmem:[%s3 + $0x8] sm:$0xff] %v188
  %249 = vst [vmem:[%s3 + $0x10] sm:$0xff] %v193
  %250 = vst [vmem:[%s3 + $0x18] sm:$0xff] %v196
  %251 = vst [vmem:[%s3 + $0x20] sm:$0xff] %v201
  %252 = vst [vmem:[%s3 + $0x28] sm:$0xff] %v204
  %253 = vst [vmem:[%s3 + $0x30] sm:$0xff] %v209
  %254 = vst [vmem:[%s3 + $0x38] sm:$0xff] %v212
  %255 = vst [vmem:[%s3 + $0x40] sm:$0xff] %v217
  %256 = vst [vmem:[%s3 + $0x48] sm:$0xff] %v220
  %257 = vst [vmem:[%s3 + $0x50] sm:$0xff] %v225
  %258 = vst [vmem:[%s3 + $0x58] sm:$0xff] %v228
  %259 = vst [vmem:[%s3 + $0x60] sm:$0xff] %v233
  %260 = vst [vmem:[%s3 + $0x68] sm:$0xff] %v236
  %261 = vst [vmem:[%s3 + $0x70] sm:$0xff] %v241
  %262 = vst [vmem:[%s3 + $0x78] sm:$0xff] %v244
  // Predicated region
  $region14: #{forward.24} parent=0 // pred_check
    _
  $region15: #{forward.24} parent=0 // pred_check_branch
    %264 = sbr.rel (0) target = $region17
  $region16: #{forward.24} parent=0 // pred_region
    _
  $region17: #{forward.24} parent=0 // pred_fallthru
    _
  // Predicated region
  $region18: #{forward.24} parent=0 // pred_check
    _
  $region19: #{forward.24} parent=0 // pred_check_branch
    %266 = sbr.rel (0) target = $region21
  $region20: #{forward.24} parent=0 // pred_region
    _
  $region21: #{forward.24} parent=0 // pred_fallthru
    _

// kernel: forward.25
$region0: #{forward.25}
  #allocation0 [shape = 'u32[]', space=smem, size = 0x4, offset = 0x4, fixed_abs, tag = 'smem constant byte address 0x4 - core index']
  #allocation1 [shape = 'u32[144,128]{1,0:T(1,128)}', space=vmem, size = 0x12000, scoped, tag = 'internal scratch']
  %s0 = inlined_call_operand.vmem [shape: bf16[32,256], index: 0, kind: input, shape index: {}]
  %s1 = inlined_call_operand.vmem [shape: bf16[256,128], index: 1, kind: input, shape index: {}]
  %s2 = inlined_call_operand.vmem [shape: f32[1,128], index: 2, kind: input, shape index: {}]
  %s3 = inlined_call_operand.vmem [shape: bf16[32,128], index: 3, kind: output, shape index: {}]
  %s4 = sld [smem:[#allocation0]]
  $region22: #{forward.25} parent=0
    _
  %s6 = ssub.s32 1, %s4
  %s7 = scalar_select 0, %s6, %s4
  // Predicated region
  $region2: #{forward.25} parent=0 // pred_check
    _
  $region3: #{forward.25} parent=0 // pred_check_branch
    %9 = sbr.rel (0) target = $region5
  $region4: #{forward.25} parent=0 // pred_region
    _
  $region5: #{forward.25} parent=0 // pred_fallthru
    _
  // Predicated region
  $region6: #{forward.25} parent=0 // pred_check
    _
  $region7: #{forward.25} parent=0 // pred_check_branch
    %11 = sbr.rel (0) target = $region9
  $region8: #{forward.25} parent=0 // pred_region
    _
  $region9: #{forward.25} parent=0 // pred_fallthru
    _
  // Predicated region
  $region10: #{forward.25} parent=0 // pred_check
    _
  $region11: #{forward.25} parent=0 // pred_check_branch
    %13 = sbr.rel (0) target = $region13
  $region12: #{forward.25} parent=0 // pred_region
    _
  $region13: #{forward.25} parent=0 // pred_fallthru
    _
  %v15 = vld [vmem:[%s0] sm:$0xff]
  %v16 = vld [vmem:[%s0 + $0x8] sm:$0xff]
  %v17 = vld [vmem:[%s0 + $0x10] sm:$0xff]
  %v18 = vld [vmem:[%s0 + $0x18] sm:$0xff]
  %v19 = vld [vmem:[%s1] sm:$0xf]
  %v20 = vld [vmem:[%s1 + $0x4] sm:$0xf]
  %v21 = vld [vmem:[%s1 + $0x8] sm:$0xf]
  %v22 = vld [vmem:[%s1 + $0xc] sm:$0xf]
  %v23 = vld [vmem:[%s1 + $0x10] sm:$0xf]
  %v24 = vld [vmem:[%s1 + $0x14] sm:$0xf]
  %v25 = vld [vmem:[%s1 + $0x18] sm:$0xf]
  %v26 = vld [vmem:[%s1 + $0x1c] sm:$0xf]
  %v27 = vld [vmem:[%s1 + $0x20] sm:$0xf]
  %v28 = vld [vmem:[%s1 + $0x24] sm:$0xf]
  %v29 = vld [vmem:[%s1 + $0x28] sm:$0xf]
  %v30 = vld [vmem:[%s1 + $0x2c] sm:$0xf]
  %v31 = vld [vmem:[%s1 + $0x30] sm:$0xf]
  %v32 = vld [vmem:[%s1 + $0x34] sm:$0xf]
  %v33 = vld [vmem:[%s1 + $0x38] sm:$0xf]
  %v34 = vld [vmem:[%s1 + $0x3c] sm:$0xf]
  %v35 = vld [vmem:[%s1 + $0x40] sm:$0xf]
  %v36 = vld [vmem:[%s1 + $0x44] sm:$0xf]
  %v37 = vld [vmem:[%s1 + $0x48] sm:$0xf]
  %v38 = vld [vmem:[%s1 + $0x4c] sm:$0xf]
  %v39 = vld [vmem:[%s1 + $0x50] sm:$0xf]
  %v40 = vld [vmem:[%s1 + $0x54] sm:$0xf]
  %v41 = vld [vmem:[%s1 + $0x58] sm:$0xf]
  %v42 = vld [vmem:[%s1 + $0x5c] sm:$0xf]
  %v43 = vld [vmem:[%s1 + $0x60] sm:$0xf]
  %v44 = vld [vmem:[%s1 + $0x64] sm:$0xf]
  %v45 = vld [vmem:[%s1 + $0x68] sm:$0xf]
  %v46 = vld [vmem:[%s1 + $0x6c] sm:$0xf]
  %v47 = vld [vmem:[%s1 + $0x70] sm:$0xf]
  %v48 = vld [vmem:[%s1 + $0x74] sm:$0xf]
  %v49 = vld [vmem:[%s1 + $0x78] sm:$0xf]
  %v50 = vld [vmem:[%s1 + $0x7c] sm:$0xf]
  %v51 = vld [vmem:[%s2] sm:$0x1]
  %v53 = vlaneseq
  %v54 = vshrl.u32 %v53, 7
  %v55 = vsub.s32 0, %v54
  %v56 = vrot.slane %v51, %v55
  %v62 = vunpack.c.l.b16 %v15
  %v63 = vunpack.c.h.b16 %v15
  %v64 = vunpack.c.l.b16 %v16
  %v65 = vunpack.c.h.b16 %v16
  %v66 = vunpack.c.l.b16 %v17
  %v67 = vunpack.c.h.b16 %v17
  %v68 = vunpack.c.l.b16 %v18
  %v69 = vunpack.c.h.b16 %v18
  %v70 = vpack.c.b16 %v64, %v62
  %v71 = vpack.c.b16 %v65, %v63
  %v72 = vpack.c.b16 %v68, %v66
  %v73 = vpack.c.b16 %v69, %v67
  %v110 = vunpack.c.l.b16 %v19
  %v111 = vunpack.c.l.b16 %v20
  %v112 = vunpack.c.l.b16 %v21
  %v113 = vunpack.c.l.b16 %v22
  %v114 = vunpack.c.l.b16 %v23
  %v115 = vunpack.c.l.b16 %v24
  %v116 = vunpack.c.l.b16 %v25
  %v117 = vunpack.c.l.b16 %v26
  %v118 = vunpack.c.l.b16 %v27
  %v119 = vunpack.c.l.b16 %v28
  %v120 = vunpack.c.l.b16 %v29
  %v121 = vunpack.c.l.b16 %v30
  %v122 = vunpack.c.l.b16 %v31
  %v123 = vunpack.c.l.b16 %v32
  %v124 = vunpack.c.l.b16 %v33
  %v125 = vunpack.c.l.b16 %v34
  %v126 = vunpack.c.l.b16 %v35
  %v127 = vunpack.c.l.b16 %v36
  %v128 = vunpack.c.l.b16 %v37
  %v129 = vunpack.c.l.b16 %v38
  %v130 = vunpack.c.l.b16 %v39
  %v131 = vunpack.c.l.b16 %v40
  %v132 = vunpack.c.l.b16 %v41
  %v133 = vunpack.c.l.b16 %v42
  %v134 = vunpack.c.l.b16 %v43
  %v135 = vunpack.c.l.b16 %v44
  %v136 = vunpack.c.l.b16 %v45
  %v137 = vunpack.c.l.b16 %v46
  %v138 = vunpack.c.l.b16 %v47
  %v139 = vunpack.c.l.b16 %v48
  %v140 = vunpack.c.l.b16 %v49
  %v141 = vunpack.c.l.b16 %v50
  %v142 = vpack.c.b16 %v111, %v110
  %v143 = vpack.c.b16 %v113, %v112
  %v144 = vpack.c.b16 %v115, %v114
  %v145 = vpack.c.b16 %v117, %v116
  %v146 = vpack.c.b16 %v119, %v118
  %v147 = vpack.c.b16 %v121, %v120
  %v148 = vpack.c.b16 %v123, %v122
  %v149 = vpack.c.b16 %v125, %v124
  %v150 = vpack.c.b16 %v127, %v126
  %v151 = vpack.c.b16 %v129, %v128
  %v152 = vpack.c.b16 %v131, %v130
  %v153 = vpack.c.b16 %v133, %v132
  %v154 = vpack.c.b16 %v135, %v134
  %v155 = vpack.c.b16 %v137, %v136
  %v156 = vpack.c.b16 %v139, %v138
  %v157 = vpack.c.b16 %v141, %v140
  %174 = vmatprep.subr.bf16.mxu0 0
  %175 = vmatpush1.bf16.msra.mxu0 %v142
  %176 = vmatprep.subr.bf16.mxu0 0
  %177 = vmatpush1.bf16.msra.mxu0 %v143
  %178 = vmatprep.subr.bf16.mxu0 0
  %179 = vmatpush1.bf16.msra.mxu0 %v144
  %180 = vmatprep.subr.bf16.mxu0 0
  %181 = vmatpush1.bf16.msra.mxu0 %v145
  %182 = vmatprep.subr.bf16.mxu0 0
  %183 = vmatpush1.bf16.msra.mxu0 %v146
  %184 = vmatprep.subr.bf16.mxu0 0
  %185 = vmatpush1.bf16.msra.mxu0 %v147
  %186 = vmatprep.subr.bf16.mxu0 0
  %187 = vmatpush1.bf16.msra.mxu0 %v148
  %188 = vmatprep.subr.bf16.mxu0 0
  %189 = vmatpush1.bf16.msra.mxu0 %v149
  %190 = vmatprep.subr.bf16.mxu0 0
  %191 = vmatpush1.bf16.msra.mxu0 %v150
  %192 = vmatprep.subr.bf16.mxu0 0
  %193 = vmatpush1.bf16.msra.mxu0 %v151
  %194 = vmatprep.subr.bf16.mxu0 0
  %195 = vmatpush1.bf16.msra.mxu0 %v152
  %196 = vmatprep.subr.bf16.mxu0 0
  %197 = vmatpush1.bf16.msra.mxu0 %v153
  %198 = vmatprep.subr.bf16.mxu0 0
  %199 = vmatpush1.bf16.msra.mxu0 %v154
  %200 = vmatprep.subr.bf16.mxu0 0
  %201 = vmatpush1.bf16.msra.mxu0 %v155
  %202 = vmatprep.subr.bf16.mxu0 0
  %203 = vmatpush1.bf16.msra.mxu0 %v156
  %204 = vmatprep.subr.bf16.mxu0 0
  %205 = vmatpush1.bf16.msra.mxu0 %v157
  %206 = vmatprep.mubr.bf16.mxu0 %v71
  %207 = vmatmul.mubr.bf16.gmra.mrb[0].mxu0 %v70
  %v208 = vpop.f32.mrb[0].mxu0
  %v209 = vadd.f32 %v56, %v208
  %v210 = vpop.f32.mrb[0].mxu0
  %v211 = vpop.f32.mrb[0].mxu0
  %v212 = vadd.f32 %v56, %v211
  %v213 = vpop.f32.mrb[0].mxu0
  %214 = vmatprep.mubr.bf16.mxu0 %v73
  %215 = vmatmul.mubr.bf16.gmra.mrb[0].mxu0 %v72
  %v216 = vpop.f32.mrb[0].mxu0
  %v217 = vadd.f32 %v56, %v216
  %v218 = vpop.f32.mrb[0].mxu0
  %v219 = vpop.f32.mrb[0].mxu0
  %v220 = vadd.f32 %v56, %v219
  %v221 = vpop.f32.mrb[0].mxu0
  %222 = vdwg.mxu0
  %v223 = vmax.f32 %v209, 0.0
  %v224 = vmax.f32 %v212, 0.0
  %v225 = vmax.f32 %v217, 0.0
  %v226 = vmax.f32 %v220, 0.0
  %v227 = vmin.f32 %v223, 6.0
  %v228 = vmin.f32 %v224, 6.0
  %v229 = vmin.f32 %v225, 6.0
  %v230 = vmin.f32 %v226, 6.0
  %v231 = vpack.c.bf16 %v228, %v227
  %v232 = vpack.c.bf16 %v230, %v229
  %v235 = vunpack.c.l.b16 %v231
  %v236 = vunpack.c.h.b16 %v231
  %v237 = vunpack.c.l.b16 %v232
  %v238 = vunpack.c.h.b16 %v232
  %v239 = vpack.c.b16 %v235, %v235
  %v240 = vpack.c.b16 %v236, %v236
  %v241 = vpack.c.b16 %v237, %v237
  %v242 = vpack.c.b16 %v238, %v238
  %247 = vst [vmem:[%s3] sm:$0xf] %v239
  %248 = vst [vmem:[%s3 + $0x4] sm:$0xf] %v240
  %249 = vst [vmem:[%s3 + $0x8] sm:$0xf] %v241
  %250 = vst [vmem:[%s3 + $0xc] sm:$0xf] %v242
  // Predicated region
  $region14: #{forward.25} parent=0 // pred_check
    _
  $region15: #{forward.25} parent=0 // pred_check_branch
    %252 = sbr.rel (0) target = $region17
  $region16: #{forward.25} parent=0 // pred_region
    _
  $region17: #{forward.25} parent=0 // pred_fallthru
    _
  // Predicated region
  $region18: #{forward.25} parent=0 // pred_check
    _
  $region19: #{forward.25} parent=0 // pred_check_branch
    %254 = sbr.rel (0) target = $region21
  $region20: #{forward.25} parent=0 // pred_region
    _
  $region21: #{forward.25} parent=0 // pred_fallthru
    _

// kernel: forward.26
$region0: #{forward.26}
  #allocation0 [shape = 'u32[]', space=smem, size = 0x4, offset = 0x4, fixed_abs, tag = 'smem constant byte address 0x4 - core index']
  #allocation1 [shape = 'u32[144,128]{1,0:T(1,128)}', space=vmem, size = 0x12000, scoped, tag = 'internal scratch']
  %s0 = inlined_call_operand.vmem [shape: bf16[32,384], index: 0, kind: input, shape index: {}]
  %s1 = inlined_call_operand.vmem [shape: bf16[384,128], index: 1, kind: input, shape index: {}]
  %s2 = inlined_call_operand.vmem [shape: f32[1,128], index: 2, kind: input, shape index: {}]
  %s3 = inlined_call_operand.vmem [shape: bf16[32,128], index: 3, kind: output, shape index: {}]
  %s4 = sld [smem:[#allocation0]]
  $region22: #{forward.26} parent=0
    _
  %s6 = ssub.s32 1, %s4
  %s7 = scalar_select 0, %s6, %s4
  // Predicated region
  $region2: #{forward.26} parent=0 // pred_check
    _
  $region3: #{forward.26} parent=0 // pred_check_branch
    %9 = sbr.rel (0) target = $region5
  $region4: #{forward.26} parent=0 // pred_region
    _
  $region5: #{forward.26} parent=0 // pred_fallthru
    _
  // Predicated region
  $region6: #{forward.26} parent=0 // pred_check
    _
  $region7: #{forward.26} parent=0 // pred_check_branch
    %11 = sbr.rel (0) target = $region9
  $region8: #{forward.26} parent=0 // pred_region
    _
  $region9: #{forward.26} parent=0 // pred_fallthru
    _
  // Predicated region
  $region10: #{forward.26} parent=0 // pred_check
    _
  $region11: #{forward.26} parent=0 // pred_check_branch
    %13 = sbr.rel (0) target = $region13
  $region12: #{forward.26} parent=0 // pred_region
    _
  $region13: #{forward.26} parent=0 // pred_fallthru
    _
  %v15 = vld [vmem:[%s0] sm:$0xff]
  %v16 = vld [vmem:[%s0 + $0x8] sm:$0xf]
  %v17 = vld [vmem:[%s0 + $0xc] sm:$0xff]
  %v18 = vld [vmem:[%s0 + $0x14] sm:$0xf]
  %v19 = vld [vmem:[%s0 + $0x18] sm:$0xff]
  %v20 = vld [vmem:[%s0 + $0x20] sm:$0xf]
  %v21 = vld [vmem:[%s0 + $0x24] sm:$0xff]
  %v22 = vld [vmem:[%s0 + $0x2c] sm:$0xf]
  %v23 = vld [vmem:[%s1] sm:$0xf]
  %v24 = vld [vmem:[%s1 + $0x4] sm:$0xf]
  %v25 = vld [vmem:[%s1 + $0x8] sm:$0xf]
  %v26 = vld [vmem:[%s1 + $0xc] sm:$0xf]
  %v27 = vld [vmem:[%s1 + $0x10] sm:$0xf]
  %v28 = vld [vmem:[%s1 + $0x14] sm:$0xf]
  %v29 = vld [vmem:[%s1 + $0x18] sm:$0xf]
  %v30 = vld [vmem:[%s1 + $0x1c] sm:$0xf]
  %v31 = vld [vmem:[%s1 + $0x20] sm:$0xf]
  %v32 = vld [vmem:[%s1 + $0x24] sm:$0xf]
  %v33 = vld [vmem:[%s1 + $0x28] sm:$0xf]
  %v34 = vld [vmem:[%s1 + $0x2c] sm:$0xf]
  %v35 = vld [vmem:[%s1 + $0x30] sm:$0xf]
  %v36 = vld [vmem:[%s1 + $0x34] sm:$0xf]
  %v37 = vld [vmem:[%s1 + $0x38] sm:$0xf]
  %v38 = vld [vmem:[%s1 + $0x3c] sm:$0xf]
  %v39 = vld [vmem:[%s1 + $0x40] sm:$0xf]
  %v40 = vld [vmem:[%s1 + $0x44] sm:$0xf]
  %v41 = vld [vmem:[%s1 + $0x48] sm:$0xf]
  %v42 = vld [vmem:[%s1 + $0x4c] sm:$0xf]
  %v43 = vld [vmem:[%s1 + $0x50] sm:$0xf]
  %v44 = vld [vmem:[%s1 + $0x54] sm:$0xf]
  %v45 = vld [vmem:[%s1 + $0x58] sm:$0xf]
  %v46 = vld [vmem:[%s1 + $0x5c] sm:$0xf]
  %v47 = vld [vmem:[%s1 + $0x60] sm:$0xf]
  %v48 = vld [vmem:[%s1 + $0x64] sm:$0xf]
  %v49 = vld [vmem:[%s1 + $0x68] sm:$0xf]
  %v50 = vld [vmem:[%s1 + $0x6c] sm:$0xf]
  %v51 = vld [vmem:[%s1 + $0x70] sm:$0xf]
  %v52 = vld [vmem:[%s1 + $0x74] sm:$0xf]
  %v53 = vld [vmem:[%s1 + $0x78] sm:$0xf]
  %v54 = vld [vmem:[%s1 + $0x7c] sm:$0xf]
  %v55 = vld [vmem:[%s1 + $0x80] sm:$0xf]
  %v56 = vld [vmem:[%s1 + $0x84] sm:$0xf]
  %v57 = vld [vmem:[%s1 + $0x88] sm:$0xf]
  %v58 = vld [vmem:[%s1 + $0x8c] sm:$0xf]
  %v59 = vld [vmem:[%s1 + $0x90] sm:$0xf]
  %v60 = vld [vmem:[%s1 + $0x94] sm:$0xf]
  %v61 = vld [vmem:[%s1 + $0x98] sm:$0xf]
  %v62 = vld [vmem:[%s1 + $0x9c] sm:$0xf]
  %v63 = vld [vmem:[%s1 + $0xa0] sm:$0xf]
  %v64 = vld [vmem:[%s1 + $0xa4] sm:$0xf]
  %v65 = vld [vmem:[%s1 + $0xa8] sm:$0xf]
  %v66 = vld [vmem:[%s1 + $0xac] sm:$0xf]
  %v67 = vld [vmem:[%s1 + $0xb0] sm:$0xf]
  %v68 = vld [vmem:[%s1 + $0xb4] sm:$0xf]
  %v69 = vld [vmem:[%s1 + $0xb8] sm:$0xf]
  %v70 = vld [vmem:[%s1 + $0xbc] sm:$0xf]
  %v71 = vld [vmem:[%s2] sm:$0x1]
  %v73 = vlaneseq
  %v74 = vshrl.u32 %v73, 7
  %v75 = vsub.s32 0, %v74
  %v76 = vrot.slane %v71, %v75
  %v86 = vunpack.c.l.b16 %v15
  %v87 = vunpack.c.h.b16 %v15
  %v88 = vunpack.c.l.b16 %v16
  %v89 = vunpack.c.l.b16 %v17
  %v90 = vunpack.c.h.b16 %v17
  %v91 = vunpack.c.l.b16 %v18
  %v92 = vunpack.c.l.b16 %v19
  %v93 = vunpack.c.h.b16 %v19
  %v94 = vunpack.c.l.b16 %v20
  %v95 = vunpack.c.l.b16 %v21
  %v96 = vunpack.c.h.b16 %v21
  %v97 = vunpack.c.l.b16 %v22
  %v98 = vpack.c.b16 %v89, %v86
  %v99 = vpack.c.b16 %v90, %v87
  %v100 = vpack.c.b16 %v91, %v88
  %v101 = vpack.c.b16 %v95, %v92
  %v102 = vpack.c.b16 %v96, %v93
  %v103 = vpack.c.b16 %v97, %v94
  %v158 = vunpack.c.l.b16 %v23
  %v159 = vunpack.c.l.b16 %v24
  %v160 = vunpack.c.l.b16 %v25
  %v161 = vunpack.c.l.b16 %v26
  %v162 = vunpack.c.l.b16 %v27
  %v163 = vunpack.c.l.b16 %v28
  %v164 = vunpack.c.l.b16 %v29
  %v165 = vunpack.c.l.b16 %v30
  %v166 = vunpack.c.l.b16 %v31
  %v167 = vunpack.c.l.b16 %v32
  %v168 = vunpack.c.l.b16 %v33
  %v169 = vunpack.c.l.b16 %v34
  %v170 = vunpack.c.l.b16 %v35
  %v171 = vunpack.c.l.b16 %v36
  %v172 = vunpack.c.l.b16 %v37
  %v173 = vunpack.c.l.b16 %v38
  %v174 = vunpack.c.l.b16 %v39
  %v175 = vunpack.c.l.b16 %v40
  %v176 = vunpack.c.l.b16 %v41
  %v177 = vunpack.c.l.b16 %v42
  %v178 = vunpack.c.l.b16 %v43
  %v179 = vunpack.c.l.b16 %v44
  %v180 = vunpack.c.l.b16 %v45
  %v181 = vunpack.c.l.b16 %v46
  %v182 = vunpack.c.l.b16 %v47
  %v183 = vunpack.c.l.b16 %v48
  %v184 = vunpack.c.l.b16 %v49
  %v185 = vunpack.c.l.b16 %v50
  %v186 = vunpack.c.l.b16 %v51
  %v187 = vunpack.c.l.b16 %v52
  %v188 = vunpack.c.l.b16 %v53
  %v189 = vunpack.c.l.b16 %v54
  %v190 = vunpack.c.l.b16 %v55
  %v191 = vunpack.c.l.b16 %v56
  %v192 = vunpack.c.l.b16 %v57
  %v193 = vunpack.c.l.b16 %v58
  %v194 = vunpack.c.l.b16 %v59
  %v195 = vunpack.c.l.b16 %v60
  %v196 = vunpack.c.l.b16 %v61
  %v197 = vunpack.c.l.b16 %v62
  %v198 = vunpack.c.l.b16 %v63
  %v199 = vunpack.c.l.b16 %v64
  %v200 = vunpack.c.l.b16 %v65
  %v201 = vunpack.c.l.b16 %v66
  %v202 = vunpack.c.l.b16 %v67
  %v203 = vunpack.c.l.b16 %v68
  %v204 = vunpack.c.l.b16 %v69
  %v205 = vunpack.c.l.b16 %v70
  %v206 = vpack.c.b16 %v159, %v158
  %v207 = vpack.c.b16 %v161, %v160
  %v208 = vpack.c.b16 %v163, %v162
  %v209 = vpack.c.b16 %v165, %v164
  %v210 = vpack.c.b16 %v167, %v166
  %v211 = vpack.c.b16 %v169, %v168
  %v212 = vpack.c.b16 %v171, %v170
  %v213 = vpack.c.b16 %v173, %v172
  %v214 = vpack.c.b16 %v175, %v174
  %v215 = vpack.c.b16 %v177, %v176
  %v216 = vpack.c.b16 %v179, %v178
  %v217 = vpack.c.b16 %v181, %v180
  %v218 = vpack.c.b16 %v183, %v182
  %v219 = vpack.c.b16 %v185, %v184
  %v220 = vpack.c.b16 %v187, %v186
  %v221 = vpack.c.b16 %v189, %v188
  %v222 = vpack.c.b16 %v191, %v190
  %v223 = vpack.c.b16 %v193, %v192
  %v224 = vpack.c.b16 %v195, %v194
  %v225 = vpack.c.b16 %v197, %v196
  %v226 = vpack.c.b16 %v199, %v198
  %v227 = vpack.c.b16 %v201, %v200
  %v228 = vpack.c.b16 %v203, %v202
  %v229 = vpack.c.b16 %v205, %v204
  %254 = vmatprep.subr.bf16.mxu0 0
  %255 = vmatpush1.bf16.msra.mxu0 %v206
  %256 = vmatprep.subr.bf16.mxu0 0
  %257 = vmatpush1.bf16.msra.mxu0 %v207
  %258 = vmatprep.subr.bf16.mxu0 0
  %259 = vmatpush1.bf16.msra.mxu0 %v208
  %260 = vmatprep.subr.bf16.mxu0 0
  %261 = vmatpush1.bf16.msra.mxu0 %v209
  %262 = vmatprep.subr.bf16.mxu0 0
  %263 = vmatpush1.bf16.msra.mxu0 %v210
  %264 = vmatprep.subr.bf16.mxu0 0
  %265 = vmatpush1.bf16.msra.mxu0 %v211
  %266 = vmatprep.subr.bf16.mxu0 0
  %267 = vmatpush1.bf16.msra.mxu0 %v212
  %268 = vmatprep.subr.bf16.mxu0 0
  %269 = vmatpush1.bf16.msra.mxu0 %v213
  %270 = vmatprep.subr.bf16.mxu0 0
  %271 = vmatpush1.bf16.msra.mxu0 %v214
  %272 = vmatprep.subr.bf16.mxu0 0
  %273 = vmatpush1.bf16.msra.mxu0 %v215
  %274 = vmatprep.subr.bf16.mxu0 0
  %275 = vmatpush1.bf16.msra.mxu0 %v216
  %276 = vmatprep.subr.bf16.mxu0 0
  %277 = vmatpush1.bf16.msra.mxu0 %v217
  %278 = vmatprep.subr.bf16.mxu0 0
  %279 = vmatpush1.bf16.msra.mxu0 %v218
  %280 = vmatprep.subr.bf16.mxu0 0
  %281 = vmatpush1.bf16.msra.mxu0 %v219
  %282 = vmatprep.subr.bf16.mxu0 0
  %283 = vmatpush1.bf16.msra.mxu0 %v220
  %284 = vmatprep.subr.bf16.mxu0 0
  %285 = vmatpush1.bf16.msra.mxu0 %v221
  %286 = vmatprep.mubr.bf16.mxu0 %v99
  %287 = vmatmul.mubr.bf16.gmra.mrb[0].mxu0 %v98
  %v288 = vpop.f32.mrb[0].mxu0
  %v289 = vadd.f32 %v76, %v288
  %v290 = vpop.f32.mrb[0].mxu0
  %v291 = vpop.f32.mrb[0].mxu0
  %v292 = vadd.f32 %v76, %v291
  %v293 = vpop.f32.mrb[0].mxu0
  %294 = vmatprep.mubr.bf16.mxu0 %v102
  %295 = vmatmul.mubr.bf16.gmra.mrb[0].mxu0 %v101
  %v296 = vpop.f32.mrb[0].mxu0
  %v297 = vadd.f32 %v76, %v296
  %v298 = vpop.f32.mrb[0].mxu0
  %v299 = vpop.f32.mrb[0].mxu0
  %v300 = vadd.f32 %v76, %v299
  %v301 = vpop.f32.mrb[0].mxu0
  %302 = vdwg.mxu0
  %303 = vmatprep.subr.bf16.mxu0 0
  %304 = vmatpush1.bf16.msra.mxu0 %v222
  %305 = vmatprep.subr.bf16.mxu0 0
  %306 = vmatpush1.bf16.msra.mxu0 %v223
  %307 = vmatprep.subr.bf16.mxu0 0
  %308 = vmatpush1.bf16.msra.mxu0 %v224
  %309 = vmatprep.subr.bf16.mxu0 0
  %310 = vmatpush1.bf16.msra.mxu0 %v225
  %311 = vmatprep.subr.bf16.mxu0 0
  %312 = vmatpush1.bf16.msra.mxu0 %v226
  %313 = vmatprep.subr.bf16.mxu0 0
  %314 = vmatpush1.bf16.msra.mxu0 %v227
  %315 = vmatprep.subr.bf16.mxu0 0
  %316 = vmatpush1.bf16.msra.mxu0 %v228
  %317 = vmatprep.subr.bf16.mxu0 0
  %318 = vmatpush1.bf16.msra.mxu0 %v229
  %319 = vmatprep.subr.bf16.mxu0 0
  %320 = vmatpush1.bf16.msra.mxu0 0
  %321 = vmatprep.subr.bf16.mxu0 0
  %322 = vmatpush1.bf16.msra.mxu0 0
  %323 = vmatprep.subr.bf16.mxu0 0
  %324 = vmatpush1.bf16.msra.mxu0 0
  %325 = vmatprep.subr.bf16.mxu0 0
  %326 = vmatpush1.bf16.msra.mxu0 0
  %327 = vmatprep.subr.bf16.mxu0 0
  %328 = vmatpush1.bf16.msra.mxu0 0
  %329 = vmatprep.subr.bf16.mxu0 0
  %330 = vmatpush1.bf16.msra.mxu0 0
  %331 = vmatprep.subr.bf16.mxu0 0
  %332 = vmatpush1.bf16.msra.mxu0 0
  %333 = vmatprep.subr.bf16.mxu0 0
  %334 = vmatpush1.bf16.msra.mxu0 0
  %335 = vmatprep.mubr.bf16.mxu0 0
  %336 = vmatmul.mubr.bf16.gmra.mrb[0].mxu0 %v100
  %v337 = vpop.f32.mrb[0].mxu0
  %v338 = vadd.f32 %v289, %v337
  %v339 = vpop.f32.mrb[0].mxu0
  %v340 = vpop.f32.mrb[0].mxu0
  %v341 = vadd.f32 %v292, %v340
  %v342 = vpop.f32.mrb[0].mxu0
  %343 = vmatprep.mubr.bf16.mxu0 0
  %344 = vmatmul.mubr.bf16.gmra.mrb[0].mxu0 %v103
  %v345 = vpop.f32.mrb[0].mxu0
  %v346 = vadd.f32 %v297, %v345
  %v347 = vpop.f32.mrb[0].mxu0
  %v348 = vpop.f32.mrb[0].mxu0
  %v349 = vadd.f32 %v300, %v348
  %v350 = vpop.f32.mrb[0].mxu0
  %351 = vdwg.mxu0
  %v352 = vmax.f32 %v338, 0.0
  %v353 = vmax.f32 %v341, 0.0
  %v354 = vmax.f32 %v346, 0.0
  %v355 = vmax.f32 %v349, 0.0
  %v356 = vmin.f32 %v352, 6.0
  %v357 = vmin.f32 %v353, 6.0
  %v358 = vmin.f32 %v354, 6.0
  %v359 = vmin.f32 %v355, 6.0
  %v360 = vpack.c.bf16 %v357, %v356
  %v361 = vpack.c.bf16 %v359, %v358
  %v364 = vunpack.c.l.b16 %v360
  %v365 = vunpack.c.h.b16 %v360
  %v366 = vunpack.c.l.b16 %v361
  %v367 = vunpack.c.h.b16 %v361
  %v368 = vpack.c.b16 %v364, %v364
  %v369 = vpack.c.b16 %v365, %v365
  %v370 = vpack.c.b16 %v366, %v366
  %v371 = vpack.c.b16 %v367, %v367
  %376 = vst [vmem:[%s3] sm:$0xf] %v368
  %377 = vst [vmem:[%s3 + $0x4] sm:$0xf] %v369
  %378 = vst [vmem:[%s3 + $0x8] sm:$0xf] %v370
  %379 = vst [vmem:[%s3 + $0xc] sm:$0xf] %v371
  // Predicated region
  $region14: #{forward.26} parent=0 // pred_check
    _
  $region15: #{forward.26} parent=0 // pred_check_branch
    %381 = sbr.rel (0) target = $region17
  $region16: #{forward.26} parent=0 // pred_region
    _
  $region17: #{forward.26} parent=0 // pred_fallthru
    _
  // Predicated region
  $region18: #{forward.26} parent=0 // pred_check
    _
  $region19: #{forward.26} parent=0 // pred_check_branch
    %383 = sbr.rel (0) target = $region21
  $region20: #{forward.26} parent=0 // pred_region
    _
  $region21: #{forward.26} parent=0 // pred_fallthru
    _

// kernel: forward.27
$region0: #{forward.27}
  #allocation0 [shape = 'u32[]', space=smem, size = 0x4, offset = 0x4, fixed_abs, tag = 'smem constant byte address 0x4 - core index']
  #allocation1 [shape = 'u32[144,128]{1,0:T(1,128)}', space=vmem, size = 0x12000, scoped, tag = 'internal scratch']
  %s0 = inlined_call_operand.vmem [shape: bf16[8,384], index: 0, kind: input, shape index: {}]
  %s1 = inlined_call_operand.vmem [shape: bf16[384,128], index: 1, kind: input, shape index: {}]
  %s2 = inlined_call_operand.vmem [shape: f32[1,128], index: 2, kind: input, shape index: {}]
  %s3 = inlined_call_operand.vmem [shape: bf16[8,128], index: 3, kind: output, shape index: {}]
  %s4 = sld [smem:[#allocation0]]
  $region22: #{forward.27} parent=0
    _
  %s6 = ssub.s32 1, %s4
  %s7 = scalar_select 0, %s6, %s4
  // Predicated region
  $region2: #{forward.27} parent=0 // pred_check
    _
  $region3: #{forward.27} parent=0 // pred_check_branch
    %9 = sbr.rel (0) target = $region5
  $region4: #{forward.27} parent=0 // pred_region
    _
  $region5: #{forward.27} parent=0 // pred_fallthru
    _
  // Predicated region
  $region6: #{forward.27} parent=0 // pred_check
    _
  $region7: #{forward.27} parent=0 // pred_check_branch
    %11 = sbr.rel (0) target = $region9
  $region8: #{forward.27} parent=0 // pred_region
    _
  $region9: #{forward.27} parent=0 // pred_fallthru
    _
  // Predicated region
  $region10: #{forward.27} parent=0 // pred_check
    _
  $region11: #{forward.27} parent=0 // pred_check_branch
    %13 = sbr.rel (0) target = $region13
  $region12: #{forward.27} parent=0 // pred_region
    _
  $region13: #{forward.27} parent=0 // pred_fallthru
    _
  %v15 = vld [vmem:[%s0] sm:$0xff]
  %v16 = vld [vmem:[%s0 + $0x8] sm:$0xf]
  %v17 = vld [vmem:[%s1] sm:$0xf]
  %v18 = vld [vmem:[%s1 + $0x4] sm:$0xf]
  %v19 = vld [vmem:[%s1 + $0x8] sm:$0xf]
  %v20 = vld [vmem:[%s1 + $0xc] sm:$0xf]
  %v21 = vld [vmem:[%s1 + $0x10] sm:$0xf]
  %v22 = vld [vmem:[%s1 + $0x14] sm:$0xf]
  %v23 = vld [vmem:[%s1 + $0x18] sm:$0xf]
  %v24 = vld [vmem:[%s1 + $0x1c] sm:$0xf]
  %v25 = vld [vmem:[%s1 + $0x20] sm:$0xf]
  %v26 = vld [vmem:[%s1 + $0x24] sm:$0xf]
  %v27 = vld [vmem:[%s1 + $0x28] sm:$0xf]
  %v28 = vld [vmem:[%s1 + $0x2c] sm:$0xf]
  %v29 = vld [vmem:[%s1 + $0x30] sm:$0xf]
  %v30 = vld [vmem:[%s1 + $0x34] sm:$0xf]
  %v31 = vld [vmem:[%s1 + $0x38] sm:$0xf]
  %v32 = vld [vmem:[%s1 + $0x3c] sm:$0xf]
  %v33 = vld [vmem:[%s1 + $0x40] sm:$0xf]
  %v34 = vld [vmem:[%s1 + $0x44] sm:$0xf]
  %v35 = vld [vmem:[%s1 + $0x48] sm:$0xf]
  %v36 = vld [vmem:[%s1 + $0x4c] sm:$0xf]
  %v37 = vld [vmem:[%s1 + $0x50] sm:$0xf]
  %v38 = vld [vmem:[%s1 + $0x54] sm:$0xf]
  %v39 = vld [vmem:[%s1 + $0x58] sm:$0xf]
  %v40 = vld [vmem:[%s1 + $0x5c] sm:$0xf]
  %v41 = vld [vmem:[%s1 + $0x60] sm:$0xf]
  %v42 = vld [vmem:[%s1 + $0x64] sm:$0xf]
  %v43 = vld [vmem:[%s1 + $0x68] sm:$0xf]
  %v44 = vld [vmem:[%s1 + $0x6c] sm:$0xf]
  %v45 = vld [vmem:[%s1 + $0x70] sm:$0xf]
  %v46 = vld [vmem:[%s1 + $0x74] sm:$0xf]
  %v47 = vld [vmem:[%s1 + $0x78] sm:$0xf]
  %v48 = vld [vmem:[%s1 + $0x7c] sm:$0xf]
  %v49 = vld [vmem:[%s1 + $0x80] sm:$0xf]
  %v50 = vld [vmem:[%s1 + $0x84] sm:$0xf]
  %v51 = vld [vmem:[%s1 + $0x88] sm:$0xf]
  %v52 = vld [vmem:[%s1 + $0x8c] sm:$0xf]
  %v53 = vld [vmem:[%s1 + $0x90] sm:$0xf]
  %v54 = vld [vmem:[%s1 + $0x94] sm:$0xf]
  %v55 = vld [vmem:[%s1 + $0x98] sm:$0xf]
  %v56 = vld [vmem:[%s1 + $0x9c] sm:$0xf]
  %v57 = vld [vmem:[%s1 + $0xa0] sm:$0xf]
  %v58 = vld [vmem:[%s1 + $0xa4] sm:$0xf]
  %v59 = vld [vmem:[%s1 + $0xa8] sm:$0xf]
  %v60 = vld [vmem:[%s1 + $0xac] sm:$0xf]
  %v61 = vld [vmem:[%s1 + $0xb0] sm:$0xf]
  %v62 = vld [vmem:[%s1 + $0xb4] sm:$0xf]
  %v63 = vld [vmem:[%s1 + $0xb8] sm:$0xf]
  %v64 = vld [vmem:[%s1 + $0xbc] sm:$0xf]
  %v65 = vld [vmem:[%s2] sm:$0x1]
  %v67 = vlaneseq
  %v68 = vshrl.u32 %v67, 7
  %v69 = vsub.s32 0, %v68
  %v70 = vrot.slane %v65, %v69
  %v74 = vunpack.c.l.b16 %v15
  %v75 = vunpack.c.h.b16 %v15
  %v76 = vunpack.c.l.b16 %v16
  %v77 = vpack.c.b16 %v74, %v74
  %v78 = vpack.c.b16 %v75, %v75
  %v79 = vpack.c.b16 %v76, %v76
  %v131 = vunpack.c.l.b16 %v17
  %v132 = vunpack.c.l.b16 %v18
  %v133 = vunpack.c.l.b16 %v19
  %v134 = vunpack.c.l.b16 %v20
  %v135 = vunpack.c.l.b16 %v21
  %v136 = vunpack.c.l.b16 %v22
  %v137 = vunpack.c.l.b16 %v23
  %v138 = vunpack.c.l.b16 %v24
  %v139 = vunpack.c.l.b16 %v25
  %v140 = vunpack.c.l.b16 %v26
  %v141 = vunpack.c.l.b16 %v27
  %v142 = vunpack.c.l.b16 %v28
  %v143 = vunpack.c.l.b16 %v29
  %v144 = vunpack.c.l.b16 %v30
  %v145 = vunpack.c.l.b16 %v31
  %v146 = vunpack.c.l.b16 %v32
  %v147 = vunpack.c.l.b16 %v33
  %v148 = vunpack.c.l.b16 %v34
  %v149 = vunpack.c.l.b16 %v35
  %v150 = vunpack.c.l.b16 %v36
  %v151 = vunpack.c.l.b16 %v37
  %v152 = vunpack.c.l.b16 %v38
  %v153 = vunpack.c.l.b16 %v39
  %v154 = vunpack.c.l.b16 %v40
  %v155 = vunpack.c.l.b16 %v41
  %v156 = vunpack.c.l.b16 %v42
  %v157 = vunpack.c.l.b16 %v43
  %v158 = vunpack.c.l.b16 %v44
  %v159 = vunpack.c.l.b16 %v45
  %v160 = vunpack.c.l.b16 %v46
  %v161 = vunpack.c.l.b16 %v47
  %v162 = vunpack.c.l.b16 %v48
  %v163 = vunpack.c.l.b16 %v49
  %v164 = vunpack.c.l.b16 %v50
  %v165 = vunpack.c.l.b16 %v51
  %v166 = vunpack.c.l.b16 %v52
  %v167 = vunpack.c.l.b16 %v53
  %v168 = vunpack.c.l.b16 %v54
  %v169 = vunpack.c.l.b16 %v55
  %v170 = vunpack.c.l.b16 %v56
  %v171 = vunpack.c.l.b16 %v57
  %v172 = vunpack.c.l.b16 %v58
  %v173 = vunpack.c.l.b16 %v59
  %v174 = vunpack.c.l.b16 %v60
  %v175 = vunpack.c.l.b16 %v61
  %v176 = vunpack.c.l.b16 %v62
  %v177 = vunpack.c.l.b16 %v63
  %v178 = vunpack.c.l.b16 %v64
  %v179 = vpack.c.b16 %v132, %v131
  %v180 = vpack.c.b16 %v134, %v133
  %v181 = vpack.c.b16 %v136, %v135
  %v182 = vpack.c.b16 %v138, %v137
  %v183 = vpack.c.b16 %v140, %v139
  %v184 = vpack.c.b16 %v142, %v141
  %v185 = vpack.c.b16 %v144, %v143
  %v186 = vpack.c.b16 %v146, %v145
  %v187 = vpack.c.b16 %v148, %v147
  %v188 = vpack.c.b16 %v150, %v149
  %v189 = vpack.c.b16 %v152, %v151
  %v190 = vpack.c.b16 %v154, %v153
  %v191 = vpack.c.b16 %v156, %v155
  %v192 = vpack.c.b16 %v158, %v157
  %v193 = vpack.c.b16 %v160, %v159
  %v194 = vpack.c.b16 %v162, %v161
  %v195 = vpack.c.b16 %v164, %v163
  %v196 = vpack.c.b16 %v166, %v165
  %v197 = vpack.c.b16 %v168, %v167
  %v198 = vpack.c.b16 %v170, %v169
  %v199 = vpack.c.b16 %v172, %v171
  %v200 = vpack.c.b16 %v174, %v173
  %v201 = vpack.c.b16 %v176, %v175
  %v202 = vpack.c.b16 %v178, %v177
  %227 = vmatprep.subr.bf16.mxu0 0
  %228 = vmatpush1.bf16.msra.mxu0 %v179
  %229 = vmatprep.subr.bf16.mxu0 0
  %230 = vmatpush1.bf16.msra.mxu0 %v180
  %231 = vmatprep.subr.bf16.mxu0 0
  %232 = vmatpush1.bf16.msra.mxu0 %v181
  %233 = vmatprep.subr.bf16.mxu0 0
  %234 = vmatpush1.bf16.msra.mxu0 %v182
  %235 = vmatprep.subr.bf16.mxu0 0
  %236 = vmatpush1.bf16.msra.mxu0 %v183
  %237 = vmatprep.subr.bf16.mxu0 0
  %238 = vmatpush1.bf16.msra.mxu0 %v184
  %239 = vmatprep.subr.bf16.mxu0 0
  %240 = vmatpush1.bf16.msra.mxu0 %v185
  %241 = vmatprep.subr.bf16.mxu0 0
  %242 = vmatpush1.bf16.msra.mxu0 %v186
  %243 = vmatprep.subr.bf16.mxu0 0
  %244 = vmatpush1.bf16.msra.mxu0 %v187
  %245 = vmatprep.subr.bf16.mxu0 0
  %246 = vmatpush1.bf16.msra.mxu0 %v188
  %247 = vmatprep.subr.bf16.mxu0 0
  %248 = vmatpush1.bf16.msra.mxu0 %v189
  %249 = vmatprep.subr.bf16.mxu0 0
  %250 = vmatpush1.bf16.msra.mxu0 %v190
  %251 = vmatprep.subr.bf16.mxu0 0
  %252 = vmatpush1.bf16.msra.mxu0 %v191
  %253 = vmatprep.subr.bf16.mxu0 0
  %254 = vmatpush1.bf16.msra.mxu0 %v192
  %255 = vmatprep.subr.bf16.mxu0 0
  %256 = vmatpush1.bf16.msra.mxu0 %v193
  %257 = vmatprep.subr.bf16.mxu0 0
  %258 = vmatpush1.bf16.msra.mxu0 %v194
  %259 = vmatprep.mubr.bf16.mxu0 %v78
  %260 = vmatmul.mubr.bf16.gmra.mrb[0].mxu0 %v77
  %v261 = vpop.f32.mrb[0].mxu0
  %v262 = vadd.f32 %v70, %v261
  %v263 = vpop.f32.mrb[0].mxu0
  %v264 = vpop.f32.mrb[0].mxu0
  %v265 = vpop.f32.mrb[0].mxu0
  %266 = vdwg.mxu0
  %267 = vmatprep.subr.bf16.mxu0 0
  %268 = vmatpush1.bf16.msra.mxu0 %v195
  %269 = vmatprep.subr.bf16.mxu0 0
  %270 = vmatpush1.bf16.msra.mxu0 %v196
  %271 = vmatprep.subr.bf16.mxu0 0
  %272 = vmatpush1.bf16.msra.mxu0 %v197
  %273 = vmatprep.subr.bf16.mxu0 0
  %274 = vmatpush1.bf16.msra.mxu0 %v198
  %275 = vmatprep.subr.bf16.mxu0 0
  %276 = vmatpush1.bf16.msra.mxu0 %v199
  %277 = vmatprep.subr.bf16.mxu0 0
  %278 = vmatpush1.bf16.msra.mxu0 %v200
  %279 = vmatprep.subr.bf16.mxu0 0
  %280 = vmatpush1.bf16.msra.mxu0 %v201
  %281 = vmatprep.subr.bf16.mxu0 0
  %282 = vmatpush1.bf16.msra.mxu0 %v202
  %283 = vmatprep.subr.bf16.mxu0 0
  %284 = vmatpush1.bf16.msra.mxu0 0
  %285 = vmatprep.subr.bf16.mxu0 0
  %286 = vmatpush1.bf16.msra.mxu0 0
  %287 = vmatprep.subr.bf16.mxu0 0
  %288 = vmatpush1.bf16.msra.mxu0 0
  %289 = vmatprep.subr.bf16.mxu0 0
  %290 = vmatpush1.bf16.msra.mxu0 0
  %291 = vmatprep.subr.bf16.mxu0 0
  %292 = vmatpush1.bf16.msra.mxu0 0
  %293 = vmatprep.subr.bf16.mxu0 0
  %294 = vmatpush1.bf16.msra.mxu0 0
  %295 = vmatprep.subr.bf16.mxu0 0
  %296 = vmatpush1.bf16.msra.mxu0 0
  %297 = vmatprep.subr.bf16.mxu0 0
  %298 = vmatpush1.bf16.msra.mxu0 0
  %299 = vmatprep.mubr.bf16.mxu0 0
  %300 = vmatmul.mubr.bf16.gmra.mrb[0].mxu0 %v79
  %v301 = vpop.f32.mrb[0].mxu0
  %v302 = vadd.f32 %v262, %v301
  %v303 = vpop.f32.mrb[0].mxu0
  %v304 = vpop.f32.mrb[0].mxu0
  %v305 = vpop.f32.mrb[0].mxu0
  %306 = vdwg.mxu0
  %v307 = vmax.f32 %v302, 0.0
  %v308 = vmin.f32 %v307, 6.0
  %v309 = vpack.c.bf16 %v308, %v308
  %310 = vst [vmem:[%s3] sm:$0xf] %v309
  // Predicated region
  $region14: #{forward.27} parent=0 // pred_check
    _
  $region15: #{forward.27} parent=0 // pred_check_branch
    %312 = sbr.rel (0) target = $region17
  $region16: #{forward.27} parent=0 // pred_region
    _
  $region17: #{forward.27} parent=0 // pred_fallthru
    _
  // Predicated region
  $region18: #{forward.27} parent=0 // pred_check
    _
  $region19: #{forward.27} parent=0 // pred_check_branch
    %314 = sbr.rel (0) target = $region21
  $region20: #{forward.27} parent=0 // pred_region
    _
  $region21: #{forward.27} parent=0 // pred_fallthru
    _

// kernel: forward.31
$region0: #{forward.31}
  #allocation0 [shape = 'u32[]', space=smem, size = 0x4, offset = 0x4, fixed_abs, tag = 'smem constant byte address 0x4 - core index']
  #allocation1 [shape = 'u32[144,128]{1,0:T(1,128)}', space=vmem, size = 0x12000, scoped, tag = 'internal scratch']
  %s0 = inlined_call_operand.vmem [shape: bf16[8,128], index: 0, kind: input, shape index: {}]
  %s1 = inlined_call_operand.vmem [shape: bf16[128,256], index: 1, kind: input, shape index: {}]
  %s2 = inlined_call_operand.vmem [shape: f32[1,256], index: 2, kind: input, shape index: {}]
  %s3 = inlined_call_operand.vmem [shape: bf16[8,256], index: 3, kind: output, shape index: {}]
  %s4 = sld [smem:[#allocation0]]
  $region22: #{forward.31} parent=0
    _
  %s6 = ssub.s32 1, %s4
  %s7 = scalar_select 0, %s6, %s4
  // Predicated region
  $region2: #{forward.31} parent=0 // pred_check
    _
  $region3: #{forward.31} parent=0 // pred_check_branch
    %9 = sbr.rel (0) target = $region5
  $region4: #{forward.31} parent=0 // pred_region
    _
  $region5: #{forward.31} parent=0 // pred_fallthru
    _
  // Predicated region
  $region6: #{forward.31} parent=0 // pred_check
    _
  $region7: #{forward.31} parent=0 // pred_check_branch
    %11 = sbr.rel (0) target = $region9
  $region8: #{forward.31} parent=0 // pred_region
    _
  $region9: #{forward.31} parent=0 // pred_fallthru
    _
  // Predicated region
  $region10: #{forward.31} parent=0 // pred_check
    _
  $region11: #{forward.31} parent=0 // pred_check_branch
    %13 = sbr.rel (0) target = $region13
  $region12: #{forward.31} parent=0 // pred_region
    _
  $region13: #{forward.31} parent=0 // pred_fallthru
    _
  %v15 = vld [vmem:[%s0] sm:$0xf]
  %v16 = vld [vmem:[%s1] sm:$0xff]
  %v17 = vld [vmem:[%s1 + $0x8] sm:$0xff]
  %v18 = vld [vmem:[%s1 + $0x10] sm:$0xff]
  %v19 = vld [vmem:[%s1 + $0x18] sm:$0xff]
  %v20 = vld [vmem:[%s1 + $0x20] sm:$0xff]
  %v21 = vld [vmem:[%s1 + $0x28] sm:$0xff]
  %v22 = vld [vmem:[%s1 + $0x30] sm:$0xff]
  %v23 = vld [vmem:[%s1 + $0x38] sm:$0xff]
  %v24 = vld [vmem:[%s1 + $0x40] sm:$0xff]
  %v25 = vld [vmem:[%s1 + $0x48] sm:$0xff]
  %v26 = vld [vmem:[%s1 + $0x50] sm:$0xff]
  %v27 = vld [vmem:[%s1 + $0x58] sm:$0xff]
  %v28 = vld [vmem:[%s1 + $0x60] sm:$0xff]
  %v29 = vld [vmem:[%s1 + $0x68] sm:$0xff]
  %v30 = vld [vmem:[%s1 + $0x70] sm:$0xff]
  %v31 = vld [vmem:[%s1 + $0x78] sm:$0xff]
  %v32 = vld [vmem:[%s2] sm:$0x3]
  %v34 = vlaneseq
  %v35 = vshrl.u32 %v34, 7
  %v36 = vsub.s32 0, %v35
  %v37 = vrot.slane %v32, %v36
  %v38 = vlaneseq
  %v39 = vshrl.u32 %v38, 7
  %v40 = vsub.s32 1, %v39
  %v41 = vrot.slane %v32, %v40
  %v60 = vunpack.c.l.b16 %v16
  %v61 = vunpack.c.h.b16 %v16
  %v62 = vunpack.c.l.b16 %v17
  %v63 = vunpack.c.h.b16 %v17
  %v64 = vunpack.c.l.b16 %v18
  %v65 = vunpack.c.h.b16 %v18
  %v66 = vunpack.c.l.b16 %v19
  %v67 = vunpack.c.h.b16 %v19
  %v68 = vunpack.c.l.b16 %v20
  %v69 = vunpack.c.h.b16 %v20
  %v70 = vunpack.c.l.b16 %v21
  %v71 = vunpack.c.h.b16 %v21
  %v72 = vunpack.c.l.b16 %v22
  %v73 = vunpack.c.h.b16 %v22
  %v74 = vunpack.c.l.b16 %v23
  %v75 = vunpack.c.h.b16 %v23
  %v76 = vunpack.c.l.b16 %v24
  %v77 = vunpack.c.h.b16 %v24
  %v78 = vunpack.c.l.b16 %v25
  %v79 = vunpack.c.h.b16 %v25
  %v80 = vunpack.c.l.b16 %v26
  %v81 = vunpack.c.h.b16 %v26
  %v82 = vunpack.c.l.b16 %v27
  %v83 = vunpack.c.h.b16 %v27
  %v84 = vunpack.c.l.b16 %v28
  %v85 = vunpack.c.h.b16 %v28
  %v86 = vunpack.c.l.b16 %v29
  %v87 = vunpack.c.h.b16 %v29
  %v88 = vunpack.c.l.b16 %v30
  %v89 = vunpack.c.h.b16 %v30
  %v90 = vunpack.c.l.b16 %v31
  %v91 = vunpack.c.h.b16 %v31
  %v92 = vpack.c.b16 %v62, %v60
  %v93 = vpack.c.b16 %v63, %v61
  %v94 = vpack.c.b16 %v66, %v64
  %v95 = vpack.c.b16 %v67, %v65
  %v96 = vpack.c.b16 %v70, %v68
  %v97 = vpack.c.b16 %v71, %v69
  %v98 = vpack.c.b16 %v74, %v72
  %v99 = vpack.c.b16 %v75, %v73
  %v100 = vpack.c.b16 %v78, %v76
  %v101 = vpack.c.b16 %v79, %v77
  %v102 = vpack.c.b16 %v82, %v80
  %v103 = vpack.c.b16 %v83, %v81
  %v104 = vpack.c.b16 %v86, %v84
  %v105 = vpack.c.b16 %v87, %v85
  %v106 = vpack.c.b16 %v90, %v88
  %v107 = vpack.c.b16 %v91, %v89
  %124 = vmatprep.subr.bf16.mxu0 %v93
  %125 = vmatpush1.bf16.msra.mxu0 %v92
  %126 = vmatprep.subr.bf16.mxu0 %v95
  %127 = vmatpush1.bf16.msra.mxu0 %v94
  %128 = vmatprep.subr.bf16.mxu0 %v97
  %129 = vmatpush1.bf16.msra.mxu0 %v96
  %130 = vmatprep.subr.bf16.mxu0 %v99
  %131 = vmatpush1.bf16.msra.mxu0 %v98
  %132 = vmatprep.subr.bf16.mxu0 %v101
  %133 = vmatpush1.bf16.msra.mxu0 %v100
  %134 = vmatprep.subr.bf16.mxu0 %v103
  %135 = vmatpush1.bf16.msra.mxu0 %v102
  %136 = vmatprep.subr.bf16.mxu0 %v105
  %137 = vmatpush1.bf16.msra.mxu0 %v104
  %138 = vmatprep.subr.bf16.mxu0 %v107
  %139 = vmatpush1.bf16.msra.mxu0 %v106
  %140 = vmatprep.subr.bf16.mxu0 0
  %141 = vmatpush1.bf16.msra.mxu0 0
  %142 = vmatprep.subr.bf16.mxu0 0
  %143 = vmatpush1.bf16.msra.mxu0 0
  %144 = vmatprep.subr.bf16.mxu0 0
  %145 = vmatpush1.bf16.msra.mxu0 0
  %146 = vmatprep.subr.bf16.mxu0 0
  %147 = vmatpush1.bf16.msra.mxu0 0
  %148 = vmatprep.subr.bf16.mxu0 0
  %149 = vmatpush1.bf16.msra.mxu0 0
  %150 = vmatprep.subr.bf16.mxu0 0
  %151 = vmatpush1.bf16.msra.mxu0 0
  %152 = vmatprep.subr.bf16.mxu0 0
  %153 = vmatpush1.bf16.msra.mxu0 0
  %154 = vmatprep.subr.bf16.mxu0 0
  %155 = vmatpush1.bf16.msra.mxu0 0
  %156 = vmatprep.mubr.bf16.mxu0 0
  %157 = vmatmul.mubr.bf16.gmra.mrb[0].mxu0 %v15
  %v158 = vpop.f32.mrb[0].mxu0
  %v159 = vadd.f32 %v37, %v158
  %v160 = vpop.f32.mrb[0].mxu0
  %v161 = vadd.f32 %v41, %v160
  %v162 = vpop.f32.mrb[0].mxu0
  %v163 = vpop.f32.mrb[0].mxu0
  %164 = vdwg.mxu0
  %v165 = vmax.f32 %v159, 0.0
  %v166 = vmax.f32 %v161, 0.0
  %v167 = vmin.f32 %v165, 6.0
  %v168 = vmin.f32 %v166, 6.0
  %v169 = vpack.c.bf16 %v167, %v167
  %v170 = vpack.c.bf16 %v168, %v168
  %v173 = vunpack.c.l.b16 %v169
  %v174 = vunpack.c.l.b16 %v170
  %v175 = vpack.c.b16 %v174, %v173
  %177 = vst [vmem:[%s3] sm:$0xff] %v175
  // Predicated region
  $region14: #{forward.31} parent=0 // pred_check
    _
  $region15: #{forward.31} parent=0 // pred_check_branch
    %179 = sbr.rel (0) target = $region17
  $region16: #{forward.31} parent=0 // pred_region
    _
  $region17: #{forward.31} parent=0 // pred_fallthru
    _
  // Predicated region
  $region18: #{forward.31} parent=0 // pred_check
    _
  $region19: #{forward.31} parent=0 // pred_check_branch
    %181 = sbr.rel (0) target = $region21
  $region20: #{forward.31} parent=0 // pred_region
    _
  $region21: #{forward.31} parent=0 // pred_fallthru
    _

// kernel: forward.30
$region0: #{forward.30}
  #allocation0 [shape = 'u32[]', space=smem, size = 0x4, offset = 0x4, fixed_abs, tag = 'smem constant byte address 0x4 - core index']
  #allocation1 [shape = 'u32[144,128]{1,0:T(1,128)}', space=vmem, size = 0x12000, scoped, tag = 'internal scratch']
  %s0 = inlined_call_operand.vmem [shape: bf16[8,128], index: 0, kind: input, shape index: {}]
  %s1 = inlined_call_operand.vmem [shape: bf16[128,128], index: 1, kind: input, shape index: {}]
  %s2 = inlined_call_operand.vmem [shape: f32[1,128], index: 2, kind: input, shape index: {}]
  %s3 = inlined_call_operand.vmem [shape: bf16[8,128], index: 3, kind: output, shape index: {}]
  %s4 = sld [smem:[#allocation0]]
  $region22: #{forward.30} parent=0
    _
  %s6 = ssub.s32 1, %s4
  %s7 = scalar_select 0, %s6, %s4
  // Predicated region
  $region2: #{forward.30} parent=0 // pred_check
    _
  $region3: #{forward.30} parent=0 // pred_check_branch
    %9 = sbr.rel (0) target = $region5
  $region4: #{forward.30} parent=0 // pred_region
    _
  $region5: #{forward.30} parent=0 // pred_fallthru
    _
  // Predicated region
  $region6: #{forward.30} parent=0 // pred_check
    _
  $region7: #{forward.30} parent=0 // pred_check_branch
    %11 = sbr.rel (0) target = $region9
  $region8: #{forward.30} parent=0 // pred_region
    _
  $region9: #{forward.30} parent=0 // pred_fallthru
    _
  // Predicated region
  $region10: #{forward.30} parent=0 // pred_check
    _
  $region11: #{forward.30} parent=0 // pred_check_branch
    %13 = sbr.rel (0) target = $region13
  $region12: #{forward.30} parent=0 // pred_region
    _
  $region13: #{forward.30} parent=0 // pred_fallthru
    _
  %v15 = vld [vmem:[%s0] sm:$0xf]
  %v16 = vld [vmem:[%s1] sm:$0xf]
  %v17 = vld [vmem:[%s1 + $0x4] sm:$0xf]
  %v18 = vld [vmem:[%s1 + $0x8] sm:$0xf]
  %v19 = vld [vmem:[%s1 + $0xc] sm:$0xf]
  %v20 = vld [vmem:[%s1 + $0x10] sm:$0xf]
  %v21 = vld [vmem:[%s1 + $0x14] sm:$0xf]
  %v22 = vld [vmem:[%s1 + $0x18] sm:$0xf]
  %v23 = vld [vmem:[%s1 + $0x1c] sm:$0xf]
  %v24 = vld [vmem:[%s1 + $0x20] sm:$0xf]
  %v25 = vld [vmem:[%s1 + $0x24] sm:$0xf]
  %v26 = vld [vmem:[%s1 + $0x28] sm:$0xf]
  %v27 = vld [vmem:[%s1 + $0x2c] sm:$0xf]
  %v28 = vld [vmem:[%s1 + $0x30] sm:$0xf]
  %v29 = vld [vmem:[%s1 + $0x34] sm:$0xf]
  %v30 = vld [vmem:[%s1 + $0x38] sm:$0xf]
  %v31 = vld [vmem:[%s1 + $0x3c] sm:$0xf]
  %v32 = vld [vmem:[%s2] sm:$0x1]
  %v34 = vlaneseq
  %v35 = vshrl.u32 %v34, 7
  %v36 = vsub.s32 0, %v35
  %v37 = vrot.slane %v32, %v36
  %v55 = vunpack.c.l.b16 %v16
  %v56 = vunpack.c.l.b16 %v17
  %v57 = vunpack.c.l.b16 %v18
  %v58 = vunpack.c.l.b16 %v19
  %v59 = vunpack.c.l.b16 %v20
  %v60 = vunpack.c.l.b16 %v21
  %v61 = vunpack.c.l.b16 %v22
  %v62 = vunpack.c.l.b16 %v23
  %v63 = vunpack.c.l.b16 %v24
  %v64 = vunpack.c.l.b16 %v25
  %v65 = vunpack.c.l.b16 %v26
  %v66 = vunpack.c.l.b16 %v27
  %v67 = vunpack.c.l.b16 %v28
  %v68 = vunpack.c.l.b16 %v29
  %v69 = vunpack.c.l.b16 %v30
  %v70 = vunpack.c.l.b16 %v31
  %v71 = vpack.c.b16 %v56, %v55
  %v72 = vpack.c.b16 %v58, %v57
  %v73 = vpack.c.b16 %v60, %v59
  %v74 = vpack.c.b16 %v62, %v61
  %v75 = vpack.c.b16 %v64, %v63
  %v76 = vpack.c.b16 %v66, %v65
  %v77 = vpack.c.b16 %v68, %v67
  %v78 = vpack.c.b16 %v70, %v69
  %87 = vmatprep.subr.bf16.mxu0 0
  %88 = vmatpush1.bf16.msra.mxu0 %v71
  %89 = vmatprep.subr.bf16.mxu0 0
  %90 = vmatpush1.bf16.msra.mxu0 %v72
  %91 = vmatprep.subr.bf16.mxu0 0
  %92 = vmatpush1.bf16.msra.mxu0 %v73
  %93 = vmatprep.subr.bf16.mxu0 0
  %94 = vmatpush1.bf16.msra.mxu0 %v74
  %95 = vmatprep.subr.bf16.mxu0 0
  %96 = vmatpush1.bf16.msra.mxu0 %v75
  %97 = vmatprep.subr.bf16.mxu0 0
  %98 = vmatpush1.bf16.msra.mxu0 %v76
  %99 = vmatprep.subr.bf16.mxu0 0
  %100 = vmatpush1.bf16.msra.mxu0 %v77
  %101 = vmatprep.subr.bf16.mxu0 0
  %102 = vmatpush1.bf16.msra.mxu0 %v78
  %103 = vmatprep.subr.bf16.mxu0 0
  %104 = vmatpush1.bf16.msra.mxu0 0
  %105 = vmatprep.subr.bf16.mxu0 0
  %106 = vmatpush1.bf16.msra.mxu0 0
  %107 = vmatprep.subr.bf16.mxu0 0
  %108 = vmatpush1.bf16.msra.mxu0 0
  %109 = vmatprep.subr.bf16.mxu0 0
  %110 = vmatpush1.bf16.msra.mxu0 0
  %111 = vmatprep.subr.bf16.mxu0 0
  %112 = vmatpush1.bf16.msra.mxu0 0
  %113 = vmatprep.subr.bf16.mxu0 0
  %114 = vmatpush1.bf16.msra.mxu0 0
  %115 = vmatprep.subr.bf16.mxu0 0
  %116 = vmatpush1.bf16.msra.mxu0 0
  %117 = vmatprep.subr.bf16.mxu0 0
  %118 = vmatpush1.bf16.msra.mxu0 0
  %119 = vmatprep.mubr.bf16.mxu0 0
  %120 = vmatmul.mubr.bf16.gmra.mrb[0].mxu0 %v15
  %v121 = vpop.f32.mrb[0].mxu0
  %v122 = vadd.f32 %v37, %v121
  %v123 = vpop.f32.mrb[0].mxu0
  %v124 = vpop.f32.mrb[0].mxu0
  %v125 = vpop.f32.mrb[0].mxu0
  %126 = vdwg.mxu0
  %v127 = vmax.f32 %v122, 0.0
  %v128 = vmin.f32 %v127, 6.0
  %v129 = vpack.c.bf16 %v128, %v128
  %130 = vst [vmem:[%s3] sm:$0xf] %v129
  // Predicated region
  $region14: #{forward.30} parent=0 // pred_check
    _
  $region15: #{forward.30} parent=0 // pred_check_branch
    %132 = sbr.rel (0) target = $region17
  $region16: #{forward.30} parent=0 // pred_region
    _
  $region17: #{forward.30} parent=0 // pred_fallthru
    _
  // Predicated region
  $region18: #{forward.30} parent=0 // pred_check
    _
  $region19: #{forward.30} parent=0 // pred_check_branch
    %134 = sbr.rel (0) target = $region21
  $region20: #{forward.30} parent=0 // pred_region
    _
  $region21: #{forward.30} parent=0 // pred_fallthru
    _

// kernel: forward.28
$region0: #{forward.28}
  #allocation0 [shape = 'u32[]', space=smem, size = 0x4, offset = 0x4, fixed_abs, tag = 'smem constant byte address 0x4 - core index']
  #allocation1 [shape = 'u32[144,128]{1,0:T(1,128)}', space=vmem, size = 0x12000, scoped, tag = 'internal scratch']
  %s0 = inlined_call_operand.vmem [shape: bf16[8,640], index: 0, kind: input, shape index: {}]
  %s1 = inlined_call_operand.vmem [shape: bf16[640,128], index: 1, kind: input, shape index: {}]
  %s2 = inlined_call_operand.vmem [shape: f32[1,128], index: 2, kind: input, shape index: {}]
  %s3 = inlined_call_operand.vmem [shape: bf16[8,128], index: 3, kind: output, shape index: {}]
  %s4 = sld [smem:[#allocation0]]
  $region22: #{forward.28} parent=0
    _
  %s6 = ssub.s32 1, %s4
  %s7 = scalar_select 0, %s6, %s4
  // Predicated region
  $region2: #{forward.28} parent=0 // pred_check
    _
  $region3: #{forward.28} parent=0 // pred_check_branch
    %9 = sbr.rel (0) target = $region5
  $region4: #{forward.28} parent=0 // pred_region
    _
  $region5: #{forward.28} parent=0 // pred_fallthru
    _
  // Predicated region
  $region6: #{forward.28} parent=0 // pred_check
    _
  $region7: #{forward.28} parent=0 // pred_check_branch
    %11 = sbr.rel (0) target = $region9
  $region8: #{forward.28} parent=0 // pred_region
    _
  $region9: #{forward.28} parent=0 // pred_fallthru
    _
  // Predicated region
  $region10: #{forward.28} parent=0 // pred_check
    _
  $region11: #{forward.28} parent=0 // pred_check_branch
    %13 = sbr.rel (0) target = $region13
  $region12: #{forward.28} parent=0 // pred_region
    _
  $region13: #{forward.28} parent=0 // pred_fallthru
    _
  %v15 = vld [vmem:[%s0] sm:$0xff]
  %v16 = vld [vmem:[%s0 + $0x8] sm:$0xff]
  %v17 = vld [vmem:[%s0 + $0x10] sm:$0xf]
  %v18 = vld [vmem:[%s1] sm:$0xf]
  %v19 = vld [vmem:[%s1 + $0x4] sm:$0xf]
  %v20 = vld [vmem:[%s1 + $0x8] sm:$0xf]
  %v21 = vld [vmem:[%s1 + $0xc] sm:$0xf]
  %v22 = vld [vmem:[%s1 + $0x10] sm:$0xf]
  %v23 = vld [vmem:[%s1 + $0x14] sm:$0xf]
  %v24 = vld [vmem:[%s1 + $0x18] sm:$0xf]
  %v25 = vld [vmem:[%s1 + $0x1c] sm:$0xf]
  %v26 = vld [vmem:[%s1 + $0x20] sm:$0xf]
  %v27 = vld [vmem:[%s1 + $0x24] sm:$0xf]
  %v28 = vld [vmem:[%s1 + $0x28] sm:$0xf]
  %v29 = vld [vmem:[%s1 + $0x2c] sm:$0xf]
  %v30 = vld [vmem:[%s1 + $0x30] sm:$0xf]
  %v31 = vld [vmem:[%s1 + $0x34] sm:$0xf]
  %v32 = vld [vmem:[%s1 + $0x38] sm:$0xf]
  %v33 = vld [vmem:[%s1 + $0x3c] sm:$0xf]
  %v34 = vld [vmem:[%s1 + $0x40] sm:$0xf]
  %v35 = vld [vmem:[%s1 + $0x44] sm:$0xf]
  %v36 = vld [vmem:[%s1 + $0x48] sm:$0xf]
  %v37 = vld [vmem:[%s1 + $0x4c] sm:$0xf]
  %v38 = vld [vmem:[%s1 + $0x50] sm:$0xf]
  %v39 = vld [vmem:[%s1 + $0x54] sm:$0xf]
  %v40 = vld [vmem:[%s1 + $0x58] sm:$0xf]
  %v41 = vld [vmem:[%s1 + $0x5c] sm:$0xf]
  %v42 = vld [vmem:[%s1 + $0x60] sm:$0xf]
  %v43 = vld [vmem:[%s1 + $0x64] sm:$0xf]
  %v44 = vld [vmem:[%s1 + $0x68] sm:$0xf]
  %v45 = vld [vmem:[%s1 + $0x6c] sm:$0xf]
  %v46 = vld [vmem:[%s1 + $0x70] sm:$0xf]
  %v47 = vld [vmem:[%s1 + $0x74] sm:$0xf]
  %v48 = vld [vmem:[%s1 + $0x78] sm:$0xf]
  %v49 = vld [vmem:[%s1 + $0x7c] sm:$0xf]
  %v50 = vld [vmem:[%s1 + $0x80] sm:$0xf]
  %v51 = vld [vmem:[%s1 + $0x84] sm:$0xf]
  %v52 = vld [vmem:[%s1 + $0x88] sm:$0xf]
  %v53 = vld [vmem:[%s1 + $0x8c] sm:$0xf]
  %v54 = vld [vmem:[%s1 + $0x90] sm:$0xf]
  %v55 = vld [vmem:[%s1 + $0x94] sm:$0xf]
  %v56 = vld [vmem:[%s1 + $0x98] sm:$0xf]
  %v57 = vld [vmem:[%s1 + $0x9c] sm:$0xf]
  %v58 = vld [vmem:[%s1 + $0xa0] sm:$0xf]
  %v59 = vld [vmem:[%s1 + $0xa4] sm:$0xf]
  %v60 = vld [vmem:[%s1 + $0xa8] sm:$0xf]
  %v61 = vld [vmem:[%s1 + $0xac] sm:$0xf]
  %v62 = vld [vmem:[%s1 + $0xb0] sm:$0xf]
  %v63 = vld [vmem:[%s1 + $0xb4] sm:$0xf]
  %v64 = vld [vmem:[%s1 + $0xb8] sm:$0xf]
  %v65 = vld [vmem:[%s1 + $0xbc] sm:$0xf]
  %v66 = vld [vmem:[%s1 + $0xc0] sm:$0xf]
  %v67 = vld [vmem:[%s1 + $0xc4] sm:$0xf]
  %v68 = vld [vmem:[%s1 + $0xc8] sm:$0xf]
  %v69 = vld [vmem:[%s1 + $0xcc] sm:$0xf]
  %v70 = vld [vmem:[%s1 + $0xd0] sm:$0xf]
  %v71 = vld [vmem:[%s1 + $0xd4] sm:$0xf]
  %v72 = vld [vmem:[%s1 + $0xd8] sm:$0xf]
  %v73 = vld [vmem:[%s1 + $0xdc] sm:$0xf]
  %v74 = vld [vmem:[%s1 + $0xe0] sm:$0xf]
  %v75 = vld [vmem:[%s1 + $0xe4] sm:$0xf]
  %v76 = vld [vmem:[%s1 + $0xe8] sm:$0xf]
  %v77 = vld [vmem:[%s1 + $0xec] sm:$0xf]
  %v78 = vld [vmem:[%s1 + $0xf0] sm:$0xf]
  %v79 = vld [vmem:[%s1 + $0xf4] sm:$0xf]
  %v80 = vld [vmem:[%s1 + $0xf8] sm:$0xf]
  %v81 = vld [vmem:[%s1 + $0xfc] sm:$0xf]
  %v82 = vld [vmem:[%s1 + $0x100] sm:$0xf]
  %v83 = vld [vmem:[%s1 + $0x104] sm:$0xf]
  %v84 = vld [vmem:[%s1 + $0x108] sm:$0xf]
  %v85 = vld [vmem:[%s1 + $0x10c] sm:$0xf]
  %v86 = vld [vmem:[%s1 + $0x110] sm:$0xf]
  %v87 = vld [vmem:[%s1 + $0x114] sm:$0xf]
  %v88 = vld [vmem:[%s1 + $0x118] sm:$0xf]
  %v89 = vld [vmem:[%s1 + $0x11c] sm:$0xf]
  %v90 = vld [vmem:[%s1 + $0x120] sm:$0xf]
  %v91 = vld [vmem:[%s1 + $0x124] sm:$0xf]
  %v92 = vld [vmem:[%s1 + $0x128] sm:$0xf]
  %v93 = vld [vmem:[%s1 + $0x12c] sm:$0xf]
  %v94 = vld [vmem:[%s1 + $0x130] sm:$0xf]
  %v95 = vld [vmem:[%s1 + $0x134] sm:$0xf]
  %v96 = vld [vmem:[%s1 + $0x138] sm:$0xf]
  %v97 = vld [vmem:[%s1 + $0x13c] sm:$0xf]
  %v98 = vld [vmem:[%s2] sm:$0x1]
  %v100 = vlaneseq
  %v101 = vshrl.u32 %v100, 7
  %v102 = vsub.s32 0, %v101
  %v103 = vrot.slane %v98, %v102
  %v108 = vunpack.c.l.b16 %v15
  %v109 = vunpack.c.h.b16 %v15
  %v110 = vunpack.c.l.b16 %v16
  %v111 = vunpack.c.h.b16 %v16
  %v112 = vunpack.c.l.b16 %v17
  %v113 = vpack.c.b16 %v108, %v108
  %v114 = vpack.c.b16 %v109, %v109
  %v115 = vpack.c.b16 %v110, %v110
  %v116 = vpack.c.b16 %v111, %v111
  %v117 = vpack.c.b16 %v112, %v112
  %v203 = vunpack.c.l.b16 %v18
  %v204 = vunpack.c.l.b16 %v19
  %v205 = vunpack.c.l.b16 %v20
  %v206 = vunpack.c.l.b16 %v21
  %v207 = vunpack.c.l.b16 %v22
  %v208 = vunpack.c.l.b16 %v23
  %v209 = vunpack.c.l.b16 %v24
  %v210 = vunpack.c.l.b16 %v25
  %v211 = vunpack.c.l.b16 %v26
  %v212 = vunpack.c.l.b16 %v27
  %v213 = vunpack.c.l.b16 %v28
  %v214 = vunpack.c.l.b16 %v29
  %v215 = vunpack.c.l.b16 %v30
  %v216 = vunpack.c.l.b16 %v31
  %v217 = vunpack.c.l.b16 %v32
  %v218 = vunpack.c.l.b16 %v33
  %v219 = vunpack.c.l.b16 %v34
  %v220 = vunpack.c.l.b16 %v35
  %v221 = vunpack.c.l.b16 %v36
  %v222 = vunpack.c.l.b16 %v37
  %v223 = vunpack.c.l.b16 %v38
  %v224 = vunpack.c.l.b16 %v39
  %v225 = vunpack.c.l.b16 %v40
  %v226 = vunpack.c.l.b16 %v41
  %v227 = vunpack.c.l.b16 %v42
  %v228 = vunpack.c.l.b16 %v43
  %v229 = vunpack.c.l.b16 %v44
  %v230 = vunpack.c.l.b16 %v45
  %v231 = vunpack.c.l.b16 %v46
  %v232 = vunpack.c.l.b16 %v47
  %v233 = vunpack.c.l.b16 %v48
  %v234 = vunpack.c.l.b16 %v49
  %v235 = vunpack.c.l.b16 %v50
  %v236 = vunpack.c.l.b16 %v51
  %v237 = vunpack.c.l.b16 %v52
  %v238 = vunpack.c.l.b16 %v53
  %v239 = vunpack.c.l.b16 %v54
  %v240 = vunpack.c.l.b16 %v55
  %v241 = vunpack.c.l.b16 %v56
  %v242 = vunpack.c.l.b16 %v57
  %v243 = vunpack.c.l.b16 %v58
  %v244 = vunpack.c.l.b16 %v59
  %v245 = vunpack.c.l.b16 %v60
  %v246 = vunpack.c.l.b16 %v61
  %v247 = vunpack.c.l.b16 %v62
  %v248 = vunpack.c.l.b16 %v63
  %v249 = vunpack.c.l.b16 %v64
  %v250 = vunpack.c.l.b16 %v65
  %v251 = vunpack.c.l.b16 %v66
  %v252 = vunpack.c.l.b16 %v67
  %v253 = vunpack.c.l.b16 %v68
  %v254 = vunpack.c.l.b16 %v69
  %v255 = vunpack.c.l.b16 %v70
  %v256 = vunpack.c.l.b16 %v71
  %v257 = vunpack.c.l.b16 %v72
  %v258 = vunpack.c.l.b16 %v73
  %v259 = vunpack.c.l.b16 %v74
  %v260 = vunpack.c.l.b16 %v75
  %v261 = vunpack.c.l.b16 %v76
  %v262 = vunpack.c.l.b16 %v77
  %v263 = vunpack.c.l.b16 %v78
  %v264 = vunpack.c.l.b16 %v79
  %v265 = vunpack.c.l.b16 %v80
  %v266 = vunpack.c.l.b16 %v81
  %v267 = vunpack.c.l.b16 %v82
  %v268 = vunpack.c.l.b16 %v83
  %v269 = vunpack.c.l.b16 %v84
  %v270 = vunpack.c.l.b16 %v85
  %v271 = vunpack.c.l.b16 %v86
  %v272 = vunpack.c.l.b16 %v87
  %v273 = vunpack.c.l.b16 %v88
  %v274 = vunpack.c.l.b16 %v89
  %v275 = vunpack.c.l.b16 %v90
  %v276 = vunpack.c.l.b16 %v91
  %v277 = vunpack.c.l.b16 %v92
  %v278 = vunpack.c.l.b16 %v93
  %v279 = vunpack.c.l.b16 %v94
  %v280 = vunpack.c.l.b16 %v95
  %v281 = vunpack.c.l.b16 %v96
  %v282 = vunpack.c.l.b16 %v97
  %v283 = vpack.c.b16 %v204, %v203
  %v284 = vpack.c.b16 %v206, %v205
  %v285 = vpack.c.b16 %v208, %v207
  %v286 = vpack.c.b16 %v210, %v209
  %v287 = vpack.c.b16 %v212, %v211
  %v288 = vpack.c.b16 %v214, %v213
  %v289 = vpack.c.b16 %v216, %v215
  %v290 = vpack.c.b16 %v218, %v217
  %v291 = vpack.c.b16 %v220, %v219
  %v292 = vpack.c.b16 %v222, %v221
  %v293 = vpack.c.b16 %v224, %v223
  %v294 = vpack.c.b16 %v226, %v225
  %v295 = vpack.c.b16 %v228, %v227
  %v296 = vpack.c.b16 %v230, %v229
  %v297 = vpack.c.b16 %v232, %v231
  %v298 = vpack.c.b16 %v234, %v233
  %v299 = vpack.c.b16 %v236, %v235
  %v300 = vpack.c.b16 %v238, %v237
  %v301 = vpack.c.b16 %v240, %v239
  %v302 = vpack.c.b16 %v242, %v241
  %v303 = vpack.c.b16 %v244, %v243
  %v304 = vpack.c.b16 %v246, %v245
  %v305 = vpack.c.b16 %v248, %v247
  %v306 = vpack.c.b16 %v250, %v249
  %v307 = vpack.c.b16 %v252, %v251
  %v308 = vpack.c.b16 %v254, %v253
  %v309 = vpack.c.b16 %v256, %v255
  %v310 = vpack.c.b16 %v258, %v257
  %v311 = vpack.c.b16 %v260, %v259
  %v312 = vpack.c.b16 %v262, %v261
  %v313 = vpack.c.b16 %v264, %v263
  %v314 = vpack.c.b16 %v266, %v265
  %v315 = vpack.c.b16 %v268, %v267
  %v316 = vpack.c.b16 %v270, %v269
  %v317 = vpack.c.b16 %v272, %v271
  %v318 = vpack.c.b16 %v274, %v273
  %v319 = vpack.c.b16 %v276, %v275
  %v320 = vpack.c.b16 %v278, %v277
  %v321 = vpack.c.b16 %v280, %v279
  %v322 = vpack.c.b16 %v282, %v281
  %363 = vmatprep.subr.bf16.mxu0 0
  %364 = vmatpush1.bf16.msra.mxu0 %v283
  %365 = vmatprep.subr.bf16.mxu0 0
  %366 = vmatpush1.bf16.msra.mxu0 %v284
  %367 = vmatprep.subr.bf16.mxu0 0
  %368 = vmatpush1.bf16.msra.mxu0 %v285
  %369 = vmatprep.subr.bf16.mxu0 0
  %370 = vmatpush1.bf16.msra.mxu0 %v286
  %371 = vmatprep.subr.bf16.mxu0 0
  %372 = vmatpush1.bf16.msra.mxu0 %v287
  %373 = vmatprep.subr.bf16.mxu0 0
  %374 = vmatpush1.bf16.msra.mxu0 %v288
  %375 = vmatprep.subr.bf16.mxu0 0
  %376 = vmatpush1.bf16.msra.mxu0 %v289
  %377 = vmatprep.subr.bf16.mxu0 0
  %378 = vmatpush1.bf16.msra.mxu0 %v290
  %379 = vmatprep.subr.bf16.mxu0 0
  %380 = vmatpush1.bf16.msra.mxu0 %v291
  %381 = vmatprep.subr.bf16.mxu0 0
  %382 = vmatpush1.bf16.msra.mxu0 %v292
  %383 = vmatprep.subr.bf16.mxu0 0
  %384 = vmatpush1.bf16.msra.mxu0 %v293
  %385 = vmatprep.subr.bf16.mxu0 0
  %386 = vmatpush1.bf16.msra.mxu0 %v294
  %387 = vmatprep.subr.bf16.mxu0 0
  %388 = vmatpush1.bf16.msra.mxu0 %v295
  %389 = vmatprep.subr.bf16.mxu0 0
  %390 = vmatpush1.bf16.msra.mxu0 %v296
  %391 = vmatprep.subr.bf16.mxu0 0
  %392 = vmatpush1.bf16.msra.mxu0 %v297
  %393 = vmatprep.subr.bf16.mxu0 0
  %394 = vmatpush1.bf16.msra.mxu0 %v298
  %395 = vmatprep.mubr.bf16.mxu0 %v114
  %396 = vmatmul.mubr.bf16.gmra.mrb[0].mxu0 %v113
  %v397 = vpop.f32.mrb[0].mxu0
  %v398 = vadd.f32 %v103, %v397
  %v399 = vpop.f32.mrb[0].mxu0
  %v400 = vpop.f32.mrb[0].mxu0
  %v401 = vpop.f32.mrb[0].mxu0
  %402 = vdwg.mxu0
  %403 = vmatprep.subr.bf16.mxu0 0
  %404 = vmatpush1.bf16.msra.mxu0 %v299
  %405 = vmatprep.subr.bf16.mxu0 0
  %406 = vmatpush1.bf16.msra.mxu0 %v300
  %407 = vmatprep.subr.bf16.mxu0 0
  %408 = vmatpush1.bf16.msra.mxu0 %v301
  %409 = vmatprep.subr.bf16.mxu0 0
  %410 = vmatpush1.bf16.msra.mxu0 %v302
  %411 = vmatprep.subr.bf16.mxu0 0
  %412 = vmatpush1.bf16.msra.mxu0 %v303
  %413 = vmatprep.subr.bf16.mxu0 0
  %414 = vmatpush1.bf16.msra.mxu0 %v304
  %415 = vmatprep.subr.bf16.mxu0 0
  %416 = vmatpush1.bf16.msra.mxu0 %v305
  %417 = vmatprep.subr.bf16.mxu0 0
  %418 = vmatpush1.bf16.msra.mxu0 %v306
  %419 = vmatprep.subr.bf16.mxu0 0
  %420 = vmatpush1.bf16.msra.mxu0 %v307
  %421 = vmatprep.subr.bf16.mxu0 0
  %422 = vmatpush1.bf16.msra.mxu0 %v308
  %423 = vmatprep.subr.bf16.mxu0 0
  %424 = vmatpush1.bf16.msra.mxu0 %v309
  %425 = vmatprep.subr.bf16.mxu0 0
  %426 = vmatpush1.bf16.msra.mxu0 %v310
  %427 = vmatprep.subr.bf16.mxu0 0
  %428 = vmatpush1.bf16.msra.mxu0 %v311
  %429 = vmatprep.subr.bf16.mxu0 0
  %430 = vmatpush1.bf16.msra.mxu0 %v312
  %431 = vmatprep.subr.bf16.mxu0 0
  %432 = vmatpush1.bf16.msra.mxu0 %v313
  %433 = vmatprep.subr.bf16.mxu0 0
  %434 = vmatpush1.bf16.msra.mxu0 %v314
  %435 = vmatprep.mubr.bf16.mxu0 %v116
  %436 = vmatmul.mubr.bf16.gmra.mrb[0].mxu0 %v115
  %v437 = vpop.f32.mrb[0].mxu0
  %v438 = vadd.f32 %v398, %v437
  %v439 = vpop.f32.mrb[0].mxu0
  %v440 = vpop.f32.mrb[0].mxu0
  %v441 = vpop.f32.mrb[0].mxu0
  %442 = vdwg.mxu0
  %443 = vmatprep.subr.bf16.mxu0 0
  %444 = vmatpush1.bf16.msra.mxu0 %v315
  %445 = vmatprep.subr.bf16.mxu0 0
  %446 = vmatpush1.bf16.msra.mxu0 %v316
  %447 = vmatprep.subr.bf16.mxu0 0
  %448 = vmatpush1.bf16.msra.mxu0 %v317
  %449 = vmatprep.subr.bf16.mxu0 0
  %450 = vmatpush1.bf16.msra.mxu0 %v318
  %451 = vmatprep.subr.bf16.mxu0 0
  %452 = vmatpush1.bf16.msra.mxu0 %v319
  %453 = vmatprep.subr.bf16.mxu0 0
  %454 = vmatpush1.bf16.msra.mxu0 %v320
  %455 = vmatprep.subr.bf16.mxu0 0
  %456 = vmatpush1.bf16.msra.mxu0 %v321
  %457 = vmatprep.subr.bf16.mxu0 0
  %458 = vmatpush1.bf16.msra.mxu0 %v322
  %459 = vmatprep.subr.bf16.mxu0 0
  %460 = vmatpush1.bf16.msra.mxu0 0
  %461 = vmatprep.subr.bf16.mxu0 0
  %462 = vmatpush1.bf16.msra.mxu0 0
  %463 = vmatprep.subr.bf16.mxu0 0
  %464 = vmatpush1.bf16.msra.mxu0 0
  %465 = vmatprep.subr.bf16.mxu0 0
  %466 = vmatpush1.bf16.msra.mxu0 0
  %467 = vmatprep.subr.bf16.mxu0 0
  %468 = vmatpush1.bf16.msra.mxu0 0
  %469 = vmatprep.subr.bf16.mxu0 0
  %470 = vmatpush1.bf16.msra.mxu0 0
  %471 = vmatprep.subr.bf16.mxu0 0
  %472 = vmatpush1.bf16.msra.mxu0 0
  %473 = vmatprep.subr.bf16.mxu0 0
  %474 = vmatpush1.bf16.msra.mxu0 0
  %475 = vmatprep.mubr.bf16.mxu0 0
  %476 = vmatmul.mubr.bf16.gmra.mrb[0].mxu0 %v117
  %v477 = vpop.f32.mrb[0].mxu0
  %v478 = vadd.f32 %v438, %v477
  %v479 = vpop.f32.mrb[0].mxu0
  %v480 = vpop.f32.mrb[0].mxu0
  %v481 = vpop.f32.mrb[0].mxu0
  %482 = vdwg.mxu0
  %v483 = vmax.f32 %v478, 0.0
  %v484 = vmin.f32 %v483, 6.0
  %v485 = vpack.c.bf16 %v484, %v484
  %486 = vst [vmem:[%s3] sm:$0xf] %v485
  // Predicated region
  $region14: #{forward.28} parent=0 // pred_check
    _
  $region15: #{forward.28} parent=0 // pred_check_branch
    %488 = sbr.rel (0) target = $region17
  $region16: #{forward.28} parent=0 // pred_region
    _
  $region17: #{forward.28} parent=0 // pred_fallthru
    _
  // Predicated region
  $region18: #{forward.28} parent=0 // pred_check
    _
  $region19: #{forward.28} parent=0 // pred_check_branch
    %490 = sbr.rel (0) target = $region21
  $region20: #{forward.28} parent=0 // pred_region
    _
  $region21: #{forward.28} parent=0 // pred_fallthru
    _

// kernel: forward.32
$region0: #{forward.32}
  #allocation0 [shape = 'u32[]', space=smem, size = 0x4, offset = 0x4, fixed_abs, tag = 'smem constant byte address 0x4 - core index']
  #allocation1 [shape = 'u32[144,128]{1,0:T(1,128)}', space=vmem, size = 0x12000, scoped, tag = 'internal scratch']
  %s0 = inlined_call_operand.vmem [shape: bf16[8,256], index: 0, kind: input, shape index: {}]
  %s1 = inlined_call_operand.vmem [shape: bf16[256,256], index: 1, kind: input, shape index: {}]
  %s2 = inlined_call_operand.vmem [shape: f32[1,256], index: 2, kind: input, shape index: {}]
  %s3 = inlined_call_operand.vmem [shape: bf16[8,256], index: 3, kind: output, shape index: {}]
  %s4 = sld [smem:[#allocation0]]
  $region22: #{forward.32} parent=0
    _
  %s6 = ssub.s32 1, %s4
  %s7 = scalar_select 0, %s6, %s4
  // Predicated region
  $region2: #{forward.32} parent=0 // pred_check
    _
  $region3: #{forward.32} parent=0 // pred_check_branch
    %9 = sbr.rel (0) target = $region5
  $region4: #{forward.32} parent=0 // pred_region
    _
  $region5: #{forward.32} parent=0 // pred_fallthru
    _
  // Predicated region
  $region6: #{forward.32} parent=0 // pred_check
    _
  $region7: #{forward.32} parent=0 // pred_check_branch
    %11 = sbr.rel (0) target = $region9
  $region8: #{forward.32} parent=0 // pred_region
    _
  $region9: #{forward.32} parent=0 // pred_fallthru
    _
  // Predicated region
  $region10: #{forward.32} parent=0 // pred_check
    _
  $region11: #{forward.32} parent=0 // pred_check_branch
    %13 = sbr.rel (0) target = $region13
  $region12: #{forward.32} parent=0 // pred_region
    _
  $region13: #{forward.32} parent=0 // pred_fallthru
    _
  %v14 = vld [vmem:[%s0] sm:$0xff]
  %v15 = vld [vmem:[%s1] sm:$0xff]
  %v16 = vld [vmem:[%s1 + $0x8] sm:$0xff]
  %v17 = vld [vmem:[%s1 + $0x10] sm:$0xff]
  %v18 = vld [vmem:[%s1 + $0x18] sm:$0xff]
  %v19 = vld [vmem:[%s1 + $0x20] sm:$0xff]
  %v20 = vld [vmem:[%s1 + $0x28] sm:$0xff]
  %v21 = vld [vmem:[%s1 + $0x30] sm:$0xff]
  %v22 = vld [vmem:[%s1 + $0x38] sm:$0xff]
  %v23 = vld [vmem:[%s1 + $0x40] sm:$0xff]
  %v24 = vld [vmem:[%s1 + $0x48] sm:$0xff]
  %v25 = vld [vmem:[%s1 + $0x50] sm:$0xff]
  %v26 = vld [vmem:[%s1 + $0x58] sm:$0xff]
  %v27 = vld [vmem:[%s1 + $0x60] sm:$0xff]
  %v28 = vld [vmem:[%s1 + $0x68] sm:$0xff]
  %v29 = vld [vmem:[%s1 + $0x70] sm:$0xff]
  %v30 = vld [vmem:[%s1 + $0x78] sm:$0xff]
  %v31 = vld [vmem:[%s1 + $0x80] sm:$0xff]
  %v32 = vld [vmem:[%s1 + $0x88] sm:$0xff]
  %v33 = vld [vmem:[%s1 + $0x90] sm:$0xff]
  %v34 = vld [vmem:[%s1 + $0x98] sm:$0xff]
  %v35 = vld [vmem:[%s1 + $0xa0] sm:$0xff]
  %v36 = vld [vmem:[%s1 + $0xa8] sm:$0xff]
  %v37 = vld [vmem:[%s1 + $0xb0] sm:$0xff]
  %v38 = vld [vmem:[%s1 + $0xb8] sm:$0xff]
  %v39 = vld [vmem:[%s1 + $0xc0] sm:$0xff]
  %v40 = vld [vmem:[%s1 + $0xc8] sm:$0xff]
  %v41 = vld [vmem:[%s1 + $0xd0] sm:$0xff]
  %v42 = vld [vmem:[%s1 + $0xd8] sm:$0xff]
  %v43 = vld [vmem:[%s1 + $0xe0] sm:$0xff]
  %v44 = vld [vmem:[%s1 + $0xe8] sm:$0xff]
  %v45 = vld [vmem:[%s1 + $0xf0] sm:$0xff]
  %v46 = vld [vmem:[%s1 + $0xf8] sm:$0xff]
  %v47 = vld [vmem:[%s2] sm:$0x3]
  %v49 = vlaneseq
  %v50 = vshrl.u32 %v49, 7
  %v51 = vsub.s32 0, %v50
  %v52 = vrot.slane %v47, %v51
  %v53 = vlaneseq
  %v54 = vshrl.u32 %v53, 7
  %v55 = vsub.s32 1, %v54
  %v56 = vrot.slane %v47, %v55
  %v60 = vunpack.c.l.b16 %v14
  %v61 = vunpack.c.h.b16 %v14
  %v62 = vpack.c.b16 %v60, %v60
  %v63 = vpack.c.b16 %v61, %v61
  %v98 = vunpack.c.l.b16 %v15
  %v99 = vunpack.c.h.b16 %v15
  %v100 = vunpack.c.l.b16 %v16
  %v101 = vunpack.c.h.b16 %v16
  %v102 = vunpack.c.l.b16 %v17
  %v103 = vunpack.c.h.b16 %v17
  %v104 = vunpack.c.l.b16 %v18
  %v105 = vunpack.c.h.b16 %v18
  %v106 = vunpack.c.l.b16 %v19
  %v107 = vunpack.c.h.b16 %v19
  %v108 = vunpack.c.l.b16 %v20
  %v109 = vunpack.c.h.b16 %v20
  %v110 = vunpack.c.l.b16 %v21
  %v111 = vunpack.c.h.b16 %v21
  %v112 = vunpack.c.l.b16 %v22
  %v113 = vunpack.c.h.b16 %v22
  %v114 = vunpack.c.l.b16 %v23
  %v115 = vunpack.c.h.b16 %v23
  %v116 = vunpack.c.l.b16 %v24
  %v117 = vunpack.c.h.b16 %v24
  %v118 = vunpack.c.l.b16 %v25
  %v119 = vunpack.c.h.b16 %v25
  %v120 = vunpack.c.l.b16 %v26
  %v121 = vunpack.c.h.b16 %v26
  %v122 = vunpack.c.l.b16 %v27
  %v123 = vunpack.c.h.b16 %v27
  %v124 = vunpack.c.l.b16 %v28
  %v125 = vunpack.c.h.b16 %v28
  %v126 = vunpack.c.l.b16 %v29
  %v127 = vunpack.c.h.b16 %v29
  %v128 = vunpack.c.l.b16 %v30
  %v129 = vunpack.c.h.b16 %v30
  %v130 = vunpack.c.l.b16 %v31
  %v131 = vunpack.c.h.b16 %v31
  %v132 = vunpack.c.l.b16 %v32
  %v133 = vunpack.c.h.b16 %v32
  %v134 = vunpack.c.l.b16 %v33
  %v135 = vunpack.c.h.b16 %v33
  %v136 = vunpack.c.l.b16 %v34
  %v137 = vunpack.c.h.b16 %v34
  %v138 = vunpack.c.l.b16 %v35
  %v139 = vunpack.c.h.b16 %v35
  %v140 = vunpack.c.l.b16 %v36
  %v141 = vunpack.c.h.b16 %v36
  %v142 = vunpack.c.l.b16 %v37
  %v143 = vunpack.c.h.b16 %v37
  %v144 = vunpack.c.l.b16 %v38
  %v145 = vunpack.c.h.b16 %v38
  %v146 = vunpack.c.l.b16 %v39
  %v147 = vunpack.c.h.b16 %v39
  %v148 = vunpack.c.l.b16 %v40
  %v149 = vunpack.c.h.b16 %v40
  %v150 = vunpack.c.l.b16 %v41
  %v151 = vunpack.c.h.b16 %v41
  %v152 = vunpack.c.l.b16 %v42
  %v153 = vunpack.c.h.b16 %v42
  %v154 = vunpack.c.l.b16 %v43
  %v155 = vunpack.c.h.b16 %v43
  %v156 = vunpack.c.l.b16 %v44
  %v157 = vunpack.c.h.b16 %v44
  %v158 = vunpack.c.l.b16 %v45
  %v159 = vunpack.c.h.b16 %v45
  %v160 = vunpack.c.l.b16 %v46
  %v161 = vunpack.c.h.b16 %v46
  %v162 = vpack.c.b16 %v100, %v98
  %v163 = vpack.c.b16 %v101, %v99
  %v164 = vpack.c.b16 %v104, %v102
  %v165 = vpack.c.b16 %v105, %v103
  %v166 = vpack.c.b16 %v108, %v106
  %v167 = vpack.c.b16 %v109, %v107
  %v168 = vpack.c.b16 %v112, %v110
  %v169 = vpack.c.b16 %v113, %v111
  %v170 = vpack.c.b16 %v116, %v114
  %v171 = vpack.c.b16 %v117, %v115
  %v172 = vpack.c.b16 %v120, %v118
  %v173 = vpack.c.b16 %v121, %v119
  %v174 = vpack.c.b16 %v124, %v122
  %v175 = vpack.c.b16 %v125, %v123
  %v176 = vpack.c.b16 %v128, %v126
  %v177 = vpack.c.b16 %v129, %v127
  %v178 = vpack.c.b16 %v132, %v130
  %v179 = vpack.c.b16 %v133, %v131
  %v180 = vpack.c.b16 %v136, %v134
  %v181 = vpack.c.b16 %v137, %v135
  %v182 = vpack.c.b16 %v140, %v138
  %v183 = vpack.c.b16 %v141, %v139
  %v184 = vpack.c.b16 %v144, %v142
  %v185 = vpack.c.b16 %v145, %v143
  %v186 = vpack.c.b16 %v148, %v146
  %v187 = vpack.c.b16 %v149, %v147
  %v188 = vpack.c.b16 %v152, %v150
  %v189 = vpack.c.b16 %v153, %v151
  %v190 = vpack.c.b16 %v156, %v154
  %v191 = vpack.c.b16 %v157, %v155
  %v192 = vpack.c.b16 %v160, %v158
  %v193 = vpack.c.b16 %v161, %v159
  %226 = vmatprep.subr.bf16.mxu0 %v163
  %227 = vmatpush1.bf16.msra.mxu0 %v162
  %228 = vmatprep.subr.bf16.mxu0 %v165
  %229 = vmatpush1.bf16.msra.mxu0 %v164
  %230 = vmatprep.subr.bf16.mxu0 %v167
  %231 = vmatpush1.bf16.msra.mxu0 %v166
  %232 = vmatprep.subr.bf16.mxu0 %v169
  %233 = vmatpush1.bf16.msra.mxu0 %v168
  %234 = vmatprep.subr.bf16.mxu0 %v171
  %235 = vmatpush1.bf16.msra.mxu0 %v170
  %236 = vmatprep.subr.bf16.mxu0 %v173
  %237 = vmatpush1.bf16.msra.mxu0 %v172
  %238 = vmatprep.subr.bf16.mxu0 %v175
  %239 = vmatpush1.bf16.msra.mxu0 %v174
  %240 = vmatprep.subr.bf16.mxu0 %v177
  %241 = vmatpush1.bf16.msra.mxu0 %v176
  %242 = vmatprep.subr.bf16.mxu0 %v179
  %243 = vmatpush1.bf16.msra.mxu0 %v178
  %244 = vmatprep.subr.bf16.mxu0 %v181
  %245 = vmatpush1.bf16.msra.mxu0 %v180
  %246 = vmatprep.subr.bf16.mxu0 %v183
  %247 = vmatpush1.bf16.msra.mxu0 %v182
  %248 = vmatprep.subr.bf16.mxu0 %v185
  %249 = vmatpush1.bf16.msra.mxu0 %v184
  %250 = vmatprep.subr.bf16.mxu0 %v187
  %251 = vmatpush1.bf16.msra.mxu0 %v186
  %252 = vmatprep.subr.bf16.mxu0 %v189
  %253 = vmatpush1.bf16.msra.mxu0 %v188
  %254 = vmatprep.subr.bf16.mxu0 %v191
  %255 = vmatpush1.bf16.msra.mxu0 %v190
  %256 = vmatprep.subr.bf16.mxu0 %v193
  %257 = vmatpush1.bf16.msra.mxu0 %v192
  %258 = vmatprep.mubr.bf16.mxu0 %v63
  %259 = vmatmul.mubr.bf16.gmra.mrb[0].mxu0 %v62
  %v260 = vpop.f32.mrb[0].mxu0
  %v261 = vadd.f32 %v52, %v260
  %v262 = vpop.f32.mrb[0].mxu0
  %v263 = vadd.f32 %v56, %v262
  %v264 = vpop.f32.mrb[0].mxu0
  %v265 = vpop.f32.mrb[0].mxu0
  %266 = vdwg.mxu0
  %v267 = vmax.f32 %v261, 0.0
  %v268 = vmax.f32 %v263, 0.0
  %v269 = vmin.f32 %v267, 6.0
  %v270 = vmin.f32 %v268, 6.0
  %v271 = vpack.c.bf16 %v269, %v269
  %v272 = vpack.c.bf16 %v270, %v270
  %v275 = vunpack.c.l.b16 %v271
  %v276 = vunpack.c.l.b16 %v272
  %v277 = vpack.c.b16 %v276, %v275
  %279 = vst [vmem:[%s3] sm:$0xff] %v277
  // Predicated region
  $region14: #{forward.32} parent=0 // pred_check
    _
  $region15: #{forward.32} parent=0 // pred_check_branch
    %281 = sbr.rel (0) target = $region17
  $region16: #{forward.32} parent=0 // pred_region
    _
  $region17: #{forward.32} parent=0 // pred_fallthru
    _
  // Predicated region
  $region18: #{forward.32} parent=0 // pred_check
    _
  $region19: #{forward.32} parent=0 // pred_check_branch
    %283 = sbr.rel (0) target = $region21
  $region20: #{forward.32} parent=0 // pred_region
    _
  $region21: #{forward.32} parent=0 // pred_fallthru
    _

// kernel: forward.33
$region0: #{forward.33}
  #allocation0 [shape = 'u32[]', space=smem, size = 0x4, offset = 0x4, fixed_abs, tag = 'smem constant byte address 0x4 - core index']
  #allocation1 [shape = 'u32[144,128]{1,0:T(1,128)}', space=vmem, size = 0x12000, scoped, tag = 'internal scratch']
  %s0 = inlined_call_operand.vmem [shape: bf16[8,256], index: 0, kind: input, shape index: {}]
  %s1 = inlined_call_operand.vmem [shape: bf16[256,384], index: 1, kind: input, shape index: {}]
  %s2 = inlined_call_operand.vmem [shape: f32[1,384], index: 2, kind: input, shape index: {}]
  %s3 = inlined_call_operand.vmem [shape: bf16[8,384], index: 3, kind: output, shape index: {}]
  %s4 = sld [smem:[#allocation0]]
  $region86: #{forward.33} parent=0
    _
  %s6 = ssub.s32 1, %s4
  %s7 = scalar_select 0, %s6, %s4
  $region1: #{forward.33} parent=0
    #allocation2 [shape = 'u8[131072]{0}', space=vmem, size = 0x20000, scoped, tag = 'input window, operand 1']
    loop: start=0, step=1, limit=5
    $region2: #{forward.33} parent=1 // loop_pre_header
      _
    $region3: #{forward.33} parent=1 // loop_header
      %s9 = sphi 0, %s13
      %p10 = scmp.ge.s32.totalorder %s9, 5
      %s17 = sphi 0, %s17
      %s19 = sphi 0, %s17
      %s20 = sphi 0, %s19
      %s34 = sphi 0, %s20
      %s40 = sphi 0, %s42
      %s43 = sphi 0, %s40
      %s44 = sphi 0, %s43
      %s60 = sphi 0, %s44
      %s66 = sphi 0, %s68
      %s69 = sphi 0, %s66
      %s70 = sphi 0, %s69
      %s86 = sphi 0, %s70
      %s92 = sphi 0, %s94
      %s95 = sphi 0, %s92
      %s96 = sphi 0, %s95
      %s112 = sphi 0, %s96
    $region4: #{forward.33} parent=1 // loop_header_branch
      %12 = sbr.rel (%p10) target = $region8
    $region5: #{forward.33} parent=1 // loop_body
      %s14 = ssub.s32 %s9, 1
      %s15 = ssub.s32 %s9, 2
      %s16 = sadd.s32 %s9, 1
      %s18 = sadd.s32 %s17, 1
      %p21 = scmp.eq.s32.totalorder %s9, 2
      %p22 = scmp.ne.s32.totalorder %s17, %s19
      %p23 = scmp.eq.s32.totalorder %s9, 0
      %p24 = por %p22, %p23
      %p25 = scmp.ne.s32.totalorder %s17, %s19
      %p26 = scmp.eq.s32.totalorder %s14, 2
      %p27 = por %p25, %p26
      %p28 = scmp.ne.s32.totalorder %s19, %s20
      %p29 = scmp.eq.s32.totalorder %s14, 0
      %p30 = por %p28, %p29
      %p31 = scmp.ne.s32.totalorder %s19, %s20
      %p32 = scmp.eq.s32.totalorder %s15, 2
      %p33 = por %p31, %p32
      %p35 = scmp.ne.s32.totalorder %s20, %s34
      %p36 = scmp.eq.s32.totalorder %s15, 0
      %p37 = por %p35, %p36
      %s38 = ssub.s32 %s9, %s16
      %p39 = scmp.eq.s32.totalorder %s38, 0
      %s41 = sadd.s32 %s40, 1
      %s42 = scalar_select %p39, %s40, %s41
      %p45 = pneg %p39
      %p46 = scmp.eq.s32.totalorder %s9, 2
      %p47 = por %p45, %p46
      %p48 = scmp.ne.s32.totalorder %s40, %s43
      %p49 = scmp.eq.s32.totalorder %s9, 0
      %p50 = por %p48, %p49
      %p51 = scmp.ne.s32.totalorder %s40, %s43
      %p52 = scmp.eq.s32.totalorder %s14, 2
      %p53 = por %p51, %p52
      %p54 = scmp.ne.s32.totalorder %s43, %s44
      %p55 = scmp.eq.s32.totalorder %s14, 0
      %p56 = por %p54, %p55
      %p57 = scmp.ne.s32.totalorder %s43, %s44
      %p58 = scmp.eq.s32.totalorder %s15, 2
      %p59 = por %p57, %p58
      %p61 = scmp.ne.s32.totalorder %s44, %s60
      %p62 = scmp.eq.s32.totalorder %s15, 0
      %p63 = por %p61, %p62
      %s64 = ssub.s32 %s9, %s16
      %p65 = scmp.eq.s32.totalorder %s64, 0
      %s67 = sadd.s32 %s66, 1
      %s68 = scalar_select %p65, %s66, %s67
      %p71 = pneg %p65
      %p72 = scmp.eq.s32.totalorder %s9, 2
      %p73 = por %p71, %p72
      %p74 = scmp.ne.s32.totalorder %s66, %s69
      %p75 = scmp.eq.s32.totalorder %s9, 0
      %p76 = por %p74, %p75
      %p77 = scmp.ne.s32.totalorder %s66, %s69
      %p78 = scmp.eq.s32.totalorder %s14, 2
      %p79 = por %p77, %p78
      %p80 = scmp.ne.s32.totalorder %s69, %s70
      %p81 = scmp.eq.s32.totalorder %s14, 0
      %p82 = por %p80, %p81
      %p83 = scmp.ne.s32.totalorder %s69, %s70
      %p84 = scmp.eq.s32.totalorder %s15, 2
      %p85 = por %p83, %p84
      %p87 = scmp.ne.s32.totalorder %s70, %s86
      %p88 = scmp.eq.s32.totalorder %s15, 0
      %p89 = por %p87, %p88
      %s90 = ssub.s32 %s9, %s16
      %p91 = scmp.eq.s32.totalorder %s90, 0
      %s93 = sadd.s32 %s92, 1
      %s94 = scalar_select %p91, %s92, %s93
      %p97 = pneg %p91
      %p98 = scmp.eq.s32.totalorder %s9, 2
      %p99 = por %p97, %p98
      %p100 = scmp.ne.s32.totalorder %s92, %s95
      %p101 = scmp.eq.s32.totalorder %s9, 0
      %p102 = por %p100, %p101
      %p103 = scmp.ne.s32.totalorder %s92, %s95
      %p104 = scmp.eq.s32.totalorder %s14, 2
      %p105 = por %p103, %p104
      %p106 = scmp.ne.s32.totalorder %s95, %s96
      %p107 = scmp.eq.s32.totalorder %s14, 0
      %p108 = por %p106, %p107
      %p109 = scmp.ne.s32.totalorder %s95, %s96
      %p110 = scmp.eq.s32.totalorder %s15, 2
      %p111 = por %p109, %p110
      %p113 = scmp.ne.s32.totalorder %s96, %s112
      %p114 = scmp.eq.s32.totalorder %s15, 0
      %p115 = por %p113, %p114
      %p116 = scmp.le.s32.totalorder 1, %s9
      %p117 = scmp.lt.s32.totalorder %s9, 4
      %p118 = pnand %p116, %p117
      %p119 = pneg %p118
      // Predicated region
      $region9: #{forward.33} parent=5 // pred_check
        _
      $region10: #{forward.33} parent=5 // pred_check_branch
        %121 = sbr.rel (%p118) target = $region12
      $region11: #{forward.33} parent=5 // pred_region
        %s122 = ssub.s32 %s9, 1
        // Predicated region
        $region13: #{forward.33} parent=11 // pred_check
          %p123 = pneg %p30
        $region14: #{forward.33} parent=11 // pred_check_branch
          %125 = sbr.rel (%p123) target = $region16
        $region15: #{forward.33} parent=11 // pred_region
          _
        $region16: #{forward.33} parent=11 // pred_fallthru
          _
      $region12: #{forward.33} parent=5 // pred_fallthru
        _
      %p126 = scmp.lt.s32.totalorder %s9, 3
      // Predicated region
      $region17: #{forward.33} parent=5 // pred_check
        %p127 = pneg %p126
      $region18: #{forward.33} parent=5 // pred_check_branch
        %129 = sbr.rel (%p127) target = $region20
      $region19: #{forward.33} parent=5 // pred_region
        // Predicated region
        $region21: #{forward.33} parent=19 // pred_check
          %p130 = pneg %p50
        $region22: #{forward.33} parent=19 // pred_check_branch
          %132 = sbr.rel (%p130) target = $region24
        $region23: #{forward.33} parent=19 // pred_region
          %s133 = sand.u32 %s40, 1
          %s134 = sand.u32 %s40, 1
          %s135 = smul.addr %s134, 128
          %s136 = scalar_lea.vmem [#allocation2], %s135
          %s137 = smul.addr %s9, 4
          %s138 = scalar_lea.vmem %s1, %s137
          // Predicated region
          $region25: #{forward.33} parent=23 // pred_check
            _
          $region26: #{forward.33} parent=23 // pred_check_branch
            %140 = sbr.rel (0) target = $region28
          $region27: #{forward.33} parent=23 // pred_region
            // Predicated region
            $region29: #{forward.33} parent=27 // pred_check
              _
            $region30: #{forward.33} parent=27 // pred_check_branch
              %142 = sbr.rel target = $region32
            $region31: #{forward.33} parent=27 // pred_region
              // Predicated region
              $region44: #{forward.33} parent=31 // pred_check
                _
              $region45: #{forward.33} parent=31 // pred_check_branch
                %219 = sbr.rel (0) target = $region47
              $region46: #{forward.33} parent=31 // pred_region
                loop: start=0, step=1, limit=1
                $region48: #{forward.33} parent=46 // loop_pre_header
                  _
                $region49: #{forward.33} parent=46 // loop_header
                  %s221 = sphi 0, %s225
                  %p222 = scmp.ge.s32.totalorder %s221, 1
                  %s226 = sphi %s138, %s138
                  %s227 = sphi %s136, %s136
                $region50: #{forward.33} parent=46 // loop_header_branch
                  %224 = sbr.rel (%p222) target = $region54
                $region51: #{forward.33} parent=46 // loop_body
                  _
                $region52: #{forward.33} parent=46 // loop_footer
                  %s225 = sadd.s32 1, %s221
                $region53: #{forward.33} parent=46 // loop_footer_branch
                  %220 = sbr.rel target = $region49
                $region54: #{forward.33} parent=46 // loop_exit
                  _
                loop: start=0, step=1, limit=1
                $region55: #{forward.33} parent=46 // loop_pre_header
                  _
                $region56: #{forward.33} parent=46 // loop_header
                  %s230 = sphi 0, %s234
                  %p231 = scmp.ge.s32.totalorder %s230, 1
                  %s235 = sphi %s138, %s138
                  %s236 = sphi %s136, %s136
                $region57: #{forward.33} parent=46 // loop_header_branch
                  %233 = sbr.rel (%p231) target = $region61
                $region58: #{forward.33} parent=46 // loop_body
                  %v237 = vld [vmem:[%s235] sm:$0xf]
                  %238 = vst [vmem:[%s236] sm:$0xf] %v237
                  %v239 = vld [vmem:[%s235 + $0xc] sm:$0xf]
                  %240 = vst [vmem:[%s236 + $0x4] sm:$0xf] %v239
                  %v241 = vld [vmem:[%s235 + $0x18] sm:$0xf]
                  %242 = vst [vmem:[%s236 + $0x8] sm:$0xf] %v241
                  %v243 = vld [vmem:[%s235 + $0x24] sm:$0xf]
                  %244 = vst [vmem:[%s236 + $0xc] sm:$0xf] %v243
                  %v245 = vld [vmem:[%s235 + $0x30] sm:$0xf]
                  %246 = vst [vmem:[%s236 + $0x10] sm:$0xf] %v245
                  %v247 = vld [vmem:[%s235 + $0x3c] sm:$0xf]
                  %248 = vst [vmem:[%s236 + $0x14] sm:$0xf] %v247
                  %v249 = vld [vmem:[%s235 + $0x48] sm:$0xf]
                  %250 = vst [vmem:[%s236 + $0x18] sm:$0xf] %v249
                  %v251 = vld [vmem:[%s235 + $0x54] sm:$0xf]
                  %252 = vst [vmem:[%s236 + $0x1c] sm:$0xf] %v251
                  %v253 = vld [vmem:[%s235 + $0x60] sm:$0xf]
                  %254 = vst [vmem:[%s236 + $0x20] sm:$0xf] %v253
                  %v255 = vld [vmem:[%s235 + $0x6c] sm:$0xf]
                  %256 = vst [vmem:[%s236 + $0x24] sm:$0xf] %v255
                  %v257 = vld [vmem:[%s235 + $0x78] sm:$0xf]
                  %258 = vst [vmem:[%s236 + $0x28] sm:$0xf] %v257
                  %v259 = vld [vmem:[%s235 + $0x84] sm:$0xf]
                  %260 = vst [vmem:[%s236 + $0x2c] sm:$0xf] %v259
                  %v261 = vld [vmem:[%s235 + $0x90] sm:$0xf]
                  %262 = vst [vmem:[%s236 + $0x30] sm:$0xf] %v261
                  %v263 = vld [vmem:[%s235 + $0x9c] sm:$0xf]
                  %264 = vst [vmem:[%s236 + $0x34] sm:$0xf] %v263
                  %v265 = vld [vmem:[%s235 + $0xa8] sm:$0xf]
                  %266 = vst [vmem:[%s236 + $0x38] sm:$0xf] %v265
                  %v267 = vld [vmem:[%s235 + $0xb4] sm:$0xf]
                  %268 = vst [vmem:[%s236 + $0x3c] sm:$0xf] %v267
                  %v269 = vld [vmem:[%s235 + $0xc0] sm:$0xf]
                  %270 = vst [vmem:[%s236 + $0x40] sm:$0xf] %v269
                  %v271 = vld [vmem:[%s235 + $0xcc] sm:$0xf]
                  %272 = vst [vmem:[%s236 + $0x44] sm:$0xf] %v271
                  %v273 = vld [vmem:[%s235 + $0xd8] sm:$0xf]
                  %274 = vst [vmem:[%s236 + $0x48] sm:$0xf] %v273
                  %v275 = vld [vmem:[%s235 + $0xe4] sm:$0xf]
                  %276 = vst [vmem:[%s236 + $0x4c] sm:$0xf] %v275
                  %v277 = vld [vmem:[%s235 + $0xf0] sm:$0xf]
                  %278 = vst [vmem:[%s236 + $0x50] sm:$0xf] %v277
                  %v279 = vld [vmem:[%s235 + $0xfc] sm:$0xf]
                  %280 = vst [vmem:[%s236 + $0x54] sm:$0xf] %v279
                  %v281 = vld [vmem:[%s235 + $0x108] sm:$0xf]
                  %282 = vst [vmem:[%s236 + $0x58] sm:$0xf] %v281
                  %v283 = vld [vmem:[%s235 + $0x114] sm:$0xf]
                  %284 = vst [vmem:[%s236 + $0x5c] sm:$0xf] %v283
                  %v285 = vld [vmem:[%s235 + $0x120] sm:$0xf]
                  %286 = vst [vmem:[%s236 + $0x60] sm:$0xf] %v285
                  %v287 = vld [vmem:[%s235 + $0x12c] sm:$0xf]
                  %288 = vst [vmem:[%s236 + $0x64] sm:$0xf] %v287
                  %v289 = vld [vmem:[%s235 + $0x138] sm:$0xf]
                  %290 = vst [vmem:[%s236 + $0x68] sm:$0xf] %v289
                  %v291 = vld [vmem:[%s235 + $0x144] sm:$0xf]
                  %292 = vst [vmem:[%s236 + $0x6c] sm:$0xf] %v291
                  %v293 = vld [vmem:[%s235 + $0x150] sm:$0xf]
                  %294 = vst [vmem:[%s236 + $0x70] sm:$0xf] %v293
                  %v295 = vld [vmem:[%s235 + $0x15c] sm:$0xf]
                  %296 = vst [vmem:[%s236 + $0x74] sm:$0xf] %v295
                  %v297 = vld [vmem:[%s235 + $0x168] sm:$0xf]
                  %298 = vst [vmem:[%s236 + $0x78] sm:$0xf] %v297
                  %v299 = vld [vmem:[%s235 + $0x174] sm:$0xf]
                  %300 = vst [vmem:[%s236 + $0x7c] sm:$0xf] %v299
                $region59: #{forward.33} parent=46 // loop_footer
                  %s234 = sadd.s32 1, %s230
                $region60: #{forward.33} parent=46 // loop_footer_branch
                  %229 = sbr.rel target = $region56
                $region61: #{forward.33} parent=46 // loop_exit
                  _
              $region47: #{forward.33} parent=31 // pred_fallthru
                _
            $region32: #{forward.33} parent=27 // pred_fallthru
              _
            // Predicated region
            $region33: #{forward.33} parent=27 // pred_check
              _
            $region34: #{forward.33} parent=27 // pred_check_branch
              %144 = sbr.rel (0) target = $region36
            $region35: #{forward.33} parent=27 // pred_region
              loop: start=0, step=1, limit=1
              $region37: #{forward.33} parent=35 // loop_pre_header
                _
              $region38: #{forward.33} parent=35 // loop_header
                %s147 = sphi 0, %s151
                %p148 = scmp.ge.s32.totalorder %s147, 1
                %s152 = sphi %s138, %s138
                %s153 = sphi %s136, %s136
              $region39: #{forward.33} parent=35 // loop_header_branch
                %150 = sbr.rel (%p148) target = $region43
              $region40: #{forward.33} parent=35 // loop_body
                %v154 = vld [vmem:[%s152] sm:$0xf]
                %155 = vst [vmem:[%s153] sm:$0xf] %v154
                %v156 = vld [vmem:[%s152 + $0xc] sm:$0xf]
                %157 = vst [vmem:[%s153 + $0x4] sm:$0xf] %v156
                %v158 = vld [vmem:[%s152 + $0x18] sm:$0xf]
                %159 = vst [vmem:[%s153 + $0x8] sm:$0xf] %v158
                %v160 = vld [vmem:[%s152 + $0x24] sm:$0xf]
                %161 = vst [vmem:[%s153 + $0xc] sm:$0xf] %v160
                %v162 = vld [vmem:[%s152 + $0x30] sm:$0xf]
                %163 = vst [vmem:[%s153 + $0x10] sm:$0xf] %v162
                %v164 = vld [vmem:[%s152 + $0x3c] sm:$0xf]
                %165 = vst [vmem:[%s153 + $0x14] sm:$0xf] %v164
                %v166 = vld [vmem:[%s152 + $0x48] sm:$0xf]
                %167 = vst [vmem:[%s153 + $0x18] sm:$0xf] %v166
                %v168 = vld [vmem:[%s152 + $0x54] sm:$0xf]
                %169 = vst [vmem:[%s153 + $0x1c] sm:$0xf] %v168
                %v170 = vld [vmem:[%s152 + $0x60] sm:$0xf]
                %171 = vst [vmem:[%s153 + $0x20] sm:$0xf] %v170
                %v172 = vld [vmem:[%s152 + $0x6c] sm:$0xf]
                %173 = vst [vmem:[%s153 + $0x24] sm:$0xf] %v172
                %v174 = vld [vmem:[%s152 + $0x78] sm:$0xf]
                %175 = vst [vmem:[%s153 + $0x28] sm:$0xf] %v174
                %v176 = vld [vmem:[%s152 + $0x84] sm:$0xf]
                %177 = vst [vmem:[%s153 + $0x2c] sm:$0xf] %v176
                %v178 = vld [vmem:[%s152 + $0x90] sm:$0xf]
                %179 = vst [vmem:[%s153 + $0x30] sm:$0xf] %v178
                %v180 = vld [vmem:[%s152 + $0x9c] sm:$0xf]
                %181 = vst [vmem:[%s153 + $0x34] sm:$0xf] %v180
                %v182 = vld [vmem:[%s152 + $0xa8] sm:$0xf]
                %183 = vst [vmem:[%s153 + $0x38] sm:$0xf] %v182
                %v184 = vld [vmem:[%s152 + $0xb4] sm:$0xf]
                %185 = vst [vmem:[%s153 + $0x3c] sm:$0xf] %v184
                %v186 = vld [vmem:[%s152 + $0xc0] sm:$0xf]
                %187 = vst [vmem:[%s153 + $0x40] sm:$0xf] %v186
                %v188 = vld [vmem:[%s152 + $0xcc] sm:$0xf]
                %189 = vst [vmem:[%s153 + $0x44] sm:$0xf] %v188
                %v190 = vld [vmem:[%s152 + $0xd8] sm:$0xf]
                %191 = vst [vmem:[%s153 + $0x48] sm:$0xf] %v190
                %v192 = vld [vmem:[%s152 + $0xe4] sm:$0xf]
                %193 = vst [vmem:[%s153 + $0x4c] sm:$0xf] %v192
                %v194 = vld [vmem:[%s152 + $0xf0] sm:$0xf]
                %195 = vst [vmem:[%s153 + $0x50] sm:$0xf] %v194
                %v196 = vld [vmem:[%s152 + $0xfc] sm:$0xf]
                %197 = vst [vmem:[%s153 + $0x54] sm:$0xf] %v196
                %v198 = vld [vmem:[%s152 + $0x108] sm:$0xf]
                %199 = vst [vmem:[%s153 + $0x58] sm:$0xf] %v198
                %v200 = vld [vmem:[%s152 + $0x114] sm:$0xf]
                %201 = vst [vmem:[%s153 + $0x5c] sm:$0xf] %v200
                %v202 = vld [vmem:[%s152 + $0x120] sm:$0xf]
                %203 = vst [vmem:[%s153 + $0x60] sm:$0xf] %v202
                %v204 = vld [vmem:[%s152 + $0x12c] sm:$0xf]
                %205 = vst [vmem:[%s153 + $0x64] sm:$0xf] %v204
                %v206 = vld [vmem:[%s152 + $0x138] sm:$0xf]
                %207 = vst [vmem:[%s153 + $0x68] sm:$0xf] %v206
                %v208 = vld [vmem:[%s152 + $0x144] sm:$0xf]
                %209 = vst [vmem:[%s153 + $0x6c] sm:$0xf] %v208
                %v210 = vld [vmem:[%s152 + $0x150] sm:$0xf]
                %211 = vst [vmem:[%s153 + $0x70] sm:$0xf] %v210
                %v212 = vld [vmem:[%s152 + $0x15c] sm:$0xf]
                %213 = vst [vmem:[%s153 + $0x74] sm:$0xf] %v212
                %v214 = vld [vmem:[%s152 + $0x168] sm:$0xf]
                %215 = vst [vmem:[%s153 + $0x78] sm:$0xf] %v214
                %v216 = vld [vmem:[%s152 + $0x174] sm:$0xf]
                %217 = vst [vmem:[%s153 + $0x7c] sm:$0xf] %v216
              $region41: #{forward.33} parent=35 // loop_footer
                %s151 = sadd.s32 1, %s147
              $region42: #{forward.33} parent=35 // loop_footer_branch
                %146 = sbr.rel target = $region38
              $region43: #{forward.33} parent=35 // loop_exit
                _
            $region36: #{forward.33} parent=27 // pred_fallthru
              _
          $region28: #{forward.33} parent=23 // pred_fallthru
            _
          %301 = vnop
        $region24: #{forward.33} parent=19 // pred_fallthru
          _
        // Predicated region
        $region62: #{forward.33} parent=19 // pred_check
          %p302 = pneg %p76
        $region63: #{forward.33} parent=19 // pred_check_branch
          %304 = sbr.rel (%p302) target = $region65
        $region64: #{forward.33} parent=19 // pred_region
          %p305 = scmp.lt.s32.totalorder %s9, 2
          %s306 = scalar_select %p305, %s9, 2
          %s307 = scalar_lea.vmem %s2, %s306
        $region65: #{forward.33} parent=19 // pred_fallthru
          _
      $region20: #{forward.33} parent=5 // pred_fallthru
        _
      %p308 = scmp.le.s32.totalorder 1, %s9
      %p309 = scmp.lt.s32.totalorder %s9, 4
      %p310 = pnand %p308, %p309
      %p311 = pneg %p310
      // Predicated region
      $region66: #{forward.33} parent=5 // pred_check
        _
      $region67: #{forward.33} parent=5 // pred_check_branch
        %313 = sbr.rel (%p310) target = $region69
      $region68: #{forward.33} parent=5 // pred_region
        %s314 = ssub.s32 %s9, 1
        %s315 = sand.u32 %s43, 1
        %s316 = sand.u32 %s43, 1
        %s317 = smul.addr %s316, 128
        %s318 = scalar_lea.vmem [#allocation2], %s317
        // Predicated region
        $region70: #{forward.33} parent=68 // pred_check
          %p319 = pneg %p56
        $region71: #{forward.33} parent=68 // pred_check_branch
          %321 = sbr.rel (%p319) target = $region73
        $region72: #{forward.33} parent=68 // pred_region
          _
        $region73: #{forward.33} parent=68 // pred_fallthru
          _
        %p322 = pneg %p30
        %p323 = pneg %p27
        %s324 = sand.u32 %s43, 1
        %s325 = sand.u32 %s43, 1
        %s326 = smul.addr %s325, 128
        %s327 = scalar_lea.vmem [#allocation2], %s326
        %p328 = pneg %p56
        %p329 = pneg %p53
        %p330 = scmp.lt.s32.totalorder %s14, 2
        %s331 = scalar_select %p330, %s14, 2
        %s332 = scalar_lea.vmem %s2, %s331
        %p333 = pneg %p82
        %p334 = pneg %p79
        %p335 = pneg %p108
        %p336 = pneg %p105
        %p337 = scmp.lt.s32.totalorder %s14, 2
        %s338 = scalar_select %p337, %s14, 2
        %s339 = smul.addr %s338, 4
        %s340 = scalar_lea.vmem %s3, %s339
        %p341 = scmp.lt.s32.totalorder %s14, 2
        %s342 = scalar_select %p341, %s14, 2
        %s343 = scalar_lea.vmem %s2, %s342
        %p344 = scmp.lt.s32.totalorder %s14, 2
        %s345 = scalar_select %p344, %s14, 2
        %s346 = smul.addr %s345, 4
        %s347 = scalar_lea.vmem %s3, %s346
        %v349 = vld [vmem:[%s0] sm:$0xff]
        %v350 = vld [vmem:[%s318] sm:$0xf]
        %v351 = vld [vmem:[%s318 + $0x4] sm:$0xf]
        %v352 = vld [vmem:[%s318 + $0x8] sm:$0xf]
        %v353 = vld [vmem:[%s318 + $0xc] sm:$0xf]
        %v354 = vld [vmem:[%s318 + $0x10] sm:$0xf]
        %v355 = vld [vmem:[%s318 + $0x14] sm:$0xf]
        %v356 = vld [vmem:[%s318 + $0x18] sm:$0xf]
        %v357 = vld [vmem:[%s318 + $0x1c] sm:$0xf]
        %v358 = vld [vmem:[%s318 + $0x20] sm:$0xf]
        %v359 = vld [vmem:[%s318 + $0x24] sm:$0xf]
        %v360 = vld [vmem:[%s318 + $0x28] sm:$0xf]
        %v361 = vld [vmem:[%s318 + $0x2c] sm:$0xf]
        %v362 = vld [vmem:[%s318 + $0x30] sm:$0xf]
        %v363 = vld [vmem:[%s318 + $0x34] sm:$0xf]
        %v364 = vld [vmem:[%s318 + $0x38] sm:$0xf]
        %v365 = vld [vmem:[%s318 + $0x3c] sm:$0xf]
        %v366 = vld [vmem:[%s318 + $0x40] sm:$0xf]
        %v367 = vld [vmem:[%s318 + $0x44] sm:$0xf]
        %v368 = vld [vmem:[%s318 + $0x48] sm:$0xf]
        %v369 = vld [vmem:[%s318 + $0x4c] sm:$0xf]
        %v370 = vld [vmem:[%s318 + $0x50] sm:$0xf]
        %v371 = vld [vmem:[%s318 + $0x54] sm:$0xf]
        %v372 = vld [vmem:[%s318 + $0x58] sm:$0xf]
        %v373 = vld [vmem:[%s318 + $0x5c] sm:$0xf]
        %v374 = vld [vmem:[%s318 + $0x60] sm:$0xf]
        %v375 = vld [vmem:[%s318 + $0x64] sm:$0xf]
        %v376 = vld [vmem:[%s318 + $0x68] sm:$0xf]
        %v377 = vld [vmem:[%s318 + $0x6c] sm:$0xf]
        %v378 = vld [vmem:[%s318 + $0x70] sm:$0xf]
        %v379 = vld [vmem:[%s318 + $0x74] sm:$0xf]
        %v380 = vld [vmem:[%s318 + $0x78] sm:$0xf]
        %v381 = vld [vmem:[%s318 + $0x7c] sm:$0xf]
        %v382 = vld [vmem:[%s343] sm:$0x1]
        %v384 = vlaneseq
        %v385 = vshrl.u32 %v384, 7
        %v386 = vsub.s32 0, %v385
        %v387 = vrot.slane %v382, %v386
        %v390 = vunpack.c.l.b16 %v349
        %v391 = vunpack.c.h.b16 %v349
        %v392 = vpack.c.b16 %v390, %v390
        %v393 = vpack.c.b16 %v391, %v391
        %v428 = vunpack.c.l.b16 %v350
        %v429 = vunpack.c.l.b16 %v351
        %v430 = vunpack.c.l.b16 %v352
        %v431 = vunpack.c.l.b16 %v353
        %v432 = vunpack.c.l.b16 %v354
        %v433 = vunpack.c.l.b16 %v355
        %v434 = vunpack.c.l.b16 %v356
        %v435 = vunpack.c.l.b16 %v357
        %v436 = vunpack.c.l.b16 %v358
        %v437 = vunpack.c.l.b16 %v359
        %v438 = vunpack.c.l.b16 %v360
        %v439 = vunpack.c.l.b16 %v361
        %v440 = vunpack.c.l.b16 %v362
        %v441 = vunpack.c.l.b16 %v363
        %v442 = vunpack.c.l.b16 %v364
        %v443 = vunpack.c.l.b16 %v365
        %v444 = vunpack.c.l.b16 %v366
        %v445 = vunpack.c.l.b16 %v367
        %v446 = vunpack.c.l.b16 %v368
        %v447 = vunpack.c.l.b16 %v369
        %v448 = vunpack.c.l.b16 %v370
        %v449 = vunpack.c.l.b16 %v371
        %v450 = vunpack.c.l.b16 %v372
        %v451 = vunpack.c.l.b16 %v373
        %v452 = vunpack.c.l.b16 %v374
        %v453 = vunpack.c.l.b16 %v375
        %v454 = vunpack.c.l.b16 %v376
        %v455 = vunpack.c.l.b16 %v377
        %v456 = vunpack.c.l.b16 %v378
        %v457 = vunpack.c.l.b16 %v379
        %v458 = vunpack.c.l.b16 %v380
        %v459 = vunpack.c.l.b16 %v381
        %v460 = vpack.c.b16 %v429, %v428
        %v461 = vpack.c.b16 %v431, %v430
        %v462 = vpack.c.b16 %v433, %v432
        %v463 = vpack.c.b16 %v435, %v434
        %v464 = vpack.c.b16 %v437, %v436
        %v465 = vpack.c.b16 %v439, %v438
        %v466 = vpack.c.b16 %v441, %v440
        %v467 = vpack.c.b16 %v443, %v442
        %v468 = vpack.c.b16 %v445, %v444
        %v469 = vpack.c.b16 %v447, %v446
        %v470 = vpack.c.b16 %v449, %v448
        %v471 = vpack.c.b16 %v451, %v450
        %v472 = vpack.c.b16 %v453, %v452
        %v473 = vpack.c.b16 %v455, %v454
        %v474 = vpack.c.b16 %v457, %v456
        %v475 = vpack.c.b16 %v459, %v458
        %492 = vmatprep.subr.bf16.mxu0 0
        %493 = vmatpush1.bf16.msra.mxu0 %v460
        %494 = vmatprep.subr.bf16.mxu0 0
        %495 = vmatpush1.bf16.msra.mxu0 %v461
        %496 = vmatprep.subr.bf16.mxu0 0
        %497 = vmatpush1.bf16.msra.mxu0 %v462
        %498 = vmatprep.subr.bf16.mxu0 0
        %499 = vmatpush1.bf16.msra.mxu0 %v463
        %500 = vmatprep.subr.bf16.mxu0 0
        %501 = vmatpush1.bf16.msra.mxu0 %v464
        %502 = vmatprep.subr.bf16.mxu0 0
        %503 = vmatpush1.bf16.msra.mxu0 %v465
        %504 = vmatprep.subr.bf16.mxu0 0
        %505 = vmatpush1.bf16.msra.mxu0 %v466
        %506 = vmatprep.subr.bf16.mxu0 0
        %507 = vmatpush1.bf16.msra.mxu0 %v467
        %508 = vmatprep.subr.bf16.mxu0 0
        %509 = vmatpush1.bf16.msra.mxu0 %v468
        %510 = vmatprep.subr.bf16.mxu0 0
        %511 = vmatpush1.bf16.msra.mxu0 %v469
        %512 = vmatprep.subr.bf16.mxu0 0
        %513 = vmatpush1.bf16.msra.mxu0 %v470
        %514 = vmatprep.subr.bf16.mxu0 0
        %515 = vmatpush1.bf16.msra.mxu0 %v471
        %516 = vmatprep.subr.bf16.mxu0 0
        %517 = vmatpush1.bf16.msra.mxu0 %v472
        %518 = vmatprep.subr.bf16.mxu0 0
        %519 = vmatpush1.bf16.msra.mxu0 %v473
        %520 = vmatprep.subr.bf16.mxu0 0
        %521 = vmatpush1.bf16.msra.mxu0 %v474
        %522 = vmatprep.subr.bf16.mxu0 0
        %523 = vmatpush1.bf16.msra.mxu0 %v475
        %524 = vmatprep.mubr.bf16.mxu0 %v393
        %525 = vmatmul.mubr.bf16.gmra.mrb[0].mxu0 %v392
        %v526 = vpop.f32.mrb[0].mxu0
        %v527 = vadd.f32 %v387, %v526
        %v528 = vpop.f32.mrb[0].mxu0
        %v529 = vpop.f32.mrb[0].mxu0
        %v530 = vpop.f32.mrb[0].mxu0
        %531 = vdwg.mxu0
        %v532 = vmax.f32 %v527, 0.0
        %v533 = vmin.f32 %v532, 6.0
        %v534 = vpack.c.bf16 %v533, %v533
        %535 = vst [vmem:[%s347] sm:$0xf] %v534
        %p536 = scmp.lt.s32.totalorder %s14, 2
        %s537 = scalar_select %p536, %s14, 2
        %s538 = smul.addr %s537, 4
        %s539 = scalar_lea.vmem %s3, %s538
        // Predicated region
        $region74: #{forward.33} parent=68 // pred_check
          %p540 = pneg %p105
        $region75: #{forward.33} parent=68 // pred_check_branch
          %542 = sbr.rel (%p540) target = $region77
        $region76: #{forward.33} parent=68 // pred_region
          _
        $region77: #{forward.33} parent=68 // pred_fallthru
          _
      $region69: #{forward.33} parent=5 // pred_fallthru
        _
      %p543 = scmp.le.s32.totalorder 2, %s9
      // Predicated region
      $region78: #{forward.33} parent=5 // pred_check
        %p544 = pneg %p543
      $region79: #{forward.33} parent=5 // pred_check_branch
        %546 = sbr.rel (%p544) target = $region81
      $region80: #{forward.33} parent=5 // pred_region
        %s547 = ssub.s32 %s9, 2
        // Predicated region
        $region82: #{forward.33} parent=80 // pred_check
          %p548 = pneg %p111
        $region83: #{forward.33} parent=80 // pred_check_branch
          %550 = sbr.rel (%p548) target = $region85
        $region84: #{forward.33} parent=80 // pred_region
          %p551 = scmp.lt.s32.totalorder %s15, 2
          %s552 = scalar_select %p551, %s15, 2
          %s553 = smul.addr %s552, 4
          %s554 = scalar_lea.vmem %s3, %s553
        $region85: #{forward.33} parent=80 // pred_fallthru
          _
      $region81: #{forward.33} parent=5 // pred_fallthru
        _
    $region6: #{forward.33} parent=1 // loop_footer
      %s13 = sadd.s32 1, %s9
    $region7: #{forward.33} parent=1 // loop_footer_branch
      %8 = sbr.rel target = $region3
    $region8: #{forward.33} parent=1 // loop_exit
      _

// kernel: forward.34
$region0: #{forward.34}
  #allocation0 [shape = 'u32[]', space=smem, size = 0x4, offset = 0x4, fixed_abs, tag = 'smem constant byte address 0x4 - core index']
  #allocation1 [shape = 'u32[144,128]{1,0:T(1,128)}', space=vmem, size = 0x12000, scoped, tag = 'internal scratch']
  %s0 = inlined_call_operand.vmem [shape: bf16[8,384], index: 0, kind: input, shape index: {}]
  %s1 = inlined_call_operand.vmem [shape: bf16[384,384], index: 1, kind: input, shape index: {}]
  %s2 = inlined_call_operand.vmem [shape: f32[1,384], index: 2, kind: input, shape index: {}]
  %s3 = inlined_call_operand.vmem [shape: bf16[8,384], index: 3, kind: output, shape index: {}]
  %s4 = sld [smem:[#allocation0]]
  $region86: #{forward.34} parent=0
    _
  %s6 = ssub.s32 1, %s4
  %s7 = scalar_select 0, %s6, %s4
  $region1: #{forward.34} parent=0
    #allocation2 [shape = 'u8[196608]{0}', space=vmem, size = 0x30000, scoped, tag = 'input window, operand 1']
    loop: start=0, step=1, limit=5
    $region2: #{forward.34} parent=1 // loop_pre_header
      _
    $region3: #{forward.34} parent=1 // loop_header
      %s9 = sphi 0, %s13
      %p10 = scmp.ge.s32.totalorder %s9, 5
      %s17 = sphi 0, %s17
      %s19 = sphi 0, %s17
      %s20 = sphi 0, %s19
      %s34 = sphi 0, %s20
      %s40 = sphi 0, %s42
      %s43 = sphi 0, %s40
      %s44 = sphi 0, %s43
      %s60 = sphi 0, %s44
      %s66 = sphi 0, %s68
      %s69 = sphi 0, %s66
      %s70 = sphi 0, %s69
      %s86 = sphi 0, %s70
      %s92 = sphi 0, %s94
      %s95 = sphi 0, %s92
      %s96 = sphi 0, %s95
      %s112 = sphi 0, %s96
    $region4: #{forward.34} parent=1 // loop_header_branch
      %12 = sbr.rel (%p10) target = $region8
    $region5: #{forward.34} parent=1 // loop_body
      %s14 = ssub.s32 %s9, 1
      %s15 = ssub.s32 %s9, 2
      %s16 = sadd.s32 %s9, 1
      %s18 = sadd.s32 %s17, 1
      %p21 = scmp.eq.s32.totalorder %s9, 2
      %p22 = scmp.ne.s32.totalorder %s17, %s19
      %p23 = scmp.eq.s32.totalorder %s9, 0
      %p24 = por %p22, %p23
      %p25 = scmp.ne.s32.totalorder %s17, %s19
      %p26 = scmp.eq.s32.totalorder %s14, 2
      %p27 = por %p25, %p26
      %p28 = scmp.ne.s32.totalorder %s19, %s20
      %p29 = scmp.eq.s32.totalorder %s14, 0
      %p30 = por %p28, %p29
      %p31 = scmp.ne.s32.totalorder %s19, %s20
      %p32 = scmp.eq.s32.totalorder %s15, 2
      %p33 = por %p31, %p32
      %p35 = scmp.ne.s32.totalorder %s20, %s34
      %p36 = scmp.eq.s32.totalorder %s15, 0
      %p37 = por %p35, %p36
      %s38 = ssub.s32 %s9, %s16
      %p39 = scmp.eq.s32.totalorder %s38, 0
      %s41 = sadd.s32 %s40, 1
      %s42 = scalar_select %p39, %s40, %s41
      %p45 = pneg %p39
      %p46 = scmp.eq.s32.totalorder %s9, 2
      %p47 = por %p45, %p46
      %p48 = scmp.ne.s32.totalorder %s40, %s43
      %p49 = scmp.eq.s32.totalorder %s9, 0
      %p50 = por %p48, %p49
      %p51 = scmp.ne.s32.totalorder %s40, %s43
      %p52 = scmp.eq.s32.totalorder %s14, 2
      %p53 = por %p51, %p52
      %p54 = scmp.ne.s32.totalorder %s43, %s44
      %p55 = scmp.eq.s32.totalorder %s14, 0
      %p56 = por %p54, %p55
      %p57 = scmp.ne.s32.totalorder %s43, %s44
      %p58 = scmp.eq.s32.totalorder %s15, 2
      %p59 = por %p57, %p58
      %p61 = scmp.ne.s32.totalorder %s44, %s60
      %p62 = scmp.eq.s32.totalorder %s15, 0
      %p63 = por %p61, %p62
      %s64 = ssub.s32 %s9, %s16
      %p65 = scmp.eq.s32.totalorder %s64, 0
      %s67 = sadd.s32 %s66, 1
      %s68 = scalar_select %p65, %s66, %s67
      %p71 = pneg %p65
      %p72 = scmp.eq.s32.totalorder %s9, 2
      %p73 = por %p71, %p72
      %p74 = scmp.ne.s32.totalorder %s66, %s69
      %p75 = scmp.eq.s32.totalorder %s9, 0
      %p76 = por %p74, %p75
      %p77 = scmp.ne.s32.totalorder %s66, %s69
      %p78 = scmp.eq.s32.totalorder %s14, 2
      %p79 = por %p77, %p78
      %p80 = scmp.ne.s32.totalorder %s69, %s70
      %p81 = scmp.eq.s32.totalorder %s14, 0
      %p82 = por %p80, %p81
      %p83 = scmp.ne.s32.totalorder %s69, %s70
      %p84 = scmp.eq.s32.totalorder %s15, 2
      %p85 = por %p83, %p84
      %p87 = scmp.ne.s32.totalorder %s70, %s86
      %p88 = scmp.eq.s32.totalorder %s15, 0
      %p89 = por %p87, %p88
      %s90 = ssub.s32 %s9, %s16
      %p91 = scmp.eq.s32.totalorder %s90, 0
      %s93 = sadd.s32 %s92, 1
      %s94 = scalar_select %p91, %s92, %s93
      %p97 = pneg %p91
      %p98 = scmp.eq.s32.totalorder %s9, 2
      %p99 = por %p97, %p98
      %p100 = scmp.ne.s32.totalorder %s92, %s95
      %p101 = scmp.eq.s32.totalorder %s9, 0
      %p102 = por %p100, %p101
      %p103 = scmp.ne.s32.totalorder %s92, %s95
      %p104 = scmp.eq.s32.totalorder %s14, 2
      %p105 = por %p103, %p104
      %p106 = scmp.ne.s32.totalorder %s95, %s96
      %p107 = scmp.eq.s32.totalorder %s14, 0
      %p108 = por %p106, %p107
      %p109 = scmp.ne.s32.totalorder %s95, %s96
      %p110 = scmp.eq.s32.totalorder %s15, 2
      %p111 = por %p109, %p110
      %p113 = scmp.ne.s32.totalorder %s96, %s112
      %p114 = scmp.eq.s32.totalorder %s15, 0
      %p115 = por %p113, %p114
      %p116 = scmp.le.s32.totalorder 1, %s9
      %p117 = scmp.lt.s32.totalorder %s9, 4
      %p118 = pnand %p116, %p117
      %p119 = pneg %p118
      // Predicated region
      $region9: #{forward.34} parent=5 // pred_check
        _
      $region10: #{forward.34} parent=5 // pred_check_branch
        %121 = sbr.rel (%p118) target = $region12
      $region11: #{forward.34} parent=5 // pred_region
        %s122 = ssub.s32 %s9, 1
        // Predicated region
        $region13: #{forward.34} parent=11 // pred_check
          %p123 = pneg %p30
        $region14: #{forward.34} parent=11 // pred_check_branch
          %125 = sbr.rel (%p123) target = $region16
        $region15: #{forward.34} parent=11 // pred_region
          _
        $region16: #{forward.34} parent=11 // pred_fallthru
          _
      $region12: #{forward.34} parent=5 // pred_fallthru
        _
      %p126 = scmp.lt.s32.totalorder %s9, 3
      // Predicated region
      $region17: #{forward.34} parent=5 // pred_check
        %p127 = pneg %p126
      $region18: #{forward.34} parent=5 // pred_check_branch
        %129 = sbr.rel (%p127) target = $region20
      $region19: #{forward.34} parent=5 // pred_region
        // Predicated region
        $region21: #{forward.34} parent=19 // pred_check
          %p130 = pneg %p50
        $region22: #{forward.34} parent=19 // pred_check_branch
          %132 = sbr.rel (%p130) target = $region24
        $region23: #{forward.34} parent=19 // pred_region
          %s133 = sand.u32 %s40, 1
          %s134 = sand.u32 %s40, 1
          %s135 = smul.addr %s134, 192
          %s136 = scalar_lea.vmem [#allocation2], %s135
          %s137 = smul.addr %s9, 4
          %s138 = scalar_lea.vmem %s1, %s137
          // Predicated region
          $region25: #{forward.34} parent=23 // pred_check
            _
          $region26: #{forward.34} parent=23 // pred_check_branch
            %140 = sbr.rel (0) target = $region28
          $region27: #{forward.34} parent=23 // pred_region
            // Predicated region
            $region29: #{forward.34} parent=27 // pred_check
              _
            $region30: #{forward.34} parent=27 // pred_check_branch
              %142 = sbr.rel target = $region32
            $region31: #{forward.34} parent=27 // pred_region
              // Predicated region
              $region44: #{forward.34} parent=31 // pred_check
                _
              $region45: #{forward.34} parent=31 // pred_check_branch
                %251 = sbr.rel (0) target = $region47
              $region46: #{forward.34} parent=31 // pred_region
                loop: start=0, step=1, limit=1
                $region48: #{forward.34} parent=46 // loop_pre_header
                  _
                $region49: #{forward.34} parent=46 // loop_header
                  %s253 = sphi 0, %s257
                  %p254 = scmp.ge.s32.totalorder %s253, 1
                  %s258 = sphi %s138, %s138
                  %s259 = sphi %s136, %s136
                $region50: #{forward.34} parent=46 // loop_header_branch
                  %256 = sbr.rel (%p254) target = $region54
                $region51: #{forward.34} parent=46 // loop_body
                  _
                $region52: #{forward.34} parent=46 // loop_footer
                  %s257 = sadd.s32 1, %s253
                $region53: #{forward.34} parent=46 // loop_footer_branch
                  %252 = sbr.rel target = $region49
                $region54: #{forward.34} parent=46 // loop_exit
                  _
                loop: start=0, step=1, limit=1
                $region55: #{forward.34} parent=46 // loop_pre_header
                  _
                $region56: #{forward.34} parent=46 // loop_header
                  %s262 = sphi 0, %s266
                  %p263 = scmp.ge.s32.totalorder %s262, 1
                  %s267 = sphi %s138, %s138
                  %s268 = sphi %s136, %s136
                $region57: #{forward.34} parent=46 // loop_header_branch
                  %265 = sbr.rel (%p263) target = $region61
                $region58: #{forward.34} parent=46 // loop_body
                  %v269 = vld [vmem:[%s267] sm:$0xf]
                  %270 = vst [vmem:[%s268] sm:$0xf] %v269
                  %v271 = vld [vmem:[%s267 + $0xc] sm:$0xf]
                  %272 = vst [vmem:[%s268 + $0x4] sm:$0xf] %v271
                  %v273 = vld [vmem:[%s267 + $0x18] sm:$0xf]
                  %274 = vst [vmem:[%s268 + $0x8] sm:$0xf] %v273
                  %v275 = vld [vmem:[%s267 + $0x24] sm:$0xf]
                  %276 = vst [vmem:[%s268 + $0xc] sm:$0xf] %v275
                  %v277 = vld [vmem:[%s267 + $0x30] sm:$0xf]
                  %278 = vst [vmem:[%s268 + $0x10] sm:$0xf] %v277
                  %v279 = vld [vmem:[%s267 + $0x3c] sm:$0xf]
                  %280 = vst [vmem:[%s268 + $0x14] sm:$0xf] %v279
                  %v281 = vld [vmem:[%s267 + $0x48] sm:$0xf]
                  %282 = vst [vmem:[%s268 + $0x18] sm:$0xf] %v281
                  %v283 = vld [vmem:[%s267 + $0x54] sm:$0xf]
                  %284 = vst [vmem:[%s268 + $0x1c] sm:$0xf] %v283
                  %v285 = vld [vmem:[%s267 + $0x60] sm:$0xf]
                  %286 = vst [vmem:[%s268 + $0x20] sm:$0xf] %v285
                  %v287 = vld [vmem:[%s267 + $0x6c] sm:$0xf]
                  %288 = vst [vmem:[%s268 + $0x24] sm:$0xf] %v287
                  %v289 = vld [vmem:[%s267 + $0x78] sm:$0xf]
                  %290 = vst [vmem:[%s268 + $0x28] sm:$0xf] %v289
                  %v291 = vld [vmem:[%s267 + $0x84] sm:$0xf]
                  %292 = vst [vmem:[%s268 + $0x2c] sm:$0xf] %v291
                  %v293 = vld [vmem:[%s267 + $0x90] sm:$0xf]
                  %294 = vst [vmem:[%s268 + $0x30] sm:$0xf] %v293
                  %v295 = vld [vmem:[%s267 + $0x9c] sm:$0xf]
                  %296 = vst [vmem:[%s268 + $0x34] sm:$0xf] %v295
                  %v297 = vld [vmem:[%s267 + $0xa8] sm:$0xf]
                  %298 = vst [vmem:[%s268 + $0x38] sm:$0xf] %v297
                  %v299 = vld [vmem:[%s267 + $0xb4] sm:$0xf]
                  %300 = vst [vmem:[%s268 + $0x3c] sm:$0xf] %v299
                  %v301 = vld [vmem:[%s267 + $0xc0] sm:$0xf]
                  %302 = vst [vmem:[%s268 + $0x40] sm:$0xf] %v301
                  %v303 = vld [vmem:[%s267 + $0xcc] sm:$0xf]
                  %304 = vst [vmem:[%s268 + $0x44] sm:$0xf] %v303
                  %v305 = vld [vmem:[%s267 + $0xd8] sm:$0xf]
                  %306 = vst [vmem:[%s268 + $0x48] sm:$0xf] %v305
                  %v307 = vld [vmem:[%s267 + $0xe4] sm:$0xf]
                  %308 = vst [vmem:[%s268 + $0x4c] sm:$0xf] %v307
                  %v309 = vld [vmem:[%s267 + $0xf0] sm:$0xf]
                  %310 = vst [vmem:[%s268 + $0x50] sm:$0xf] %v309
                  %v311 = vld [vmem:[%s267 + $0xfc] sm:$0xf]
                  %312 = vst [vmem:[%s268 + $0x54] sm:$0xf] %v311
                  %v313 = vld [vmem:[%s267 + $0x108] sm:$0xf]
                  %314 = vst [vmem:[%s268 + $0x58] sm:$0xf] %v313
                  %v315 = vld [vmem:[%s267 + $0x114] sm:$0xf]
                  %316 = vst [vmem:[%s268 + $0x5c] sm:$0xf] %v315
                  %v317 = vld [vmem:[%s267 + $0x120] sm:$0xf]
                  %318 = vst [vmem:[%s268 + $0x60] sm:$0xf] %v317
                  %v319 = vld [vmem:[%s267 + $0x12c] sm:$0xf]
                  %320 = vst [vmem:[%s268 + $0x64] sm:$0xf] %v319
                  %v321 = vld [vmem:[%s267 + $0x138] sm:$0xf]
                  %322 = vst [vmem:[%s268 + $0x68] sm:$0xf] %v321
                  %v323 = vld [vmem:[%s267 + $0x144] sm:$0xf]
                  %324 = vst [vmem:[%s268 + $0x6c] sm:$0xf] %v323
                  %v325 = vld [vmem:[%s267 + $0x150] sm:$0xf]
                  %326 = vst [vmem:[%s268 + $0x70] sm:$0xf] %v325
                  %v327 = vld [vmem:[%s267 + $0x15c] sm:$0xf]
                  %328 = vst [vmem:[%s268 + $0x74] sm:$0xf] %v327
                  %v329 = vld [vmem:[%s267 + $0x168] sm:$0xf]
                  %330 = vst [vmem:[%s268 + $0x78] sm:$0xf] %v329
                  %v331 = vld [vmem:[%s267 + $0x174] sm:$0xf]
                  %332 = vst [vmem:[%s268 + $0x7c] sm:$0xf] %v331
                  %v333 = vld [vmem:[%s267 + $0x180] sm:$0xf]
                  %334 = vst [vmem:[%s268 + $0x80] sm:$0xf] %v333
                  %v335 = vld [vmem:[%s267 + $0x18c] sm:$0xf]
                  %336 = vst [vmem:[%s268 + $0x84] sm:$0xf] %v335
                  %v337 = vld [vmem:[%s267 + $0x198] sm:$0xf]
                  %338 = vst [vmem:[%s268 + $0x88] sm:$0xf] %v337
                  %v339 = vld [vmem:[%s267 + $0x1a4] sm:$0xf]
                  %340 = vst [vmem:[%s268 + $0x8c] sm:$0xf] %v339
                  %v341 = vld [vmem:[%s267 + $0x1b0] sm:$0xf]
                  %342 = vst [vmem:[%s268 + $0x90] sm:$0xf] %v341
                  %v343 = vld [vmem:[%s267 + $0x1bc] sm:$0xf]
                  %344 = vst [vmem:[%s268 + $0x94] sm:$0xf] %v343
                  %v345 = vld [vmem:[%s267 + $0x1c8] sm:$0xf]
                  %346 = vst [vmem:[%s268 + $0x98] sm:$0xf] %v345
                  %v347 = vld [vmem:[%s267 + $0x1d4] sm:$0xf]
                  %348 = vst [vmem:[%s268 + $0x9c] sm:$0xf] %v347
                  %v349 = vld [vmem:[%s267 + $0x1e0] sm:$0xf]
                  %350 = vst [vmem:[%s268 + $0xa0] sm:$0xf] %v349
                  %v351 = vld [vmem:[%s267 + $0x1ec] sm:$0xf]
                  %352 = vst [vmem:[%s268 + $0xa4] sm:$0xf] %v351
                  %v353 = vld [vmem:[%s267 + $0x1f8] sm:$0xf]
                  %354 = vst [vmem:[%s268 + $0xa8] sm:$0xf] %v353
                  %v355 = vld [vmem:[%s267 + $0x204] sm:$0xf]
                  %356 = vst [vmem:[%s268 + $0xac] sm:$0xf] %v355
                  %v357 = vld [vmem:[%s267 + $0x210] sm:$0xf]
                  %358 = vst [vmem:[%s268 + $0xb0] sm:$0xf] %v357
                  %v359 = vld [vmem:[%s267 + $0x21c] sm:$0xf]
                  %360 = vst [vmem:[%s268 + $0xb4] sm:$0xf] %v359
                  %v361 = vld [vmem:[%s267 + $0x228] sm:$0xf]
                  %362 = vst [vmem:[%s268 + $0xb8] sm:$0xf] %v361
                  %v363 = vld [vmem:[%s267 + $0x234] sm:$0xf]
                  %364 = vst [vmem:[%s268 + $0xbc] sm:$0xf] %v363
                $region59: #{forward.34} parent=46 // loop_footer
                  %s266 = sadd.s32 1, %s262
                $region60: #{forward.34} parent=46 // loop_footer_branch
                  %261 = sbr.rel target = $region56
                $region61: #{forward.34} parent=46 // loop_exit
                  _
              $region47: #{forward.34} parent=31 // pred_fallthru
                _
            $region32: #{forward.34} parent=27 // pred_fallthru
              _
            // Predicated region
            $region33: #{forward.34} parent=27 // pred_check
              _
            $region34: #{forward.34} parent=27 // pred_check_branch
              %144 = sbr.rel (0) target = $region36
            $region35: #{forward.34} parent=27 // pred_region
              loop: start=0, step=1, limit=1
              $region37: #{forward.34} parent=35 // loop_pre_header
                _
              $region38: #{forward.34} parent=35 // loop_header
                %s147 = sphi 0, %s151
                %p148 = scmp.ge.s32.totalorder %s147, 1
                %s152 = sphi %s138, %s138
                %s153 = sphi %s136, %s136
              $region39: #{forward.34} parent=35 // loop_header_branch
                %150 = sbr.rel (%p148) target = $region43
              $region40: #{forward.34} parent=35 // loop_body
                %v154 = vld [vmem:[%s152] sm:$0xf]
                %155 = vst [vmem:[%s153] sm:$0xf] %v154
                %v156 = vld [vmem:[%s152 + $0xc] sm:$0xf]
                %157 = vst [vmem:[%s153 + $0x4] sm:$0xf] %v156
                %v158 = vld [vmem:[%s152 + $0x18] sm:$0xf]
                %159 = vst [vmem:[%s153 + $0x8] sm:$0xf] %v158
                %v160 = vld [vmem:[%s152 + $0x24] sm:$0xf]
                %161 = vst [vmem:[%s153 + $0xc] sm:$0xf] %v160
                %v162 = vld [vmem:[%s152 + $0x30] sm:$0xf]
                %163 = vst [vmem:[%s153 + $0x10] sm:$0xf] %v162
                %v164 = vld [vmem:[%s152 + $0x3c] sm:$0xf]
                %165 = vst [vmem:[%s153 + $0x14] sm:$0xf] %v164
                %v166 = vld [vmem:[%s152 + $0x48] sm:$0xf]
                %167 = vst [vmem:[%s153 + $0x18] sm:$0xf] %v166
                %v168 = vld [vmem:[%s152 + $0x54] sm:$0xf]
                %169 = vst [vmem:[%s153 + $0x1c] sm:$0xf] %v168
                %v170 = vld [vmem:[%s152 + $0x60] sm:$0xf]
                %171 = vst [vmem:[%s153 + $0x20] sm:$0xf] %v170
                %v172 = vld [vmem:[%s152 + $0x6c] sm:$0xf]
                %173 = vst [vmem:[%s153 + $0x24] sm:$0xf] %v172
                %v174 = vld [vmem:[%s152 + $0x78] sm:$0xf]
                %175 = vst [vmem:[%s153 + $0x28] sm:$0xf] %v174
                %v176 = vld [vmem:[%s152 + $0x84] sm:$0xf]
                %177 = vst [vmem:[%s153 + $0x2c] sm:$0xf] %v176
                %v178 = vld [vmem:[%s152 + $0x90] sm:$0xf]
                %179 = vst [vmem:[%s153 + $0x30] sm:$0xf] %v178
                %v180 = vld [vmem:[%s152 + $0x9c] sm:$0xf]
                %181 = vst [vmem:[%s153 + $0x34] sm:$0xf] %v180
                %v182 = vld [vmem:[%s152 + $0xa8] sm:$0xf]
                %183 = vst [vmem:[%s153 + $0x38] sm:$0xf] %v182
                %v184 = vld [vmem:[%s152 + $0xb4] sm:$0xf]
                %185 = vst [vmem:[%s153 + $0x3c] sm:$0xf] %v184
                %v186 = vld [vmem:[%s152 + $0xc0] sm:$0xf]
                %187 = vst [vmem:[%s153 + $0x40] sm:$0xf] %v186
                %v188 = vld [vmem:[%s152 + $0xcc] sm:$0xf]
                %189 = vst [vmem:[%s153 + $0x44] sm:$0xf] %v188
                %v190 = vld [vmem:[%s152 + $0xd8] sm:$0xf]
                %191 = vst [vmem:[%s153 + $0x48] sm:$0xf] %v190
                %v192 = vld [vmem:[%s152 + $0xe4] sm:$0xf]
                %193 = vst [vmem:[%s153 + $0x4c] sm:$0xf] %v192
                %v194 = vld [vmem:[%s152 + $0xf0] sm:$0xf]
                %195 = vst [vmem:[%s153 + $0x50] sm:$0xf] %v194
                %v196 = vld [vmem:[%s152 + $0xfc] sm:$0xf]
                %197 = vst [vmem:[%s153 + $0x54] sm:$0xf] %v196
                %v198 = vld [vmem:[%s152 + $0x108] sm:$0xf]
                %199 = vst [vmem:[%s153 + $0x58] sm:$0xf] %v198
                %v200 = vld [vmem:[%s152 + $0x114] sm:$0xf]
                %201 = vst [vmem:[%s153 + $0x5c] sm:$0xf] %v200
                %v202 = vld [vmem:[%s152 + $0x120] sm:$0xf]
                %203 = vst [vmem:[%s153 + $0x60] sm:$0xf] %v202
                %v204 = vld [vmem:[%s152 + $0x12c] sm:$0xf]
                %205 = vst [vmem:[%s153 + $0x64] sm:$0xf] %v204
                %v206 = vld [vmem:[%s152 + $0x138] sm:$0xf]
                %207 = vst [vmem:[%s153 + $0x68] sm:$0xf] %v206
                %v208 = vld [vmem:[%s152 + $0x144] sm:$0xf]
                %209 = vst [vmem:[%s153 + $0x6c] sm:$0xf] %v208
                %v210 = vld [vmem:[%s152 + $0x150] sm:$0xf]
                %211 = vst [vmem:[%s153 + $0x70] sm:$0xf] %v210
                %v212 = vld [vmem:[%s152 + $0x15c] sm:$0xf]
                %213 = vst [vmem:[%s153 + $0x74] sm:$0xf] %v212
                %v214 = vld [vmem:[%s152 + $0x168] sm:$0xf]
                %215 = vst [vmem:[%s153 + $0x78] sm:$0xf] %v214
                %v216 = vld [vmem:[%s152 + $0x174] sm:$0xf]
                %217 = vst [vmem:[%s153 + $0x7c] sm:$0xf] %v216
                %v218 = vld [vmem:[%s152 + $0x180] sm:$0xf]
                %219 = vst [vmem:[%s153 + $0x80] sm:$0xf] %v218
                %v220 = vld [vmem:[%s152 + $0x18c] sm:$0xf]
                %221 = vst [vmem:[%s153 + $0x84] sm:$0xf] %v220
                %v222 = vld [vmem:[%s152 + $0x198] sm:$0xf]
                %223 = vst [vmem:[%s153 + $0x88] sm:$0xf] %v222
                %v224 = vld [vmem:[%s152 + $0x1a4] sm:$0xf]
                %225 = vst [vmem:[%s153 + $0x8c] sm:$0xf] %v224
                %v226 = vld [vmem:[%s152 + $0x1b0] sm:$0xf]
                %227 = vst [vmem:[%s153 + $0x90] sm:$0xf] %v226
                %v228 = vld [vmem:[%s152 + $0x1bc] sm:$0xf]
                %229 = vst [vmem:[%s153 + $0x94] sm:$0xf] %v228
                %v230 = vld [vmem:[%s152 + $0x1c8] sm:$0xf]
                %231 = vst [vmem:[%s153 + $0x98] sm:$0xf] %v230
                %v232 = vld [vmem:[%s152 + $0x1d4] sm:$0xf]
                %233 = vst [vmem:[%s153 + $0x9c] sm:$0xf] %v232
                %v234 = vld [vmem:[%s152 + $0x1e0] sm:$0xf]
                %235 = vst [vmem:[%s153 + $0xa0] sm:$0xf] %v234
                %v236 = vld [vmem:[%s152 + $0x1ec] sm:$0xf]
                %237 = vst [vmem:[%s153 + $0xa4] sm:$0xf] %v236
                %v238 = vld [vmem:[%s152 + $0x1f8] sm:$0xf]
                %239 = vst [vmem:[%s153 + $0xa8] sm:$0xf] %v238
                %v240 = vld [vmem:[%s152 + $0x204] sm:$0xf]
                %241 = vst [vmem:[%s153 + $0xac] sm:$0xf] %v240
                %v242 = vld [vmem:[%s152 + $0x210] sm:$0xf]
                %243 = vst [vmem:[%s153 + $0xb0] sm:$0xf] %v242
                %v244 = vld [vmem:[%s152 + $0x21c] sm:$0xf]
                %245 = vst [vmem:[%s153 + $0xb4] sm:$0xf] %v244
                %v246 = vld [vmem:[%s152 + $0x228] sm:$0xf]
                %247 = vst [vmem:[%s153 + $0xb8] sm:$0xf] %v246
                %v248 = vld [vmem:[%s152 + $0x234] sm:$0xf]
                %249 = vst [vmem:[%s153 + $0xbc] sm:$0xf] %v248
              $region41: #{forward.34} parent=35 // loop_footer
                %s151 = sadd.s32 1, %s147
              $region42: #{forward.34} parent=35 // loop_footer_branch
                %146 = sbr.rel target = $region38
              $region43: #{forward.34} parent=35 // loop_exit
                _
            $region36: #{forward.34} parent=27 // pred_fallthru
              _
          $region28: #{forward.34} parent=23 // pred_fallthru
            _
          %365 = vnop
        $region24: #{forward.34} parent=19 // pred_fallthru
          _
        // Predicated region
        $region62: #{forward.34} parent=19 // pred_check
          %p366 = pneg %p76
        $region63: #{forward.34} parent=19 // pred_check_branch
          %368 = sbr.rel (%p366) target = $region65
        $region64: #{forward.34} parent=19 // pred_region
          %p369 = scmp.lt.s32.totalorder %s9, 2
          %s370 = scalar_select %p369, %s9, 2
          %s371 = scalar_lea.vmem %s2, %s370
        $region65: #{forward.34} parent=19 // pred_fallthru
          _
      $region20: #{forward.34} parent=5 // pred_fallthru
        _
      %p372 = scmp.le.s32.totalorder 1, %s9
      %p373 = scmp.lt.s32.totalorder %s9, 4
      %p374 = pnand %p372, %p373
      %p375 = pneg %p374
      // Predicated region
      $region66: #{forward.34} parent=5 // pred_check
        _
      $region67: #{forward.34} parent=5 // pred_check_branch
        %377 = sbr.rel (%p374) target = $region69
      $region68: #{forward.34} parent=5 // pred_region
        %s378 = ssub.s32 %s9, 1
        %s379 = sand.u32 %s43, 1
        %s380 = sand.u32 %s43, 1
        %s381 = smul.addr %s380, 192
        %s382 = scalar_lea.vmem [#allocation2], %s381
        // Predicated region
        $region70: #{forward.34} parent=68 // pred_check
          %p383 = pneg %p56
        $region71: #{forward.34} parent=68 // pred_check_branch
          %385 = sbr.rel (%p383) target = $region73
        $region72: #{forward.34} parent=68 // pred_region
          _
        $region73: #{forward.34} parent=68 // pred_fallthru
          _
        %p386 = pneg %p30
        %p387 = pneg %p27
        %s388 = sand.u32 %s43, 1
        %s389 = sand.u32 %s43, 1
        %s390 = smul.addr %s389, 192
        %s391 = scalar_lea.vmem [#allocation2], %s390
        %p392 = pneg %p56
        %p393 = pneg %p53
        %p394 = scmp.lt.s32.totalorder %s14, 2
        %s395 = scalar_select %p394, %s14, 2
        %s396 = scalar_lea.vmem %s2, %s395
        %p397 = pneg %p82
        %p398 = pneg %p79
        %p399 = pneg %p108
        %p400 = pneg %p105
        %p401 = scmp.lt.s32.totalorder %s14, 2
        %s402 = scalar_select %p401, %s14, 2
        %s403 = smul.addr %s402, 4
        %s404 = scalar_lea.vmem %s3, %s403
        %p405 = scmp.lt.s32.totalorder %s14, 2
        %s406 = scalar_select %p405, %s14, 2
        %s407 = scalar_lea.vmem %s2, %s406
        %p408 = scmp.lt.s32.totalorder %s14, 2
        %s409 = scalar_select %p408, %s14, 2
        %s410 = smul.addr %s409, 4
        %s411 = scalar_lea.vmem %s3, %s410
        %v413 = vld [vmem:[%s0] sm:$0xff]
        %v414 = vld [vmem:[%s0 + $0x8] sm:$0xf]
        %v415 = vld [vmem:[%s382] sm:$0xf]
        %v416 = vld [vmem:[%s382 + $0x4] sm:$0xf]
        %v417 = vld [vmem:[%s382 + $0x8] sm:$0xf]
        %v418 = vld [vmem:[%s382 + $0xc] sm:$0xf]
        %v419 = vld [vmem:[%s382 + $0x10] sm:$0xf]
        %v420 = vld [vmem:[%s382 + $0x14] sm:$0xf]
        %v421 = vld [vmem:[%s382 + $0x18] sm:$0xf]
        %v422 = vld [vmem:[%s382 + $0x1c] sm:$0xf]
        %v423 = vld [vmem:[%s382 + $0x20] sm:$0xf]
        %v424 = vld [vmem:[%s382 + $0x24] sm:$0xf]
        %v425 = vld [vmem:[%s382 + $0x28] sm:$0xf]
        %v426 = vld [vmem:[%s382 + $0x2c] sm:$0xf]
        %v427 = vld [vmem:[%s382 + $0x30] sm:$0xf]
        %v428 = vld [vmem:[%s382 + $0x34] sm:$0xf]
        %v429 = vld [vmem:[%s382 + $0x38] sm:$0xf]
        %v430 = vld [vmem:[%s382 + $0x3c] sm:$0xf]
        %v431 = vld [vmem:[%s382 + $0x40] sm:$0xf]
        %v432 = vld [vmem:[%s382 + $0x44] sm:$0xf]
        %v433 = vld [vmem:[%s382 + $0x48] sm:$0xf]
        %v434 = vld [vmem:[%s382 + $0x4c] sm:$0xf]
        %v435 = vld [vmem:[%s382 + $0x50] sm:$0xf]
        %v436 = vld [vmem:[%s382 + $0x54] sm:$0xf]
        %v437 = vld [vmem:[%s382 + $0x58] sm:$0xf]
        %v438 = vld [vmem:[%s382 + $0x5c] sm:$0xf]
        %v439 = vld [vmem:[%s382 + $0x60] sm:$0xf]
        %v440 = vld [vmem:[%s382 + $0x64] sm:$0xf]
        %v441 = vld [vmem:[%s382 + $0x68] sm:$0xf]
        %v442 = vld [vmem:[%s382 + $0x6c] sm:$0xf]
        %v443 = vld [vmem:[%s382 + $0x70] sm:$0xf]
        %v444 = vld [vmem:[%s382 + $0x74] sm:$0xf]
        %v445 = vld [vmem:[%s382 + $0x78] sm:$0xf]
        %v446 = vld [vmem:[%s382 + $0x7c] sm:$0xf]
        %v447 = vld [vmem:[%s382 + $0x80] sm:$0xf]
        %v448 = vld [vmem:[%s382 + $0x84] sm:$0xf]
        %v449 = vld [vmem:[%s382 + $0x88] sm:$0xf]
        %v450 = vld [vmem:[%s382 + $0x8c] sm:$0xf]
        %v451 = vld [vmem:[%s382 + $0x90] sm:$0xf]
        %v452 = vld [vmem:[%s382 + $0x94] sm:$0xf]
        %v453 = vld [vmem:[%s382 + $0x98] sm:$0xf]
        %v454 = vld [vmem:[%s382 + $0x9c] sm:$0xf]
        %v455 = vld [vmem:[%s382 + $0xa0] sm:$0xf]
        %v456 = vld [vmem:[%s382 + $0xa4] sm:$0xf]
        %v457 = vld [vmem:[%s382 + $0xa8] sm:$0xf]
        %v458 = vld [vmem:[%s382 + $0xac] sm:$0xf]
        %v459 = vld [vmem:[%s382 + $0xb0] sm:$0xf]
        %v460 = vld [vmem:[%s382 + $0xb4] sm:$0xf]
        %v461 = vld [vmem:[%s382 + $0xb8] sm:$0xf]
        %v462 = vld [vmem:[%s382 + $0xbc] sm:$0xf]
        %v463 = vld [vmem:[%s407] sm:$0x1]
        %v465 = vlaneseq
        %v466 = vshrl.u32 %v465, 7
        %v467 = vsub.s32 0, %v466
        %v468 = vrot.slane %v463, %v467
        %v472 = vunpack.c.l.b16 %v413
        %v473 = vunpack.c.h.b16 %v413
        %v474 = vunpack.c.l.b16 %v414
        %v475 = vpack.c.b16 %v472, %v472
        %v476 = vpack.c.b16 %v473, %v473
        %v477 = vpack.c.b16 %v474, %v474
        %v529 = vunpack.c.l.b16 %v415
        %v530 = vunpack.c.l.b16 %v416
        %v531 = vunpack.c.l.b16 %v417
        %v532 = vunpack.c.l.b16 %v418
        %v533 = vunpack.c.l.b16 %v419
        %v534 = vunpack.c.l.b16 %v420
        %v535 = vunpack.c.l.b16 %v421
        %v536 = vunpack.c.l.b16 %v422
        %v537 = vunpack.c.l.b16 %v423
        %v538 = vunpack.c.l.b16 %v424
        %v539 = vunpack.c.l.b16 %v425
        %v540 = vunpack.c.l.b16 %v426
        %v541 = vunpack.c.l.b16 %v427
        %v542 = vunpack.c.l.b16 %v428
        %v543 = vunpack.c.l.b16 %v429
        %v544 = vunpack.c.l.b16 %v430
        %v545 = vunpack.c.l.b16 %v431
        %v546 = vunpack.c.l.b16 %v432
        %v547 = vunpack.c.l.b16 %v433
        %v548 = vunpack.c.l.b16 %v434
        %v549 = vunpack.c.l.b16 %v435
        %v550 = vunpack.c.l.b16 %v436
        %v551 = vunpack.c.l.b16 %v437
        %v552 = vunpack.c.l.b16 %v438
        %v553 = vunpack.c.l.b16 %v439
        %v554 = vunpack.c.l.b16 %v440
        %v555 = vunpack.c.l.b16 %v441
        %v556 = vunpack.c.l.b16 %v442
        %v557 = vunpack.c.l.b16 %v443
        %v558 = vunpack.c.l.b16 %v444
        %v559 = vunpack.c.l.b16 %v445
        %v560 = vunpack.c.l.b16 %v446
        %v561 = vunpack.c.l.b16 %v447
        %v562 = vunpack.c.l.b16 %v448
        %v563 = vunpack.c.l.b16 %v449
        %v564 = vunpack.c.l.b16 %v450
        %v565 = vunpack.c.l.b16 %v451
        %v566 = vunpack.c.l.b16 %v452
        %v567 = vunpack.c.l.b16 %v453
        %v568 = vunpack.c.l.b16 %v454
        %v569 = vunpack.c.l.b16 %v455
        %v570 = vunpack.c.l.b16 %v456
        %v571 = vunpack.c.l.b16 %v457
        %v572 = vunpack.c.l.b16 %v458
        %v573 = vunpack.c.l.b16 %v459
        %v574 = vunpack.c.l.b16 %v460
        %v575 = vunpack.c.l.b16 %v461
        %v576 = vunpack.c.l.b16 %v462
        %v577 = vpack.c.b16 %v530, %v529
        %v578 = vpack.c.b16 %v532, %v531
        %v579 = vpack.c.b16 %v534, %v533
        %v580 = vpack.c.b16 %v536, %v535
        %v581 = vpack.c.b16 %v538, %v537
        %v582 = vpack.c.b16 %v540, %v539
        %v583 = vpack.c.b16 %v542, %v541
        %v584 = vpack.c.b16 %v544, %v543
        %v585 = vpack.c.b16 %v546, %v545
        %v586 = vpack.c.b16 %v548, %v547
        %v587 = vpack.c.b16 %v550, %v549
        %v588 = vpack.c.b16 %v552, %v551
        %v589 = vpack.c.b16 %v554, %v553
        %v590 = vpack.c.b16 %v556, %v555
        %v591 = vpack.c.b16 %v558, %v557
        %v592 = vpack.c.b16 %v560, %v559
        %v593 = vpack.c.b16 %v562, %v561
        %v594 = vpack.c.b16 %v564, %v563
        %v595 = vpack.c.b16 %v566, %v565
        %v596 = vpack.c.b16 %v568, %v567
        %v597 = vpack.c.b16 %v570, %v569
        %v598 = vpack.c.b16 %v572, %v571
        %v599 = vpack.c.b16 %v574, %v573
        %v600 = vpack.c.b16 %v576, %v575
        %625 = vmatprep.subr.bf16.mxu0 0
        %626 = vmatpush1.bf16.msra.mxu0 %v577
        %627 = vmatprep.subr.bf16.mxu0 0
        %628 = vmatpush1.bf16.msra.mxu0 %v578
        %629 = vmatprep.subr.bf16.mxu0 0
        %630 = vmatpush1.bf16.msra.mxu0 %v579
        %631 = vmatprep.subr.bf16.mxu0 0
        %632 = vmatpush1.bf16.msra.mxu0 %v580
        %633 = vmatprep.subr.bf16.mxu0 0
        %634 = vmatpush1.bf16.msra.mxu0 %v581
        %635 = vmatprep.subr.bf16.mxu0 0
        %636 = vmatpush1.bf16.msra.mxu0 %v582
        %637 = vmatprep.subr.bf16.mxu0 0
        %638 = vmatpush1.bf16.msra.mxu0 %v583
        %639 = vmatprep.subr.bf16.mxu0 0
        %640 = vmatpush1.bf16.msra.mxu0 %v584
        %641 = vmatprep.subr.bf16.mxu0 0
        %642 = vmatpush1.bf16.msra.mxu0 %v585
        %643 = vmatprep.subr.bf16.mxu0 0
        %644 = vmatpush1.bf16.msra.mxu0 %v586
        %645 = vmatprep.subr.bf16.mxu0 0
        %646 = vmatpush1.bf16.msra.mxu0 %v587
        %647 = vmatprep.subr.bf16.mxu0 0
        %648 = vmatpush1.bf16.msra.mxu0 %v588
        %649 = vmatprep.subr.bf16.mxu0 0
        %650 = vmatpush1.bf16.msra.mxu0 %v589
        %651 = vmatprep.subr.bf16.mxu0 0
        %652 = vmatpush1.bf16.msra.mxu0 %v590
        %653 = vmatprep.subr.bf16.mxu0 0
        %654 = vmatpush1.bf16.msra.mxu0 %v591
        %655 = vmatprep.subr.bf16.mxu0 0
        %656 = vmatpush1.bf16.msra.mxu0 %v592
        %657 = vmatprep.mubr.bf16.mxu0 %v476
        %658 = vmatmul.mubr.bf16.gmra.mrb[0].mxu0 %v475
        %v659 = vpop.f32.mrb[0].mxu0
        %v660 = vadd.f32 %v468, %v659
        %v661 = vpop.f32.mrb[0].mxu0
        %v662 = vpop.f32.mrb[0].mxu0
        %v663 = vpop.f32.mrb[0].mxu0
        %664 = vdwg.mxu0
        %665 = vmatprep.subr.bf16.mxu0 0
        %666 = vmatpush1.bf16.msra.mxu0 %v593
        %667 = vmatprep.subr.bf16.mxu0 0
        %668 = vmatpush1.bf16.msra.mxu0 %v594
        %669 = vmatprep.subr.bf16.mxu0 0
        %670 = vmatpush1.bf16.msra.mxu0 %v595
        %671 = vmatprep.subr.bf16.mxu0 0
        %672 = vmatpush1.bf16.msra.mxu0 %v596
        %673 = vmatprep.subr.bf16.mxu0 0
        %674 = vmatpush1.bf16.msra.mxu0 %v597
        %675 = vmatprep.subr.bf16.mxu0 0
        %676 = vmatpush1.bf16.msra.mxu0 %v598
        %677 = vmatprep.subr.bf16.mxu0 0
        %678 = vmatpush1.bf16.msra.mxu0 %v599
        %679 = vmatprep.subr.bf16.mxu0 0
        %680 = vmatpush1.bf16.msra.mxu0 %v600
        %681 = vmatprep.subr.bf16.mxu0 0
        %682 = vmatpush1.bf16.msra.mxu0 0
        %683 = vmatprep.subr.bf16.mxu0 0
        %684 = vmatpush1.bf16.msra.mxu0 0
        %685 = vmatprep.subr.bf16.mxu0 0
        %686 = vmatpush1.bf16.msra.mxu0 0
        %687 = vmatprep.subr.bf16.mxu0 0
        %688 = vmatpush1.bf16.msra.mxu0 0
        %689 = vmatprep.subr.bf16.mxu0 0
        %690 = vmatpush1.bf16.msra.mxu0 0
        %691 = vmatprep.subr.bf16.mxu0 0
        %692 = vmatpush1.bf16.msra.mxu0 0
        %693 = vmatprep.subr.bf16.mxu0 0
        %694 = vmatpush1.bf16.msra.mxu0 0
        %695 = vmatprep.subr.bf16.mxu0 0
        %696 = vmatpush1.bf16.msra.mxu0 0
        %697 = vmatprep.mubr.bf16.mxu0 0
        %698 = vmatmul.mubr.bf16.gmra.mrb[0].mxu0 %v477
        %v699 = vpop.f32.mrb[0].mxu0
        %v700 = vadd.f32 %v660, %v699
        %v701 = vpop.f32.mrb[0].mxu0
        %v702 = vpop.f32.mrb[0].mxu0
        %v703 = vpop.f32.mrb[0].mxu0
        %704 = vdwg.mxu0
        %v705 = vmax.f32 %v700, 0.0
        %v706 = vmin.f32 %v705, 6.0
        %v707 = vpack.c.bf16 %v706, %v706
        %708 = vst [vmem:[%s411] sm:$0xf] %v707
        %p709 = scmp.lt.s32.totalorder %s14, 2
        %s710 = scalar_select %p709, %s14, 2
        %s711 = smul.addr %s710, 4
        %s712 = scalar_lea.vmem %s3, %s711
        // Predicated region
        $region74: #{forward.34} parent=68 // pred_check
          %p713 = pneg %p105
        $region75: #{forward.34} parent=68 // pred_check_branch
          %715 = sbr.rel (%p713) target = $region77
        $region76: #{forward.34} parent=68 // pred_region
          _
        $region77: #{forward.34} parent=68 // pred_fallthru
          _
      $region69: #{forward.34} parent=5 // pred_fallthru
        _
      %p716 = scmp.le.s32.totalorder 2, %s9
      // Predicated region
      $region78: #{forward.34} parent=5 // pred_check
        %p717 = pneg %p716
      $region79: #{forward.34} parent=5 // pred_check_branch
        %719 = sbr.rel (%p717) target = $region81
      $region80: #{forward.34} parent=5 // pred_region
        %s720 = ssub.s32 %s9, 2
        // Predicated region
        $region82: #{forward.34} parent=80 // pred_check
          %p721 = pneg %p111
        $region83: #{forward.34} parent=80 // pred_check_branch
          %723 = sbr.rel (%p721) target = $region85
        $region84: #{forward.34} parent=80 // pred_region
          %p724 = scmp.lt.s32.totalorder %s15, 2
          %s725 = scalar_select %p724, %s15, 2
          %s726 = smul.addr %s725, 4
          %s727 = scalar_lea.vmem %s3, %s726
        $region85: #{forward.34} parent=80 // pred_fallthru
          _
      $region81: #{forward.34} parent=5 // pred_fallthru
        _
    $region6: #{forward.34} parent=1 // loop_footer
      %s13 = sadd.s32 1, %s9
    $region7: #{forward.34} parent=1 // loop_footer_branch
      %8 = sbr.rel target = $region3
    $region8: #{forward.34} parent=1 // loop_exit
      _

// kernel: forward.35
$region0: #{forward.35}
  #allocation0 [shape = 'u32[]', space=smem, size = 0x4, offset = 0x4, fixed_abs, tag = 'smem constant byte address 0x4 - core index']
  #allocation1 [shape = 'u32[144,128]{1,0:T(1,128)}', space=vmem, size = 0x12000, scoped, tag = 'internal scratch']
  %s0 = inlined_call_operand.vmem [shape: bf16[8,384], index: 0, kind: input, shape index: {}]
  %s1 = inlined_call_operand.vmem [shape: bf16[384,1280], index: 1, kind: input, shape index: {}]
  %s2 = inlined_call_operand.vmem [shape: f32[1,1280], index: 2, kind: input, shape index: {}]
  %s3 = inlined_call_operand.vmem [shape: bf16[8,1280], index: 3, kind: output, shape index: {}]
  %s4 = sld [smem:[#allocation0]]
  $region83: #{forward.35} parent=0
    _
  %s6 = ssub.s32 1, %s4
  %s7 = scalar_select 0, %s6, %s4
  $region1: #{forward.35} parent=0
    #allocation2 [shape = 'u8[393216]{0}', space=vmem, size = 0x60000, scoped, tag = 'input window, operand 1']
    loop: start=0, step=1, limit=7
    $region2: #{forward.35} parent=1 // loop_pre_header
      _
    $region3: #{forward.35} parent=1 // loop_header
      %s9 = sphi 0, %s13
      %p10 = scmp.ge.s32.totalorder %s9, 7
      %s17 = sphi 0, %s17
      %s19 = sphi 0, %s17
      %s20 = sphi 0, %s19
      %s34 = sphi 0, %s20
      %s40 = sphi 0, %s42
      %s43 = sphi 0, %s40
      %s44 = sphi 0, %s43
      %s60 = sphi 0, %s44
      %s66 = sphi 0, %s68
      %s69 = sphi 0, %s66
      %s70 = sphi 0, %s69
      %s86 = sphi 0, %s70
      %s92 = sphi 0, %s94
      %s95 = sphi 0, %s92
      %s96 = sphi 0, %s95
      %s112 = sphi 0, %s96
    $region4: #{forward.35} parent=1 // loop_header_branch
      %12 = sbr.rel (%p10) target = $region8
    $region5: #{forward.35} parent=1 // loop_body
      %s14 = ssub.s32 %s9, 1
      %s15 = ssub.s32 %s9, 2
      %s16 = sadd.s32 %s9, 1
      %s18 = sadd.s32 %s17, 1
      %p21 = scmp.eq.s32.totalorder %s9, 4
      %p22 = scmp.ne.s32.totalorder %s17, %s19
      %p23 = scmp.eq.s32.totalorder %s9, 0
      %p24 = por %p22, %p23
      %p25 = scmp.ne.s32.totalorder %s17, %s19
      %p26 = scmp.eq.s32.totalorder %s14, 4
      %p27 = por %p25, %p26
      %p28 = scmp.ne.s32.totalorder %s19, %s20
      %p29 = scmp.eq.s32.totalorder %s14, 0
      %p30 = por %p28, %p29
      %p31 = scmp.ne.s32.totalorder %s19, %s20
      %p32 = scmp.eq.s32.totalorder %s15, 4
      %p33 = por %p31, %p32
      %p35 = scmp.ne.s32.totalorder %s20, %s34
      %p36 = scmp.eq.s32.totalorder %s15, 0
      %p37 = por %p35, %p36
      %s38 = ssub.s32 %s9, %s16
      %p39 = scmp.eq.s32.totalorder %s38, 0
      %s41 = sadd.s32 %s40, 1
      %s42 = scalar_select %p39, %s40, %s41
      %p45 = pneg %p39
      %p46 = scmp.eq.s32.totalorder %s9, 4
      %p47 = por %p45, %p46
      %p48 = scmp.ne.s32.totalorder %s40, %s43
      %p49 = scmp.eq.s32.totalorder %s9, 0
      %p50 = por %p48, %p49
      %p51 = scmp.ne.s32.totalorder %s40, %s43
      %p52 = scmp.eq.s32.totalorder %s14, 4
      %p53 = por %p51, %p52
      %p54 = scmp.ne.s32.totalorder %s43, %s44
      %p55 = scmp.eq.s32.totalorder %s14, 0
      %p56 = por %p54, %p55
      %p57 = scmp.ne.s32.totalorder %s43, %s44
      %p58 = scmp.eq.s32.totalorder %s15, 4
      %p59 = por %p57, %p58
      %p61 = scmp.ne.s32.totalorder %s44, %s60
      %p62 = scmp.eq.s32.totalorder %s15, 0
      %p63 = por %p61, %p62
      %s64 = ssub.s32 %s9, %s16
      %p65 = scmp.eq.s32.totalorder %s64, 0
      %s67 = sadd.s32 %s66, 1
      %s68 = scalar_select %p65, %s66, %s67
      %p71 = pneg %p65
      %p72 = scmp.eq.s32.totalorder %s9, 4
      %p73 = por %p71, %p72
      %p74 = scmp.ne.s32.totalorder %s66, %s69
      %p75 = scmp.eq.s32.totalorder %s9, 0
      %p76 = por %p74, %p75
      %p77 = scmp.ne.s32.totalorder %s66, %s69
      %p78 = scmp.eq.s32.totalorder %s14, 4
      %p79 = por %p77, %p78
      %p80 = scmp.ne.s32.totalorder %s69, %s70
      %p81 = scmp.eq.s32.totalorder %s14, 0
      %p82 = por %p80, %p81
      %p83 = scmp.ne.s32.totalorder %s69, %s70
      %p84 = scmp.eq.s32.totalorder %s15, 4
      %p85 = por %p83, %p84
      %p87 = scmp.ne.s32.totalorder %s70, %s86
      %p88 = scmp.eq.s32.totalorder %s15, 0
      %p89 = por %p87, %p88
      %s90 = ssub.s32 %s9, %s16
      %p91 = scmp.eq.s32.totalorder %s90, 0
      %s93 = sadd.s32 %s92, 1
      %s94 = scalar_select %p91, %s92, %s93
      %p97 = pneg %p91
      %p98 = scmp.eq.s32.totalorder %s9, 4
      %p99 = por %p97, %p98
      %p100 = scmp.ne.s32.totalorder %s92, %s95
      %p101 = scmp.eq.s32.totalorder %s9, 0
      %p102 = por %p100, %p101
      %p103 = scmp.ne.s32.totalorder %s92, %s95
      %p104 = scmp.eq.s32.totalorder %s14, 4
      %p105 = por %p103, %p104
      %p106 = scmp.ne.s32.totalorder %s95, %s96
      %p107 = scmp.eq.s32.totalorder %s14, 0
      %p108 = por %p106, %p107
      %p109 = scmp.ne.s32.totalorder %s95, %s96
      %p110 = scmp.eq.s32.totalorder %s15, 4
      %p111 = por %p109, %p110
      %p113 = scmp.ne.s32.totalorder %s96, %s112
      %p114 = scmp.eq.s32.totalorder %s15, 0
      %p115 = por %p113, %p114
      %p116 = scmp.le.s32.totalorder 1, %s9
      %p117 = scmp.lt.s32.totalorder %s9, 6
      %p118 = pnand %p116, %p117
      %p119 = pneg %p118
      // Predicated region
      $region9: #{forward.35} parent=5 // pred_check
        _
      $region10: #{forward.35} parent=5 // pred_check_branch
        %121 = sbr.rel (%p118) target = $region12
      $region11: #{forward.35} parent=5 // pred_region
        %s122 = ssub.s32 %s9, 1
        // Predicated region
        $region13: #{forward.35} parent=11 // pred_check
          %p123 = pneg %p30
        $region14: #{forward.35} parent=11 // pred_check_branch
          %125 = sbr.rel (%p123) target = $region16
        $region15: #{forward.35} parent=11 // pred_region
          _
        $region16: #{forward.35} parent=11 // pred_fallthru
          _
      $region12: #{forward.35} parent=5 // pred_fallthru
        _
      %p126 = scmp.lt.s32.totalorder %s9, 5
      // Predicated region
      $region17: #{forward.35} parent=5 // pred_check
        %p127 = pneg %p126
      $region18: #{forward.35} parent=5 // pred_check_branch
        %129 = sbr.rel (%p127) target = $region20
      $region19: #{forward.35} parent=5 // pred_region
        // Predicated region
        $region21: #{forward.35} parent=19 // pred_check
          %p130 = pneg %p50
        $region22: #{forward.35} parent=19 // pred_check_branch
          %132 = sbr.rel (%p130) target = $region24
        $region23: #{forward.35} parent=19 // pred_region
          %s133 = sand.u32 %s40, 1
          %s134 = sand.u32 %s40, 1
          %s135 = smul.addr %s134, 384
          %s136 = scalar_lea.vmem [#allocation2], %s135
          %s137 = smul.u32 2, %s9
          %s138 = smul.addr %s137, 4
          %s139 = scalar_lea.vmem %s1, %s138
          // Predicated region
          $region25: #{forward.35} parent=23 // pred_check
            _
          $region26: #{forward.35} parent=23 // pred_check_branch
            %141 = sbr.rel (0) target = $region28
          $region27: #{forward.35} parent=23 // pred_region
            // Predicated region
            $region29: #{forward.35} parent=27 // pred_check
              _
            $region30: #{forward.35} parent=27 // pred_check_branch
              %143 = sbr.rel (0) target = $region32
            $region31: #{forward.35} parent=27 // pred_region
              // Predicated region
              $region44: #{forward.35} parent=31 // pred_check
                _
              $region45: #{forward.35} parent=31 // pred_check_branch
                %252 = sbr.rel (0) target = $region47
              $region46: #{forward.35} parent=31 // pred_region
                loop: start=0, step=1, limit=1
                $region48: #{forward.35} parent=46 // loop_pre_header
                  _
                $region49: #{forward.35} parent=46 // loop_header
                  %s254 = sphi 0, %s258
                  %p255 = scmp.ge.s32.totalorder %s254, 1
                  %s259 = sphi %s139, %s139
                  %s260 = sphi %s136, %s136
                $region50: #{forward.35} parent=46 // loop_header_branch
                  %257 = sbr.rel (%p255) target = $region54
                $region51: #{forward.35} parent=46 // loop_body
                  %v261 = vld [vmem:[%s259] sm:$0xff]
                  %262 = vst [vmem:[%s260] sm:$0xff] %v261
                  %v263 = vld [vmem:[%s259 + $0x28] sm:$0xff]
                  %264 = vst [vmem:[%s260 + $0x8] sm:$0xff] %v263
                  %v265 = vld [vmem:[%s259 + $0x50] sm:$0xff]
                  %266 = vst [vmem:[%s260 + $0x10] sm:$0xff] %v265
                  %v267 = vld [vmem:[%s259 + $0x78] sm:$0xff]
                  %268 = vst [vmem:[%s260 + $0x18] sm:$0xff] %v267
                  %v269 = vld [vmem:[%s259 + $0xa0] sm:$0xff]
                  %270 = vst [vmem:[%s260 + $0x20] sm:$0xff] %v269
                  %v271 = vld [vmem:[%s259 + $0xc8] sm:$0xff]
                  %272 = vst [vmem:[%s260 + $0x28] sm:$0xff] %v271
                  %v273 = vld [vmem:[%s259 + $0xf0] sm:$0xff]
                  %274 = vst [vmem:[%s260 + $0x30] sm:$0xff] %v273
                  %v275 = vld [vmem:[%s259 + $0x118] sm:$0xff]
                  %276 = vst [vmem:[%s260 + $0x38] sm:$0xff] %v275
                  %v277 = vld [vmem:[%s259 + $0x140] sm:$0xff]
                  %278 = vst [vmem:[%s260 + $0x40] sm:$0xff] %v277
                  %v279 = vld [vmem:[%s259 + $0x168] sm:$0xff]
                  %280 = vst [vmem:[%s260 + $0x48] sm:$0xff] %v279
                  %v281 = vld [vmem:[%s259 + $0x190] sm:$0xff]
                  %282 = vst [vmem:[%s260 + $0x50] sm:$0xff] %v281
                  %v283 = vld [vmem:[%s259 + $0x1b8] sm:$0xff]
                  %284 = vst [vmem:[%s260 + $0x58] sm:$0xff] %v283
                  %v285 = vld [vmem:[%s259 + $0x1e0] sm:$0xff]
                  %286 = vst [vmem:[%s260 + $0x60] sm:$0xff] %v285
                  %v287 = vld [vmem:[%s259 + $0x208] sm:$0xff]
                  %288 = vst [vmem:[%s260 + $0x68] sm:$0xff] %v287
                  %v289 = vld [vmem:[%s259 + $0x230] sm:$0xff]
                  %290 = vst [vmem:[%s260 + $0x70] sm:$0xff] %v289
                  %v291 = vld [vmem:[%s259 + $0x258] sm:$0xff]
                  %292 = vst [vmem:[%s260 + $0x78] sm:$0xff] %v291
                  %v293 = vld [vmem:[%s259 + $0x280] sm:$0xff]
                  %294 = vst [vmem:[%s260 + $0x80] sm:$0xff] %v293
                  %v295 = vld [vmem:[%s259 + $0x2a8] sm:$0xff]
                  %296 = vst [vmem:[%s260 + $0x88] sm:$0xff] %v295
                  %v297 = vld [vmem:[%s259 + $0x2d0] sm:$0xff]
                  %298 = vst [vmem:[%s260 + $0x90] sm:$0xff] %v297
                  %v299 = vld [vmem:[%s259 + $0x2f8] sm:$0xff]
                  %300 = vst [vmem:[%s260 + $0x98] sm:$0xff] %v299
                  %v301 = vld [vmem:[%s259 + $0x320] sm:$0xff]
                  %302 = vst [vmem:[%s260 + $0xa0] sm:$0xff] %v301
                  %v303 = vld [vmem:[%s259 + $0x348] sm:$0xff]
                  %304 = vst [vmem:[%s260 + $0xa8] sm:$0xff] %v303
                  %v305 = vld [vmem:[%s259 + $0x370] sm:$0xff]
                  %306 = vst [vmem:[%s260 + $0xb0] sm:$0xff] %v305
                  %v307 = vld [vmem:[%s259 + $0x398] sm:$0xff]
                  %308 = vst [vmem:[%s260 + $0xb8] sm:$0xff] %v307
                  %v309 = vld [vmem:[%s259 + $0x3c0] sm:$0xff]
                  %310 = vst [vmem:[%s260 + $0xc0] sm:$0xff] %v309
                  %v311 = vld [vmem:[%s259 + $0x3e8] sm:$0xff]
                  %312 = vst [vmem:[%s260 + $0xc8] sm:$0xff] %v311
                  %v313 = vld [vmem:[%s259 + $0x410] sm:$0xff]
                  %314 = vst [vmem:[%s260 + $0xd0] sm:$0xff] %v313
                  %v315 = vld [vmem:[%s259 + $0x438] sm:$0xff]
                  %316 = vst [vmem:[%s260 + $0xd8] sm:$0xff] %v315
                  %v317 = vld [vmem:[%s259 + $0x460] sm:$0xff]
                  %318 = vst [vmem:[%s260 + $0xe0] sm:$0xff] %v317
                  %v319 = vld [vmem:[%s259 + $0x488] sm:$0xff]
                  %320 = vst [vmem:[%s260 + $0xe8] sm:$0xff] %v319
                  %v321 = vld [vmem:[%s259 + $0x4b0] sm:$0xff]
                  %322 = vst [vmem:[%s260 + $0xf0] sm:$0xff] %v321
                  %v323 = vld [vmem:[%s259 + $0x4d8] sm:$0xff]
                  %324 = vst [vmem:[%s260 + $0xf8] sm:$0xff] %v323
                  %v325 = vld [vmem:[%s259 + $0x500] sm:$0xff]
                  %326 = vst [vmem:[%s260 + $0x100] sm:$0xff] %v325
                  %v327 = vld [vmem:[%s259 + $0x528] sm:$0xff]
                  %328 = vst [vmem:[%s260 + $0x108] sm:$0xff] %v327
                  %v329 = vld [vmem:[%s259 + $0x550] sm:$0xff]
                  %330 = vst [vmem:[%s260 + $0x110] sm:$0xff] %v329
                  %v331 = vld [vmem:[%s259 + $0x578] sm:$0xff]
                  %332 = vst [vmem:[%s260 + $0x118] sm:$0xff] %v331
                  %v333 = vld [vmem:[%s259 + $0x5a0] sm:$0xff]
                  %334 = vst [vmem:[%s260 + $0x120] sm:$0xff] %v333
                  %v335 = vld [vmem:[%s259 + $0x5c8] sm:$0xff]
                  %336 = vst [vmem:[%s260 + $0x128] sm:$0xff] %v335
                  %v337 = vld [vmem:[%s259 + $0x5f0] sm:$0xff]
                  %338 = vst [vmem:[%s260 + $0x130] sm:$0xff] %v337
                  %v339 = vld [vmem:[%s259 + $0x618] sm:$0xff]
                  %340 = vst [vmem:[%s260 + $0x138] sm:$0xff] %v339
                  %v341 = vld [vmem:[%s259 + $0x640] sm:$0xff]
                  %342 = vst [vmem:[%s260 + $0x140] sm:$0xff] %v341
                  %v343 = vld [vmem:[%s259 + $0x668] sm:$0xff]
                  %344 = vst [vmem:[%s260 + $0x148] sm:$0xff] %v343
                  %v345 = vld [vmem:[%s259 + $0x690] sm:$0xff]
                  %346 = vst [vmem:[%s260 + $0x150] sm:$0xff] %v345
                  %v347 = vld [vmem:[%s259 + $0x6b8] sm:$0xff]
                  %348 = vst [vmem:[%s260 + $0x158] sm:$0xff] %v347
                  %v349 = vld [vmem:[%s259 + $0x6e0] sm:$0xff]
                  %350 = vst [vmem:[%s260 + $0x160] sm:$0xff] %v349
                  %v351 = vld [vmem:[%s259 + $0x708] sm:$0xff]
                  %352 = vst [vmem:[%s260 + $0x168] sm:$0xff] %v351
                  %v353 = vld [vmem:[%s259 + $0x730] sm:$0xff]
                  %354 = vst [vmem:[%s260 + $0x170] sm:$0xff] %v353
                  %v355 = vld [vmem:[%s259 + $0x758] sm:$0xff]
                  %356 = vst [vmem:[%s260 + $0x178] sm:$0xff] %v355
                $region52: #{forward.35} parent=46 // loop_footer
                  %s258 = sadd.s32 1, %s254
                $region53: #{forward.35} parent=46 // loop_footer_branch
                  %253 = sbr.rel target = $region49
                $region54: #{forward.35} parent=46 // loop_exit
                  _
              $region47: #{forward.35} parent=31 // pred_fallthru
                _
              // Predicated region
              $region55: #{forward.35} parent=31 // pred_check
                _
              $region56: #{forward.35} parent=31 // pred_check_branch
                %358 = sbr.rel target = $region58
              $region57: #{forward.35} parent=31 // pred_region
                _
              $region58: #{forward.35} parent=31 // pred_fallthru
                _
            $region32: #{forward.35} parent=27 // pred_fallthru
              _
            // Predicated region
            $region33: #{forward.35} parent=27 // pred_check
              _
            $region34: #{forward.35} parent=27 // pred_check_branch
              %145 = sbr.rel target = $region36
            $region35: #{forward.35} parent=27 // pred_region
              loop: start=0, step=1, limit=1
              $region37: #{forward.35} parent=35 // loop_pre_header
                _
              $region38: #{forward.35} parent=35 // loop_header
                %s148 = sphi 0, %s152
                %p149 = scmp.ge.s32.totalorder %s148, 1
                %s153 = sphi %s139, %s139
                %s154 = sphi %s136, %s136
              $region39: #{forward.35} parent=35 // loop_header_branch
                %151 = sbr.rel (%p149) target = $region43
              $region40: #{forward.35} parent=35 // loop_body
                %v155 = vld [vmem:[%s153] sm:$0xff]
                %156 = vst [vmem:[%s154] sm:$0xff] %v155
                %v157 = vld [vmem:[%s153 + $0x28] sm:$0xff]
                %158 = vst [vmem:[%s154 + $0x8] sm:$0xff] %v157
                %v159 = vld [vmem:[%s153 + $0x50] sm:$0xff]
                %160 = vst [vmem:[%s154 + $0x10] sm:$0xff] %v159
                %v161 = vld [vmem:[%s153 + $0x78] sm:$0xff]
                %162 = vst [vmem:[%s154 + $0x18] sm:$0xff] %v161
                %v163 = vld [vmem:[%s153 + $0xa0] sm:$0xff]
                %164 = vst [vmem:[%s154 + $0x20] sm:$0xff] %v163
                %v165 = vld [vmem:[%s153 + $0xc8] sm:$0xff]
                %166 = vst [vmem:[%s154 + $0x28] sm:$0xff] %v165
                %v167 = vld [vmem:[%s153 + $0xf0] sm:$0xff]
                %168 = vst [vmem:[%s154 + $0x30] sm:$0xff] %v167
                %v169 = vld [vmem:[%s153 + $0x118] sm:$0xff]
                %170 = vst [vmem:[%s154 + $0x38] sm:$0xff] %v169
                %v171 = vld [vmem:[%s153 + $0x140] sm:$0xff]
                %172 = vst [vmem:[%s154 + $0x40] sm:$0xff] %v171
                %v173 = vld [vmem:[%s153 + $0x168] sm:$0xff]
                %174 = vst [vmem:[%s154 + $0x48] sm:$0xff] %v173
                %v175 = vld [vmem:[%s153 + $0x190] sm:$0xff]
                %176 = vst [vmem:[%s154 + $0x50] sm:$0xff] %v175
                %v177 = vld [vmem:[%s153 + $0x1b8] sm:$0xff]
                %178 = vst [vmem:[%s154 + $0x58] sm:$0xff] %v177
                %v179 = vld [vmem:[%s153 + $0x1e0] sm:$0xff]
                %180 = vst [vmem:[%s154 + $0x60] sm:$0xff] %v179
                %v181 = vld [vmem:[%s153 + $0x208] sm:$0xff]
                %182 = vst [vmem:[%s154 + $0x68] sm:$0xff] %v181
                %v183 = vld [vmem:[%s153 + $0x230] sm:$0xff]
                %184 = vst [vmem:[%s154 + $0x70] sm:$0xff] %v183
                %v185 = vld [vmem:[%s153 + $0x258] sm:$0xff]
                %186 = vst [vmem:[%s154 + $0x78] sm:$0xff] %v185
                %v187 = vld [vmem:[%s153 + $0x280] sm:$0xff]
                %188 = vst [vmem:[%s154 + $0x80] sm:$0xff] %v187
                %v189 = vld [vmem:[%s153 + $0x2a8] sm:$0xff]
                %190 = vst [vmem:[%s154 + $0x88] sm:$0xff] %v189
                %v191 = vld [vmem:[%s153 + $0x2d0] sm:$0xff]
                %192 = vst [vmem:[%s154 + $0x90] sm:$0xff] %v191
                %v193 = vld [vmem:[%s153 + $0x2f8] sm:$0xff]
                %194 = vst [vmem:[%s154 + $0x98] sm:$0xff] %v193
                %v195 = vld [vmem:[%s153 + $0x320] sm:$0xff]
                %196 = vst [vmem:[%s154 + $0xa0] sm:$0xff] %v195
                %v197 = vld [vmem:[%s153 + $0x348] sm:$0xff]
                %198 = vst [vmem:[%s154 + $0xa8] sm:$0xff] %v197
                %v199 = vld [vmem:[%s153 + $0x370] sm:$0xff]
                %200 = vst [vmem:[%s154 + $0xb0] sm:$0xff] %v199
                %v201 = vld [vmem:[%s153 + $0x398] sm:$0xff]
                %202 = vst [vmem:[%s154 + $0xb8] sm:$0xff] %v201
                %v203 = vld [vmem:[%s153 + $0x3c0] sm:$0xff]
                %204 = vst [vmem:[%s154 + $0xc0] sm:$0xff] %v203
                %v205 = vld [vmem:[%s153 + $0x3e8] sm:$0xff]
                %206 = vst [vmem:[%s154 + $0xc8] sm:$0xff] %v205
                %v207 = vld [vmem:[%s153 + $0x410] sm:$0xff]
                %208 = vst [vmem:[%s154 + $0xd0] sm:$0xff] %v207
                %v209 = vld [vmem:[%s153 + $0x438] sm:$0xff]
                %210 = vst [vmem:[%s154 + $0xd8] sm:$0xff] %v209
                %v211 = vld [vmem:[%s153 + $0x460] sm:$0xff]
                %212 = vst [vmem:[%s154 + $0xe0] sm:$0xff] %v211
                %v213 = vld [vmem:[%s153 + $0x488] sm:$0xff]
                %214 = vst [vmem:[%s154 + $0xe8] sm:$0xff] %v213
                %v215 = vld [vmem:[%s153 + $0x4b0] sm:$0xff]
                %216 = vst [vmem:[%s154 + $0xf0] sm:$0xff] %v215
                %v217 = vld [vmem:[%s153 + $0x4d8] sm:$0xff]
                %218 = vst [vmem:[%s154 + $0xf8] sm:$0xff] %v217
                %v219 = vld [vmem:[%s153 + $0x500] sm:$0xff]
                %220 = vst [vmem:[%s154 + $0x100] sm:$0xff] %v219
                %v221 = vld [vmem:[%s153 + $0x528] sm:$0xff]
                %222 = vst [vmem:[%s154 + $0x108] sm:$0xff] %v221
                %v223 = vld [vmem:[%s153 + $0x550] sm:$0xff]
                %224 = vst [vmem:[%s154 + $0x110] sm:$0xff] %v223
                %v225 = vld [vmem:[%s153 + $0x578] sm:$0xff]
                %226 = vst [vmem:[%s154 + $0x118] sm:$0xff] %v225
                %v227 = vld [vmem:[%s153 + $0x5a0] sm:$0xff]
                %228 = vst [vmem:[%s154 + $0x120] sm:$0xff] %v227
                %v229 = vld [vmem:[%s153 + $0x5c8] sm:$0xff]
                %230 = vst [vmem:[%s154 + $0x128] sm:$0xff] %v229
                %v231 = vld [vmem:[%s153 + $0x5f0] sm:$0xff]
                %232 = vst [vmem:[%s154 + $0x130] sm:$0xff] %v231
                %v233 = vld [vmem:[%s153 + $0x618] sm:$0xff]
                %234 = vst [vmem:[%s154 + $0x138] sm:$0xff] %v233
                %v235 = vld [vmem:[%s153 + $0x640] sm:$0xff]
                %236 = vst [vmem:[%s154 + $0x140] sm:$0xff] %v235
                %v237 = vld [vmem:[%s153 + $0x668] sm:$0xff]
                %238 = vst [vmem:[%s154 + $0x148] sm:$0xff] %v237
                %v239 = vld [vmem:[%s153 + $0x690] sm:$0xff]
                %240 = vst [vmem:[%s154 + $0x150] sm:$0xff] %v239
                %v241 = vld [vmem:[%s153 + $0x6b8] sm:$0xff]
                %242 = vst [vmem:[%s154 + $0x158] sm:$0xff] %v241
                %v243 = vld [vmem:[%s153 + $0x6e0] sm:$0xff]
                %244 = vst [vmem:[%s154 + $0x160] sm:$0xff] %v243
                %v245 = vld [vmem:[%s153 + $0x708] sm:$0xff]
                %246 = vst [vmem:[%s154 + $0x168] sm:$0xff] %v245
                %v247 = vld [vmem:[%s153 + $0x730] sm:$0xff]
                %248 = vst [vmem:[%s154 + $0x170] sm:$0xff] %v247
                %v249 = vld [vmem:[%s153 + $0x758] sm:$0xff]
                %250 = vst [vmem:[%s154 + $0x178] sm:$0xff] %v249
              $region41: #{forward.35} parent=35 // loop_footer
                %s152 = sadd.s32 1, %s148
              $region42: #{forward.35} parent=35 // loop_footer_branch
                %147 = sbr.rel target = $region38
              $region43: #{forward.35} parent=35 // loop_exit
                _
            $region36: #{forward.35} parent=27 // pred_fallthru
              _
          $region28: #{forward.35} parent=23 // pred_fallthru
            _
          %359 = vnop
        $region24: #{forward.35} parent=19 // pred_fallthru
          _
        // Predicated region
        $region59: #{forward.35} parent=19 // pred_check
          %p360 = pneg %p76
        $region60: #{forward.35} parent=19 // pred_check_branch
          %362 = sbr.rel (%p360) target = $region62
        $region61: #{forward.35} parent=19 // pred_region
          %s363 = smul.u32 2, %s9
          %p364 = scmp.lt.s32.totalorder %s363, 9
          %s365 = scalar_select %p364, %s363, 9
          %s366 = scalar_lea.vmem %s2, %s365
          %s367 = smul.u32 2, %s9
        $region62: #{forward.35} parent=19 // pred_fallthru
          _
      $region20: #{forward.35} parent=5 // pred_fallthru
        _
      %p368 = scmp.le.s32.totalorder 1, %s9
      %p369 = scmp.lt.s32.totalorder %s9, 6
      %p370 = pnand %p368, %p369
      %p371 = pneg %p370
      // Predicated region
      $region63: #{forward.35} parent=5 // pred_check
        _
      $region64: #{forward.35} parent=5 // pred_check_branch
        %373 = sbr.rel (%p370) target = $region66
      $region65: #{forward.35} parent=5 // pred_region
        %s374 = ssub.s32 %s9, 1
        %s375 = sand.u32 %s43, 1
        %s376 = sand.u32 %s43, 1
        %s377 = smul.addr %s376, 384
        %s378 = scalar_lea.vmem [#allocation2], %s377
        // Predicated region
        $region67: #{forward.35} parent=65 // pred_check
          %p379 = pneg %p56
        $region68: #{forward.35} parent=65 // pred_check_branch
          %381 = sbr.rel (%p379) target = $region70
        $region69: #{forward.35} parent=65 // pred_region
          _
        $region70: #{forward.35} parent=65 // pred_fallthru
          _
        %p382 = pneg %p30
        %p383 = pneg %p27
        %s384 = sand.u32 %s43, 1
        %s385 = sand.u32 %s43, 1
        %s386 = smul.addr %s385, 384
        %s387 = scalar_lea.vmem [#allocation2], %s386
        %p388 = pneg %p56
        %p389 = pneg %p53
        %s390 = smul.u32 2, %s14
        %p391 = scmp.lt.s32.totalorder %s390, 9
        %s392 = scalar_select %p391, %s390, 9
        %s393 = scalar_lea.vmem %s2, %s392
        %p394 = pneg %p82
        %p395 = pneg %p79
        %p396 = pneg %p108
        %p397 = pneg %p105
        %s398 = smul.u32 2, %s14
        %p399 = scmp.lt.s32.totalorder %s398, 9
        %s400 = scalar_select %p399, %s398, 9
        %s401 = smul.addr %s400, 4
        %s402 = scalar_lea.vmem %s3, %s401
        %s403 = smul.u32 2, %s14
        %s404 = smul.u32 2, %s14
        %p405 = scmp.lt.s32.totalorder %s404, 9
        %s406 = scalar_select %p405, %s404, 9
        %s407 = scalar_lea.vmem %s2, %s406
        %s408 = smul.u32 2, %s14
        %s409 = smul.u32 2, %s14
        %p410 = scmp.lt.s32.totalorder %s409, 9
        %s411 = scalar_select %p410, %s409, 9
        %s412 = smul.addr %s411, 4
        %s413 = scalar_lea.vmem %s3, %s412
        %s414 = smul.u32 2, %s14
        %v416 = vld [vmem:[%s0] sm:$0xff]
        %v417 = vld [vmem:[%s0 + $0x8] sm:$0xf]
        %v418 = vld [vmem:[%s378] sm:$0xff]
        %v419 = vld [vmem:[%s378 + $0x8] sm:$0xff]
        %v420 = vld [vmem:[%s378 + $0x10] sm:$0xff]
        %v421 = vld [vmem:[%s378 + $0x18] sm:$0xff]
        %v422 = vld [vmem:[%s378 + $0x20] sm:$0xff]
        %v423 = vld [vmem:[%s378 + $0x28] sm:$0xff]
        %v424 = vld [vmem:[%s378 + $0x30] sm:$0xff]
        %v425 = vld [vmem:[%s378 + $0x38] sm:$0xff]
        %v426 = vld [vmem:[%s378 + $0x40] sm:$0xff]
        %v427 = vld [vmem:[%s378 + $0x48] sm:$0xff]
        %v428 = vld [vmem:[%s378 + $0x50] sm:$0xff]
        %v429 = vld [vmem:[%s378 + $0x58] sm:$0xff]
        %v430 = vld [vmem:[%s378 + $0x60] sm:$0xff]
        %v431 = vld [vmem:[%s378 + $0x68] sm:$0xff]
        %v432 = vld [vmem:[%s378 + $0x70] sm:$0xff]
        %v433 = vld [vmem:[%s378 + $0x78] sm:$0xff]
        %v434 = vld [vmem:[%s378 + $0x80] sm:$0xff]
        %v435 = vld [vmem:[%s378 + $0x88] sm:$0xff]
        %v436 = vld [vmem:[%s378 + $0x90] sm:$0xff]
        %v437 = vld [vmem:[%s378 + $0x98] sm:$0xff]
        %v438 = vld [vmem:[%s378 + $0xa0] sm:$0xff]
        %v439 = vld [vmem:[%s378 + $0xa8] sm:$0xff]
        %v440 = vld [vmem:[%s378 + $0xb0] sm:$0xff]
        %v441 = vld [vmem:[%s378 + $0xb8] sm:$0xff]
        %v442 = vld [vmem:[%s378 + $0xc0] sm:$0xff]
        %v443 = vld [vmem:[%s378 + $0xc8] sm:$0xff]
        %v444 = vld [vmem:[%s378 + $0xd0] sm:$0xff]
        %v445 = vld [vmem:[%s378 + $0xd8] sm:$0xff]
        %v446 = vld [vmem:[%s378 + $0xe0] sm:$0xff]
        %v447 = vld [vmem:[%s378 + $0xe8] sm:$0xff]
        %v448 = vld [vmem:[%s378 + $0xf0] sm:$0xff]
        %v449 = vld [vmem:[%s378 + $0xf8] sm:$0xff]
        %v450 = vld [vmem:[%s378 + $0x100] sm:$0xff]
        %v451 = vld [vmem:[%s378 + $0x108] sm:$0xff]
        %v452 = vld [vmem:[%s378 + $0x110] sm:$0xff]
        %v453 = vld [vmem:[%s378 + $0x118] sm:$0xff]
        %v454 = vld [vmem:[%s378 + $0x120] sm:$0xff]
        %v455 = vld [vmem:[%s378 + $0x128] sm:$0xff]
        %v456 = vld [vmem:[%s378 + $0x130] sm:$0xff]
        %v457 = vld [vmem:[%s378 + $0x138] sm:$0xff]
        %v458 = vld [vmem:[%s378 + $0x140] sm:$0xff]
        %v459 = vld [vmem:[%s378 + $0x148] sm:$0xff]
        %v460 = vld [vmem:[%s378 + $0x150] sm:$0xff]
        %v461 = vld [vmem:[%s378 + $0x158] sm:$0xff]
        %v462 = vld [vmem:[%s378 + $0x160] sm:$0xff]
        %v463 = vld [vmem:[%s378 + $0x168] sm:$0xff]
        %v464 = vld [vmem:[%s378 + $0x170] sm:$0xff]
        %v465 = vld [vmem:[%s378 + $0x178] sm:$0xff]
        %v466 = vld [vmem:[%s407] sm:$0x3]
        %v468 = vlaneseq
        %v469 = vshrl.u32 %v468, 7
        %v470 = vsub.s32 0, %v469
        %v471 = vrot.slane %v466, %v470
        %v472 = vlaneseq
        %v473 = vshrl.u32 %v472, 7
        %v474 = vsub.s32 1, %v473
        %v475 = vrot.slane %v466, %v474
        %v480 = vunpack.c.l.b16 %v416
        %v481 = vunpack.c.h.b16 %v416
        %v482 = vunpack.c.l.b16 %v417
        %v483 = vpack.c.b16 %v480, %v480
        %v484 = vpack.c.b16 %v481, %v481
        %v485 = vpack.c.b16 %v482, %v482
        %v537 = vunpack.c.l.b16 %v418
        %v538 = vunpack.c.h.b16 %v418
        %v539 = vunpack.c.l.b16 %v419
        %v540 = vunpack.c.h.b16 %v419
        %v541 = vunpack.c.l.b16 %v420
        %v542 = vunpack.c.h.b16 %v420
        %v543 = vunpack.c.l.b16 %v421
        %v544 = vunpack.c.h.b16 %v421
        %v545 = vunpack.c.l.b16 %v422
        %v546 = vunpack.c.h.b16 %v422
        %v547 = vunpack.c.l.b16 %v423
        %v548 = vunpack.c.h.b16 %v423
        %v549 = vunpack.c.l.b16 %v424
        %v550 = vunpack.c.h.b16 %v424
        %v551 = vunpack.c.l.b16 %v425
        %v552 = vunpack.c.h.b16 %v425
        %v553 = vunpack.c.l.b16 %v426
        %v554 = vunpack.c.h.b16 %v426
        %v555 = vunpack.c.l.b16 %v427
        %v556 = vunpack.c.h.b16 %v427
        %v557 = vunpack.c.l.b16 %v428
        %v558 = vunpack.c.h.b16 %v428
        %v559 = vunpack.c.l.b16 %v429
        %v560 = vunpack.c.h.b16 %v429
        %v561 = vunpack.c.l.b16 %v430
        %v562 = vunpack.c.h.b16 %v430
        %v563 = vunpack.c.l.b16 %v431
        %v564 = vunpack.c.h.b16 %v431
        %v565 = vunpack.c.l.b16 %v432
        %v566 = vunpack.c.h.b16 %v432
        %v567 = vunpack.c.l.b16 %v433
        %v568 = vunpack.c.h.b16 %v433
        %v569 = vunpack.c.l.b16 %v434
        %v570 = vunpack.c.h.b16 %v434
        %v571 = vunpack.c.l.b16 %v435
        %v572 = vunpack.c.h.b16 %v435
        %v573 = vunpack.c.l.b16 %v436
        %v574 = vunpack.c.h.b16 %v436
        %v575 = vunpack.c.l.b16 %v437
        %v576 = vunpack.c.h.b16 %v437
        %v577 = vunpack.c.l.b16 %v438
        %v578 = vunpack.c.h.b16 %v438
        %v579 = vunpack.c.l.b16 %v439
        %v580 = vunpack.c.h.b16 %v439
        %v581 = vunpack.c.l.b16 %v440
        %v582 = vunpack.c.h.b16 %v440
        %v583 = vunpack.c.l.b16 %v441
        %v584 = vunpack.c.h.b16 %v441
        %v585 = vunpack.c.l.b16 %v442
        %v586 = vunpack.c.h.b16 %v442
        %v587 = vunpack.c.l.b16 %v443
        %v588 = vunpack.c.h.b16 %v443
        %v589 = vunpack.c.l.b16 %v444
        %v590 = vunpack.c.h.b16 %v444
        %v591 = vunpack.c.l.b16 %v445
        %v592 = vunpack.c.h.b16 %v445
        %v593 = vunpack.c.l.b16 %v446
        %v594 = vunpack.c.h.b16 %v446
        %v595 = vunpack.c.l.b16 %v447
        %v596 = vunpack.c.h.b16 %v447
        %v597 = vunpack.c.l.b16 %v448
        %v598 = vunpack.c.h.b16 %v448
        %v599 = vunpack.c.l.b16 %v449
        %v600 = vunpack.c.h.b16 %v449
        %v601 = vunpack.c.l.b16 %v450
        %v602 = vunpack.c.h.b16 %v450
        %v603 = vunpack.c.l.b16 %v451
        %v604 = vunpack.c.h.b16 %v451
        %v605 = vunpack.c.l.b16 %v452
        %v606 = vunpack.c.h.b16 %v452
        %v607 = vunpack.c.l.b16 %v453
        %v608 = vunpack.c.h.b16 %v453
        %v609 = vunpack.c.l.b16 %v454
        %v610 = vunpack.c.h.b16 %v454
        %v611 = vunpack.c.l.b16 %v455
        %v612 = vunpack.c.h.b16 %v455
        %v613 = vunpack.c.l.b16 %v456
        %v614 = vunpack.c.h.b16 %v456
        %v615 = vunpack.c.l.b16 %v457
        %v616 = vunpack.c.h.b16 %v457
        %v617 = vunpack.c.l.b16 %v458
        %v618 = vunpack.c.h.b16 %v458
        %v619 = vunpack.c.l.b16 %v459
        %v620 = vunpack.c.h.b16 %v459
        %v621 = vunpack.c.l.b16 %v460
        %v622 = vunpack.c.h.b16 %v460
        %v623 = vunpack.c.l.b16 %v461
        %v624 = vunpack.c.h.b16 %v461
        %v625 = vunpack.c.l.b16 %v462
        %v626 = vunpack.c.h.b16 %v462
        %v627 = vunpack.c.l.b16 %v463
        %v628 = vunpack.c.h.b16 %v463
        %v629 = vunpack.c.l.b16 %v464
        %v630 = vunpack.c.h.b16 %v464
        %v631 = vunpack.c.l.b16 %v465
        %v632 = vunpack.c.h.b16 %v465
        %v633 = vpack.c.b16 %v539, %v537
        %v634 = vpack.c.b16 %v540, %v538
        %v635 = vpack.c.b16 %v543, %v541
        %v636 = vpack.c.b16 %v544, %v542
        %v637 = vpack.c.b16 %v547, %v545
        %v638 = vpack.c.b16 %v548, %v546
        %v639 = vpack.c.b16 %v551, %v549
        %v640 = vpack.c.b16 %v552, %v550
        %v641 = vpack.c.b16 %v555, %v553
        %v642 = vpack.c.b16 %v556, %v554
        %v643 = vpack.c.b16 %v559, %v557
        %v644 = vpack.c.b16 %v560, %v558
        %v645 = vpack.c.b16 %v563, %v561
        %v646 = vpack.c.b16 %v564, %v562
        %v647 = vpack.c.b16 %v567, %v565
        %v648 = vpack.c.b16 %v568, %v566
        %v649 = vpack.c.b16 %v571, %v569
        %v650 = vpack.c.b16 %v572, %v570
        %v651 = vpack.c.b16 %v575, %v573
        %v652 = vpack.c.b16 %v576, %v574
        %v653 = vpack.c.b16 %v579, %v577
        %v654 = vpack.c.b16 %v580, %v578
        %v655 = vpack.c.b16 %v583, %v581
        %v656 = vpack.c.b16 %v584, %v582
        %v657 = vpack.c.b16 %v587, %v585
        %v658 = vpack.c.b16 %v588, %v586
        %v659 = vpack.c.b16 %v591, %v589
        %v660 = vpack.c.b16 %v592, %v590
        %v661 = vpack.c.b16 %v595, %v593
        %v662 = vpack.c.b16 %v596, %v594
        %v663 = vpack.c.b16 %v599, %v597
        %v664 = vpack.c.b16 %v600, %v598
        %v665 = vpack.c.b16 %v603, %v601
        %v666 = vpack.c.b16 %v604, %v602
        %v667 = vpack.c.b16 %v607, %v605
        %v668 = vpack.c.b16 %v608, %v606
        %v669 = vpack.c.b16 %v611, %v609
        %v670 = vpack.c.b16 %v612, %v610
        %v671 = vpack.c.b16 %v615, %v613
        %v672 = vpack.c.b16 %v616, %v614
        %v673 = vpack.c.b16 %v619, %v617
        %v674 = vpack.c.b16 %v620, %v618
        %v675 = vpack.c.b16 %v623, %v621
        %v676 = vpack.c.b16 %v624, %v622
        %v677 = vpack.c.b16 %v627, %v625
        %v678 = vpack.c.b16 %v628, %v626
        %v679 = vpack.c.b16 %v631, %v629
        %v680 = vpack.c.b16 %v632, %v630
        %729 = vmatprep.subr.bf16.mxu0 %v634
        %730 = vmatpush1.bf16.msra.mxu0 %v633
        %731 = vmatprep.subr.bf16.mxu0 %v636
        %732 = vmatpush1.bf16.msra.mxu0 %v635
        %733 = vmatprep.subr.bf16.mxu0 %v638
        %734 = vmatpush1.bf16.msra.mxu0 %v637
        %735 = vmatprep.subr.bf16.mxu0 %v640
        %736 = vmatpush1.bf16.msra.mxu0 %v639
        %737 = vmatprep.subr.bf16.mxu0 %v642
        %738 = vmatpush1.bf16.msra.mxu0 %v641
        %739 = vmatprep.subr.bf16.mxu0 %v644
        %740 = vmatpush1.bf16.msra.mxu0 %v643
        %741 = vmatprep.subr.bf16.mxu0 %v646
        %742 = vmatpush1.bf16.msra.mxu0 %v645
        %743 = vmatprep.subr.bf16.mxu0 %v648
        %744 = vmatpush1.bf16.msra.mxu0 %v647
        %745 = vmatprep.subr.bf16.mxu0 %v650
        %746 = vmatpush1.bf16.msra.mxu0 %v649
        %747 = vmatprep.subr.bf16.mxu0 %v652
        %748 = vmatpush1.bf16.msra.mxu0 %v651
        %749 = vmatprep.subr.bf16.mxu0 %v654
        %750 = vmatpush1.bf16.msra.mxu0 %v653
        %751 = vmatprep.subr.bf16.mxu0 %v656
        %752 = vmatpush1.bf16.msra.mxu0 %v655
        %753 = vmatprep.subr.bf16.mxu0 %v658
        %754 = vmatpush1.bf16.msra.mxu0 %v657
        %755 = vmatprep.subr.bf16.mxu0 %v660
        %756 = vmatpush1.bf16.msra.mxu0 %v659
        %757 = vmatprep.subr.bf16.mxu0 %v662
        %758 = vmatpush1.bf16.msra.mxu0 %v661
        %759 = vmatprep.subr.bf16.mxu0 %v664
        %760 = vmatpush1.bf16.msra.mxu0 %v663
        %761 = vmatprep.mubr.bf16.mxu0 %v484
        %762 = vmatmul.mubr.bf16.gmra.mrb[0].mxu0 %v483
        %v763 = vpop.f32.mrb[0].mxu0
        %v764 = vadd.f32 %v471, %v763
        %v765 = vpop.f32.mrb[0].mxu0
        %v766 = vadd.f32 %v475, %v765
        %v767 = vpop.f32.mrb[0].mxu0
        %v768 = vpop.f32.mrb[0].mxu0
        %769 = vdwg.mxu0
        %770 = vmatprep.subr.bf16.mxu0 %v666
        %771 = vmatpush1.bf16.msra.mxu0 %v665
        %772 = vmatprep.subr.bf16.mxu0 %v668
        %773 = vmatpush1.bf16.msra.mxu0 %v667
        %774 = vmatprep.subr.bf16.mxu0 %v670
        %775 = vmatpush1.bf16.msra.mxu0 %v669
        %776 = vmatprep.subr.bf16.mxu0 %v672
        %777 = vmatpush1.bf16.msra.mxu0 %v671
        %778 = vmatprep.subr.bf16.mxu0 %v674
        %779 = vmatpush1.bf16.msra.mxu0 %v673
        %780 = vmatprep.subr.bf16.mxu0 %v676
        %781 = vmatpush1.bf16.msra.mxu0 %v675
        %782 = vmatprep.subr.bf16.mxu0 %v678
        %783 = vmatpush1.bf16.msra.mxu0 %v677
        %784 = vmatprep.subr.bf16.mxu0 %v680
        %785 = vmatpush1.bf16.msra.mxu0 %v679
        %786 = vmatprep.subr.bf16.mxu0 0
        %787 = vmatpush1.bf16.msra.mxu0 0
        %788 = vmatprep.subr.bf16.mxu0 0
        %789 = vmatpush1.bf16.msra.mxu0 0
        %790 = vmatprep.subr.bf16.mxu0 0
        %791 = vmatpush1.bf16.msra.mxu0 0
        %792 = vmatprep.subr.bf16.mxu0 0
        %793 = vmatpush1.bf16.msra.mxu0 0
        %794 = vmatprep.subr.bf16.mxu0 0
        %795 = vmatpush1.bf16.msra.mxu0 0
        %796 = vmatprep.subr.bf16.mxu0 0
        %797 = vmatpush1.bf16.msra.mxu0 0
        %798 = vmatprep.subr.bf16.mxu0 0
        %799 = vmatpush1.bf16.msra.mxu0 0
        %800 = vmatprep.subr.bf16.mxu0 0
        %801 = vmatpush1.bf16.msra.mxu0 0
        %802 = vmatprep.mubr.bf16.mxu0 0
        %803 = vmatmul.mubr.bf16.gmra.mrb[0].mxu0 %v485
        %v804 = vpop.f32.mrb[0].mxu0
        %v805 = vadd.f32 %v764, %v804
        %v806 = vpop.f32.mrb[0].mxu0
        %v807 = vadd.f32 %v766, %v806
        %v808 = vpop.f32.mrb[0].mxu0
        %v809 = vpop.f32.mrb[0].mxu0
        %810 = vdwg.mxu0
        %v811 = vmax.f32 %v805, 0.0
        %v812 = vmax.f32 %v807, 0.0
        %v813 = vmin.f32 %v811, 6.0
        %v814 = vmin.f32 %v812, 6.0
        %v815 = vpack.c.bf16 %v813, %v813
        %v816 = vpack.c.bf16 %v814, %v814
        %v819 = vunpack.c.l.b16 %v815
        %v820 = vunpack.c.l.b16 %v816
        %v821 = vpack.c.b16 %v820, %v819
        %823 = vst [vmem:[%s413] sm:$0xff] %v821
        %s824 = smul.u32 2, %s14
        %p825 = scmp.lt.s32.totalorder %s824, 9
        %s826 = scalar_select %p825, %s824, 9
        %s827 = smul.addr %s826, 4
        %s828 = scalar_lea.vmem %s3, %s827
        // Predicated region
        $region71: #{forward.35} parent=65 // pred_check
          %p829 = pneg %p105
        $region72: #{forward.35} parent=65 // pred_check_branch
          %831 = sbr.rel (%p829) target = $region74
        $region73: #{forward.35} parent=65 // pred_region
          %s832 = smul.u32 2, %s14
        $region74: #{forward.35} parent=65 // pred_fallthru
          _
      $region66: #{forward.35} parent=5 // pred_fallthru
        _
      %p833 = scmp.le.s32.totalorder 2, %s9
      // Predicated region
      $region75: #{forward.35} parent=5 // pred_check
        %p834 = pneg %p833
      $region76: #{forward.35} parent=5 // pred_check_branch
        %836 = sbr.rel (%p834) target = $region78
      $region77: #{forward.35} parent=5 // pred_region
        %s837 = ssub.s32 %s9, 2
        // Predicated region
        $region79: #{forward.35} parent=77 // pred_check
          %p838 = pneg %p111
        $region80: #{forward.35} parent=77 // pred_check_branch
          %840 = sbr.rel (%p838) target = $region82
        $region81: #{forward.35} parent=77 // pred_region
          %s841 = smul.u32 2, %s15
          %p842 = scmp.lt.s32.totalorder %s841, 9
          %s843 = scalar_select %p842, %s841, 9
          %s844 = smul.addr %s843, 4
          %s845 = scalar_lea.vmem %s3, %s844
        $region82: #{forward.35} parent=77 // pred_fallthru
          _
      $region78: #{forward.35} parent=5 // pred_fallthru
        _
    $region6: #{forward.35} parent=1 // loop_footer
      %s13 = sadd.s32 1, %s9
    $region7: #{forward.35} parent=1 // loop_footer_branch
      %8 = sbr.rel target = $region3
    $region8: #{forward.35} parent=1 // loop_exit
      _

// kernel: forward.36
$region0: #{forward.36}
  #allocation0 [shape = 'u32[]', space=smem, size = 0x4, offset = 0x4, fixed_abs, tag = 'smem constant byte address 0x4 - core index']
  #allocation1 [shape = 'u32[144,128]{1,0:T(1,128)}', space=vmem, size = 0x12000, scoped, tag = 'internal scratch']
  %s0 = inlined_call_operand.vmem [shape: bf16[8,1280], index: 0, kind: input, shape index: {}]
  %s1 = inlined_call_operand.vmem [shape: bf16[1280,128], index: 1, kind: input, shape index: {}]
  %s2 = inlined_call_operand.vmem [shape: f32[1,128], index: 2, kind: input, shape index: {}]
  %s3 = inlined_call_operand.vmem [shape: f32[8,128], index: 3, kind: output, shape index: {}]
  %s4 = sld [smem:[#allocation0]]
  $region22: #{forward.36} parent=0
    _
  %s6 = ssub.s32 1, %s4
  %s7 = scalar_select 0, %s6, %s4
  // Predicated region
  $region2: #{forward.36} parent=0 // pred_check
    _
  $region3: #{forward.36} parent=0 // pred_check_branch
    %9 = sbr.rel (0) target = $region5
  $region4: #{forward.36} parent=0 // pred_region
    _
  $region5: #{forward.36} parent=0 // pred_fallthru
    _
  // Predicated region
  $region6: #{forward.36} parent=0 // pred_check
    _
  $region7: #{forward.36} parent=0 // pred_check_branch
    %11 = sbr.rel (0) target = $region9
  $region8: #{forward.36} parent=0 // pred_region
    _
  $region9: #{forward.36} parent=0 // pred_fallthru
    _
  // Predicated region
  $region10: #{forward.36} parent=0 // pred_check
    _
  $region11: #{forward.36} parent=0 // pred_check_branch
    %13 = sbr.rel (0) target = $region13
  $region12: #{forward.36} parent=0 // pred_region
    _
  $region13: #{forward.36} parent=0 // pred_fallthru
    _
  %v15 = vld [vmem:[%s0] sm:$0xff]
  %v16 = vld [vmem:[%s0 + $0x8] sm:$0xff]
  %v17 = vld [vmem:[%s0 + $0x10] sm:$0xff]
  %v18 = vld [vmem:[%s0 + $0x18] sm:$0xff]
  %v19 = vld [vmem:[%s0 + $0x20] sm:$0xff]
  %v20 = vld [vmem:[%s1] sm:$0xf]
  %v21 = vld [vmem:[%s1 + $0x4] sm:$0xf]
  %v22 = vld [vmem:[%s1 + $0x8] sm:$0xf]
  %v23 = vld [vmem:[%s1 + $0xc] sm:$0xf]
  %v24 = vld [vmem:[%s1 + $0x10] sm:$0xf]
  %v25 = vld [vmem:[%s1 + $0x14] sm:$0xf]
  %v26 = vld [vmem:[%s1 + $0x18] sm:$0xf]
  %v27 = vld [vmem:[%s1 + $0x1c] sm:$0xf]
  %v28 = vld [vmem:[%s1 + $0x20] sm:$0xf]
  %v29 = vld [vmem:[%s1 + $0x24] sm:$0xf]
  %v30 = vld [vmem:[%s1 + $0x28] sm:$0xf]
  %v31 = vld [vmem:[%s1 + $0x2c] sm:$0xf]
  %v32 = vld [vmem:[%s1 + $0x30] sm:$0xf]
  %v33 = vld [vmem:[%s1 + $0x34] sm:$0xf]
  %v34 = vld [vmem:[%s1 + $0x38] sm:$0xf]
  %v35 = vld [vmem:[%s1 + $0x3c] sm:$0xf]
  %v36 = vld [vmem:[%s1 + $0x40] sm:$0xf]
  %v37 = vld [vmem:[%s1 + $0x44] sm:$0xf]
  %v38 = vld [vmem:[%s1 + $0x48] sm:$0xf]
  %v39 = vld [vmem:[%s1 + $0x4c] sm:$0xf]
  %v40 = vld [vmem:[%s1 + $0x50] sm:$0xf]
  %v41 = vld [vmem:[%s1 + $0x54] sm:$0xf]
  %v42 = vld [vmem:[%s1 + $0x58] sm:$0xf]
  %v43 = vld [vmem:[%s1 + $0x5c] sm:$0xf]
  %v44 = vld [vmem:[%s1 + $0x60] sm:$0xf]
  %v45 = vld [vmem:[%s1 + $0x64] sm:$0xf]
  %v46 = vld [vmem:[%s1 + $0x68] sm:$0xf]
  %v47 = vld [vmem:[%s1 + $0x6c] sm:$0xf]
  %v48 = vld [vmem:[%s1 + $0x70] sm:$0xf]
  %v49 = vld [vmem:[%s1 + $0x74] sm:$0xf]
  %v50 = vld [vmem:[%s1 + $0x78] sm:$0xf]
  %v51 = vld [vmem:[%s1 + $0x7c] sm:$0xf]
  %v52 = vld [vmem:[%s1 + $0x80] sm:$0xf]
  %v53 = vld [vmem:[%s1 + $0x84] sm:$0xf]
  %v54 = vld [vmem:[%s1 + $0x88] sm:$0xf]
  %v55 = vld [vmem:[%s1 + $0x8c] sm:$0xf]
  %v56 = vld [vmem:[%s1 + $0x90] sm:$0xf]
  %v57 = vld [vmem:[%s1 + $0x94] sm:$0xf]
  %v58 = vld [vmem:[%s1 + $0x98] sm:$0xf]
  %v59 = vld [vmem:[%s1 + $0x9c] sm:$0xf]
  %v60 = vld [vmem:[%s1 + $0xa0] sm:$0xf]
  %v61 = vld [vmem:[%s1 + $0xa4] sm:$0xf]
  %v62 = vld [vmem:[%s1 + $0xa8] sm:$0xf]
  %v63 = vld [vmem:[%s1 + $0xac] sm:$0xf]
  %v64 = vld [vmem:[%s1 + $0xb0] sm:$0xf]
  %v65 = vld [vmem:[%s1 + $0xb4] sm:$0xf]
  %v66 = vld [vmem:[%s1 + $0xb8] sm:$0xf]
  %v67 = vld [vmem:[%s1 + $0xbc] sm:$0xf]
  %v68 = vld [vmem:[%s1 + $0xc0] sm:$0xf]
  %v69 = vld [vmem:[%s1 + $0xc4] sm:$0xf]
  %v70 = vld [vmem:[%s1 + $0xc8] sm:$0xf]
  %v71 = vld [vmem:[%s1 + $0xcc] sm:$0xf]
  %v72 = vld [vmem:[%s1 + $0xd0] sm:$0xf]
  %v73 = vld [vmem:[%s1 + $0xd4] sm:$0xf]
  %v74 = vld [vmem:[%s1 + $0xd8] sm:$0xf]
  %v75 = vld [vmem:[%s1 + $0xdc] sm:$0xf]
  %v76 = vld [vmem:[%s1 + $0xe0] sm:$0xf]
  %v77 = vld [vmem:[%s1 + $0xe4] sm:$0xf]
  %v78 = vld [vmem:[%s1 + $0xe8] sm:$0xf]
  %v79 = vld [vmem:[%s1 + $0xec] sm:$0xf]
  %v80 = vld [vmem:[%s1 + $0xf0] sm:$0xf]
  %v81 = vld [vmem:[%s1 + $0xf4] sm:$0xf]
  %v82 = vld [vmem:[%s1 + $0xf8] sm:$0xf]
  %v83 = vld [vmem:[%s1 + $0xfc] sm:$0xf]
  %v84 = vld [vmem:[%s1 + $0x100] sm:$0xf]
  %v85 = vld [vmem:[%s1 + $0x104] sm:$0xf]
  %v86 = vld [vmem:[%s1 + $0x108] sm:$0xf]
  %v87 = vld [vmem:[%s1 + $0x10c] sm:$0xf]
  %v88 = vld [vmem:[%s1 + $0x110] sm:$0xf]
  %v89 = vld [vmem:[%s1 + $0x114] sm:$0xf]
  %v90 = vld [vmem:[%s1 + $0x118] sm:$0xf]
  %v91 = vld [vmem:[%s1 + $0x11c] sm:$0xf]
  %v92 = vld [vmem:[%s1 + $0x120] sm:$0xf]
  %v93 = vld [vmem:[%s1 + $0x124] sm:$0xf]
  %v94 = vld [vmem:[%s1 + $0x128] sm:$0xf]
  %v95 = vld [vmem:[%s1 + $0x12c] sm:$0xf]
  %v96 = vld [vmem:[%s1 + $0x130] sm:$0xf]
  %v97 = vld [vmem:[%s1 + $0x134] sm:$0xf]
  %v98 = vld [vmem:[%s1 + $0x138] sm:$0xf]
  %v99 = vld [vmem:[%s1 + $0x13c] sm:$0xf]
  %v100 = vld [vmem:[%s1 + $0x140] sm:$0xf]
  %v101 = vld [vmem:[%s1 + $0x144] sm:$0xf]
  %v102 = vld [vmem:[%s1 + $0x148] sm:$0xf]
  %v103 = vld [vmem:[%s1 + $0x14c] sm:$0xf]
  %v104 = vld [vmem:[%s1 + $0x150] sm:$0xf]
  %v105 = vld [vmem:[%s1 + $0x154] sm:$0xf]
  %v106 = vld [vmem:[%s1 + $0x158] sm:$0xf]
  %v107 = vld [vmem:[%s1 + $0x15c] sm:$0xf]
  %v108 = vld [vmem:[%s1 + $0x160] sm:$0xf]
  %v109 = vld [vmem:[%s1 + $0x164] sm:$0xf]
  %v110 = vld [vmem:[%s1 + $0x168] sm:$0xf]
  %v111 = vld [vmem:[%s1 + $0x16c] sm:$0xf]
  %v112 = vld [vmem:[%s1 + $0x170] sm:$0xf]
  %v113 = vld [vmem:[%s1 + $0x174] sm:$0xf]
  %v114 = vld [vmem:[%s1 + $0x178] sm:$0xf]
  %v115 = vld [vmem:[%s1 + $0x17c] sm:$0xf]
  %v116 = vld [vmem:[%s1 + $0x180] sm:$0xf]
  %v117 = vld [vmem:[%s1 + $0x184] sm:$0xf]
  %v118 = vld [vmem:[%s1 + $0x188] sm:$0xf]
  %v119 = vld [vmem:[%s1 + $0x18c] sm:$0xf]
  %v120 = vld [vmem:[%s1 + $0x190] sm:$0xf]
  %v121 = vld [vmem:[%s1 + $0x194] sm:$0xf]
  %v122 = vld [vmem:[%s1 + $0x198] sm:$0xf]
  %v123 = vld [vmem:[%s1 + $0x19c] sm:$0xf]
  %v124 = vld [vmem:[%s1 + $0x1a0] sm:$0xf]
  %v125 = vld [vmem:[%s1 + $0x1a4] sm:$0xf]
  %v126 = vld [vmem:[%s1 + $0x1a8] sm:$0xf]
  %v127 = vld [vmem:[%s1 + $0x1ac] sm:$0xf]
  %v128 = vld [vmem:[%s1 + $0x1b0] sm:$0xf]
  %v129 = vld [vmem:[%s1 + $0x1b4] sm:$0xf]
  %v130 = vld [vmem:[%s1 + $0x1b8] sm:$0xf]
  %v131 = vld [vmem:[%s1 + $0x1bc] sm:$0xf]
  %v132 = vld [vmem:[%s1 + $0x1c0] sm:$0xf]
  %v133 = vld [vmem:[%s1 + $0x1c4] sm:$0xf]
  %v134 = vld [vmem:[%s1 + $0x1c8] sm:$0xf]
  %v135 = vld [vmem:[%s1 + $0x1cc] sm:$0xf]
  %v136 = vld [vmem:[%s1 + $0x1d0] sm:$0xf]
  %v137 = vld [vmem:[%s1 + $0x1d4] sm:$0xf]
  %v138 = vld [vmem:[%s1 + $0x1d8] sm:$0xf]
  %v139 = vld [vmem:[%s1 + $0x1dc] sm:$0xf]
  %v140 = vld [vmem:[%s1 + $0x1e0] sm:$0xf]
  %v141 = vld [vmem:[%s1 + $0x1e4] sm:$0xf]
  %v142 = vld [vmem:[%s1 + $0x1e8] sm:$0xf]
  %v143 = vld [vmem:[%s1 + $0x1ec] sm:$0xf]
  %v144 = vld [vmem:[%s1 + $0x1f0] sm:$0xf]
  %v145 = vld [vmem:[%s1 + $0x1f4] sm:$0xf]
  %v146 = vld [vmem:[%s1 + $0x1f8] sm:$0xf]
  %v147 = vld [vmem:[%s1 + $0x1fc] sm:$0xf]
  %v148 = vld [vmem:[%s1 + $0x200] sm:$0xf]
  %v149 = vld [vmem:[%s1 + $0x204] sm:$0xf]
  %v150 = vld [vmem:[%s1 + $0x208] sm:$0xf]
  %v151 = vld [vmem:[%s1 + $0x20c] sm:$0xf]
  %v152 = vld [vmem:[%s1 + $0x210] sm:$0xf]
  %v153 = vld [vmem:[%s1 + $0x214] sm:$0xf]
  %v154 = vld [vmem:[%s1 + $0x218] sm:$0xf]
  %v155 = vld [vmem:[%s1 + $0x21c] sm:$0xf]
  %v156 = vld [vmem:[%s1 + $0x220] sm:$0xf]
  %v157 = vld [vmem:[%s1 + $0x224] sm:$0xf]
  %v158 = vld [vmem:[%s1 + $0x228] sm:$0xf]
  %v159 = vld [vmem:[%s1 + $0x22c] sm:$0xf]
  %v160 = vld [vmem:[%s1 + $0x230] sm:$0xf]
  %v161 = vld [vmem:[%s1 + $0x234] sm:$0xf]
  %v162 = vld [vmem:[%s1 + $0x238] sm:$0xf]
  %v163 = vld [vmem:[%s1 + $0x23c] sm:$0xf]
  %v164 = vld [vmem:[%s1 + $0x240] sm:$0xf]
  %v165 = vld [vmem:[%s1 + $0x244] sm:$0xf]
  %v166 = vld [vmem:[%s1 + $0x248] sm:$0xf]
  %v167 = vld [vmem:[%s1 + $0x24c] sm:$0xf]
  %v168 = vld [vmem:[%s1 + $0x250] sm:$0xf]
  %v169 = vld [vmem:[%s1 + $0x254] sm:$0xf]
  %v170 = vld [vmem:[%s1 + $0x258] sm:$0xf]
  %v171 = vld [vmem:[%s1 + $0x25c] sm:$0xf]
  %v172 = vld [vmem:[%s1 + $0x260] sm:$0xf]
  %v173 = vld [vmem:[%s1 + $0x264] sm:$0xf]
  %v174 = vld [vmem:[%s1 + $0x268] sm:$0xf]
  %v175 = vld [vmem:[%s1 + $0x26c] sm:$0xf]
  %v176 = vld [vmem:[%s1 + $0x270] sm:$0xf]
  %v177 = vld [vmem:[%s1 + $0x274] sm:$0xf]
  %v178 = vld [vmem:[%s1 + $0x278] sm:$0xf]
  %v179 = vld [vmem:[%s1 + $0x27c] sm:$0xf]
  %v180 = vld [vmem:[%s2] sm:$0x1]
  %v182 = vlaneseq
  %v183 = vshrl.u32 %v182, 7
  %v184 = vsub.s32 0, %v183
  %v185 = vrot.slane %v180, %v184
  %v192 = vunpack.c.l.b16 %v15
  %v193 = vunpack.c.h.b16 %v15
  %v194 = vunpack.c.l.b16 %v16
  %v195 = vunpack.c.h.b16 %v16
  %v196 = vunpack.c.l.b16 %v17
  %v197 = vunpack.c.h.b16 %v17
  %v198 = vunpack.c.l.b16 %v18
  %v199 = vunpack.c.h.b16 %v18
  %v200 = vunpack.c.l.b16 %v19
  %v201 = vunpack.c.h.b16 %v19
  %v202 = vpack.c.b16 %v192, %v192
  %v203 = vpack.c.b16 %v193, %v193
  %v204 = vpack.c.b16 %v194, %v194
  %v205 = vpack.c.b16 %v195, %v195
  %v206 = vpack.c.b16 %v196, %v196
  %v207 = vpack.c.b16 %v197, %v197
  %v208 = vpack.c.b16 %v198, %v198
  %v209 = vpack.c.b16 %v199, %v199
  %v210 = vpack.c.b16 %v200, %v200
  %v211 = vpack.c.b16 %v201, %v201
  %v382 = vunpack.c.l.b16 %v20
  %v383 = vunpack.c.l.b16 %v21
  %v384 = vunpack.c.l.b16 %v22
  %v385 = vunpack.c.l.b16 %v23
  %v386 = vunpack.c.l.b16 %v24
  %v387 = vunpack.c.l.b16 %v25
  %v388 = vunpack.c.l.b16 %v26
  %v389 = vunpack.c.l.b16 %v27
  %v390 = vunpack.c.l.b16 %v28
  %v391 = vunpack.c.l.b16 %v29
  %v392 = vunpack.c.l.b16 %v30
  %v393 = vunpack.c.l.b16 %v31
  %v394 = vunpack.c.l.b16 %v32
  %v395 = vunpack.c.l.b16 %v33
  %v396 = vunpack.c.l.b16 %v34
  %v397 = vunpack.c.l.b16 %v35
  %v398 = vunpack.c.l.b16 %v36
  %v399 = vunpack.c.l.b16 %v37
  %v400 = vunpack.c.l.b16 %v38
  %v401 = vunpack.c.l.b16 %v39
  %v402 = vunpack.c.l.b16 %v40
  %v403 = vunpack.c.l.b16 %v41
  %v404 = vunpack.c.l.b16 %v42
  %v405 = vunpack.c.l.b16 %v43
  %v406 = vunpack.c.l.b16 %v44
  %v407 = vunpack.c.l.b16 %v45
  %v408 = vunpack.c.l.b16 %v46
  %v409 = vunpack.c.l.b16 %v47
  %v410 = vunpack.c.l.b16 %v48
  %v411 = vunpack.c.l.b16 %v49
  %v412 = vunpack.c.l.b16 %v50
  %v413 = vunpack.c.l.b16 %v51
  %v414 = vunpack.c.l.b16 %v52
  %v415 = vunpack.c.l.b16 %v53
  %v416 = vunpack.c.l.b16 %v54
  %v417 = vunpack.c.l.b16 %v55
  %v418 = vunpack.c.l.b16 %v56
  %v419 = vunpack.c.l.b16 %v57
  %v420 = vunpack.c.l.b16 %v58
  %v421 = vunpack.c.l.b16 %v59
  %v422 = vunpack.c.l.b16 %v60
  %v423 = vunpack.c.l.b16 %v61
  %v424 = vunpack.c.l.b16 %v62
  %v425 = vunpack.c.l.b16 %v63
  %v426 = vunpack.c.l.b16 %v64
  %v427 = vunpack.c.l.b16 %v65
  %v428 = vunpack.c.l.b16 %v66
  %v429 = vunpack.c.l.b16 %v67
  %v430 = vunpack.c.l.b16 %v68
  %v431 = vunpack.c.l.b16 %v69
  %v432 = vunpack.c.l.b16 %v70
  %v433 = vunpack.c.l.b16 %v71
  %v434 = vunpack.c.l.b16 %v72
  %v435 = vunpack.c.l.b16 %v73
  %v436 = vunpack.c.l.b16 %v74
  %v437 = vunpack.c.l.b16 %v75
  %v438 = vunpack.c.l.b16 %v76
  %v439 = vunpack.c.l.b16 %v77
  %v440 = vunpack.c.l.b16 %v78
  %v441 = vunpack.c.l.b16 %v79
  %v442 = vunpack.c.l.b16 %v80
  %v443 = vunpack.c.l.b16 %v81
  %v444 = vunpack.c.l.b16 %v82
  %v445 = vunpack.c.l.b16 %v83
  %v446 = vunpack.c.l.b16 %v84
  %v447 = vunpack.c.l.b16 %v85
  %v448 = vunpack.c.l.b16 %v86
  %v449 = vunpack.c.l.b16 %v87
  %v450 = vunpack.c.l.b16 %v88
  %v451 = vunpack.c.l.b16 %v89
  %v452 = vunpack.c.l.b16 %v90
  %v453 = vunpack.c.l.b16 %v91
  %v454 = vunpack.c.l.b16 %v92
  %v455 = vunpack.c.l.b16 %v93
  %v456 = vunpack.c.l.b16 %v94
  %v457 = vunpack.c.l.b16 %v95
  %v458 = vunpack.c.l.b16 %v96
  %v459 = vunpack.c.l.b16 %v97
  %v460 = vunpack.c.l.b16 %v98
  %v461 = vunpack.c.l.b16 %v99
  %v462 = vunpack.c.l.b16 %v100
  %v463 = vunpack.c.l.b16 %v101
  %v464 = vunpack.c.l.b16 %v102
  %v465 = vunpack.c.l.b16 %v103
  %v466 = vunpack.c.l.b16 %v104
  %v467 = vunpack.c.l.b16 %v105
  %v468 = vunpack.c.l.b16 %v106
  %v469 = vunpack.c.l.b16 %v107
  %v470 = vunpack.c.l.b16 %v108
  %v471 = vunpack.c.l.b16 %v109
  %v472 = vunpack.c.l.b16 %v110
  %v473 = vunpack.c.l.b16 %v111
  %v474 = vunpack.c.l.b16 %v112
  %v475 = vunpack.c.l.b16 %v113
  %v476 = vunpack.c.l.b16 %v114
  %v477 = vunpack.c.l.b16 %v115
  %v478 = vunpack.c.l.b16 %v116
  %v479 = vunpack.c.l.b16 %v117
  %v480 = vunpack.c.l.b16 %v118
  %v481 = vunpack.c.l.b16 %v119
  %v482 = vunpack.c.l.b16 %v120
  %v483 = vunpack.c.l.b16 %v121
  %v484 = vunpack.c.l.b16 %v122
  %v485 = vunpack.c.l.b16 %v123
  %v486 = vunpack.c.l.b16 %v124
  %v487 = vunpack.c.l.b16 %v125
  %v488 = vunpack.c.l.b16 %v126
  %v489 = vunpack.c.l.b16 %v127
  %v490 = vunpack.c.l.b16 %v128
  %v491 = vunpack.c.l.b16 %v129
  %v492 = vunpack.c.l.b16 %v130
  %v493 = vunpack.c.l.b16 %v131
  %v494 = vunpack.c.l.b16 %v132
  %v495 = vunpack.c.l.b16 %v133
  %v496 = vunpack.c.l.b16 %v134
  %v497 = vunpack.c.l.b16 %v135
  %v498 = vunpack.c.l.b16 %v136
  %v499 = vunpack.c.l.b16 %v137
  %v500 = vunpack.c.l.b16 %v138
  %v501 = vunpack.c.l.b16 %v139
  %v502 = vunpack.c.l.b16 %v140
  %v503 = vunpack.c.l.b16 %v141
  %v504 = vunpack.c.l.b16 %v142
  %v505 = vunpack.c.l.b16 %v143
  %v506 = vunpack.c.l.b16 %v144
  %v507 = vunpack.c.l.b16 %v145
  %v508 = vunpack.c.l.b16 %v146
  %v509 = vunpack.c.l.b16 %v147
  %v510 = vunpack.c.l.b16 %v148
  %v511 = vunpack.c.l.b16 %v149
  %v512 = vunpack.c.l.b16 %v150
  %v513 = vunpack.c.l.b16 %v151
  %v514 = vunpack.c.l.b16 %v152
  %v515 = vunpack.c.l.b16 %v153
  %v516 = vunpack.c.l.b16 %v154
  %v517 = vunpack.c.l.b16 %v155
  %v518 = vunpack.c.l.b16 %v156
  %v519 = vunpack.c.l.b16 %v157
  %v520 = vunpack.c.l.b16 %v158
  %v521 = vunpack.c.l.b16 %v159
  %v522 = vunpack.c.l.b16 %v160
  %v523 = vunpack.c.l.b16 %v161
  %v524 = vunpack.c.l.b16 %v162
  %v525 = vunpack.c.l.b16 %v163
  %v526 = vunpack.c.l.b16 %v164
  %v527 = vunpack.c.l.b16 %v165
  %v528 = vunpack.c.l.b16 %v166
  %v529 = vunpack.c.l.b16 %v167
  %v530 = vunpack.c.l.b16 %v168
  %v531 = vunpack.c.l.b16 %v169
  %v532 = vunpack.c.l.b16 %v170
  %v533 = vunpack.c.l.b16 %v171
  %v534 = vunpack.c.l.b16 %v172
  %v535 = vunpack.c.l.b16 %v173
  %v536 = vunpack.c.l.b16 %v174
  %v537 = vunpack.c.l.b16 %v175
  %v538 = vunpack.c.l.b16 %v176
  %v539 = vunpack.c.l.b16 %v177
  %v540 = vunpack.c.l.b16 %v178
  %v541 = vunpack.c.l.b16 %v179
  %v542 = vpack.c.b16 %v383, %v382
  %v543 = vpack.c.b16 %v385, %v384
  %v544 = vpack.c.b16 %v387, %v386
  %v545 = vpack.c.b16 %v389, %v388
  %v546 = vpack.c.b16 %v391, %v390
  %v547 = vpack.c.b16 %v393, %v392
  %v548 = vpack.c.b16 %v395, %v394
  %v549 = vpack.c.b16 %v397, %v396
  %v550 = vpack.c.b16 %v399, %v398
  %v551 = vpack.c.b16 %v401, %v400
  %v552 = vpack.c.b16 %v403, %v402
  %v553 = vpack.c.b16 %v405, %v404
  %v554 = vpack.c.b16 %v407, %v406
  %v555 = vpack.c.b16 %v409, %v408
  %v556 = vpack.c.b16 %v411, %v410
  %v557 = vpack.c.b16 %v413, %v412
  %v558 = vpack.c.b16 %v415, %v414
  %v559 = vpack.c.b16 %v417, %v416
  %v560 = vpack.c.b16 %v419, %v418
  %v561 = vpack.c.b16 %v421, %v420
  %v562 = vpack.c.b16 %v423, %v422
  %v563 = vpack.c.b16 %v425, %v424
  %v564 = vpack.c.b16 %v427, %v426
  %v565 = vpack.c.b16 %v429, %v428
  %v566 = vpack.c.b16 %v431, %v430
  %v567 = vpack.c.b16 %v433, %v432
  %v568 = vpack.c.b16 %v435, %v434
  %v569 = vpack.c.b16 %v437, %v436
  %v570 = vpack.c.b16 %v439, %v438
  %v571 = vpack.c.b16 %v441, %v440
  %v572 = vpack.c.b16 %v443, %v442
  %v573 = vpack.c.b16 %v445, %v444
  %v574 = vpack.c.b16 %v447, %v446
  %v575 = vpack.c.b16 %v449, %v448
  %v576 = vpack.c.b16 %v451, %v450
  %v577 = vpack.c.b16 %v453, %v452
  %v578 = vpack.c.b16 %v455, %v454
  %v579 = vpack.c.b16 %v457, %v456
  %v580 = vpack.c.b16 %v459, %v458
  %v581 = vpack.c.b16 %v461, %v460
  %v582 = vpack.c.b16 %v463, %v462
  %v583 = vpack.c.b16 %v465, %v464
  %v584 = vpack.c.b16 %v467, %v466
  %v585 = vpack.c.b16 %v469, %v468
  %v586 = vpack.c.b16 %v471, %v470
  %v587 = vpack.c.b16 %v473, %v472
  %v588 = vpack.c.b16 %v475, %v474
  %v589 = vpack.c.b16 %v477, %v476
  %v590 = vpack.c.b16 %v479, %v478
  %v591 = vpack.c.b16 %v481, %v480
  %v592 = vpack.c.b16 %v483, %v482
  %v593 = vpack.c.b16 %v485, %v484
  %v594 = vpack.c.b16 %v487, %v486
  %v595 = vpack.c.b16 %v489, %v488
  %v596 = vpack.c.b16 %v491, %v490
  %v597 = vpack.c.b16 %v493, %v492
  %v598 = vpack.c.b16 %v495, %v494
  %v599 = vpack.c.b16 %v497, %v496
  %v600 = vpack.c.b16 %v499, %v498
  %v601 = vpack.c.b16 %v501, %v500
  %v602 = vpack.c.b16 %v503, %v502
  %v603 = vpack.c.b16 %v505, %v504
  %v604 = vpack.c.b16 %v507, %v506
  %v605 = vpack.c.b16 %v509, %v508
  %v606 = vpack.c.b16 %v511, %v510
  %v607 = vpack.c.b16 %v513, %v512
  %v608 = vpack.c.b16 %v515, %v514
  %v609 = vpack.c.b16 %v517, %v516
  %v610 = vpack.c.b16 %v519, %v518
  %v611 = vpack.c.b16 %v521, %v520
  %v612 = vpack.c.b16 %v523, %v522
  %v613 = vpack.c.b16 %v525, %v524
  %v614 = vpack.c.b16 %v527, %v526
  %v615 = vpack.c.b16 %v529, %v528
  %v616 = vpack.c.b16 %v531, %v530
  %v617 = vpack.c.b16 %v533, %v532
  %v618 = vpack.c.b16 %v535, %v534
  %v619 = vpack.c.b16 %v537, %v536
  %v620 = vpack.c.b16 %v539, %v538
  %v621 = vpack.c.b16 %v541, %v540
  %702 = vmatprep.subr.bf16.mxu0 0
  %703 = vmatpush1.bf16.msra.mxu0 %v542
  %704 = vmatprep.subr.bf16.mxu0 0
  %705 = vmatpush1.bf16.msra.mxu0 %v543
  %706 = vmatprep.subr.bf16.mxu0 0
  %707 = vmatpush1.bf16.msra.mxu0 %v544
  %708 = vmatprep.subr.bf16.mxu0 0
  %709 = vmatpush1.bf16.msra.mxu0 %v545
  %710 = vmatprep.subr.bf16.mxu0 0
  %711 = vmatpush1.bf16.msra.mxu0 %v546
  %712 = vmatprep.subr.bf16.mxu0 0
  %713 = vmatpush1.bf16.msra.mxu0 %v547
  %714 = vmatprep.subr.bf16.mxu0 0
  %715 = vmatpush1.bf16.msra.mxu0 %v548
  %716 = vmatprep.subr.bf16.mxu0 0
  %717 = vmatpush1.bf16.msra.mxu0 %v549
  %718 = vmatprep.subr.bf16.mxu0 0
  %719 = vmatpush1.bf16.msra.mxu0 %v550
  %720 = vmatprep.subr.bf16.mxu0 0
  %721 = vmatpush1.bf16.msra.mxu0 %v551
  %722 = vmatprep.subr.bf16.mxu0 0
  %723 = vmatpush1.bf16.msra.mxu0 %v552
  %724 = vmatprep.subr.bf16.mxu0 0
  %725 = vmatpush1.bf16.msra.mxu0 %v553
  %726 = vmatprep.subr.bf16.mxu0 0
  %727 = vmatpush1.bf16.msra.mxu0 %v554
  %728 = vmatprep.subr.bf16.mxu0 0
  %729 = vmatpush1.bf16.msra.mxu0 %v555
  %730 = vmatprep.subr.bf16.mxu0 0
  %731 = vmatpush1.bf16.msra.mxu0 %v556
  %732 = vmatprep.subr.bf16.mxu0 0
  %733 = vmatpush1.bf16.msra.mxu0 %v557
  %734 = vmatprep.mubr.bf16.mxu0 %v203
  %735 = vmatmul.mubr.bf16.gmra.mrb[0].mxu0 %v202
  %v736 = vpop.f32.mrb[0].mxu0
  %v737 = vadd.f32 %v185, %v736
  %v738 = vpop.f32.mrb[0].mxu0
  %v739 = vpop.f32.mrb[0].mxu0
  %v740 = vpop.f32.mrb[0].mxu0
  %741 = vdwg.mxu0
  %742 = vmatprep.subr.bf16.mxu0 0
  %743 = vmatpush1.bf16.msra.mxu0 %v558
  %744 = vmatprep.subr.bf16.mxu0 0
  %745 = vmatpush1.bf16.msra.mxu0 %v559
  %746 = vmatprep.subr.bf16.mxu0 0
  %747 = vmatpush1.bf16.msra.mxu0 %v560
  %748 = vmatprep.subr.bf16.mxu0 0
  %749 = vmatpush1.bf16.msra.mxu0 %v561
  %750 = vmatprep.subr.bf16.mxu0 0
  %751 = vmatpush1.bf16.msra.mxu0 %v562
  %752 = vmatprep.subr.bf16.mxu0 0
  %753 = vmatpush1.bf16.msra.mxu0 %v563
  %754 = vmatprep.subr.bf16.mxu0 0
  %755 = vmatpush1.bf16.msra.mxu0 %v564
  %756 = vmatprep.subr.bf16.mxu0 0
  %757 = vmatpush1.bf16.msra.mxu0 %v565
  %758 = vmatprep.subr.bf16.mxu0 0
  %759 = vmatpush1.bf16.msra.mxu0 %v566
  %760 = vmatprep.subr.bf16.mxu0 0
  %761 = vmatpush1.bf16.msra.mxu0 %v567
  %762 = vmatprep.subr.bf16.mxu0 0
  %763 = vmatpush1.bf16.msra.mxu0 %v568
  %764 = vmatprep.subr.bf16.mxu0 0
  %765 = vmatpush1.bf16.msra.mxu0 %v569
  %766 = vmatprep.subr.bf16.mxu0 0
  %767 = vmatpush1.bf16.msra.mxu0 %v570
  %768 = vmatprep.subr.bf16.mxu0 0
  %769 = vmatpush1.bf16.msra.mxu0 %v571
  %770 = vmatprep.subr.bf16.mxu0 0
  %771 = vmatpush1.bf16.msra.mxu0 %v572
  %772 = vmatprep.subr.bf16.mxu0 0
  %773 = vmatpush1.bf16.msra.mxu0 %v573
  %774 = vmatprep.mubr.bf16.mxu0 %v205
  %775 = vmatmul.mubr.bf16.gmra.mrb[0].mxu0 %v204
  %v776 = vpop.f32.mrb[0].mxu0
  %v777 = vadd.f32 %v737, %v776
  %v778 = vpop.f32.mrb[0].mxu0
  %v779 = vpop.f32.mrb[0].mxu0
  %v780 = vpop.f32.mrb[0].mxu0
  %781 = vdwg.mxu0
  %782 = vmatprep.subr.bf16.mxu0 0
  %783 = vmatpush1.bf16.msra.mxu0 %v574
  %784 = vmatprep.subr.bf16.mxu0 0
  %785 = vmatpush1.bf16.msra.mxu0 %v575
  %786 = vmatprep.subr.bf16.mxu0 0
  %787 = vmatpush1.bf16.msra.mxu0 %v576
  %788 = vmatprep.subr.bf16.mxu0 0
  %789 = vmatpush1.bf16.msra.mxu0 %v577
  %790 = vmatprep.subr.bf16.mxu0 0
  %791 = vmatpush1.bf16.msra.mxu0 %v578
  %792 = vmatprep.subr.bf16.mxu0 0
  %793 = vmatpush1.bf16.msra.mxu0 %v579
  %794 = vmatprep.subr.bf16.mxu0 0
  %795 = vmatpush1.bf16.msra.mxu0 %v580
  %796 = vmatprep.subr.bf16.mxu0 0
  %797 = vmatpush1.bf16.msra.mxu0 %v581
  %798 = vmatprep.subr.bf16.mxu0 0
  %799 = vmatpush1.bf16.msra.mxu0 %v582
  %800 = vmatprep.subr.bf16.mxu0 0
  %801 = vmatpush1.bf16.msra.mxu0 %v583
  %802 = vmatprep.subr.bf16.mxu0 0
  %803 = vmatpush1.bf16.msra.mxu0 %v584
  %804 = vmatprep.subr.bf16.mxu0 0
  %805 = vmatpush1.bf16.msra.mxu0 %v585
  %806 = vmatprep.subr.bf16.mxu0 0
  %807 = vmatpush1.bf16.msra.mxu0 %v586
  %808 = vmatprep.subr.bf16.mxu0 0
  %809 = vmatpush1.bf16.msra.mxu0 %v587
  %810 = vmatprep.subr.bf16.mxu0 0
  %811 = vmatpush1.bf16.msra.mxu0 %v588
  %812 = vmatprep.subr.bf16.mxu0 0
  %813 = vmatpush1.bf16.msra.mxu0 %v589
  %814 = vmatprep.mubr.bf16.mxu0 %v207
  %815 = vmatmul.mubr.bf16.gmra.mrb[0].mxu0 %v206
  %v816 = vpop.f32.mrb[0].mxu0
  %v817 = vadd.f32 %v777, %v816
  %v818 = vpop.f32.mrb[0].mxu0
  %v819 = vpop.f32.mrb[0].mxu0
  %v820 = vpop.f32.mrb[0].mxu0
  %821 = vdwg.mxu0
  %822 = vmatprep.subr.bf16.mxu0 0
  %823 = vmatpush1.bf16.msra.mxu0 %v590
  %824 = vmatprep.subr.bf16.mxu0 0
  %825 = vmatpush1.bf16.msra.mxu0 %v591
  %826 = vmatprep.subr.bf16.mxu0 0
  %827 = vmatpush1.bf16.msra.mxu0 %v592
  %828 = vmatprep.subr.bf16.mxu0 0
  %829 = vmatpush1.bf16.msra.mxu0 %v593
  %830 = vmatprep.subr.bf16.mxu0 0
  %831 = vmatpush1.bf16.msra.mxu0 %v594
  %832 = vmatprep.subr.bf16.mxu0 0
  %833 = vmatpush1.bf16.msra.mxu0 %v595
  %834 = vmatprep.subr.bf16.mxu0 0
  %835 = vmatpush1.bf16.msra.mxu0 %v596
  %836 = vmatprep.subr.bf16.mxu0 0
  %837 = vmatpush1.bf16.msra.mxu0 %v597
  %838 = vmatprep.subr.bf16.mxu0 0
  %839 = vmatpush1.bf16.msra.mxu0 %v598
  %840 = vmatprep.subr.bf16.mxu0 0
  %841 = vmatpush1.bf16.msra.mxu0 %v599
  %842 = vmatprep.subr.bf16.mxu0 0
  %843 = vmatpush1.bf16.msra.mxu0 %v600
  %844 = vmatprep.subr.bf16.mxu0 0
  %845 = vmatpush1.bf16.msra.mxu0 %v601
  %846 = vmatprep.subr.bf16.mxu0 0
  %847 = vmatpush1.bf16.msra.mxu0 %v602
  %848 = vmatprep.subr.bf16.mxu0 0
  %849 = vmatpush1.bf16.msra.mxu0 %v603
  %850 = vmatprep.subr.bf16.mxu0 0
  %851 = vmatpush1.bf16.msra.mxu0 %v604
  %852 = vmatprep.subr.bf16.mxu0 0
  %853 = vmatpush1.bf16.msra.mxu0 %v605
  %854 = vmatprep.mubr.bf16.mxu0 %v209
  %855 = vmatmul.mubr.bf16.gmra.mrb[0].mxu0 %v208
  %v856 = vpop.f32.mrb[0].mxu0
  %v857 = vadd.f32 %v817, %v856
  %v858 = vpop.f32.mrb[0].mxu0
  %v859 = vpop.f32.mrb[0].mxu0
  %v860 = vpop.f32.mrb[0].mxu0
  %861 = vdwg.mxu0
  %862 = vmatprep.subr.bf16.mxu0 0
  %863 = vmatpush1.bf16.msra.mxu0 %v606
  %864 = vmatprep.subr.bf16.mxu0 0
  %865 = vmatpush1.bf16.msra.mxu0 %v607
  %866 = vmatprep.subr.bf16.mxu0 0
  %867 = vmatpush1.bf16.msra.mxu0 %v608
  %868 = vmatprep.subr.bf16.mxu0 0
  %869 = vmatpush1.bf16.msra.mxu0 %v609
  %870 = vmatprep.subr.bf16.mxu0 0
  %871 = vmatpush1.bf16.msra.mxu0 %v610
  %872 = vmatprep.subr.bf16.mxu0 0
  %873 = vmatpush1.bf16.msra.mxu0 %v611
  %874 = vmatprep.subr.bf16.mxu0 0
  %875 = vmatpush1.bf16.msra.mxu0 %v612
  %876 = vmatprep.subr.bf16.mxu0 0
  %877 = vmatpush1.bf16.msra.mxu0 %v613
  %878 = vmatprep.subr.bf16.mxu0 0
  %879 = vmatpush1.bf16.msra.mxu0 %v614
  %880 = vmatprep.subr.bf16.mxu0 0
  %881 = vmatpush1.bf16.msra.mxu0 %v615
  %882 = vmatprep.subr.bf16.mxu0 0
  %883 = vmatpush1.bf16.msra.mxu0 %v616
  %884 = vmatprep.subr.bf16.mxu0 0
  %885 = vmatpush1.bf16.msra.mxu0 %v617
  %886 = vmatprep.subr.bf16.mxu0 0
  %887 = vmatpush1.bf16.msra.mxu0 %v618
  %888 = vmatprep.subr.bf16.mxu0 0
  %889 = vmatpush1.bf16.msra.mxu0 %v619
  %890 = vmatprep.subr.bf16.mxu0 0
  %891 = vmatpush1.bf16.msra.mxu0 %v620
  %892 = vmatprep.subr.bf16.mxu0 0
  %893 = vmatpush1.bf16.msra.mxu0 %v621
  %894 = vmatprep.mubr.bf16.mxu0 %v211
  %895 = vmatmul.mubr.bf16.gmra.mrb[0].mxu0 %v210
  %v896 = vpop.f32.mrb[0].mxu0
  %v897 = vadd.f32 %v857, %v896
  %v898 = vpop.f32.mrb[0].mxu0
  %v899 = vpop.f32.mrb[0].mxu0
  %v900 = vpop.f32.mrb[0].mxu0
  %901 = vdwg.mxu0
  %902 = vst [vmem:[%s3] sm:$0xff] %v897
  // Predicated region
  $region14: #{forward.36} parent=0 // pred_check
    _
  $region15: #{forward.36} parent=0 // pred_check_branch
    %904 = sbr.rel (0) target = $region17
  $region16: #{forward.36} parent=0 // pred_region
    _
  $region17: #{forward.36} parent=0 // pred_fallthru
    _
  // Predicated region
  $region18: #{forward.36} parent=0 // pred_check
    _
  $region19: #{forward.36} parent=0 // pred_check_branch
    %906 = sbr.rel (0) target = $region21
  $region20: #{forward.36} parent=0 // pred_region
    _
  $region21: #{forward.36} parent=0 // pred_fallthru
    _

// kernel: forward.37
$region0: #{forward.37}
  #allocation0 [shape = 'u32[]', space=smem, size = 0x4, offset = 0x4, fixed_abs, tag = 'smem constant byte address 0x4 - core index']
  #allocation1 [shape = 'u32[144,128]{1,0:T(1,128)}', space=vmem, size = 0x12000, scoped, tag = 'internal scratch']
  %s0 = inlined_call_operand.vmem [shape: f32[8,128], index: 0, kind: input, shape index: {}]
  %s1 = inlined_call_operand.vmem [shape: f32[128,1024], index: 1, kind: input, shape index: {}]
  %s2 = inlined_call_operand.vmem [shape: f32[1,1024], index: 2, kind: input, shape index: {}]
  %s3 = inlined_call_operand.vmem [shape: f32[8,1024], index: 3, kind: output, shape index: {}]
  %s4 = sld [smem:[#allocation0]]
  $region68: #{forward.37} parent=0
    _
  %s6 = ssub.s32 1, %s4
  %s7 = scalar_select 0, %s6, %s4
  $region1: #{forward.37} parent=0
    #allocation2 [shape = 'u8[262144]{0}', space=vmem, size = 0x40000, scoped, tag = 'input window, operand 1']
    loop: start=0, step=1, limit=6
    $region2: #{forward.37} parent=1 // loop_pre_header
      _
    $region3: #{forward.37} parent=1 // loop_header
      %s9 = sphi 0, %s13
      %p10 = scmp.ge.s32.totalorder %s9, 6
      %s17 = sphi 0, %s17
      %s19 = sphi 0, %s17
      %s20 = sphi 0, %s19
      %s34 = sphi 0, %s20
      %s40 = sphi 0, %s42
      %s43 = sphi 0, %s40
      %s44 = sphi 0, %s43
      %s60 = sphi 0, %s44
      %s66 = sphi 0, %s68
      %s69 = sphi 0, %s66
      %s70 = sphi 0, %s69
      %s86 = sphi 0, %s70
      %s92 = sphi 0, %s94
      %s95 = sphi 0, %s92
      %s96 = sphi 0, %s95
      %s112 = sphi 0, %s96
    $region4: #{forward.37} parent=1 // loop_header_branch
      %12 = sbr.rel (%p10) target = $region8
    $region5: #{forward.37} parent=1 // loop_body
      %s14 = ssub.s32 %s9, 1
      %s15 = ssub.s32 %s9, 2
      %s16 = sadd.s32 %s9, 1
      %s18 = sadd.s32 %s17, 1
      %p21 = scmp.eq.s32.totalorder %s9, 3
      %p22 = scmp.ne.s32.totalorder %s17, %s19
      %p23 = scmp.eq.s32.totalorder %s9, 0
      %p24 = por %p22, %p23
      %p25 = scmp.ne.s32.totalorder %s17, %s19
      %p26 = scmp.eq.s32.totalorder %s14, 3
      %p27 = por %p25, %p26
      %p28 = scmp.ne.s32.totalorder %s19, %s20
      %p29 = scmp.eq.s32.totalorder %s14, 0
      %p30 = por %p28, %p29
      %p31 = scmp.ne.s32.totalorder %s19, %s20
      %p32 = scmp.eq.s32.totalorder %s15, 3
      %p33 = por %p31, %p32
      %p35 = scmp.ne.s32.totalorder %s20, %s34
      %p36 = scmp.eq.s32.totalorder %s15, 0
      %p37 = por %p35, %p36
      %s38 = ssub.s32 %s9, %s16
      %p39 = scmp.eq.s32.totalorder %s38, 0
      %s41 = sadd.s32 %s40, 1
      %s42 = scalar_select %p39, %s40, %s41
      %p45 = pneg %p39
      %p46 = scmp.eq.s32.totalorder %s9, 3
      %p47 = por %p45, %p46
      %p48 = scmp.ne.s32.totalorder %s40, %s43
      %p49 = scmp.eq.s32.totalorder %s9, 0
      %p50 = por %p48, %p49
      %p51 = scmp.ne.s32.totalorder %s40, %s43
      %p52 = scmp.eq.s32.totalorder %s14, 3
      %p53 = por %p51, %p52
      %p54 = scmp.ne.s32.totalorder %s43, %s44
      %p55 = scmp.eq.s32.totalorder %s14, 0
      %p56 = por %p54, %p55
      %p57 = scmp.ne.s32.totalorder %s43, %s44
      %p58 = scmp.eq.s32.totalorder %s15, 3
      %p59 = por %p57, %p58
      %p61 = scmp.ne.s32.totalorder %s44, %s60
      %p62 = scmp.eq.s32.totalorder %s15, 0
      %p63 = por %p61, %p62
      %s64 = ssub.s32 %s9, %s16
      %p65 = scmp.eq.s32.totalorder %s64, 0
      %s67 = sadd.s32 %s66, 1
      %s68 = scalar_select %p65, %s66, %s67
      %p71 = pneg %p65
      %p72 = scmp.eq.s32.totalorder %s9, 3
      %p73 = por %p71, %p72
      %p74 = scmp.ne.s32.totalorder %s66, %s69
      %p75 = scmp.eq.s32.totalorder %s9, 0
      %p76 = por %p74, %p75
      %p77 = scmp.ne.s32.totalorder %s66, %s69
      %p78 = scmp.eq.s32.totalorder %s14, 3
      %p79 = por %p77, %p78
      %p80 = scmp.ne.s32.totalorder %s69, %s70
      %p81 = scmp.eq.s32.totalorder %s14, 0
      %p82 = por %p80, %p81
      %p83 = scmp.ne.s32.totalorder %s69, %s70
      %p84 = scmp.eq.s32.totalorder %s15, 3
      %p85 = por %p83, %p84
      %p87 = scmp.ne.s32.totalorder %s70, %s86
      %p88 = scmp.eq.s32.totalorder %s15, 0
      %p89 = por %p87, %p88
      %s90 = ssub.s32 %s9, %s16
      %p91 = scmp.eq.s32.totalorder %s90, 0
      %s93 = sadd.s32 %s92, 1
      %s94 = scalar_select %p91, %s92, %s93
      %p97 = pneg %p91
      %p98 = scmp.eq.s32.totalorder %s9, 3
      %p99 = por %p97, %p98
      %p100 = scmp.ne.s32.totalorder %s92, %s95
      %p101 = scmp.eq.s32.totalorder %s9, 0
      %p102 = por %p100, %p101
      %p103 = scmp.ne.s32.totalorder %s92, %s95
      %p104 = scmp.eq.s32.totalorder %s14, 3
      %p105 = por %p103, %p104
      %p106 = scmp.ne.s32.totalorder %s95, %s96
      %p107 = scmp.eq.s32.totalorder %s14, 0
      %p108 = por %p106, %p107
      %p109 = scmp.ne.s32.totalorder %s95, %s96
      %p110 = scmp.eq.s32.totalorder %s15, 3
      %p111 = por %p109, %p110
      %p113 = scmp.ne.s32.totalorder %s96, %s112
      %p114 = scmp.eq.s32.totalorder %s15, 0
      %p115 = por %p113, %p114
      %p116 = scmp.le.s32.totalorder 1, %s9
      %p117 = scmp.lt.s32.totalorder %s9, 5
      %p118 = pnand %p116, %p117
      %p119 = pneg %p118
      // Predicated region
      $region9: #{forward.37} parent=5 // pred_check
        _
      $region10: #{forward.37} parent=5 // pred_check_branch
        %121 = sbr.rel (%p118) target = $region12
      $region11: #{forward.37} parent=5 // pred_region
        %s122 = ssub.s32 %s9, 1
        // Predicated region
        $region13: #{forward.37} parent=11 // pred_check
          %p123 = pneg %p30
        $region14: #{forward.37} parent=11 // pred_check_branch
          %125 = sbr.rel (%p123) target = $region16
        $region15: #{forward.37} parent=11 // pred_region
          _
        $region16: #{forward.37} parent=11 // pred_fallthru
          _
      $region12: #{forward.37} parent=5 // pred_fallthru
        _
      %p126 = scmp.lt.s32.totalorder %s9, 4
      // Predicated region
      $region17: #{forward.37} parent=5 // pred_check
        %p127 = pneg %p126
      $region18: #{forward.37} parent=5 // pred_check_branch
        %129 = sbr.rel (%p127) target = $region20
      $region19: #{forward.37} parent=5 // pred_region
        // Predicated region
        $region21: #{forward.37} parent=19 // pred_check
          %p130 = pneg %p50
        $region22: #{forward.37} parent=19 // pred_check_branch
          %132 = sbr.rel (%p130) target = $region24
        $region23: #{forward.37} parent=19 // pred_region
          %s133 = sand.u32 %s40, 1
          %s134 = sand.u32 %s40, 1
          %s135 = smul.addr %s134, 256
          %s136 = scalar_lea.vmem [#allocation2], %s135
          %s137 = smul.u32 2, %s9
          %s138 = smul.addr %s137, 8
          %s139 = scalar_lea.vmem %s1, %s138
          // Predicated region
          $region25: #{forward.37} parent=23 // pred_check
            _
          $region26: #{forward.37} parent=23 // pred_check_branch
            %141 = sbr.rel (0) target = $region28
          $region27: #{forward.37} parent=23 // pred_region
            // Predicated region
            $region29: #{forward.37} parent=27 // pred_check
              _
            $region30: #{forward.37} parent=27 // pred_check_branch
              %143 = sbr.rel (0) target = $region32
            $region31: #{forward.37} parent=27 // pred_region
              loop: start=0, step=1, limit=1
              $region33: #{forward.37} parent=31 // loop_pre_header
                _
              $region34: #{forward.37} parent=31 // loop_header
                %s145 = sphi 0, %s149
                %p146 = scmp.ge.s32.totalorder %s145, 1
                %s150 = sphi %s139, %s139
                %s151 = sphi %s136, %s136
              $region35: #{forward.37} parent=31 // loop_header_branch
                %148 = sbr.rel (%p146) target = $region39
              $region36: #{forward.37} parent=31 // loop_body
                %v152 = vld [vmem:[%s150] sm:$0xff]
                %153 = vst [vmem:[%s151] sm:$0xff] %v152
                %v154 = vld [vmem:[%s150 + $0x8] sm:$0xff]
                %155 = vst [vmem:[%s151 + $0x8] sm:$0xff] %v154
                %v156 = vld [vmem:[%s150 + $0x40] sm:$0xff]
                %157 = vst [vmem:[%s151 + $0x10] sm:$0xff] %v156
                %v158 = vld [vmem:[%s150 + $0x48] sm:$0xff]
                %159 = vst [vmem:[%s151 + $0x18] sm:$0xff] %v158
                %v160 = vld [vmem:[%s150 + $0x80] sm:$0xff]
                %161 = vst [vmem:[%s151 + $0x20] sm:$0xff] %v160
                %v162 = vld [vmem:[%s150 + $0x88] sm:$0xff]
                %163 = vst [vmem:[%s151 + $0x28] sm:$0xff] %v162
                %v164 = vld [vmem:[%s150 + $0xc0] sm:$0xff]
                %165 = vst [vmem:[%s151 + $0x30] sm:$0xff] %v164
                %v166 = vld [vmem:[%s150 + $0xc8] sm:$0xff]
                %167 = vst [vmem:[%s151 + $0x38] sm:$0xff] %v166
                %v168 = vld [vmem:[%s150 + $0x100] sm:$0xff]
                %169 = vst [vmem:[%s151 + $0x40] sm:$0xff] %v168
                %v170 = vld [vmem:[%s150 + $0x108] sm:$0xff]
                %171 = vst [vmem:[%s151 + $0x48] sm:$0xff] %v170
                %v172 = vld [vmem:[%s150 + $0x140] sm:$0xff]
                %173 = vst [vmem:[%s151 + $0x50] sm:$0xff] %v172
                %v174 = vld [vmem:[%s150 + $0x148] sm:$0xff]
                %175 = vst [vmem:[%s151 + $0x58] sm:$0xff] %v174
                %v176 = vld [vmem:[%s150 + $0x180] sm:$0xff]
                %177 = vst [vmem:[%s151 + $0x60] sm:$0xff] %v176
                %v178 = vld [vmem:[%s150 + $0x188] sm:$0xff]
                %179 = vst [vmem:[%s151 + $0x68] sm:$0xff] %v178
                %v180 = vld [vmem:[%s150 + $0x1c0] sm:$0xff]
                %181 = vst [vmem:[%s151 + $0x70] sm:$0xff] %v180
                %v182 = vld [vmem:[%s150 + $0x1c8] sm:$0xff]
                %183 = vst [vmem:[%s151 + $0x78] sm:$0xff] %v182
                %v184 = vld [vmem:[%s150 + $0x200] sm:$0xff]
                %185 = vst [vmem:[%s151 + $0x80] sm:$0xff] %v184
                %v186 = vld [vmem:[%s150 + $0x208] sm:$0xff]
                %187 = vst [vmem:[%s151 + $0x88] sm:$0xff] %v186
                %v188 = vld [vmem:[%s150 + $0x240] sm:$0xff]
                %189 = vst [vmem:[%s151 + $0x90] sm:$0xff] %v188
                %v190 = vld [vmem:[%s150 + $0x248] sm:$0xff]
                %191 = vst [vmem:[%s151 + $0x98] sm:$0xff] %v190
                %v192 = vld [vmem:[%s150 + $0x280] sm:$0xff]
                %193 = vst [vmem:[%s151 + $0xa0] sm:$0xff] %v192
                %v194 = vld [vmem:[%s150 + $0x288] sm:$0xff]
                %195 = vst [vmem:[%s151 + $0xa8] sm:$0xff] %v194
                %v196 = vld [vmem:[%s150 + $0x2c0] sm:$0xff]
                %197 = vst [vmem:[%s151 + $0xb0] sm:$0xff] %v196
                %v198 = vld [vmem:[%s150 + $0x2c8] sm:$0xff]
                %199 = vst [vmem:[%s151 + $0xb8] sm:$0xff] %v198
                %v200 = vld [vmem:[%s150 + $0x300] sm:$0xff]
                %201 = vst [vmem:[%s151 + $0xc0] sm:$0xff] %v200
                %v202 = vld [vmem:[%s150 + $0x308] sm:$0xff]
                %203 = vst [vmem:[%s151 + $0xc8] sm:$0xff] %v202
                %v204 = vld [vmem:[%s150 + $0x340] sm:$0xff]
                %205 = vst [vmem:[%s151 + $0xd0] sm:$0xff] %v204
                %v206 = vld [vmem:[%s150 + $0x348] sm:$0xff]
                %207 = vst [vmem:[%s151 + $0xd8] sm:$0xff] %v206
                %v208 = vld [vmem:[%s150 + $0x380] sm:$0xff]
                %209 = vst [vmem:[%s151 + $0xe0] sm:$0xff] %v208
                %v210 = vld [vmem:[%s150 + $0x388] sm:$0xff]
                %211 = vst [vmem:[%s151 + $0xe8] sm:$0xff] %v210
                %v212 = vld [vmem:[%s150 + $0x3c0] sm:$0xff]
                %213 = vst [vmem:[%s151 + $0xf0] sm:$0xff] %v212
                %v214 = vld [vmem:[%s150 + $0x3c8] sm:$0xff]
                %215 = vst [vmem:[%s151 + $0xf8] sm:$0xff] %v214
              $region37: #{forward.37} parent=31 // loop_footer
                %s149 = sadd.s32 1, %s145
              $region38: #{forward.37} parent=31 // loop_footer_branch
                %144 = sbr.rel target = $region34
              $region39: #{forward.37} parent=31 // loop_exit
                _
            $region32: #{forward.37} parent=27 // pred_fallthru
              _
            // Predicated region
            $region40: #{forward.37} parent=27 // pred_check
              _
            $region41: #{forward.37} parent=27 // pred_check_branch
              %217 = sbr.rel target = $region43
            $region42: #{forward.37} parent=27 // pred_region
              _
            $region43: #{forward.37} parent=27 // pred_fallthru
              _
          $region28: #{forward.37} parent=23 // pred_fallthru
            _
          %218 = vnop
        $region24: #{forward.37} parent=19 // pred_fallthru
          _
        // Predicated region
        $region44: #{forward.37} parent=19 // pred_check
          %p219 = pneg %p76
        $region45: #{forward.37} parent=19 // pred_check_branch
          %221 = sbr.rel (%p219) target = $region47
        $region46: #{forward.37} parent=19 // pred_region
          %s222 = smul.u32 2, %s9
          %p223 = scmp.lt.s32.totalorder %s222, 7
          %s224 = scalar_select %p223, %s222, 7
          %s225 = scalar_lea.vmem %s2, %s224
          %s226 = smul.u32 2, %s9
        $region47: #{forward.37} parent=19 // pred_fallthru
          _
      $region20: #{forward.37} parent=5 // pred_fallthru
        _
      %p227 = scmp.le.s32.totalorder 1, %s9
      %p228 = scmp.lt.s32.totalorder %s9, 5
      %p229 = pnand %p227, %p228
      %p230 = pneg %p229
      // Predicated region
      $region48: #{forward.37} parent=5 // pred_check
        _
      $region49: #{forward.37} parent=5 // pred_check_branch
        %232 = sbr.rel (%p229) target = $region51
      $region50: #{forward.37} parent=5 // pred_region
        %s233 = ssub.s32 %s9, 1
        %s234 = sand.u32 %s43, 1
        %s235 = sand.u32 %s43, 1
        %s236 = smul.addr %s235, 256
        %s237 = scalar_lea.vmem [#allocation2], %s236
        // Predicated region
        $region52: #{forward.37} parent=50 // pred_check
          %p238 = pneg %p56
        $region53: #{forward.37} parent=50 // pred_check_branch
          %240 = sbr.rel (%p238) target = $region55
        $region54: #{forward.37} parent=50 // pred_region
          _
        $region55: #{forward.37} parent=50 // pred_fallthru
          _
        %p241 = pneg %p30
        %p242 = pneg %p27
        %s243 = sand.u32 %s43, 1
        %s244 = sand.u32 %s43, 1
        %s245 = smul.addr %s244, 256
        %s246 = scalar_lea.vmem [#allocation2], %s245
        %p247 = pneg %p56
        %p248 = pneg %p53
        %s249 = smul.u32 2, %s14
        %p250 = scmp.lt.s32.totalorder %s249, 7
        %s251 = scalar_select %p250, %s249, 7
        %s252 = scalar_lea.vmem %s2, %s251
        %p253 = pneg %p82
        %p254 = pneg %p79
        %p255 = pneg %p108
        %p256 = pneg %p105
        %s257 = smul.u32 2, %s14
        %p258 = scmp.lt.s32.totalorder %s257, 7
        %s259 = scalar_select %p258, %s257, 7
        %s260 = smul.addr %s259, 8
        %s261 = scalar_lea.vmem %s3, %s260
        %s262 = smul.u32 2, %s14
        %s263 = smul.u32 2, %s14
        %p264 = scmp.lt.s32.totalorder %s263, 7
        %s265 = scalar_select %p264, %s263, 7
        %s266 = scalar_lea.vmem %s2, %s265
        %s267 = smul.u32 2, %s14
        %s268 = smul.u32 2, %s14
        %p269 = scmp.lt.s32.totalorder %s268, 7
        %s270 = scalar_select %p269, %s268, 7
        %s271 = smul.addr %s270, 8
        %s272 = scalar_lea.vmem %s3, %s271
        %s273 = smul.u32 2, %s14
        %v274 = vld [vmem:[%s0] sm:$0xff]
        %v275 = vld [vmem:[%s237] sm:$0xff]
        %v276 = vld [vmem:[%s237 + $0x8] sm:$0xff]
        %v277 = vld [vmem:[%s237 + $0x10] sm:$0xff]
        %v278 = vld [vmem:[%s237 + $0x18] sm:$0xff]
        %v279 = vld [vmem:[%s237 + $0x20] sm:$0xff]
        %v280 = vld [vmem:[%s237 + $0x28] sm:$0xff]
        %v281 = vld [vmem:[%s237 + $0x30] sm:$0xff]
        %v282 = vld [vmem:[%s237 + $0x38] sm:$0xff]
        %v283 = vld [vmem:[%s237 + $0x40] sm:$0xff]
        %v284 = vld [vmem:[%s237 + $0x48] sm:$0xff]
        %v285 = vld [vmem:[%s237 + $0x50] sm:$0xff]
        %v286 = vld [vmem:[%s237 + $0x58] sm:$0xff]
        %v287 = vld [vmem:[%s237 + $0x60] sm:$0xff]
        %v288 = vld [vmem:[%s237 + $0x68] sm:$0xff]
        %v289 = vld [vmem:[%s237 + $0x70] sm:$0xff]
        %v290 = vld [vmem:[%s237 + $0x78] sm:$0xff]
        %v291 = vld [vmem:[%s237 + $0x80] sm:$0xff]
        %v292 = vld [vmem:[%s237 + $0x88] sm:$0xff]
        %v293 = vld [vmem:[%s237 + $0x90] sm:$0xff]
        %v294 = vld [vmem:[%s237 + $0x98] sm:$0xff]
        %v295 = vld [vmem:[%s237 + $0xa0] sm:$0xff]
        %v296 = vld [vmem:[%s237 + $0xa8] sm:$0xff]
        %v297 = vld [vmem:[%s237 + $0xb0] sm:$0xff]
        %v298 = vld [vmem:[%s237 + $0xb8] sm:$0xff]
        %v299 = vld [vmem:[%s237 + $0xc0] sm:$0xff]
        %v300 = vld [vmem:[%s237 + $0xc8] sm:$0xff]
        %v301 = vld [vmem:[%s237 + $0xd0] sm:$0xff]
        %v302 = vld [vmem:[%s237 + $0xd8] sm:$0xff]
        %v303 = vld [vmem:[%s237 + $0xe0] sm:$0xff]
        %v304 = vld [vmem:[%s237 + $0xe8] sm:$0xff]
        %v305 = vld [vmem:[%s237 + $0xf0] sm:$0xff]
        %v306 = vld [vmem:[%s237 + $0xf8] sm:$0xff]
        %v307 = vld [vmem:[%s266] sm:$0x3]
        %v309 = vlaneseq
        %v310 = vshrl.u32 %v309, 7
        %v311 = vsub.s32 0, %v310
        %v312 = vrot.slane %v307, %v311
        %v313 = vlaneseq
        %v314 = vshrl.u32 %v313, 7
        %v315 = vsub.s32 1, %v314
        %v316 = vrot.slane %v307, %v315
        %319 = vmatprep.subr.mxu0 %v276
        %320 = vmatpush1.msra.mxu0 %v275
        %321 = vmatprep.subr.mxu0 %v278
        %322 = vmatpush1.msra.mxu0 %v277
        %323 = vmatprep.subr.mxu0 %v280
        %324 = vmatpush1.msra.mxu0 %v279
        %325 = vmatprep.subr.mxu0 %v282
        %326 = vmatpush1.msra.mxu0 %v281
        %327 = vmatprep.subr.mxu0 %v284
        %328 = vmatpush1.msra.mxu0 %v283
        %329 = vmatprep.subr.mxu0 %v286
        %330 = vmatpush1.msra.mxu0 %v285
        %331 = vmatprep.subr.mxu0 %v288
        %332 = vmatpush1.msra.mxu0 %v287
        %333 = vmatprep.subr.mxu0 %v290
        %334 = vmatpush1.msra.mxu0 %v289
        %335 = vmatprep.subr.mxu0 %v292
        %336 = vmatpush1.msra.mxu0 %v291
        %337 = vmatprep.subr.mxu0 %v294
        %338 = vmatpush1.msra.mxu0 %v293
        %339 = vmatprep.subr.mxu0 %v296
        %340 = vmatpush1.msra.mxu0 %v295
        %341 = vmatprep.subr.mxu0 %v298
        %342 = vmatpush1.msra.mxu0 %v297
        %343 = vmatprep.subr.mxu0 %v300
        %344 = vmatpush1.msra.mxu0 %v299
        %345 = vmatprep.subr.mxu0 %v302
        %346 = vmatpush1.msra.mxu0 %v301
        %347 = vmatprep.subr.mxu0 %v304
        %348 = vmatpush1.msra.mxu0 %v303
        %349 = vmatprep.subr.mxu0 %v306
        %350 = vmatpush1.msra.mxu0 %v305
        %351 = vmatprep.subr.mxu0 0.0
        %352 = vmatpush1.msra.mxu0 0.0
        %353 = vmatprep.subr.mxu0 0.0
        %354 = vmatpush1.msra.mxu0 0.0
        %355 = vmatprep.subr.mxu0 0.0
        %356 = vmatpush1.msra.mxu0 0.0
        %357 = vmatprep.subr.mxu0 0.0
        %358 = vmatpush1.msra.mxu0 0.0
        %359 = vmatprep.subr.mxu0 0.0
        %360 = vmatpush1.msra.mxu0 0.0
        %361 = vmatprep.subr.mxu0 0.0
        %362 = vmatpush1.msra.mxu0 0.0
        %363 = vmatprep.subr.mxu0 0.0
        %364 = vmatpush1.msra.mxu0 0.0
        %365 = vmatprep.subr.mxu0 0.0
        %366 = vmatpush1.msra.mxu0 0.0
        %367 = vmatprep.subr.mxu0 0.0
        %368 = vmatpush1.msra.mxu0 0.0
        %369 = vmatprep.subr.mxu0 0.0
        %370 = vmatpush1.msra.mxu0 0.0
        %371 = vmatprep.subr.mxu0 0.0
        %372 = vmatpush1.msra.mxu0 0.0
        %373 = vmatprep.subr.mxu0 0.0
        %374 = vmatpush1.msra.mxu0 0.0
        %375 = vmatprep.subr.mxu0 0.0
        %376 = vmatpush1.msra.mxu0 0.0
        %377 = vmatprep.subr.mxu0 0.0
        %378 = vmatpush1.msra.mxu0 0.0
        %379 = vmatprep.subr.mxu0 0.0
        %380 = vmatpush1.msra.mxu0 0.0
        %381 = vmatprep.subr.mxu0 0.0
        %382 = vmatpush1.msra.mxu0 0.0
        %383 = vmatprep.mubr.f32.mxu0 0.0
        %384 = vmatmul.mubr.f32.gmra.mrb[0].mxu0 %v274
        %v385 = vpop.f32.mrb[0].mxu0
        %v386 = vadd.f32 %v312, %v385
        %v387 = vpop.f32.mrb[0].mxu0
        %v388 = vadd.f32 %v316, %v387
        %389 = vdwg.mxu0
        %390 = vst [vmem:[%s272] sm:$0xff] %v386
        %391 = vst [vmem:[%s272 + $0x8] sm:$0xff] %v388
        %s392 = smul.u32 2, %s14
        %p393 = scmp.lt.s32.totalorder %s392, 7
        %s394 = scalar_select %p393, %s392, 7
        %s395 = smul.addr %s394, 8
        %s396 = scalar_lea.vmem %s3, %s395
        // Predicated region
        $region56: #{forward.37} parent=50 // pred_check
          %p397 = pneg %p105
        $region57: #{forward.37} parent=50 // pred_check_branch
          %399 = sbr.rel (%p397) target = $region59
        $region58: #{forward.37} parent=50 // pred_region
          %s400 = smul.u32 2, %s14
        $region59: #{forward.37} parent=50 // pred_fallthru
          _
      $region51: #{forward.37} parent=5 // pred_fallthru
        _
      %p401 = scmp.le.s32.totalorder 2, %s9
      // Predicated region
      $region60: #{forward.37} parent=5 // pred_check
        %p402 = pneg %p401
      $region61: #{forward.37} parent=5 // pred_check_branch
        %404 = sbr.rel (%p402) target = $region63
      $region62: #{forward.37} parent=5 // pred_region
        %s405 = ssub.s32 %s9, 2
        // Predicated region
        $region64: #{forward.37} parent=62 // pred_check
          %p406 = pneg %p111
        $region65: #{forward.37} parent=62 // pred_check_branch
          %408 = sbr.rel (%p406) target = $region67
        $region66: #{forward.37} parent=62 // pred_region
          %s409 = smul.u32 2, %s15
          %p410 = scmp.lt.s32.totalorder %s409, 7
          %s411 = scalar_select %p410, %s409, 7
          %s412 = smul.addr %s411, 8
          %s413 = scalar_lea.vmem %s3, %s412
        $region67: #{forward.37} parent=62 // pred_fallthru
          _
      $region63: #{forward.37} parent=5 // pred_fallthru
        _
    $region6: #{forward.37} parent=1 // loop_footer
      %s13 = sadd.s32 1, %s9
    $region7: #{forward.37} parent=1 // loop_footer_branch
      %8 = sbr.rel target = $region3
    $region8: #{forward.37} parent=1 // loop_exit
      _

</llo_original>
